<compile_context>
chip_gen: v7x
topology: tpu7x:2x2x1
jax: 0.10.0
libtpu: 0.0.40
codegen_flags: <defaults>
</compile_context>

<pallas_src>
import numpy as np
import jax
import jax.numpy as jnp
from jax.experimental import pallas as pl
from jax.experimental.pallas import tpu as pltpu


# ----------------------------------------------------------------------------
# Pallas kernel
# ----------------------------------------------------------------------------
def _make_kernel(C, H, W, heads, HP, BT, use_mxu_dwconv):
    N = H * W
    NP = BT * N
    f32 = jnp.float32

    # static tap offsets (cross-correlation, "same" padding), row-major tap order
    def _offsets(k, dil):
        p = dil * (k - 1) // 2
        return [(ki * dil - p, kj * dil - p) for ki in range(k) for kj in range(k)]

    offs3 = _offsets(3, 1)   # 9 taps, dilation 1
    offs5 = _offsets(5, 4)   # 25 taps, dilation 4

    def kernel(x_ref, qkv_w, qkv_dw, head_mask, proj_w, pi_w, dw_w, po_w, big_w,
               colv, red, dwa, dwb, o_ref):
        # dwa/dwb are (mask3, mask5) on the roll path, (S3, S5) on the MXU path.

        def dwconv_roll(z, w_ref, m_ref, offs):
            # depthwise conv on (Cz, BT*N); masks kill both image-boundary taps and
            # any contamination rolled in across packed-image seams.
            out = None
            for t, (dy, dx) in enumerate(offs):
                s = dy * W + dx
                zz = z if s == 0 else pltpu.roll(z, (-s) % NP, axis=1)
                if not (dy == 0 and dx == 0):
                    zz = zz * m_ref[t:t + 1, :]
                term = w_ref[:, t:t + 1] * zz
                out = term if out is None else out + term
            return out

        def dwconv_mxu(z, w_ref, s_ref, n_taps):
            # per image: build A = [w_t * z]_t (Cz, T*N) and do ONE matmul against
            # the stacked shift+boundary matrix S (T*N, N).
            outs = []
            for bt in range(BT):
                zi = z[:, bt * N:(bt + 1) * N]
                a = jnp.concatenate(
                    [w_ref[:, t:t + 1] * zi for t in range(n_taps)], axis=1)
                outs.append(jnp.dot(a, s_ref[...], preferred_element_type=f32))
            return outs[0] if BT == 1 else jnp.concatenate(outs, axis=1)

        if use_mxu_dwconv:
            dwc3 = lambda z, w_ref: dwconv_mxu(z, w_ref, dwa, 9)
            dwc5 = lambda z, w_ref: dwconv_mxu(z, w_ref, dwb, 25)
        else:
            dwc3 = lambda z, w_ref: dwconv_roll(z, w_ref, dwa, offs3)
            dwc5 = lambda z, w_ref: dwconv_roll(z, w_ref, dwb, offs5)

        def layernorm(z):
            # channel mean / E[d^2] via a tiny (8,C) matmul on the MXU (row 0 = 1/C)
            # instead of a cross-sublane XLU reduce; affine folded into next 1x1.
            mu = jnp.dot(red[...], z, preferred_element_type=f32)[0:1, :]
            d = z - mu
            var = jnp.dot(red[...], d * d, preferred_element_type=f32)[0:1, :]
            return d * jax.lax.rsqrt(var + 1e-5)

        def gelu_exact(z):
            # exact (erf) GELU; erf via Abramowitz&Stegun 7.1.26 (|err| <= 1.5e-7).
            # reciprocal on the EUP (approx) + one Newton step -> ~f32 accurate.
            t = z * 0.7071067811865476
            at = jnp.abs(t)
            den = 1.0 + 0.3275911 * at
            u0 = pl.reciprocal(den, approx=True)
            u = u0 * (2.0 - den * u0)
            poly = u * (0.254829592 + u * (-0.284496736 + u * (1.421413741 +
                        u * (-1.453152027 + u * 1.061405429))))
            erf_abs = 1.0 - poly * jnp.exp(-at * at)
            erf = jnp.where(t >= 0, erf_abs, -erf_abs)
            return 0.5 * z * (1.0 + erf)

        # consolidated small column operands
        qkv_b = colv[0:3 * C, 0:1]        # (3C, 1)  = qkv_w @ ln1_b
        pi_b = colv[0:2 * HP, 1:2]        # (2HP, 1) = pi_w  @ ln2_b (padded)
        big_b = colv[0:C, 2:3]            # (C, 1)
        temp_rows = colv[0:C, 3:4]        # (C, 1) per-row (per-head) temperature
        hm = head_mask[...]               # (C, C) 0/1 block-diagonal head mask

        x = x_ref[0]                                              # (C, BT*N)

        # ---------------- attention branch (block-diagonal heads) -------------
        y = layernorm(x)
        qkv = jnp.dot(qkv_w[...], y, preferred_element_type=f32) + qkv_b  # (3C, BT*N)
        qkv = dwc3(qkv, qkv_dw)

        att_parts = []
        for bt in range(BT):              # attention math is per image
            lo, hi = bt * N, (bt + 1) * N
            q = qkv[0:C, lo:hi]
            k = qkv[C:2 * C, lo:hi]
            v = qkv[2 * C:3 * C, lo:hi]
            qn = q * jax.lax.rsqrt(
                jnp.maximum(jnp.sum(q * q, axis=1, keepdims=True), 1e-24))
            kn = k * jax.lax.rsqrt(
                jnp.maximum(jnp.sum(k * k, axis=1, keepdims=True), 1e-24))
            a = jax.lax.dot_general(qn, kn, (((1,), (1,)), ((), ())),
                                    preferred_element_type=f32)    # (C, C)
            a = a * temp_rows
            a = a - jnp.max(a, axis=1, keepdims=True)
            e = jnp.exp(a) * hm                                    # mask after exp
            p = e * pl.reciprocal(jnp.sum(e, axis=1, keepdims=True), approx=True)
            att_parts.append(jnp.dot(p, v, preferred_element_type=f32))
        att = att_parts[0] if BT == 1 else jnp.concatenate(att_parts, axis=1)
        x = x + jnp.dot(proj_w[...], att, preferred_element_type=f32)

        # ---------------- feed-forward branch (merged projections) ------------
        y = layernorm(x)
        hh = jnp.dot(pi_w[...], y, preferred_element_type=f32) + pi_b     # (2HP, BT*N)
        hh = dwc3(hh, dw_w)
        g = gelu_exact(hh[:HP, :]) * hh[HP:, :]
        x = x + jnp.dot(po_w[...], g, preferred_element_type=f32)

        # ---------------- big dilated depthwise conv (k=5, dilation=4) --------
        o_ref[0] = dwc5(x, big_w) + big_b

    return kernel


# ----------------------------------------------------------------------------
# wrapper helpers
# ----------------------------------------------------------------------------
def _build_masks(k, dil, H, W, reps):
    """(k*k, reps*H*W) float32 boundary masks, tiled once per packed image."""
    p = dil * (k - 1) // 2
    idx = np.arange(H * W)
    row, col = idx // W, idx % W
    masks = []
    for ki in range(k):
        for kj in range(k):
            dy, dx = ki * dil - p, kj * dil - p
            ok = (row + dy >= 0) & (row + dy < H) & (col + dx >= 0) & (col + dx < W)
            masks.append(ok.astype(np.float32))
    m = np.stack(masks)
    return jnp.asarray(np.tile(m, (1, reps)))


def _build_shift_matrices(k, dil, H, W):
    """(k*k*N, N) stacked per-tap shift+boundary matrices (MXU dwconv path)."""
    N = H * W
    p = dil * (k - 1) // 2
    idx = np.arange(N)
    row, col = idx // W, idx % W
    S = np.zeros((k * k * N, N), np.float32)
    t = 0
    for ki in range(k):
        for kj in range(k):
            dy, dx = ki * dil - p, kj * dil - p
            r2, c2 = row + dy, col + dx
            ok = (r2 >= 0) & (r2 < H) & (c2 >= 0) & (c2 < W)
            src = (r2 * W + c2)[ok]
            dst = idx[ok]
            S[t * N + src, dst] = 1.0
            t += 1
    return jnp.asarray(S)


def _default_use_mxu_dwconv():
    # shift-matrix dwconv only on 256-wide-MXU chips (v6e / v7x); roll path
    # everywhere else (v5e, older, or unrecognized devices).
    try:
        kind = jax.devices()[0].device_kind.lower()
    except Exception:
        return False
    if 'v5' in kind:
        return False
    return any(tag in kind for tag in ('v6', 'v7', '7x'))


# ----------------------------------------------------------------------------
# wrapper
# ----------------------------------------------------------------------------
def big_kernel_restormer_block(x, params, heads, use_mxu_dwconv=None):
    B, C, H, W = x.shape
    N = H * W
    dh = C // heads
    hidden = params['po_w'].shape[1]
    HP = ((hidden + 7) // 8) * 8          # pad hidden to a sublane multiple
    f32 = jnp.float32

    if use_mxu_dwconv is None:
        use_mxu_dwconv = _default_use_mxu_dwconv()

    # pack BT images per grid block along the lane axis; keep >= 2 parallel grid
    # blocks when possible so v7x can shard them across its 2 TensorCores.
    if B >= 2 and B % 2 == 0:
        n_blocks, BT = 2, B // 2
    else:
        n_blocks, BT = B, 1
    NP = BT * N

    x_flat = (x.astype(f32).reshape(n_blocks, BT, C, N)
              .transpose(0, 2, 1, 3).reshape(n_blocks, C, NP))

    # --- LayerNorm affine folded into the following 1x1 conv weights ----------
    ln1_w, ln1_b = params['ln1_w'].astype(f32), params['ln1_b'].astype(f32)
    ln2_w, ln2_b = params['ln2_w'].astype(f32), params['ln2_b'].astype(f32)

    qkv_w = params['qkv_w'].astype(f32)
    qkv_w_f = qkv_w * ln1_w[None, :]
    qkv_b = qkv_w @ ln1_b                                   # (3C,)

    pi = params['pi_w'].astype(f32)                         # (2*hidden, C)
    pi_f = pi * ln2_w[None, :]
    pi_b = pi @ ln2_b                                       # (2*hidden,)
    dw = params['dw_w'].reshape(2 * hidden, 9).astype(f32)

    pi_pad = (jnp.zeros((2 * HP, C), f32)
              .at[:hidden].set(pi_f[:hidden]).at[HP:HP + hidden].set(pi_f[hidden:]))
    dw_pad = (jnp.zeros((2 * HP, 9), f32)
              .at[:hidden].set(dw[:hidden]).at[HP:HP + hidden].set(dw[hidden:]))
    pib_pad = (jnp.zeros((2 * HP,), f32)
               .at[:hidden].set(pi_b[:hidden]).at[HP:HP + hidden].set(pi_b[hidden:]))
    po_pad = jnp.zeros((C, HP), f32).at[:, :hidden].set(params['po_w'].astype(f32))

    # multiplicative 0/1 block-diagonal head mask + per-row temperature
    hid = np.repeat(np.arange(heads), dh)
    head_mask = jnp.asarray((hid[:, None] == hid[None, :]).astype(np.float32))
    temp_rows = jnp.repeat(params['temp'].astype(f32).reshape(heads), dh)

    # small column operands consolidated into one block (fewer DMA descriptors)
    R = max(3 * C, 2 * HP)
    colv = (jnp.zeros((R, 4), f32)
            .at[:3 * C, 0].set(qkv_b)
            .at[:2 * HP, 1].set(pib_pad)
            .at[:C, 2].set(params['big_b'].astype(f32))
            .at[:C, 3].set(temp_rows))

    # LayerNorm channel-mean matrix (row 0 = 1/C) for the MXU reduction
    red = jnp.zeros((8, C), f32).at[0].set(1.0 / C)

    if use_mxu_dwconv:
        dwa = _build_shift_matrices(3, 1, H, W)      # (9*N, N)
        dwb = _build_shift_matrices(5, 4, H, W)      # (25*N, N)
    else:
        dwa = _build_masks(3, 1, H, W, BT)           # (9, BT*N)
        dwb = _build_masks(5, 4, H, W, BT)           # (25, BT*N)

    weights = [
        qkv_w_f,
        params['qkv_dw'].reshape(3 * C, 9).astype(f32),
        head_mask,
        params['proj_w'].astype(f32),
        pi_pad, dw_pad, po_pad,
        params['big_w'].reshape(C, 25).astype(f32),
        colv, red, dwa, dwb,
    ]

    in_specs = [pl.BlockSpec((1, C, NP), lambda b: (b, 0, 0))]
    for w in weights:
        in_specs.append(pl.BlockSpec(w.shape, lambda b, _nd=w.ndim: (0,) * _nd))

    cp_kwargs = dict(dimension_semantics=("parallel",))
    if use_mxu_dwconv:
        # shift matrices add ~17 MiB of double-buffered VMEM; give headroom
        cp_kwargs['vmem_limit_bytes'] = 40 * 1024 * 1024

    out = pl.pallas_call(
        _make_kernel(C, H, W, heads, HP, BT, use_mxu_dwconv),
        out_shape=jax.ShapeDtypeStruct((n_blocks, C, NP), f32),
        grid=(n_blocks,),
        in_specs=in_specs,
        out_specs=pl.BlockSpec((1, C, NP), lambda b: (b, 0, 0)),
        compiler_params=pltpu.CompilerParams(**cp_kwargs),
    )(x_flat, *weights)

    return (out.reshape(n_blocks, C, BT, N)
            .transpose(0, 2, 1, 3).reshape(B, C, H, W))


# ----------------------------------------------------------------------------
# pure-JAX reference (mirrors the PyTorch forward)
# ----------------------------------------------------------------------------
def reference_forward(x, p, heads, hidden):
    B, C, H, W = x.shape
    HI = jax.lax.Precision.HIGHEST

    def ln(z, w, b):
        mu = jnp.mean(z, axis=1, keepdims=True)
        var = jnp.mean((z - mu) ** 2, axis=1, keepdims=True)
        return (z - mu) / jnp.sqrt(var + 1e-5) * w.reshape(1, C, 1, 1) + b.reshape(1, C, 1, 1)

    def conv1x1(z, w):
        return jnp.einsum('oc,bchw->bohw', w, z, precision=HI)

    def dwc(z, w, k, dil):
        pad = dil * (k - 1) // 2
        return jax.lax.conv_general_dilated(
            z, w.reshape(z.shape[1], 1, k, k), (1, 1),
            [(pad, pad), (pad, pad)], rhs_dilation=(dil, dil),
            dimension_numbers=('NCHW', 'OIHW', 'NCHW'),
            feature_group_count=z.shape[1], precision=HI)

    # attention
    y = ln(x, p['ln1_w'], p['ln1_b'])
    qkv = dwc(conv1x1(y, p['qkv_w']), p['qkv_dw'], 3, 1)
    q, k, v = jnp.split(qkv, 3, axis=1)
    dh = C // heads
    q = q.reshape(B, heads, dh, H * W)
    k = k.reshape(B, heads, dh, H * W)
    v = v.reshape(B, heads, dh, H * W)
    q = q / jnp.maximum(jnp.sqrt(jnp.sum(q * q, -1, keepdims=True)), 1e-12)
    k = k / jnp.maximum(jnp.sqrt(jnp.sum(k * k, -1, keepdims=True)), 1e-12)
    attn = jnp.einsum('bhcn,bhdn->bhcd', q, k, precision=HI) * p['temp'].reshape(1, heads, 1, 1)
    attn = jax.nn.softmax(attn, axis=-1)
    out = jnp.einsum('bhcd,bhdn->bhcn', attn, v, precision=HI).reshape(B, C, H, W)
    x = x + conv1x1(out, p['proj_w'])

    # feed-forward
    y = ln(x, p['ln2_w'], p['ln2_b'])
    hid = dwc(conv1x1(y, p['pi_w']), p['dw_w'], 3, 1)
    x1, x2 = hid[:, :hidden], hid[:, hidden:]
    x = x + conv1x1(jax.nn.gelu(x1, approximate=False) * x2, p['po_w'])

    # big dilated depthwise conv
    return dwc(x, p['big_w'], 5, 4) + p['big_b'].reshape(1, C, 1, 1)


# ----------------------------------------------------------------------------
# deterministic parameter init (shapes from the module's __init__)
# ----------------------------------------------------------------------------
def init_params(key, C, heads, hidden):
    ks = jax.random.split(key, 8)
    s = 0.1
    return {
        'ln1_w': jnp.ones((C,), jnp.float32),
        'ln1_b': jnp.zeros((C,), jnp.float32),
        'ln2_w': jnp.ones((C,), jnp.float32),
        'ln2_b': jnp.zeros((C,), jnp.float32),
        'temp': jnp.ones((heads,), jnp.float32),
        'qkv_w': jax.random.normal(ks[0], (3 * C, C), jnp.float32) * s,
        'qkv_dw': jax.random.normal(ks[1], (3 * C, 3, 3), jnp.float32) * s,
        'proj_w': jax.random.normal(ks[2], (C, C), jnp.float32) * s,
        'pi_w': jax.random.normal(ks[3], (2 * hidden, C), jnp.float32) * s,
        'dw_w': jax.random.normal(ks[4], (2 * hidden, 3, 3), jnp.float32) * s,
        'po_w': jax.random.normal(ks[5], (C, hidden), jnp.float32) * s,
        'big_w': jax.random.normal(ks[6], (C, 5, 5), jnp.float32) * s,
        'big_b': jax.random.normal(ks[7], (C,), jnp.float32) * s,
    }


if __name__ == "__main__":
    B, C, H, W = 2, 32, 16, 16          # dim=32 (module default), small spatial
    heads = 4
    hidden = int(C * 1.2)               # = 38, as in FeedForward

    key = jax.random.PRNGKey(0)
    kx, kp = jax.random.split(key)
    params = init_params(kp, C, heads, hidden)
    x = jax.random.normal(kx, (B, C, H, W), jnp.float32)

    out = big_kernel_restormer_block(x, params, heads)
    out = jax.block_until_ready(out)

    ref = reference_forward(x, params, heads, hidden)
    max_diff = float(jnp.max(jnp.abs(out - ref)))
    assert out.shape == (B, C, H, W)
    assert max_diff < 5e-3, f"mismatch vs reference: max |diff| = {max_diff}"
    print("KERNEL_OK")
</pallas_src>

<mosaic_0001>
module attributes {stable_mosaic.version = 11 : i64} {
  func.func @kernel(%arg0: i32, %arg1: memref<1x32x256xf32, #tpu.memory_space<vmem>>, %arg2: memref<96x32xf32, #tpu.memory_space<vmem>>, %arg3: memref<96x9xf32, #tpu.memory_space<vmem>>, %arg4: memref<32x32xf32, #tpu.memory_space<vmem>>, %arg5: memref<32x32xf32, #tpu.memory_space<vmem>>, %arg6: memref<80x32xf32, #tpu.memory_space<vmem>>, %arg7: memref<80x9xf32, #tpu.memory_space<vmem>>, %arg8: memref<32x40xf32, #tpu.memory_space<vmem>>, %arg9: memref<32x25xf32, #tpu.memory_space<vmem>>, %arg10: memref<96x4xf32, #tpu.memory_space<vmem>>, %arg11: memref<8x32xf32, #tpu.memory_space<vmem>>, %arg12: memref<9x256xf32, #tpu.memory_space<vmem>>, %arg13: memref<25x256xf32, #tpu.memory_space<vmem>>, %arg14: memref<1x32x256xf32, #tpu.memory_space<vmem>>) attributes {dimension_semantics = [#tpu.dimension_semantics<parallel>], iteration_bounds = array<i64: 2>, scalar_prefetch = 0 : i64, scratch_operands = 0 : i64, tpu.core_type = #tpu.core_type<tc>, window_params = [{transform_indices = @transform_0, window_bounds = array<i64: 1, 32, 256>}, {pipeline_mode = #tpu.pipeline_mode<synchronous>, transform_indices = @transform_1, window_bounds = array<i64: 96, 32>}, {pipeline_mode = #tpu.pipeline_mode<synchronous>, transform_indices = @transform_2, window_bounds = array<i64: 96, 9>}, {pipeline_mode = #tpu.pipeline_mode<synchronous>, transform_indices = @transform_3, window_bounds = array<i64: 32, 32>}, {pipeline_mode = #tpu.pipeline_mode<synchronous>, transform_indices = @transform_4, window_bounds = array<i64: 32, 32>}, {pipeline_mode = #tpu.pipeline_mode<synchronous>, transform_indices = @transform_5, window_bounds = array<i64: 80, 32>}, {pipeline_mode = #tpu.pipeline_mode<synchronous>, transform_indices = @transform_6, window_bounds = array<i64: 80, 9>}, {pipeline_mode = #tpu.pipeline_mode<synchronous>, transform_indices = @transform_7, window_bounds = array<i64: 32, 40>}, {pipeline_mode = #tpu.pipeline_mode<synchronous>, transform_indices = @transform_8, window_bounds = array<i64: 32, 25>}, {pipeline_mode = #tpu.pipeline_mode<synchronous>, transform_indices = @transform_9, window_bounds = array<i64: 96, 4>}, {pipeline_mode = #tpu.pipeline_mode<synchronous>, transform_indices = @transform_10, window_bounds = array<i64: 8, 32>}, {pipeline_mode = #tpu.pipeline_mode<synchronous>, transform_indices = @transform_11, window_bounds = array<i64: 9, 256>}, {pipeline_mode = #tpu.pipeline_mode<synchronous>, transform_indices = @transform_12, window_bounds = array<i64: 25, 256>}, {transform_indices = @transform_13, window_bounds = array<i64: 1, 32, 256>}]} {
    %c0 = arith.constant 0 : index
    %c0_0 = arith.constant 0 : index
    %0 = vector.load %arg10[%c0, %c0_0] : memref<96x4xf32, #tpu.memory_space<vmem>>, vector<96x1xf32>
    %c0_1 = arith.constant 0 : index
    %c1 = arith.constant 1 : index
    %1 = vector.load %arg10[%c0_1, %c1] : memref<96x4xf32, #tpu.memory_space<vmem>>, vector<80x1xf32>
    %c0_2 = arith.constant 0 : index
    %c2 = arith.constant 2 : index
    %2 = vector.load %arg10[%c0_2, %c2] : memref<96x4xf32, #tpu.memory_space<vmem>>, vector<32x1xf32>
    %c0_3 = arith.constant 0 : index
    %c3 = arith.constant 3 : index
    %3 = vector.load %arg10[%c0_3, %c3] : memref<96x4xf32, #tpu.memory_space<vmem>>, vector<32x1xf32>
    %c0_4 = arith.constant 0 : index
    %c0_5 = arith.constant 0 : index
    %4 = vector.load %arg4[%c0_4, %c0_5] : memref<32x32xf32, #tpu.memory_space<vmem>>, vector<32x32xf32>
    %c0_6 = arith.constant 0 : index
    %c0_7 = arith.constant 0 : index
    %c0_8 = arith.constant 0 : index
    %5 = vector.load %arg1[%c0_6, %c0_7, %c0_8] : memref<1x32x256xf32, #tpu.memory_space<vmem>>, vector<1x32x256xf32>
    %6 = vector.shape_cast %5 : vector<1x32x256xf32> to vector<32x256xf32>
    %c0_9 = arith.constant 0 : index
    %c0_10 = arith.constant 0 : index
    %7 = vector.load %arg11[%c0_9, %c0_10] : memref<8x32xf32, #tpu.memory_space<vmem>>, vector<8x32xf32>
    %cst = arith.constant dense<0.000000e+00> : vector<8x256xf32>
    %8 = tpu.matmul %7, %6, %cst {dimension_numbers = #tpu.dot_dimension_numbers<[1], [0], [0], [1], [0, 0, 1, 1], [], []>} : vector<8x32xf32>, vector<32x256xf32>, vector<8x256xf32> -> vector<8x256xf32>
    %9 = vector.extract_strided_slice %8 {offsets = [0, 0], sizes = [1, 256], strides = [1, 1]} : vector<8x256xf32> to vector<1x256xf32>
    %10 = vector.broadcast %9 : vector<1x256xf32> to vector<32x256xf32>
    %11 = arith.subf %6, %10 : vector<32x256xf32>
    %c0_11 = arith.constant 0 : index
    %c0_12 = arith.constant 0 : index
    %12 = vector.load %arg11[%c0_11, %c0_12] : memref<8x32xf32, #tpu.memory_space<vmem>>, vector<8x32xf32>
    %13 = arith.mulf %11, %11 : vector<32x256xf32>
    %cst_13 = arith.constant dense<0.000000e+00> : vector<8x256xf32>
    %14 = tpu.matmul %12, %13, %cst_13 {dimension_numbers = #tpu.dot_dimension_numbers<[1], [0], [0], [1], [0, 0, 1, 1], [], []>} : vector<8x32xf32>, vector<32x256xf32>, vector<8x256xf32> -> vector<8x256xf32>
    %15 = vector.extract_strided_slice %14 {offsets = [0, 0], sizes = [1, 256], strides = [1, 1]} : vector<8x256xf32> to vector<1x256xf32>
    %cst_14 = arith.constant 9.99999974E-6 : f32
    %16 = vector.broadcast %cst_14 : f32 to vector<1x256xf32>
    %17 = arith.addf %15, %16 : vector<1x256xf32>
    %18 = math.rsqrt %17 : vector<1x256xf32>
    %19 = vector.broadcast %18 : vector<1x256xf32> to vector<32x256xf32>
    %20 = arith.mulf %11, %19 : vector<32x256xf32>
    %c0_15 = arith.constant 0 : index
    %c0_16 = arith.constant 0 : index
    %21 = vector.load %arg2[%c0_15, %c0_16] : memref<96x32xf32, #tpu.memory_space<vmem>>, vector<96x32xf32>
    %cst_17 = arith.constant dense<0.000000e+00> : vector<96x256xf32>
    %22 = tpu.matmul %21, %20, %cst_17 {dimension_numbers = #tpu.dot_dimension_numbers<[1], [0], [0], [1], [0, 0, 1, 1], [], []>} : vector<96x32xf32>, vector<32x256xf32>, vector<96x256xf32> -> vector<96x256xf32>
    %23 = vector.broadcast %0 : vector<96x1xf32> to vector<96x256xf32>
    %24 = arith.addf %22, %23 : vector<96x256xf32>
    %c17_i32 = arith.constant 17 : i32
    %25 = tpu.dynamic_rotate %24 by %c17_i32 dim 1 : vector<96x256xf32>, i32 -> vector<96x256xf32>
    %c0_18 = arith.constant 0 : index
    %c0_19 = arith.constant 0 : index
    %26 = vector.load %arg12[%c0_18, %c0_19] : memref<9x256xf32, #tpu.memory_space<vmem>>, vector<1x256xf32>
    %27 = vector.broadcast %26 : vector<1x256xf32> to vector<96x256xf32>
    %28 = arith.mulf %25, %27 : vector<96x256xf32>
    %c0_20 = arith.constant 0 : index
    %c0_21 = arith.constant 0 : index
    %29 = vector.load %arg3[%c0_20, %c0_21] : memref<96x9xf32, #tpu.memory_space<vmem>>, vector<96x1xf32>
    %30 = vector.broadcast %29 : vector<96x1xf32> to vector<96x256xf32>
    %31 = arith.mulf %30, %28 : vector<96x256xf32>
    %c16_i32 = arith.constant 16 : i32
    %32 = tpu.dynamic_rotate %24 by %c16_i32 dim 1 : vector<96x256xf32>, i32 -> vector<96x256xf32>
    %c1_22 = arith.constant 1 : index
    %c0_23 = arith.constant 0 : index
    %33 = vector.load %arg12[%c1_22, %c0_23] : memref<9x256xf32, #tpu.memory_space<vmem>>, vector<1x256xf32>
    %34 = vector.broadcast %33 : vector<1x256xf32> to vector<96x256xf32>
    %35 = arith.mulf %32, %34 : vector<96x256xf32>
    %c0_24 = arith.constant 0 : index
    %c1_25 = arith.constant 1 : index
    %36 = vector.load %arg3[%c0_24, %c1_25] : memref<96x9xf32, #tpu.memory_space<vmem>>, vector<96x1xf32>
    %37 = vector.broadcast %36 : vector<96x1xf32> to vector<96x256xf32>
    %38 = arith.mulf %37, %35 : vector<96x256xf32>
    %39 = arith.addf %31, %38 : vector<96x256xf32>
    %c15_i32 = arith.constant 15 : i32
    %40 = tpu.dynamic_rotate %24 by %c15_i32 dim 1 : vector<96x256xf32>, i32 -> vector<96x256xf32>
    %c2_26 = arith.constant 2 : index
    %c0_27 = arith.constant 0 : index
    %41 = vector.load %arg12[%c2_26, %c0_27] : memref<9x256xf32, #tpu.memory_space<vmem>>, vector<1x256xf32>
    %42 = vector.broadcast %41 : vector<1x256xf32> to vector<96x256xf32>
    %43 = arith.mulf %40, %42 : vector<96x256xf32>
    %c0_28 = arith.constant 0 : index
    %c2_29 = arith.constant 2 : index
    %44 = vector.load %arg3[%c0_28, %c2_29] : memref<96x9xf32, #tpu.memory_space<vmem>>, vector<96x1xf32>
    %45 = vector.broadcast %44 : vector<96x1xf32> to vector<96x256xf32>
    %46 = arith.mulf %45, %43 : vector<96x256xf32>
    %47 = arith.addf %39, %46 : vector<96x256xf32>
    %c1_i32 = arith.constant 1 : i32
    %48 = tpu.dynamic_rotate %24 by %c1_i32 dim 1 : vector<96x256xf32>, i32 -> vector<96x256xf32>
    %c3_30 = arith.constant 3 : index
    %c0_31 = arith.constant 0 : index
    %49 = vector.load %arg12[%c3_30, %c0_31] : memref<9x256xf32, #tpu.memory_space<vmem>>, vector<1x256xf32>
    %50 = vector.broadcast %49 : vector<1x256xf32> to vector<96x256xf32>
    %51 = arith.mulf %48, %50 : vector<96x256xf32>
    %c0_32 = arith.constant 0 : index
    %c3_33 = arith.constant 3 : index
    %52 = vector.load %arg3[%c0_32, %c3_33] : memref<96x9xf32, #tpu.memory_space<vmem>>, vector<96x1xf32>
    %53 = vector.broadcast %52 : vector<96x1xf32> to vector<96x256xf32>
    %54 = arith.mulf %53, %51 : vector<96x256xf32>
    %55 = arith.addf %47, %54 : vector<96x256xf32>
    %c0_34 = arith.constant 0 : index
    %c4 = arith.constant 4 : index
    %56 = vector.load %arg3[%c0_34, %c4] : memref<96x9xf32, #tpu.memory_space<vmem>>, vector<96x1xf32>
    %57 = vector.broadcast %56 : vector<96x1xf32> to vector<96x256xf32>
    %58 = arith.mulf %57, %24 : vector<96x256xf32>
    %59 = arith.addf %55, %58 : vector<96x256xf32>
    %c255_i32 = arith.constant 255 : i32
    %60 = tpu.dynamic_rotate %24 by %c255_i32 dim 1 : vector<96x256xf32>, i32 -> vector<96x256xf32>
    %c5 = arith.constant 5 : index
    %c0_35 = arith.constant 0 : index
    %61 = vector.load %arg12[%c5, %c0_35] : memref<9x256xf32, #tpu.memory_space<vmem>>, vector<1x256xf32>
    %62 = vector.broadcast %61 : vector<1x256xf32> to vector<96x256xf32>
    %63 = arith.mulf %60, %62 : vector<96x256xf32>
    %c0_36 = arith.constant 0 : index
    %c5_37 = arith.constant 5 : index
    %64 = vector.load %arg3[%c0_36, %c5_37] : memref<96x9xf32, #tpu.memory_space<vmem>>, vector<96x1xf32>
    %65 = vector.broadcast %64 : vector<96x1xf32> to vector<96x256xf32>
    %66 = arith.mulf %65, %63 : vector<96x256xf32>
    %67 = arith.addf %59, %66 : vector<96x256xf32>
    %c241_i32 = arith.constant 241 : i32
    %68 = tpu.dynamic_rotate %24 by %c241_i32 dim 1 : vector<96x256xf32>, i32 -> vector<96x256xf32>
    %c6 = arith.constant 6 : index
    %c0_38 = arith.constant 0 : index
    %69 = vector.load %arg12[%c6, %c0_38] : memref<9x256xf32, #tpu.memory_space<vmem>>, vector<1x256xf32>
    %70 = vector.broadcast %69 : vector<1x256xf32> to vector<96x256xf32>
    %71 = arith.mulf %68, %70 : vector<96x256xf32>
    %c0_39 = arith.constant 0 : index
    %c6_40 = arith.constant 6 : index
    %72 = vector.load %arg3[%c0_39, %c6_40] : memref<96x9xf32, #tpu.memory_space<vmem>>, vector<96x1xf32>
    %73 = vector.broadcast %72 : vector<96x1xf32> to vector<96x256xf32>
    %74 = arith.mulf %73, %71 : vector<96x256xf32>
    %75 = arith.addf %67, %74 : vector<96x256xf32>
    %c240_i32 = arith.constant 240 : i32
    %76 = tpu.dynamic_rotate %24 by %c240_i32 dim 1 : vector<96x256xf32>, i32 -> vector<96x256xf32>
    %c7 = arith.constant 7 : index
    %c0_41 = arith.constant 0 : index
    %77 = vector.load %arg12[%c7, %c0_41] : memref<9x256xf32, #tpu.memory_space<vmem>>, vector<1x256xf32>
    %78 = vector.broadcast %77 : vector<1x256xf32> to vector<96x256xf32>
    %79 = arith.mulf %76, %78 : vector<96x256xf32>
    %c0_42 = arith.constant 0 : index
    %c7_43 = arith.constant 7 : index
    %80 = vector.load %arg3[%c0_42, %c7_43] : memref<96x9xf32, #tpu.memory_space<vmem>>, vector<96x1xf32>
    %81 = vector.broadcast %80 : vector<96x1xf32> to vector<96x256xf32>
    %82 = arith.mulf %81, %79 : vector<96x256xf32>
    %83 = arith.addf %75, %82 : vector<96x256xf32>
    %c239_i32 = arith.constant 239 : i32
    %84 = tpu.dynamic_rotate %24 by %c239_i32 dim 1 : vector<96x256xf32>, i32 -> vector<96x256xf32>
    %c8 = arith.constant 8 : index
    %c0_44 = arith.constant 0 : index
    %85 = vector.load %arg12[%c8, %c0_44] : memref<9x256xf32, #tpu.memory_space<vmem>>, vector<1x256xf32>
    %86 = vector.broadcast %85 : vector<1x256xf32> to vector<96x256xf32>
    %87 = arith.mulf %84, %86 : vector<96x256xf32>
    %c0_45 = arith.constant 0 : index
    %c8_46 = arith.constant 8 : index
    %88 = vector.load %arg3[%c0_45, %c8_46] : memref<96x9xf32, #tpu.memory_space<vmem>>, vector<96x1xf32>
    %89 = vector.broadcast %88 : vector<96x1xf32> to vector<96x256xf32>
    %90 = arith.mulf %89, %87 : vector<96x256xf32>
    %91 = arith.addf %83, %90 : vector<96x256xf32>
    %92 = vector.extract_strided_slice %91 {offsets = [0, 0], sizes = [32, 256], strides = [1, 1]} : vector<96x256xf32> to vector<32x256xf32>
    %93 = vector.extract_strided_slice %91 {offsets = [32, 0], sizes = [32, 256], strides = [1, 1]} : vector<96x256xf32> to vector<32x256xf32>
    %94 = vector.extract_strided_slice %91 {offsets = [64, 0], sizes = [32, 256], strides = [1, 1]} : vector<96x256xf32> to vector<32x256xf32>
    %95 = arith.mulf %92, %92 : vector<32x256xf32>
    %cst_47 = arith.constant dense<0.000000e+00> : vector<32xf32>
    %96 = vector.multi_reduction <add>, %95, %cst_47 [1] : vector<32x256xf32> to vector<32xf32>
    %97 = vector.shape_cast %96 : vector<32xf32> to vector<32x1xf32>
    %cst_48 = arith.constant 1.000000e-24 : f32
    %98 = vector.broadcast %cst_48 : f32 to vector<32x1xf32>
    %99 = arith.maximumf %97, %98 : vector<32x1xf32>
    %100 = math.rsqrt %99 : vector<32x1xf32>
    %101 = vector.broadcast %100 : vector<32x1xf32> to vector<32x256xf32>
    %102 = arith.mulf %92, %101 : vector<32x256xf32>
    %103 = arith.mulf %93, %93 : vector<32x256xf32>
    %cst_49 = arith.constant dense<0.000000e+00> : vector<32xf32>
    %104 = vector.multi_reduction <add>, %103, %cst_49 [1] : vector<32x256xf32> to vector<32xf32>
    %105 = vector.shape_cast %104 : vector<32xf32> to vector<32x1xf32>
    %cst_50 = arith.constant 1.000000e-24 : f32
    %106 = vector.broadcast %cst_50 : f32 to vector<32x1xf32>
    %107 = arith.maximumf %105, %106 : vector<32x1xf32>
    %108 = math.rsqrt %107 : vector<32x1xf32>
    %109 = vector.broadcast %108 : vector<32x1xf32> to vector<32x256xf32>
    %110 = arith.mulf %93, %109 : vector<32x256xf32>
    %cst_51 = arith.constant dense<0.000000e+00> : vector<32x32xf32>
    %111 = tpu.matmul %102, %110, %cst_51 {dimension_numbers = #tpu.dot_dimension_numbers<[1], [1], [0], [0], [0, 0, 1, 0], [], []>} : vector<32x256xf32>, vector<32x256xf32>, vector<32x32xf32> -> vector<32x32xf32>
    %112 = vector.broadcast %3 : vector<32x1xf32> to vector<32x32xf32>
    %113 = arith.mulf %111, %112 : vector<32x32xf32>
    %cst_52 = arith.constant dense<0xFF800000> : vector<32xf32>
    %114 = vector.multi_reduction <maximumf>, %113, %cst_52 [1] : vector<32x32xf32> to vector<32xf32>
    %115 = vector.shape_cast %114 : vector<32xf32> to vector<32x1xf32>
    %116 = vector.broadcast %115 : vector<32x1xf32> to vector<32x32xf32>
    %117 = arith.subf %113, %116 : vector<32x32xf32>
    %118 = math.exp %117 : vector<32x32xf32>
    %119 = arith.mulf %118, %4 : vector<32x32xf32>
    %cst_53 = arith.constant dense<0.000000e+00> : vector<32xf32>
    %120 = vector.multi_reduction <add>, %119, %cst_53 [1] : vector<32x32xf32> to vector<32xf32>
    %121 = vector.shape_cast %120 : vector<32xf32> to vector<32x1xf32>
    %122 = tpu.reciprocal %121 {approx = true} : vector<32x1xf32> -> vector<32x1xf32>
    %123 = vector.broadcast %122 : vector<32x1xf32> to vector<32x32xf32>
    %124 = arith.mulf %119, %123 : vector<32x32xf32>
    %cst_54 = arith.constant dense<0.000000e+00> : vector<32x256xf32>
    %125 = tpu.matmul %124, %94, %cst_54 {dimension_numbers = #tpu.dot_dimension_numbers<[1], [0], [0], [1], [0, 0, 1, 1], [], []>} : vector<32x32xf32>, vector<32x256xf32>, vector<32x256xf32> -> vector<32x256xf32>
    %c0_55 = arith.constant 0 : index
    %c0_56 = arith.constant 0 : index
    %126 = vector.load %arg5[%c0_55, %c0_56] : memref<32x32xf32, #tpu.memory_space<vmem>>, vector<32x32xf32>
    %cst_57 = arith.constant dense<0.000000e+00> : vector<32x256xf32>
    %127 = tpu.matmul %126, %125, %cst_57 {dimension_numbers = #tpu.dot_dimension_numbers<[1], [0], [0], [1], [0, 0, 1, 1], [], []>} : vector<32x32xf32>, vector<32x256xf32>, vector<32x256xf32> -> vector<32x256xf32>
    %128 = arith.addf %6, %127 : vector<32x256xf32>
    %c0_58 = arith.constant 0 : index
    %c0_59 = arith.constant 0 : index
    %129 = vector.load %arg11[%c0_58, %c0_59] : memref<8x32xf32, #tpu.memory_space<vmem>>, vector<8x32xf32>
    %cst_60 = arith.constant dense<0.000000e+00> : vector<8x256xf32>
    %130 = tpu.matmul %129, %128, %cst_60 {dimension_numbers = #tpu.dot_dimension_numbers<[1], [0], [0], [1], [0, 0, 1, 1], [], []>} : vector<8x32xf32>, vector<32x256xf32>, vector<8x256xf32> -> vector<8x256xf32>
    %131 = vector.extract_strided_slice %130 {offsets = [0, 0], sizes = [1, 256], strides = [1, 1]} : vector<8x256xf32> to vector<1x256xf32>
    %132 = vector.broadcast %131 : vector<1x256xf32> to vector<32x256xf32>
    %133 = arith.subf %128, %132 : vector<32x256xf32>
    %c0_61 = arith.constant 0 : index
    %c0_62 = arith.constant 0 : index
    %134 = vector.load %arg11[%c0_61, %c0_62] : memref<8x32xf32, #tpu.memory_space<vmem>>, vector<8x32xf32>
    %135 = arith.mulf %133, %133 : vector<32x256xf32>
    %cst_63 = arith.constant dense<0.000000e+00> : vector<8x256xf32>
    %136 = tpu.matmul %134, %135, %cst_63 {dimension_numbers = #tpu.dot_dimension_numbers<[1], [0], [0], [1], [0, 0, 1, 1], [], []>} : vector<8x32xf32>, vector<32x256xf32>, vector<8x256xf32> -> vector<8x256xf32>
    %137 = vector.extract_strided_slice %136 {offsets = [0, 0], sizes = [1, 256], strides = [1, 1]} : vector<8x256xf32> to vector<1x256xf32>
    %cst_64 = arith.constant 9.99999974E-6 : f32
    %138 = vector.broadcast %cst_64 : f32 to vector<1x256xf32>
    %139 = arith.addf %137, %138 : vector<1x256xf32>
    %140 = math.rsqrt %139 : vector<1x256xf32>
    %141 = vector.broadcast %140 : vector<1x256xf32> to vector<32x256xf32>
    %142 = arith.mulf %133, %141 : vector<32x256xf32>
    %c0_65 = arith.constant 0 : index
    %c0_66 = arith.constant 0 : index
    %143 = vector.load %arg6[%c0_65, %c0_66] : memref<80x32xf32, #tpu.memory_space<vmem>>, vector<80x32xf32>
    %cst_67 = arith.constant dense<0.000000e+00> : vector<80x256xf32>
    %144 = tpu.matmul %143, %142, %cst_67 {dimension_numbers = #tpu.dot_dimension_numbers<[1], [0], [0], [1], [0, 0, 1, 1], [], []>} : vector<80x32xf32>, vector<32x256xf32>, vector<80x256xf32> -> vector<80x256xf32>
    %145 = vector.broadcast %1 : vector<80x1xf32> to vector<80x256xf32>
    %146 = arith.addf %144, %145 : vector<80x256xf32>
    %c17_i32_68 = arith.constant 17 : i32
    %147 = tpu.dynamic_rotate %146 by %c17_i32_68 dim 1 : vector<80x256xf32>, i32 -> vector<80x256xf32>
    %c0_69 = arith.constant 0 : index
    %c0_70 = arith.constant 0 : index
    %148 = vector.load %arg12[%c0_69, %c0_70] : memref<9x256xf32, #tpu.memory_space<vmem>>, vector<1x256xf32>
    %149 = vector.broadcast %148 : vector<1x256xf32> to vector<80x256xf32>
    %150 = arith.mulf %147, %149 : vector<80x256xf32>
    %c0_71 = arith.constant 0 : index
    %c0_72 = arith.constant 0 : index
    %151 = vector.load %arg7[%c0_71, %c0_72] : memref<80x9xf32, #tpu.memory_space<vmem>>, vector<80x1xf32>
    %152 = vector.broadcast %151 : vector<80x1xf32> to vector<80x256xf32>
    %153 = arith.mulf %152, %150 : vector<80x256xf32>
    %c16_i32_73 = arith.constant 16 : i32
    %154 = tpu.dynamic_rotate %146 by %c16_i32_73 dim 1 : vector<80x256xf32>, i32 -> vector<80x256xf32>
    %c1_74 = arith.constant 1 : index
    %c0_75 = arith.constant 0 : index
    %155 = vector.load %arg12[%c1_74, %c0_75] : memref<9x256xf32, #tpu.memory_space<vmem>>, vector<1x256xf32>
    %156 = vector.broadcast %155 : vector<1x256xf32> to vector<80x256xf32>
    %157 = arith.mulf %154, %156 : vector<80x256xf32>
    %c0_76 = arith.constant 0 : index
    %c1_77 = arith.constant 1 : index
    %158 = vector.load %arg7[%c0_76, %c1_77] : memref<80x9xf32, #tpu.memory_space<vmem>>, vector<80x1xf32>
    %159 = vector.broadcast %158 : vector<80x1xf32> to vector<80x256xf32>
    %160 = arith.mulf %159, %157 : vector<80x256xf32>
    %161 = arith.addf %153, %160 : vector<80x256xf32>
    %c15_i32_78 = arith.constant 15 : i32
    %162 = tpu.dynamic_rotate %146 by %c15_i32_78 dim 1 : vector<80x256xf32>, i32 -> vector<80x256xf32>
    %c2_79 = arith.constant 2 : index
    %c0_80 = arith.constant 0 : index
    %163 = vector.load %arg12[%c2_79, %c0_80] : memref<9x256xf32, #tpu.memory_space<vmem>>, vector<1x256xf32>
    %164 = vector.broadcast %163 : vector<1x256xf32> to vector<80x256xf32>
    %165 = arith.mulf %162, %164 : vector<80x256xf32>
    %c0_81 = arith.constant 0 : index
    %c2_82 = arith.constant 2 : index
    %166 = vector.load %arg7[%c0_81, %c2_82] : memref<80x9xf32, #tpu.memory_space<vmem>>, vector<80x1xf32>
    %167 = vector.broadcast %166 : vector<80x1xf32> to vector<80x256xf32>
    %168 = arith.mulf %167, %165 : vector<80x256xf32>
    %169 = arith.addf %161, %168 : vector<80x256xf32>
    %c1_i32_83 = arith.constant 1 : i32
    %170 = tpu.dynamic_rotate %146 by %c1_i32_83 dim 1 : vector<80x256xf32>, i32 -> vector<80x256xf32>
    %c3_84 = arith.constant 3 : index
    %c0_85 = arith.constant 0 : index
    %171 = vector.load %arg12[%c3_84, %c0_85] : memref<9x256xf32, #tpu.memory_space<vmem>>, vector<1x256xf32>
    %172 = vector.broadcast %171 : vector<1x256xf32> to vector<80x256xf32>
    %173 = arith.mulf %170, %172 : vector<80x256xf32>
    %c0_86 = arith.constant 0 : index
    %c3_87 = arith.constant 3 : index
    %174 = vector.load %arg7[%c0_86, %c3_87] : memref<80x9xf32, #tpu.memory_space<vmem>>, vector<80x1xf32>
    %175 = vector.broadcast %174 : vector<80x1xf32> to vector<80x256xf32>
    %176 = arith.mulf %175, %173 : vector<80x256xf32>
    %177 = arith.addf %169, %176 : vector<80x256xf32>
    %c0_88 = arith.constant 0 : index
    %c4_89 = arith.constant 4 : index
    %178 = vector.load %arg7[%c0_88, %c4_89] : memref<80x9xf32, #tpu.memory_space<vmem>>, vector<80x1xf32>
    %179 = vector.broadcast %178 : vector<80x1xf32> to vector<80x256xf32>
    %180 = arith.mulf %179, %146 : vector<80x256xf32>
    %181 = arith.addf %177, %180 : vector<80x256xf32>
    %c255_i32_90 = arith.constant 255 : i32
    %182 = tpu.dynamic_rotate %146 by %c255_i32_90 dim 1 : vector<80x256xf32>, i32 -> vector<80x256xf32>
    %c5_91 = arith.constant 5 : index
    %c0_92 = arith.constant 0 : index
    %183 = vector.load %arg12[%c5_91, %c0_92] : memref<9x256xf32, #tpu.memory_space<vmem>>, vector<1x256xf32>
    %184 = vector.broadcast %183 : vector<1x256xf32> to vector<80x256xf32>
    %185 = arith.mulf %182, %184 : vector<80x256xf32>
    %c0_93 = arith.constant 0 : index
    %c5_94 = arith.constant 5 : index
    %186 = vector.load %arg7[%c0_93, %c5_94] : memref<80x9xf32, #tpu.memory_space<vmem>>, vector<80x1xf32>
    %187 = vector.broadcast %186 : vector<80x1xf32> to vector<80x256xf32>
    %188 = arith.mulf %187, %185 : vector<80x256xf32>
    %189 = arith.addf %181, %188 : vector<80x256xf32>
    %c241_i32_95 = arith.constant 241 : i32
    %190 = tpu.dynamic_rotate %146 by %c241_i32_95 dim 1 : vector<80x256xf32>, i32 -> vector<80x256xf32>
    %c6_96 = arith.constant 6 : index
    %c0_97 = arith.constant 0 : index
    %191 = vector.load %arg12[%c6_96, %c0_97] : memref<9x256xf32, #tpu.memory_space<vmem>>, vector<1x256xf32>
    %192 = vector.broadcast %191 : vector<1x256xf32> to vector<80x256xf32>
    %193 = arith.mulf %190, %192 : vector<80x256xf32>
    %c0_98 = arith.constant 0 : index
    %c6_99 = arith.constant 6 : index
    %194 = vector.load %arg7[%c0_98, %c6_99] : memref<80x9xf32, #tpu.memory_space<vmem>>, vector<80x1xf32>
    %195 = vector.broadcast %194 : vector<80x1xf32> to vector<80x256xf32>
    %196 = arith.mulf %195, %193 : vector<80x256xf32>
    %197 = arith.addf %189, %196 : vector<80x256xf32>
    %c240_i32_100 = arith.constant 240 : i32
    %198 = tpu.dynamic_rotate %146 by %c240_i32_100 dim 1 : vector<80x256xf32>, i32 -> vector<80x256xf32>
    %c7_101 = arith.constant 7 : index
    %c0_102 = arith.constant 0 : index
    %199 = vector.load %arg12[%c7_101, %c0_102] : memref<9x256xf32, #tpu.memory_space<vmem>>, vector<1x256xf32>
    %200 = vector.broadcast %199 : vector<1x256xf32> to vector<80x256xf32>
    %201 = arith.mulf %198, %200 : vector<80x256xf32>
    %c0_103 = arith.constant 0 : index
    %c7_104 = arith.constant 7 : index
    %202 = vector.load %arg7[%c0_103, %c7_104] : memref<80x9xf32, #tpu.memory_space<vmem>>, vector<80x1xf32>
    %203 = vector.broadcast %202 : vector<80x1xf32> to vector<80x256xf32>
    %204 = arith.mulf %203, %201 : vector<80x256xf32>
    %205 = arith.addf %197, %204 : vector<80x256xf32>
    %c239_i32_105 = arith.constant 239 : i32
    %206 = tpu.dynamic_rotate %146 by %c239_i32_105 dim 1 : vector<80x256xf32>, i32 -> vector<80x256xf32>
    %c8_106 = arith.constant 8 : index
    %c0_107 = arith.constant 0 : index
    %207 = vector.load %arg12[%c8_106, %c0_107] : memref<9x256xf32, #tpu.memory_space<vmem>>, vector<1x256xf32>
    %208 = vector.broadcast %207 : vector<1x256xf32> to vector<80x256xf32>
    %209 = arith.mulf %206, %208 : vector<80x256xf32>
    %c0_108 = arith.constant 0 : index
    %c8_109 = arith.constant 8 : index
    %210 = vector.load %arg7[%c0_108, %c8_109] : memref<80x9xf32, #tpu.memory_space<vmem>>, vector<80x1xf32>
    %211 = vector.broadcast %210 : vector<80x1xf32> to vector<80x256xf32>
    %212 = arith.mulf %211, %209 : vector<80x256xf32>
    %213 = arith.addf %205, %212 : vector<80x256xf32>
    %214 = vector.extract_strided_slice %213 {offsets = [0, 0], sizes = [40, 256], strides = [1, 1]} : vector<80x256xf32> to vector<40x256xf32>
    %cst_110 = arith.constant 0.707106769 : f32
    %215 = vector.broadcast %cst_110 : f32 to vector<40x256xf32>
    %216 = arith.mulf %214, %215 : vector<40x256xf32>
    %217 = math.absf %216 : vector<40x256xf32>
    %cst_111 = arith.constant 0.327591091 : f32
    %218 = vector.broadcast %cst_111 : f32 to vector<40x256xf32>
    %219 = arith.mulf %218, %217 : vector<40x256xf32>
    %cst_112 = arith.constant 1.000000e+00 : f32
    %220 = vector.broadcast %cst_112 : f32 to vector<40x256xf32>
    %221 = arith.addf %220, %219 : vector<40x256xf32>
    %222 = tpu.reciprocal %221 {approx = true} : vector<40x256xf32> -> vector<40x256xf32>
    %223 = arith.mulf %221, %222 : vector<40x256xf32>
    %cst_113 = arith.constant 2.000000e+00 : f32
    %224 = vector.broadcast %cst_113 : f32 to vector<40x256xf32>
    %225 = arith.subf %224, %223 : vector<40x256xf32>
    %226 = arith.mulf %222, %225 : vector<40x256xf32>
    %cst_114 = arith.constant 1.06140542 : f32
    %227 = vector.broadcast %cst_114 : f32 to vector<40x256xf32>
    %228 = arith.mulf %226, %227 : vector<40x256xf32>
    %cst_115 = arith.constant -1.45315206 : f32
    %229 = vector.broadcast %cst_115 : f32 to vector<40x256xf32>
    %230 = arith.addf %229, %228 : vector<40x256xf32>
    %231 = arith.mulf %226, %230 : vector<40x256xf32>
    %cst_116 = arith.constant 1.42141378 : f32
    %232 = vector.broadcast %cst_116 : f32 to vector<40x256xf32>
    %233 = arith.addf %232, %231 : vector<40x256xf32>
    %234 = arith.mulf %226, %233 : vector<40x256xf32>
    %cst_117 = arith.constant -0.284496725 : f32
    %235 = vector.broadcast %cst_117 : f32 to vector<40x256xf32>
    %236 = arith.addf %235, %234 : vector<40x256xf32>
    %237 = arith.mulf %226, %236 : vector<40x256xf32>
    %cst_118 = arith.constant 0.254829586 : f32
    %238 = vector.broadcast %cst_118 : f32 to vector<40x256xf32>
    %239 = arith.addf %238, %237 : vector<40x256xf32>
    %240 = arith.mulf %226, %239 : vector<40x256xf32>
    %cst_119 = arith.constant 0.000000e+00 : f32
    %241 = vector.broadcast %cst_119 : f32 to vector<40x256xf32>
    %242 = arith.subf %241, %217 : vector<40x256xf32>
    %243 = arith.mulf %242, %217 : vector<40x256xf32>
    %244 = math.exp %243 : vector<40x256xf32>
    %245 = arith.mulf %240, %244 : vector<40x256xf32>
    %cst_120 = arith.constant 1.000000e+00 : f32
    %246 = vector.broadcast %cst_120 : f32 to vector<40x256xf32>
    %247 = arith.subf %246, %245 : vector<40x256xf32>
    %cst_121 = arith.constant 0.000000e+00 : f32
    %248 = vector.broadcast %cst_121 : f32 to vector<40x256xf32>
    %249 = arith.cmpf oge, %216, %248 : vector<40x256xf32>
    %cst_122 = arith.constant 0.000000e+00 : f32
    %250 = vector.broadcast %cst_122 : f32 to vector<40x256xf32>
    %251 = arith.subf %250, %247 : vector<40x256xf32>
    %252 = arith.select %249, %247, %251 : vector<40x256xi1>, vector<40x256xf32>
    %cst_123 = arith.constant 5.000000e-01 : f32
    %253 = vector.broadcast %cst_123 : f32 to vector<40x256xf32>
    %254 = arith.mulf %253, %214 : vector<40x256xf32>
    %cst_124 = arith.constant 1.000000e+00 : f32
    %255 = vector.broadcast %cst_124 : f32 to vector<40x256xf32>
    %256 = arith.addf %255, %252 : vector<40x256xf32>
    %257 = arith.mulf %254, %256 : vector<40x256xf32>
    %258 = vector.extract_strided_slice %213 {offsets = [40, 0], sizes = [40, 256], strides = [1, 1]} : vector<80x256xf32> to vector<40x256xf32>
    %259 = arith.mulf %257, %258 : vector<40x256xf32>
    %c0_125 = arith.constant 0 : index
    %c0_126 = arith.constant 0 : index
    %260 = vector.load %arg8[%c0_125, %c0_126] : memref<32x40xf32, #tpu.memory_space<vmem>>, vector<32x40xf32>
    %cst_127 = arith.constant dense<0.000000e+00> : vector<32x256xf32>
    %261 = tpu.matmul %260, %259, %cst_127 {dimension_numbers = #tpu.dot_dimension_numbers<[1], [0], [0], [1], [0, 0, 1, 1], [], []>} : vector<32x40xf32>, vector<40x256xf32>, vector<32x256xf32> -> vector<32x256xf32>
    %262 = arith.addf %128, %261 : vector<32x256xf32>
    %c136_i32 = arith.constant 136 : i32
    %263 = tpu.dynamic_rotate %262 by %c136_i32 dim 1 : vector<32x256xf32>, i32 -> vector<32x256xf32>
    %c0_128 = arith.constant 0 : index
    %c0_129 = arith.constant 0 : index
    %264 = vector.load %arg13[%c0_128, %c0_129] : memref<25x256xf32, #tpu.memory_space<vmem>>, vector<1x256xf32>
    %265 = vector.broadcast %264 : vector<1x256xf32> to vector<32x256xf32>
    %266 = arith.mulf %263, %265 : vector<32x256xf32>
    %c0_130 = arith.constant 0 : index
    %c0_131 = arith.constant 0 : index
    %267 = vector.load %arg9[%c0_130, %c0_131] : memref<32x25xf32, #tpu.memory_space<vmem>>, vector<32x1xf32>
    %268 = vector.broadcast %267 : vector<32x1xf32> to vector<32x256xf32>
    %269 = arith.mulf %268, %266 : vector<32x256xf32>
    %c132_i32 = arith.constant 132 : i32
    %270 = tpu.dynamic_rotate %262 by %c132_i32 dim 1 : vector<32x256xf32>, i32 -> vector<32x256xf32>
    %c1_132 = arith.constant 1 : index
    %c0_133 = arith.constant 0 : index
    %271 = vector.load %arg13[%c1_132, %c0_133] : memref<25x256xf32, #tpu.memory_space<vmem>>, vector<1x256xf32>
    %272 = vector.broadcast %271 : vector<1x256xf32> to vector<32x256xf32>
    %273 = arith.mulf %270, %272 : vector<32x256xf32>
    %c0_134 = arith.constant 0 : index
    %c1_135 = arith.constant 1 : index
    %274 = vector.load %arg9[%c0_134, %c1_135] : memref<32x25xf32, #tpu.memory_space<vmem>>, vector<32x1xf32>
    %275 = vector.broadcast %274 : vector<32x1xf32> to vector<32x256xf32>
    %276 = arith.mulf %275, %273 : vector<32x256xf32>
    %277 = arith.addf %269, %276 : vector<32x256xf32>
    %c128_i32 = arith.constant 128 : i32
    %278 = tpu.dynamic_rotate %262 by %c128_i32 dim 1 : vector<32x256xf32>, i32 -> vector<32x256xf32>
    %c2_136 = arith.constant 2 : index
    %c0_137 = arith.constant 0 : index
    %279 = vector.load %arg13[%c2_136, %c0_137] : memref<25x256xf32, #tpu.memory_space<vmem>>, vector<1x256xf32>
    %280 = vector.broadcast %279 : vector<1x256xf32> to vector<32x256xf32>
    %281 = arith.mulf %278, %280 : vector<32x256xf32>
    %c0_138 = arith.constant 0 : index
    %c2_139 = arith.constant 2 : index
    %282 = vector.load %arg9[%c0_138, %c2_139] : memref<32x25xf32, #tpu.memory_space<vmem>>, vector<32x1xf32>
    %283 = vector.broadcast %282 : vector<32x1xf32> to vector<32x256xf32>
    %284 = arith.mulf %283, %281 : vector<32x256xf32>
    %285 = arith.addf %277, %284 : vector<32x256xf32>
    %c124_i32 = arith.constant 124 : i32
    %286 = tpu.dynamic_rotate %262 by %c124_i32 dim 1 : vector<32x256xf32>, i32 -> vector<32x256xf32>
    %c3_140 = arith.constant 3 : index
    %c0_141 = arith.constant 0 : index
    %287 = vector.load %arg13[%c3_140, %c0_141] : memref<25x256xf32, #tpu.memory_space<vmem>>, vector<1x256xf32>
    %288 = vector.broadcast %287 : vector<1x256xf32> to vector<32x256xf32>
    %289 = arith.mulf %286, %288 : vector<32x256xf32>
    %c0_142 = arith.constant 0 : index
    %c3_143 = arith.constant 3 : index
    %290 = vector.load %arg9[%c0_142, %c3_143] : memref<32x25xf32, #tpu.memory_space<vmem>>, vector<32x1xf32>
    %291 = vector.broadcast %290 : vector<32x1xf32> to vector<32x256xf32>
    %292 = arith.mulf %291, %289 : vector<32x256xf32>
    %293 = arith.addf %285, %292 : vector<32x256xf32>
    %c120_i32 = arith.constant 120 : i32
    %294 = tpu.dynamic_rotate %262 by %c120_i32 dim 1 : vector<32x256xf32>, i32 -> vector<32x256xf32>
    %c4_144 = arith.constant 4 : index
    %c0_145 = arith.constant 0 : index
    %295 = vector.load %arg13[%c4_144, %c0_145] : memref<25x256xf32, #tpu.memory_space<vmem>>, vector<1x256xf32>
    %296 = vector.broadcast %295 : vector<1x256xf32> to vector<32x256xf32>
    %297 = arith.mulf %294, %296 : vector<32x256xf32>
    %c0_146 = arith.constant 0 : index
    %c4_147 = arith.constant 4 : index
    %298 = vector.load %arg9[%c0_146, %c4_147] : memref<32x25xf32, #tpu.memory_space<vmem>>, vector<32x1xf32>
    %299 = vector.broadcast %298 : vector<32x1xf32> to vector<32x256xf32>
    %300 = arith.mulf %299, %297 : vector<32x256xf32>
    %301 = arith.addf %293, %300 : vector<32x256xf32>
    %c72_i32 = arith.constant 72 : i32
    %302 = tpu.dynamic_rotate %262 by %c72_i32 dim 1 : vector<32x256xf32>, i32 -> vector<32x256xf32>
    %c5_148 = arith.constant 5 : index
    %c0_149 = arith.constant 0 : index
    %303 = vector.load %arg13[%c5_148, %c0_149] : memref<25x256xf32, #tpu.memory_space<vmem>>, vector<1x256xf32>
    %304 = vector.broadcast %303 : vector<1x256xf32> to vector<32x256xf32>
    %305 = arith.mulf %302, %304 : vector<32x256xf32>
    %c0_150 = arith.constant 0 : index
    %c5_151 = arith.constant 5 : index
    %306 = vector.load %arg9[%c0_150, %c5_151] : memref<32x25xf32, #tpu.memory_space<vmem>>, vector<32x1xf32>
    %307 = vector.broadcast %306 : vector<32x1xf32> to vector<32x256xf32>
    %308 = arith.mulf %307, %305 : vector<32x256xf32>
    %309 = arith.addf %301, %308 : vector<32x256xf32>
    %c68_i32 = arith.constant 68 : i32
    %310 = tpu.dynamic_rotate %262 by %c68_i32 dim 1 : vector<32x256xf32>, i32 -> vector<32x256xf32>
    %c6_152 = arith.constant 6 : index
    %c0_153 = arith.constant 0 : index
    %311 = vector.load %arg13[%c6_152, %c0_153] : memref<25x256xf32, #tpu.memory_space<vmem>>, vector<1x256xf32>
    %312 = vector.broadcast %311 : vector<1x256xf32> to vector<32x256xf32>
    %313 = arith.mulf %310, %312 : vector<32x256xf32>
    %c0_154 = arith.constant 0 : index
    %c6_155 = arith.constant 6 : index
    %314 = vector.load %arg9[%c0_154, %c6_155] : memref<32x25xf32, #tpu.memory_space<vmem>>, vector<32x1xf32>
    %315 = vector.broadcast %314 : vector<32x1xf32> to vector<32x256xf32>
    %316 = arith.mulf %315, %313 : vector<32x256xf32>
    %317 = arith.addf %309, %316 : vector<32x256xf32>
    %c64_i32 = arith.constant 64 : i32
    %318 = tpu.dynamic_rotate %262 by %c64_i32 dim 1 : vector<32x256xf32>, i32 -> vector<32x256xf32>
    %c7_156 = arith.constant 7 : index
    %c0_157 = arith.constant 0 : index
    %319 = vector.load %arg13[%c7_156, %c0_157] : memref<25x256xf32, #tpu.memory_space<vmem>>, vector<1x256xf32>
    %320 = vector.broadcast %319 : vector<1x256xf32> to vector<32x256xf32>
    %321 = arith.mulf %318, %320 : vector<32x256xf32>
    %c0_158 = arith.constant 0 : index
    %c7_159 = arith.constant 7 : index
    %322 = vector.load %arg9[%c0_158, %c7_159] : memref<32x25xf32, #tpu.memory_space<vmem>>, vector<32x1xf32>
    %323 = vector.broadcast %322 : vector<32x1xf32> to vector<32x256xf32>
    %324 = arith.mulf %323, %321 : vector<32x256xf32>
    %325 = arith.addf %317, %324 : vector<32x256xf32>
    %c60_i32 = arith.constant 60 : i32
    %326 = tpu.dynamic_rotate %262 by %c60_i32 dim 1 : vector<32x256xf32>, i32 -> vector<32x256xf32>
    %c8_160 = arith.constant 8 : index
    %c0_161 = arith.constant 0 : index
    %327 = vector.load %arg13[%c8_160, %c0_161] : memref<25x256xf32, #tpu.memory_space<vmem>>, vector<1x256xf32>
    %328 = vector.broadcast %327 : vector<1x256xf32> to vector<32x256xf32>
    %329 = arith.mulf %326, %328 : vector<32x256xf32>
    %c0_162 = arith.constant 0 : index
    %c8_163 = arith.constant 8 : index
    %330 = vector.load %arg9[%c0_162, %c8_163] : memref<32x25xf32, #tpu.memory_space<vmem>>, vector<32x1xf32>
    %331 = vector.broadcast %330 : vector<32x1xf32> to vector<32x256xf32>
    %332 = arith.mulf %331, %329 : vector<32x256xf32>
    %333 = arith.addf %325, %332 : vector<32x256xf32>
    %c56_i32 = arith.constant 56 : i32
    %334 = tpu.dynamic_rotate %262 by %c56_i32 dim 1 : vector<32x256xf32>, i32 -> vector<32x256xf32>
    %c9 = arith.constant 9 : index
    %c0_164 = arith.constant 0 : index
    %335 = vector.load %arg13[%c9, %c0_164] : memref<25x256xf32, #tpu.memory_space<vmem>>, vector<1x256xf32>
    %336 = vector.broadcast %335 : vector<1x256xf32> to vector<32x256xf32>
    %337 = arith.mulf %334, %336 : vector<32x256xf32>
    %c0_165 = arith.constant 0 : index
    %c9_166 = arith.constant 9 : index
    %338 = vector.load %arg9[%c0_165, %c9_166] : memref<32x25xf32, #tpu.memory_space<vmem>>, vector<32x1xf32>
    %339 = vector.broadcast %338 : vector<32x1xf32> to vector<32x256xf32>
    %340 = arith.mulf %339, %337 : vector<32x256xf32>
    %341 = arith.addf %333, %340 : vector<32x256xf32>
    %c8_i32 = arith.constant 8 : i32
    %342 = tpu.dynamic_rotate %262 by %c8_i32 dim 1 : vector<32x256xf32>, i32 -> vector<32x256xf32>
    %c10 = arith.constant 10 : index
    %c0_167 = arith.constant 0 : index
    %343 = vector.load %arg13[%c10, %c0_167] : memref<25x256xf32, #tpu.memory_space<vmem>>, vector<1x256xf32>
    %344 = vector.broadcast %343 : vector<1x256xf32> to vector<32x256xf32>
    %345 = arith.mulf %342, %344 : vector<32x256xf32>
    %c0_168 = arith.constant 0 : index
    %c10_169 = arith.constant 10 : index
    %346 = vector.load %arg9[%c0_168, %c10_169] : memref<32x25xf32, #tpu.memory_space<vmem>>, vector<32x1xf32>
    %347 = vector.broadcast %346 : vector<32x1xf32> to vector<32x256xf32>
    %348 = arith.mulf %347, %345 : vector<32x256xf32>
    %349 = arith.addf %341, %348 : vector<32x256xf32>
    %c4_i32 = arith.constant 4 : i32
    %350 = tpu.dynamic_rotate %262 by %c4_i32 dim 1 : vector<32x256xf32>, i32 -> vector<32x256xf32>
    %c11 = arith.constant 11 : index
    %c0_170 = arith.constant 0 : index
    %351 = vector.load %arg13[%c11, %c0_170] : memref<25x256xf32, #tpu.memory_space<vmem>>, vector<1x256xf32>
    %352 = vector.broadcast %351 : vector<1x256xf32> to vector<32x256xf32>
    %353 = arith.mulf %350, %352 : vector<32x256xf32>
    %c0_171 = arith.constant 0 : index
    %c11_172 = arith.constant 11 : index
    %354 = vector.load %arg9[%c0_171, %c11_172] : memref<32x25xf32, #tpu.memory_space<vmem>>, vector<32x1xf32>
    %355 = vector.broadcast %354 : vector<32x1xf32> to vector<32x256xf32>
    %356 = arith.mulf %355, %353 : vector<32x256xf32>
    %357 = arith.addf %349, %356 : vector<32x256xf32>
    %c0_173 = arith.constant 0 : index
    %c12 = arith.constant 12 : index
    %358 = vector.load %arg9[%c0_173, %c12] : memref<32x25xf32, #tpu.memory_space<vmem>>, vector<32x1xf32>
    %359 = vector.broadcast %358 : vector<32x1xf32> to vector<32x256xf32>
    %360 = arith.mulf %359, %262 : vector<32x256xf32>
    %361 = arith.addf %357, %360 : vector<32x256xf32>
    %c252_i32 = arith.constant 252 : i32
    %362 = tpu.dynamic_rotate %262 by %c252_i32 dim 1 : vector<32x256xf32>, i32 -> vector<32x256xf32>
    %c13 = arith.constant 13 : index
    %c0_174 = arith.constant 0 : index
    %363 = vector.load %arg13[%c13, %c0_174] : memref<25x256xf32, #tpu.memory_space<vmem>>, vector<1x256xf32>
    %364 = vector.broadcast %363 : vector<1x256xf32> to vector<32x256xf32>
    %365 = arith.mulf %362, %364 : vector<32x256xf32>
    %c0_175 = arith.constant 0 : index
    %c13_176 = arith.constant 13 : index
    %366 = vector.load %arg9[%c0_175, %c13_176] : memref<32x25xf32, #tpu.memory_space<vmem>>, vector<32x1xf32>
    %367 = vector.broadcast %366 : vector<32x1xf32> to vector<32x256xf32>
    %368 = arith.mulf %367, %365 : vector<32x256xf32>
    %369 = arith.addf %361, %368 : vector<32x256xf32>
    %c248_i32 = arith.constant 248 : i32
    %370 = tpu.dynamic_rotate %262 by %c248_i32 dim 1 : vector<32x256xf32>, i32 -> vector<32x256xf32>
    %c14 = arith.constant 14 : index
    %c0_177 = arith.constant 0 : index
    %371 = vector.load %arg13[%c14, %c0_177] : memref<25x256xf32, #tpu.memory_space<vmem>>, vector<1x256xf32>
    %372 = vector.broadcast %371 : vector<1x256xf32> to vector<32x256xf32>
    %373 = arith.mulf %370, %372 : vector<32x256xf32>
    %c0_178 = arith.constant 0 : index
    %c14_179 = arith.constant 14 : index
    %374 = vector.load %arg9[%c0_178, %c14_179] : memref<32x25xf32, #tpu.memory_space<vmem>>, vector<32x1xf32>
    %375 = vector.broadcast %374 : vector<32x1xf32> to vector<32x256xf32>
    %376 = arith.mulf %375, %373 : vector<32x256xf32>
    %377 = arith.addf %369, %376 : vector<32x256xf32>
    %c200_i32 = arith.constant 200 : i32
    %378 = tpu.dynamic_rotate %262 by %c200_i32 dim 1 : vector<32x256xf32>, i32 -> vector<32x256xf32>
    %c15 = arith.constant 15 : index
    %c0_180 = arith.constant 0 : index
    %379 = vector.load %arg13[%c15, %c0_180] : memref<25x256xf32, #tpu.memory_space<vmem>>, vector<1x256xf32>
    %380 = vector.broadcast %379 : vector<1x256xf32> to vector<32x256xf32>
    %381 = arith.mulf %378, %380 : vector<32x256xf32>
    %c0_181 = arith.constant 0 : index
    %c15_182 = arith.constant 15 : index
    %382 = vector.load %arg9[%c0_181, %c15_182] : memref<32x25xf32, #tpu.memory_space<vmem>>, vector<32x1xf32>
    %383 = vector.broadcast %382 : vector<32x1xf32> to vector<32x256xf32>
    %384 = arith.mulf %383, %381 : vector<32x256xf32>
    %385 = arith.addf %377, %384 : vector<32x256xf32>
    %c196_i32 = arith.constant 196 : i32
    %386 = tpu.dynamic_rotate %262 by %c196_i32 dim 1 : vector<32x256xf32>, i32 -> vector<32x256xf32>
    %c16 = arith.constant 16 : index
    %c0_183 = arith.constant 0 : index
    %387 = vector.load %arg13[%c16, %c0_183] : memref<25x256xf32, #tpu.memory_space<vmem>>, vector<1x256xf32>
    %388 = vector.broadcast %387 : vector<1x256xf32> to vector<32x256xf32>
    %389 = arith.mulf %386, %388 : vector<32x256xf32>
    %c0_184 = arith.constant 0 : index
    %c16_185 = arith.constant 16 : index
    %390 = vector.load %arg9[%c0_184, %c16_185] : memref<32x25xf32, #tpu.memory_space<vmem>>, vector<32x1xf32>
    %391 = vector.broadcast %390 : vector<32x1xf32> to vector<32x256xf32>
    %392 = arith.mulf %391, %389 : vector<32x256xf32>
    %393 = arith.addf %385, %392 : vector<32x256xf32>
    %c192_i32 = arith.constant 192 : i32
    %394 = tpu.dynamic_rotate %262 by %c192_i32 dim 1 : vector<32x256xf32>, i32 -> vector<32x256xf32>
    %c17 = arith.constant 17 : index
    %c0_186 = arith.constant 0 : index
    %395 = vector.load %arg13[%c17, %c0_186] : memref<25x256xf32, #tpu.memory_space<vmem>>, vector<1x256xf32>
    %396 = vector.broadcast %395 : vector<1x256xf32> to vector<32x256xf32>
    %397 = arith.mulf %394, %396 : vector<32x256xf32>
    %c0_187 = arith.constant 0 : index
    %c17_188 = arith.constant 17 : index
    %398 = vector.load %arg9[%c0_187, %c17_188] : memref<32x25xf32, #tpu.memory_space<vmem>>, vector<32x1xf32>
    %399 = vector.broadcast %398 : vector<32x1xf32> to vector<32x256xf32>
    %400 = arith.mulf %399, %397 : vector<32x256xf32>
    %401 = arith.addf %393, %400 : vector<32x256xf32>
    %c188_i32 = arith.constant 188 : i32
    %402 = tpu.dynamic_rotate %262 by %c188_i32 dim 1 : vector<32x256xf32>, i32 -> vector<32x256xf32>
    %c18 = arith.constant 18 : index
    %c0_189 = arith.constant 0 : index
    %403 = vector.load %arg13[%c18, %c0_189] : memref<25x256xf32, #tpu.memory_space<vmem>>, vector<1x256xf32>
    %404 = vector.broadcast %403 : vector<1x256xf32> to vector<32x256xf32>
    %405 = arith.mulf %402, %404 : vector<32x256xf32>
    %c0_190 = arith.constant 0 : index
    %c18_191 = arith.constant 18 : index
    %406 = vector.load %arg9[%c0_190, %c18_191] : memref<32x25xf32, #tpu.memory_space<vmem>>, vector<32x1xf32>
    %407 = vector.broadcast %406 : vector<32x1xf32> to vector<32x256xf32>
    %408 = arith.mulf %407, %405 : vector<32x256xf32>
    %409 = arith.addf %401, %408 : vector<32x256xf32>
    %c184_i32 = arith.constant 184 : i32
    %410 = tpu.dynamic_rotate %262 by %c184_i32 dim 1 : vector<32x256xf32>, i32 -> vector<32x256xf32>
    %c19 = arith.constant 19 : index
    %c0_192 = arith.constant 0 : index
    %411 = vector.load %arg13[%c19, %c0_192] : memref<25x256xf32, #tpu.memory_space<vmem>>, vector<1x256xf32>
    %412 = vector.broadcast %411 : vector<1x256xf32> to vector<32x256xf32>
    %413 = arith.mulf %410, %412 : vector<32x256xf32>
    %c0_193 = arith.constant 0 : index
    %c19_194 = arith.constant 19 : index
    %414 = vector.load %arg9[%c0_193, %c19_194] : memref<32x25xf32, #tpu.memory_space<vmem>>, vector<32x1xf32>
    %415 = vector.broadcast %414 : vector<32x1xf32> to vector<32x256xf32>
    %416 = arith.mulf %415, %413 : vector<32x256xf32>
    %417 = arith.addf %409, %416 : vector<32x256xf32>
    %c136_i32_195 = arith.constant 136 : i32
    %418 = tpu.dynamic_rotate %262 by %c136_i32_195 dim 1 : vector<32x256xf32>, i32 -> vector<32x256xf32>
    %c20 = arith.constant 20 : index
    %c0_196 = arith.constant 0 : index
    %419 = vector.load %arg13[%c20, %c0_196] : memref<25x256xf32, #tpu.memory_space<vmem>>, vector<1x256xf32>
    %420 = vector.broadcast %419 : vector<1x256xf32> to vector<32x256xf32>
    %421 = arith.mulf %418, %420 : vector<32x256xf32>
    %c0_197 = arith.constant 0 : index
    %c20_198 = arith.constant 20 : index
    %422 = vector.load %arg9[%c0_197, %c20_198] : memref<32x25xf32, #tpu.memory_space<vmem>>, vector<32x1xf32>
    %423 = vector.broadcast %422 : vector<32x1xf32> to vector<32x256xf32>
    %424 = arith.mulf %423, %421 : vector<32x256xf32>
    %425 = arith.addf %417, %424 : vector<32x256xf32>
    %c132_i32_199 = arith.constant 132 : i32
    %426 = tpu.dynamic_rotate %262 by %c132_i32_199 dim 1 : vector<32x256xf32>, i32 -> vector<32x256xf32>
    %c21 = arith.constant 21 : index
    %c0_200 = arith.constant 0 : index
    %427 = vector.load %arg13[%c21, %c0_200] : memref<25x256xf32, #tpu.memory_space<vmem>>, vector<1x256xf32>
    %428 = vector.broadcast %427 : vector<1x256xf32> to vector<32x256xf32>
    %429 = arith.mulf %426, %428 : vector<32x256xf32>
    %c0_201 = arith.constant 0 : index
    %c21_202 = arith.constant 21 : index
    %430 = vector.load %arg9[%c0_201, %c21_202] : memref<32x25xf32, #tpu.memory_space<vmem>>, vector<32x1xf32>
    %431 = vector.broadcast %430 : vector<32x1xf32> to vector<32x256xf32>
    %432 = arith.mulf %431, %429 : vector<32x256xf32>
    %433 = arith.addf %425, %432 : vector<32x256xf32>
    %c128_i32_203 = arith.constant 128 : i32
    %434 = tpu.dynamic_rotate %262 by %c128_i32_203 dim 1 : vector<32x256xf32>, i32 -> vector<32x256xf32>
    %c22 = arith.constant 22 : index
    %c0_204 = arith.constant 0 : index
    %435 = vector.load %arg13[%c22, %c0_204] : memref<25x256xf32, #tpu.memory_space<vmem>>, vector<1x256xf32>
    %436 = vector.broadcast %435 : vector<1x256xf32> to vector<32x256xf32>
    %437 = arith.mulf %434, %436 : vector<32x256xf32>
    %c0_205 = arith.constant 0 : index
    %c22_206 = arith.constant 22 : index
    %438 = vector.load %arg9[%c0_205, %c22_206] : memref<32x25xf32, #tpu.memory_space<vmem>>, vector<32x1xf32>
    %439 = vector.broadcast %438 : vector<32x1xf32> to vector<32x256xf32>
    %440 = arith.mulf %439, %437 : vector<32x256xf32>
    %441 = arith.addf %433, %440 : vector<32x256xf32>
    %c124_i32_207 = arith.constant 124 : i32
    %442 = tpu.dynamic_rotate %262 by %c124_i32_207 dim 1 : vector<32x256xf32>, i32 -> vector<32x256xf32>
    %c23 = arith.constant 23 : index
    %c0_208 = arith.constant 0 : index
    %443 = vector.load %arg13[%c23, %c0_208] : memref<25x256xf32, #tpu.memory_space<vmem>>, vector<1x256xf32>
    %444 = vector.broadcast %443 : vector<1x256xf32> to vector<32x256xf32>
    %445 = arith.mulf %442, %444 : vector<32x256xf32>
    %c0_209 = arith.constant 0 : index
    %c23_210 = arith.constant 23 : index
    %446 = vector.load %arg9[%c0_209, %c23_210] : memref<32x25xf32, #tpu.memory_space<vmem>>, vector<32x1xf32>
    %447 = vector.broadcast %446 : vector<32x1xf32> to vector<32x256xf32>
    %448 = arith.mulf %447, %445 : vector<32x256xf32>
    %449 = arith.addf %441, %448 : vector<32x256xf32>
    %c120_i32_211 = arith.constant 120 : i32
    %450 = tpu.dynamic_rotate %262 by %c120_i32_211 dim 1 : vector<32x256xf32>, i32 -> vector<32x256xf32>
    %c24 = arith.constant 24 : index
    %c0_212 = arith.constant 0 : index
    %451 = vector.load %arg13[%c24, %c0_212] : memref<25x256xf32, #tpu.memory_space<vmem>>, vector<1x256xf32>
    %452 = vector.broadcast %451 : vector<1x256xf32> to vector<32x256xf32>
    %453 = arith.mulf %450, %452 : vector<32x256xf32>
    %c0_213 = arith.constant 0 : index
    %c24_214 = arith.constant 24 : index
    %454 = vector.load %arg9[%c0_213, %c24_214] : memref<32x25xf32, #tpu.memory_space<vmem>>, vector<32x1xf32>
    %455 = vector.broadcast %454 : vector<32x1xf32> to vector<32x256xf32>
    %456 = arith.mulf %455, %453 : vector<32x256xf32>
    %457 = arith.addf %449, %456 : vector<32x256xf32>
    %458 = vector.broadcast %2 : vector<32x1xf32> to vector<32x256xf32>
    %459 = arith.addf %457, %458 : vector<32x256xf32>
    %c0_215 = arith.constant 0 : index
    %c0_216 = arith.constant 0 : index
    %c0_217 = arith.constant 0 : index
    %460 = vector.load %arg14[%c0_215, %c0_216, %c0_217] : memref<1x32x256xf32, #tpu.memory_space<vmem>>, vector<1x32x256xf32>
    %461 = vector.shape_cast %460 : vector<1x32x256xf32> to vector<32x256xf32>
    %462 = vector.shape_cast %459 : vector<32x256xf32> to vector<1x32x256xf32>
    tpu.vector_store %arg14[%c0_215, %c0_216, %c0_217], %462 {strides = array<i32>} : memref<1x32x256xf32, #tpu.memory_space<vmem>>, vector<1x32x256xf32>,
    return
  }
  func.func @transform_0(%arg0: i32) -> (i32, i32, i32) {
    %c0_i32 = arith.constant 0 : i32
    %c0_i32_0 = arith.constant 0 : i32
    %c0_i32_1 = arith.constant 0 : i32
    return %arg0, %c0_i32, %c0_i32_0 : i32, i32, i32
  }
  func.func @transform_1(%arg0: i32) -> (i32, i32) {
    %c0_i32 = arith.constant 0 : i32
    %c0_i32_0 = arith.constant 0 : i32
    %c0_i32_1 = arith.constant 0 : i32
    return %c0_i32, %c0_i32_0 : i32, i32
  }
  func.func @transform_2(%arg0: i32) -> (i32, i32) {
    %c0_i32 = arith.constant 0 : i32
    %c0_i32_0 = arith.constant 0 : i32
    %c0_i32_1 = arith.constant 0 : i32
    return %c0_i32, %c0_i32_0 : i32, i32
  }
  func.func @transform_3(%arg0: i32) -> (i32, i32) {
    %c0_i32 = arith.constant 0 : i32
    %c0_i32_0 = arith.constant 0 : i32
    %c0_i32_1 = arith.constant 0 : i32
    return %c0_i32, %c0_i32_0 : i32, i32
  }
  func.func @transform_4(%arg0: i32) -> (i32, i32) {
    %c0_i32 = arith.constant 0 : i32
    %c0_i32_0 = arith.constant 0 : i32
    %c0_i32_1 = arith.constant 0 : i32
    return %c0_i32, %c0_i32_0 : i32, i32
  }
  func.func @transform_5(%arg0: i32) -> (i32, i32) {
    %c0_i32 = arith.constant 0 : i32
    %c0_i32_0 = arith.constant 0 : i32
    %c0_i32_1 = arith.constant 0 : i32
    return %c0_i32, %c0_i32_0 : i32, i32
  }
  func.func @transform_6(%arg0: i32) -> (i32, i32) {
    %c0_i32 = arith.constant 0 : i32
    %c0_i32_0 = arith.constant 0 : i32
    %c0_i32_1 = arith.constant 0 : i32
    return %c0_i32, %c0_i32_0 : i32, i32
  }
  func.func @transform_7(%arg0: i32) -> (i32, i32) {
    %c0_i32 = arith.constant 0 : i32
    %c0_i32_0 = arith.constant 0 : i32
    %c0_i32_1 = arith.constant 0 : i32
    return %c0_i32, %c0_i32_0 : i32, i32
  }
  func.func @transform_8(%arg0: i32) -> (i32, i32) {
    %c0_i32 = arith.constant 0 : i32
    %c0_i32_0 = arith.constant 0 : i32
    %c0_i32_1 = arith.constant 0 : i32
    return %c0_i32, %c0_i32_0 : i32, i32
  }
  func.func @transform_9(%arg0: i32) -> (i32, i32) {
    %c0_i32 = arith.constant 0 : i32
    %c0_i32_0 = arith.constant 0 : i32
    %c0_i32_1 = arith.constant 0 : i32
    return %c0_i32, %c0_i32_0 : i32, i32
  }
  func.func @transform_10(%arg0: i32) -> (i32, i32) {
    %c0_i32 = arith.constant 0 : i32
    %c0_i32_0 = arith.constant 0 : i32
    %c0_i32_1 = arith.constant 0 : i32
    return %c0_i32, %c0_i32_0 : i32, i32
  }
  func.func @transform_11(%arg0: i32) -> (i32, i32) {
    %c0_i32 = arith.constant 0 : i32
    %c0_i32_0 = arith.constant 0 : i32
    %c0_i32_1 = arith.constant 0 : i32
    return %c0_i32, %c0_i32_0 : i32, i32
  }
  func.func @transform_12(%arg0: i32) -> (i32, i32) {
    %c0_i32 = arith.constant 0 : i32
    %c0_i32_0 = arith.constant 0 : i32
    %c0_i32_1 = arith.constant 0 : i32
    return %c0_i32, %c0_i32_0 : i32, i32
  }
  func.func @transform_13(%arg0: i32) -> (i32, i32, i32) {
    %c0_i32 = arith.constant 0 : i32
    %c0_i32_0 = arith.constant 0 : i32
    %c0_i32_1 = arith.constant 0 : i32
    return %arg0, %c0_i32, %c0_i32_0 : i32, i32, i32
  }
}

</mosaic_0001>

<llo_original>
// kernel: tpu_custom_call.1
$region0: #{tpu_custom_call.1}
  #allocation0 [shape = 'u32[]', space=smem, size = 0x4, offset = 0x4, fixed_abs, tag = 'smem constant byte address 0x4 - core index']
  #allocation1 [shape = 'u32[144,128]{1,0:T(1,128)}', space=vmem, size = 0x12000, scoped, tag = 'internal scratch']
  %s0 = inlined_call_operand.vmem [shape: f32[2,32,256], index: 0, kind: input, shape index: {}]
  %s1 = inlined_call_operand.vmem [shape: f32[96,32], index: 1, kind: input, shape index: {}]
  %s2 = inlined_call_operand.vmem [shape: f32[96,9], index: 2, kind: input, shape index: {}]
  %s3 = inlined_call_operand.vmem [shape: f32[32,32], index: 3, kind: input, shape index: {}]
  %s4 = inlined_call_operand.vmem [shape: f32[32,32], index: 4, kind: input, shape index: {}]
  %s5 = inlined_call_operand.vmem [shape: f32[80,32], index: 5, kind: input, shape index: {}]
  %s6 = inlined_call_operand.vmem [shape: f32[80,9], index: 6, kind: input, shape index: {}]
  %s7 = inlined_call_operand.vmem [shape: f32[32,40], index: 7, kind: input, shape index: {}]
  %s8 = inlined_call_operand.vmem [shape: f32[32,25], index: 8, kind: input, shape index: {}]
  %s9 = inlined_call_operand.vmem [shape: f32[96,4], index: 9, kind: input, shape index: {}]
  %s10 = inlined_call_operand.vmem [shape: f32[8,32], index: 10, kind: input, shape index: {}]
  %s11 = inlined_call_operand.vmem [shape: f32[9,256], index: 11, kind: input, shape index: {}]
  %s12 = inlined_call_operand.vmem [shape: f32[25,256], index: 12, kind: input, shape index: {}]
  %s13 = inlined_call_operand.hbm [shape: f32[2,32,256], index: 13, kind: output, shape index: {}]
  %s14 = sld [smem:[#allocation0]]
  $region85: #{tpu_custom_call.1} parent=0
    _
  %s16 = ssub.s32 1, %s14
  %s17 = scalar_select 0, %s16, %s14
  $region1: #{tpu_custom_call.1} parent=0
    #allocation2 [shape = 'u8[65536]{0}', space=vmem, size = 0x10000, scoped, tag = 'output window, operand 0']
    #allocation3 [shape = 's32[2]{0}', space=sflag, size = 0x8, scoped, tag = 'scoped memory for tpu_custom_call.1']
    %18 = vsyncpa [#allocation3], 0
    %s19 = scalar_lea.sflag [#allocation3], 1
    %20 = vsyncpa %s19, 0
    loop: start=0, step=1, limit=4
    $region2: #{tpu_custom_call.1} parent=1 // loop_pre_header
      _
    $region3: #{tpu_custom_call.1} parent=1 // loop_header
      %s22 = sphi 0, %s26
      %p23 = scmp.ge.s32.totalorder %s22, 4
      %s32 = sphi 0, %s34
      %s35 = sphi 0, %s32
      %s36 = sphi 0, %s35
      %s52 = sphi 0, %s36
      %s56 = sphi 0, %s56
      %s58 = sphi 0, %s56
      %s59 = sphi 0, %s58
      %s73 = sphi 0, %s59
      %s77 = sphi 0, %s77
      %s79 = sphi 0, %s77
      %s80 = sphi 0, %s79
      %s94 = sphi 0, %s80
      %s98 = sphi 0, %s98
      %s100 = sphi 0, %s98
      %s101 = sphi 0, %s100
      %s115 = sphi 0, %s101
      %s119 = sphi 0, %s119
      %s121 = sphi 0, %s119
      %s122 = sphi 0, %s121
      %s136 = sphi 0, %s122
      %s140 = sphi 0, %s140
      %s142 = sphi 0, %s140
      %s143 = sphi 0, %s142
      %s157 = sphi 0, %s143
      %s161 = sphi 0, %s161
      %s163 = sphi 0, %s161
      %s164 = sphi 0, %s163
      %s178 = sphi 0, %s164
      %s182 = sphi 0, %s182
      %s184 = sphi 0, %s182
      %s185 = sphi 0, %s184
      %s199 = sphi 0, %s185
      %s203 = sphi 0, %s203
      %s205 = sphi 0, %s203
      %s206 = sphi 0, %s205
      %s220 = sphi 0, %s206
      %s224 = sphi 0, %s224
      %s226 = sphi 0, %s224
      %s227 = sphi 0, %s226
      %s241 = sphi 0, %s227
      %s245 = sphi 0, %s245
      %s247 = sphi 0, %s245
      %s248 = sphi 0, %s247
      %s262 = sphi 0, %s248
      %s266 = sphi 0, %s266
      %s268 = sphi 0, %s266
      %s269 = sphi 0, %s268
      %s283 = sphi 0, %s269
      %s287 = sphi 0, %s287
      %s289 = sphi 0, %s287
      %s290 = sphi 0, %s289
      %s304 = sphi 0, %s290
      %s310 = sphi 0, %s312
      %s313 = sphi 0, %s310
      %s314 = sphi 0, %s313
      %s330 = sphi 0, %s314
    $region4: #{tpu_custom_call.1} parent=1 // loop_header_branch
      %25 = sbr.rel (%p23) target = $region8
    $region5: #{tpu_custom_call.1} parent=1 // loop_body
      %s27 = ssub.s32 %s22, 1
      %s28 = ssub.s32 %s22, 2
      %s29 = sadd.s32 %s22, 1
      %s30 = ssub.s32 %s22, %s29
      %p31 = scmp.eq.s32.totalorder %s30, 0
      %s33 = sadd.s32 %s32, 1
      %s34 = scalar_select %p31, %s32, %s33
      %p37 = pneg %p31
      %p38 = scmp.eq.s32.totalorder %s22, 1
      %p39 = por %p37, %p38
      %p40 = scmp.ne.s32.totalorder %s32, %s35
      %p41 = scmp.eq.s32.totalorder %s22, 0
      %p42 = por %p40, %p41
      %p43 = scmp.ne.s32.totalorder %s32, %s35
      %p44 = scmp.eq.s32.totalorder %s27, 1
      %p45 = por %p43, %p44
      %p46 = scmp.ne.s32.totalorder %s35, %s36
      %p47 = scmp.eq.s32.totalorder %s27, 0
      %p48 = por %p46, %p47
      %p49 = scmp.ne.s32.totalorder %s35, %s36
      %p50 = scmp.eq.s32.totalorder %s28, 1
      %p51 = por %p49, %p50
      %p53 = scmp.ne.s32.totalorder %s36, %s52
      %p54 = scmp.eq.s32.totalorder %s28, 0
      %p55 = por %p53, %p54
      %s57 = sadd.s32 %s56, 1
      %p60 = scmp.eq.s32.totalorder %s22, 1
      %p61 = scmp.ne.s32.totalorder %s56, %s58
      %p62 = scmp.eq.s32.totalorder %s22, 0
      %p63 = por %p61, %p62
      %p64 = scmp.ne.s32.totalorder %s56, %s58
      %p65 = scmp.eq.s32.totalorder %s27, 1
      %p66 = por %p64, %p65
      %p67 = scmp.ne.s32.totalorder %s58, %s59
      %p68 = scmp.eq.s32.totalorder %s27, 0
      %p69 = por %p67, %p68
      %p70 = scmp.ne.s32.totalorder %s58, %s59
      %p71 = scmp.eq.s32.totalorder %s28, 1
      %p72 = por %p70, %p71
      %p74 = scmp.ne.s32.totalorder %s59, %s73
      %p75 = scmp.eq.s32.totalorder %s28, 0
      %p76 = por %p74, %p75
      %s78 = sadd.s32 %s77, 1
      %p81 = scmp.eq.s32.totalorder %s22, 1
      %p82 = scmp.ne.s32.totalorder %s77, %s79
      %p83 = scmp.eq.s32.totalorder %s22, 0
      %p84 = por %p82, %p83
      %p85 = scmp.ne.s32.totalorder %s77, %s79
      %p86 = scmp.eq.s32.totalorder %s27, 1
      %p87 = por %p85, %p86
      %p88 = scmp.ne.s32.totalorder %s79, %s80
      %p89 = scmp.eq.s32.totalorder %s27, 0
      %p90 = por %p88, %p89
      %p91 = scmp.ne.s32.totalorder %s79, %s80
      %p92 = scmp.eq.s32.totalorder %s28, 1
      %p93 = por %p91, %p92
      %p95 = scmp.ne.s32.totalorder %s80, %s94
      %p96 = scmp.eq.s32.totalorder %s28, 0
      %p97 = por %p95, %p96
      %s99 = sadd.s32 %s98, 1
      %p102 = scmp.eq.s32.totalorder %s22, 1
      %p103 = scmp.ne.s32.totalorder %s98, %s100
      %p104 = scmp.eq.s32.totalorder %s22, 0
      %p105 = por %p103, %p104
      %p106 = scmp.ne.s32.totalorder %s98, %s100
      %p107 = scmp.eq.s32.totalorder %s27, 1
      %p108 = por %p106, %p107
      %p109 = scmp.ne.s32.totalorder %s100, %s101
      %p110 = scmp.eq.s32.totalorder %s27, 0
      %p111 = por %p109, %p110
      %p112 = scmp.ne.s32.totalorder %s100, %s101
      %p113 = scmp.eq.s32.totalorder %s28, 1
      %p114 = por %p112, %p113
      %p116 = scmp.ne.s32.totalorder %s101, %s115
      %p117 = scmp.eq.s32.totalorder %s28, 0
      %p118 = por %p116, %p117
      %s120 = sadd.s32 %s119, 1
      %p123 = scmp.eq.s32.totalorder %s22, 1
      %p124 = scmp.ne.s32.totalorder %s119, %s121
      %p125 = scmp.eq.s32.totalorder %s22, 0
      %p126 = por %p124, %p125
      %p127 = scmp.ne.s32.totalorder %s119, %s121
      %p128 = scmp.eq.s32.totalorder %s27, 1
      %p129 = por %p127, %p128
      %p130 = scmp.ne.s32.totalorder %s121, %s122
      %p131 = scmp.eq.s32.totalorder %s27, 0
      %p132 = por %p130, %p131
      %p133 = scmp.ne.s32.totalorder %s121, %s122
      %p134 = scmp.eq.s32.totalorder %s28, 1
      %p135 = por %p133, %p134
      %p137 = scmp.ne.s32.totalorder %s122, %s136
      %p138 = scmp.eq.s32.totalorder %s28, 0
      %p139 = por %p137, %p138
      %s141 = sadd.s32 %s140, 1
      %p144 = scmp.eq.s32.totalorder %s22, 1
      %p145 = scmp.ne.s32.totalorder %s140, %s142
      %p146 = scmp.eq.s32.totalorder %s22, 0
      %p147 = por %p145, %p146
      %p148 = scmp.ne.s32.totalorder %s140, %s142
      %p149 = scmp.eq.s32.totalorder %s27, 1
      %p150 = por %p148, %p149
      %p151 = scmp.ne.s32.totalorder %s142, %s143
      %p152 = scmp.eq.s32.totalorder %s27, 0
      %p153 = por %p151, %p152
      %p154 = scmp.ne.s32.totalorder %s142, %s143
      %p155 = scmp.eq.s32.totalorder %s28, 1
      %p156 = por %p154, %p155
      %p158 = scmp.ne.s32.totalorder %s143, %s157
      %p159 = scmp.eq.s32.totalorder %s28, 0
      %p160 = por %p158, %p159
      %s162 = sadd.s32 %s161, 1
      %p165 = scmp.eq.s32.totalorder %s22, 1
      %p166 = scmp.ne.s32.totalorder %s161, %s163
      %p167 = scmp.eq.s32.totalorder %s22, 0
      %p168 = por %p166, %p167
      %p169 = scmp.ne.s32.totalorder %s161, %s163
      %p170 = scmp.eq.s32.totalorder %s27, 1
      %p171 = por %p169, %p170
      %p172 = scmp.ne.s32.totalorder %s163, %s164
      %p173 = scmp.eq.s32.totalorder %s27, 0
      %p174 = por %p172, %p173
      %p175 = scmp.ne.s32.totalorder %s163, %s164
      %p176 = scmp.eq.s32.totalorder %s28, 1
      %p177 = por %p175, %p176
      %p179 = scmp.ne.s32.totalorder %s164, %s178
      %p180 = scmp.eq.s32.totalorder %s28, 0
      %p181 = por %p179, %p180
      %s183 = sadd.s32 %s182, 1
      %p186 = scmp.eq.s32.totalorder %s22, 1
      %p187 = scmp.ne.s32.totalorder %s182, %s184
      %p188 = scmp.eq.s32.totalorder %s22, 0
      %p189 = por %p187, %p188
      %p190 = scmp.ne.s32.totalorder %s182, %s184
      %p191 = scmp.eq.s32.totalorder %s27, 1
      %p192 = por %p190, %p191
      %p193 = scmp.ne.s32.totalorder %s184, %s185
      %p194 = scmp.eq.s32.totalorder %s27, 0
      %p195 = por %p193, %p194
      %p196 = scmp.ne.s32.totalorder %s184, %s185
      %p197 = scmp.eq.s32.totalorder %s28, 1
      %p198 = por %p196, %p197
      %p200 = scmp.ne.s32.totalorder %s185, %s199
      %p201 = scmp.eq.s32.totalorder %s28, 0
      %p202 = por %p200, %p201
      %s204 = sadd.s32 %s203, 1
      %p207 = scmp.eq.s32.totalorder %s22, 1
      %p208 = scmp.ne.s32.totalorder %s203, %s205
      %p209 = scmp.eq.s32.totalorder %s22, 0
      %p210 = por %p208, %p209
      %p211 = scmp.ne.s32.totalorder %s203, %s205
      %p212 = scmp.eq.s32.totalorder %s27, 1
      %p213 = por %p211, %p212
      %p214 = scmp.ne.s32.totalorder %s205, %s206
      %p215 = scmp.eq.s32.totalorder %s27, 0
      %p216 = por %p214, %p215
      %p217 = scmp.ne.s32.totalorder %s205, %s206
      %p218 = scmp.eq.s32.totalorder %s28, 1
      %p219 = por %p217, %p218
      %p221 = scmp.ne.s32.totalorder %s206, %s220
      %p222 = scmp.eq.s32.totalorder %s28, 0
      %p223 = por %p221, %p222
      %s225 = sadd.s32 %s224, 1
      %p228 = scmp.eq.s32.totalorder %s22, 1
      %p229 = scmp.ne.s32.totalorder %s224, %s226
      %p230 = scmp.eq.s32.totalorder %s22, 0
      %p231 = por %p229, %p230
      %p232 = scmp.ne.s32.totalorder %s224, %s226
      %p233 = scmp.eq.s32.totalorder %s27, 1
      %p234 = por %p232, %p233
      %p235 = scmp.ne.s32.totalorder %s226, %s227
      %p236 = scmp.eq.s32.totalorder %s27, 0
      %p237 = por %p235, %p236
      %p238 = scmp.ne.s32.totalorder %s226, %s227
      %p239 = scmp.eq.s32.totalorder %s28, 1
      %p240 = por %p238, %p239
      %p242 = scmp.ne.s32.totalorder %s227, %s241
      %p243 = scmp.eq.s32.totalorder %s28, 0
      %p244 = por %p242, %p243
      %s246 = sadd.s32 %s245, 1
      %p249 = scmp.eq.s32.totalorder %s22, 1
      %p250 = scmp.ne.s32.totalorder %s245, %s247
      %p251 = scmp.eq.s32.totalorder %s22, 0
      %p252 = por %p250, %p251
      %p253 = scmp.ne.s32.totalorder %s245, %s247
      %p254 = scmp.eq.s32.totalorder %s27, 1
      %p255 = por %p253, %p254
      %p256 = scmp.ne.s32.totalorder %s247, %s248
      %p257 = scmp.eq.s32.totalorder %s27, 0
      %p258 = por %p256, %p257
      %p259 = scmp.ne.s32.totalorder %s247, %s248
      %p260 = scmp.eq.s32.totalorder %s28, 1
      %p261 = por %p259, %p260
      %p263 = scmp.ne.s32.totalorder %s248, %s262
      %p264 = scmp.eq.s32.totalorder %s28, 0
      %p265 = por %p263, %p264
      %s267 = sadd.s32 %s266, 1
      %p270 = scmp.eq.s32.totalorder %s22, 1
      %p271 = scmp.ne.s32.totalorder %s266, %s268
      %p272 = scmp.eq.s32.totalorder %s22, 0
      %p273 = por %p271, %p272
      %p274 = scmp.ne.s32.totalorder %s266, %s268
      %p275 = scmp.eq.s32.totalorder %s27, 1
      %p276 = por %p274, %p275
      %p277 = scmp.ne.s32.totalorder %s268, %s269
      %p278 = scmp.eq.s32.totalorder %s27, 0
      %p279 = por %p277, %p278
      %p280 = scmp.ne.s32.totalorder %s268, %s269
      %p281 = scmp.eq.s32.totalorder %s28, 1
      %p282 = por %p280, %p281
      %p284 = scmp.ne.s32.totalorder %s269, %s283
      %p285 = scmp.eq.s32.totalorder %s28, 0
      %p286 = por %p284, %p285
      %s288 = sadd.s32 %s287, 1
      %p291 = scmp.eq.s32.totalorder %s22, 1
      %p292 = scmp.ne.s32.totalorder %s287, %s289
      %p293 = scmp.eq.s32.totalorder %s22, 0
      %p294 = por %p292, %p293
      %p295 = scmp.ne.s32.totalorder %s287, %s289
      %p296 = scmp.eq.s32.totalorder %s27, 1
      %p297 = por %p295, %p296
      %p298 = scmp.ne.s32.totalorder %s289, %s290
      %p299 = scmp.eq.s32.totalorder %s27, 0
      %p300 = por %p298, %p299
      %p301 = scmp.ne.s32.totalorder %s289, %s290
      %p302 = scmp.eq.s32.totalorder %s28, 1
      %p303 = por %p301, %p302
      %p305 = scmp.ne.s32.totalorder %s290, %s304
      %p306 = scmp.eq.s32.totalorder %s28, 0
      %p307 = por %p305, %p306
      %s308 = ssub.s32 %s22, %s29
      %p309 = scmp.eq.s32.totalorder %s308, 0
      %s311 = sadd.s32 %s310, 1
      %s312 = scalar_select %p309, %s310, %s311
      %p315 = pneg %p309
      %p316 = scmp.eq.s32.totalorder %s22, 1
      %p317 = por %p315, %p316
      %p318 = scmp.ne.s32.totalorder %s310, %s313
      %p319 = scmp.eq.s32.totalorder %s22, 0
      %p320 = por %p318, %p319
      %p321 = scmp.ne.s32.totalorder %s310, %s313
      %p322 = scmp.eq.s32.totalorder %s27, 1
      %p323 = por %p321, %p322
      %p324 = scmp.ne.s32.totalorder %s313, %s314
      %p325 = scmp.eq.s32.totalorder %s27, 0
      %p326 = por %p324, %p325
      %p327 = scmp.ne.s32.totalorder %s313, %s314
      %p328 = scmp.eq.s32.totalorder %s28, 1
      %p329 = por %p327, %p328
      %p331 = scmp.ne.s32.totalorder %s314, %s330
      %p332 = scmp.eq.s32.totalorder %s28, 0
      %p333 = por %p331, %p332
      %p334 = scmp.le.s32.totalorder 1, %s22
      %p335 = scmp.lt.s32.totalorder %s22, 3
      %p336 = pnand %p334, %p335
      %p337 = pneg %p336
      // Predicated region
      $region9: #{tpu_custom_call.1} parent=5 // pred_check
        _
      $region10: #{tpu_custom_call.1} parent=5 // pred_check_branch
        %339 = sbr.rel (%p336) target = $region12
      $region11: #{tpu_custom_call.1} parent=5 // pred_region
        %s340 = ssub.s32 %s22, 1
        // Predicated region
        $region13: #{tpu_custom_call.1} parent=11 // pred_check
          %p341 = pneg %p69
        $region14: #{tpu_custom_call.1} parent=11 // pred_check_branch
          %343 = sbr.rel (%p341) target = $region16
        $region15: #{tpu_custom_call.1} parent=11 // pred_region
          _
        $region16: #{tpu_custom_call.1} parent=11 // pred_fallthru
          _
        // Predicated region
        $region17: #{tpu_custom_call.1} parent=11 // pred_check
          %p344 = pneg %p90
        $region18: #{tpu_custom_call.1} parent=11 // pred_check_branch
          %346 = sbr.rel (%p344) target = $region20
        $region19: #{tpu_custom_call.1} parent=11 // pred_region
          _
        $region20: #{tpu_custom_call.1} parent=11 // pred_fallthru
          _
        // Predicated region
        $region21: #{tpu_custom_call.1} parent=11 // pred_check
          %p347 = pneg %p111
        $region22: #{tpu_custom_call.1} parent=11 // pred_check_branch
          %349 = sbr.rel (%p347) target = $region24
        $region23: #{tpu_custom_call.1} parent=11 // pred_region
          _
        $region24: #{tpu_custom_call.1} parent=11 // pred_fallthru
          _
        // Predicated region
        $region25: #{tpu_custom_call.1} parent=11 // pred_check
          %p350 = pneg %p132
        $region26: #{tpu_custom_call.1} parent=11 // pred_check_branch
          %352 = sbr.rel (%p350) target = $region28
        $region27: #{tpu_custom_call.1} parent=11 // pred_region
          _
        $region28: #{tpu_custom_call.1} parent=11 // pred_fallthru
          _
        // Predicated region
        $region29: #{tpu_custom_call.1} parent=11 // pred_check
          %p353 = pneg %p153
        $region30: #{tpu_custom_call.1} parent=11 // pred_check_branch
          %355 = sbr.rel (%p353) target = $region32
        $region31: #{tpu_custom_call.1} parent=11 // pred_region
          _
        $region32: #{tpu_custom_call.1} parent=11 // pred_fallthru
          _
        // Predicated region
        $region33: #{tpu_custom_call.1} parent=11 // pred_check
          %p356 = pneg %p174
        $region34: #{tpu_custom_call.1} parent=11 // pred_check_branch
          %358 = sbr.rel (%p356) target = $region36
        $region35: #{tpu_custom_call.1} parent=11 // pred_region
          _
        $region36: #{tpu_custom_call.1} parent=11 // pred_fallthru
          _
        // Predicated region
        $region37: #{tpu_custom_call.1} parent=11 // pred_check
          %p359 = pneg %p195
        $region38: #{tpu_custom_call.1} parent=11 // pred_check_branch
          %361 = sbr.rel (%p359) target = $region40
        $region39: #{tpu_custom_call.1} parent=11 // pred_region
          _
        $region40: #{tpu_custom_call.1} parent=11 // pred_fallthru
          _
        // Predicated region
        $region41: #{tpu_custom_call.1} parent=11 // pred_check
          %p362 = pneg %p216
        $region42: #{tpu_custom_call.1} parent=11 // pred_check_branch
          %364 = sbr.rel (%p362) target = $region44
        $region43: #{tpu_custom_call.1} parent=11 // pred_region
          _
        $region44: #{tpu_custom_call.1} parent=11 // pred_fallthru
          _
        // Predicated region
        $region45: #{tpu_custom_call.1} parent=11 // pred_check
          %p365 = pneg %p237
        $region46: #{tpu_custom_call.1} parent=11 // pred_check_branch
          %367 = sbr.rel (%p365) target = $region48
        $region47: #{tpu_custom_call.1} parent=11 // pred_region
          _
        $region48: #{tpu_custom_call.1} parent=11 // pred_fallthru
          _
        // Predicated region
        $region49: #{tpu_custom_call.1} parent=11 // pred_check
          %p368 = pneg %p258
        $region50: #{tpu_custom_call.1} parent=11 // pred_check_branch
          %370 = sbr.rel (%p368) target = $region52
        $region51: #{tpu_custom_call.1} parent=11 // pred_region
          _
        $region52: #{tpu_custom_call.1} parent=11 // pred_fallthru
          _
        // Predicated region
        $region53: #{tpu_custom_call.1} parent=11 // pred_check
          %p371 = pneg %p279
        $region54: #{tpu_custom_call.1} parent=11 // pred_check_branch
          %373 = sbr.rel (%p371) target = $region56
        $region55: #{tpu_custom_call.1} parent=11 // pred_region
          _
        $region56: #{tpu_custom_call.1} parent=11 // pred_fallthru
          _
        // Predicated region
        $region57: #{tpu_custom_call.1} parent=11 // pred_check
          %p374 = pneg %p300
        $region58: #{tpu_custom_call.1} parent=11 // pred_check_branch
          %376 = sbr.rel (%p374) target = $region60
        $region59: #{tpu_custom_call.1} parent=11 // pred_region
          _
        $region60: #{tpu_custom_call.1} parent=11 // pred_fallthru
          _
      $region12: #{tpu_custom_call.1} parent=5 // pred_fallthru
        _
      %p377 = scmp.lt.s32.totalorder %s22, 2
      // Predicated region
      $region61: #{tpu_custom_call.1} parent=5 // pred_check
        %p378 = pneg %p377
      $region62: #{tpu_custom_call.1} parent=5 // pred_check_branch
        %380 = sbr.rel (%p378) target = $region64
      $region63: #{tpu_custom_call.1} parent=5 // pred_region
        // Predicated region
        $region65: #{tpu_custom_call.1} parent=63 // pred_check
          %p381 = pneg %p42
        $region66: #{tpu_custom_call.1} parent=63 // pred_check_branch
          %383 = sbr.rel (%p381) target = $region68
        $region67: #{tpu_custom_call.1} parent=63 // pred_region
          %p384 = scmp.lt.s32.totalorder %s22, 1
          %s385 = scalar_select %p384, %s22, 1
          %s386 = smul.addr %s385, 8
          %s387 = smul.addr %s386, 8
          %s388 = scalar_lea.vmem %s0, %s387
        $region68: #{tpu_custom_call.1} parent=63 // pred_fallthru
          _
      $region64: #{tpu_custom_call.1} parent=5 // pred_fallthru
        _
      %p389 = scmp.le.s32.totalorder 1, %s22
      %p390 = scmp.lt.s32.totalorder %s22, 3
      %p391 = pnand %p389, %p390
      %p392 = pneg %p391
      // Predicated region
      $region69: #{tpu_custom_call.1} parent=5 // pred_check
        _
      $region70: #{tpu_custom_call.1} parent=5 // pred_check_branch
        %394 = sbr.rel (%p391) target = $region72
      $region71: #{tpu_custom_call.1} parent=5 // pred_region
        %s395 = ssub.s32 %s22, 1
        %p396 = scmp.lt.s32.totalorder %s27, 1
        %s397 = scalar_select %p396, %s27, 1
        %s398 = smul.addr %s397, 8
        %s399 = smul.addr %s398, 8
        %s400 = scalar_lea.vmem %s0, %s399
        %p401 = pneg %p48
        %p402 = pneg %p45
        %p403 = pneg %p69
        %p404 = pneg %p66
        %p405 = pneg %p90
        %p406 = pneg %p87
        %p407 = pneg %p111
        %p408 = pneg %p108
        %p409 = pneg %p132
        %p410 = pneg %p129
        %p411 = pneg %p153
        %p412 = pneg %p150
        %p413 = pneg %p174
        %p414 = pneg %p171
        %p415 = pneg %p195
        %p416 = pneg %p192
        %p417 = pneg %p216
        %p418 = pneg %p213
        %p419 = pneg %p237
        %p420 = pneg %p234
        %p421 = pneg %p258
        %p422 = pneg %p255
        %p423 = pneg %p279
        %p424 = pneg %p276
        %p425 = pneg %p300
        %p426 = pneg %p297
        %p427 = pneg %p326
        %p428 = pneg %p323
        %s429 = sand.u32 %s313, 1
        %s430 = scalar_lea.sflag [#allocation3], %s429
        %s431 = sand.u32 %s313, 1
        %s432 = smul.addr %s431, 64
        %s433 = scalar_lea.vmem [#allocation2], %s432
        %p434 = scmp.lt.s32.totalorder %s27, 1
        %s435 = scalar_select %p434, %s27, 1
        %s436 = smul.addr %s435, 8
        %s437 = smul.addr %s436, 8
        %s438 = scalar_lea.vmem %s0, %s437
        %v439 = vld [vmem:[%s9] sm:$0xff]
        %v440 = vld [vmem:[%s9 + $0x8] sm:$0xff]
        %v441 = vld [vmem:[%s9 + $0x10] sm:$0xff]
        %v442 = vld [vmem:[%s9 + $0x18] sm:$0xff]
        %v443 = vld [vmem:[%s9 + $0x20] sm:$0xff]
        %v444 = vld [vmem:[%s9 + $0x28] sm:$0xff]
        %v445 = vld [vmem:[%s9 + $0x30] sm:$0xff]
        %v446 = vld [vmem:[%s9 + $0x38] sm:$0xff]
        %v447 = vld [vmem:[%s9 + $0x40] sm:$0xff]
        %v448 = vld [vmem:[%s9 + $0x48] sm:$0xff]
        %v449 = vld [vmem:[%s9 + $0x50] sm:$0xff]
        %v450 = vld [vmem:[%s9 + $0x58] sm:$0xff]
        %v451 = vld [vmem:[%s3] sm:$0xff]
        %v452 = vld [vmem:[%s3 + $0x8] sm:$0xff]
        %v453 = vld [vmem:[%s3 + $0x10] sm:$0xff]
        %v454 = vld [vmem:[%s3 + $0x18] sm:$0xff]
        %v455 = vld [vmem:[%s438] sm:$0xff]
        %v456 = vld [vmem:[%s438 + $0x8] sm:$0xff]
        %v457 = vld [vmem:[%s438 + $0x10] sm:$0xff]
        %v458 = vld [vmem:[%s438 + $0x18] sm:$0xff]
        %v459 = vld [vmem:[%s438 + $0x20] sm:$0xff]
        %v460 = vld [vmem:[%s438 + $0x28] sm:$0xff]
        %v461 = vld [vmem:[%s438 + $0x30] sm:$0xff]
        %v462 = vld [vmem:[%s438 + $0x38] sm:$0xff]
        %v463 = vld [vmem:[%s10] sm:$0xff]
        %vm464 = vcmask 261120
        %v466 = vsel %vm464, %v463, 0
        %468 = vmatprep.subr.mxu0 %v456
        %469 = vmatpush1.msra.mxu0 %v455
        %470 = vmatprep.subr.mxu0 %v458
        %471 = vmatpush1.msra.mxu0 %v457
        %472 = vmatprep.subr.mxu0 %v460
        %473 = vmatpush1.msra.mxu0 %v459
        %474 = vmatprep.subr.mxu0 %v462
        %475 = vmatpush1.msra.mxu0 %v461
        %476 = vmatprep.subr.mxu0 0.0
        %477 = vmatpush1.msra.mxu0 0.0
        %478 = vmatprep.subr.mxu0 0.0
        %479 = vmatpush1.msra.mxu0 0.0
        %480 = vmatprep.subr.mxu0 0.0
        %481 = vmatpush1.msra.mxu0 0.0
        %482 = vmatprep.subr.mxu0 0.0
        %483 = vmatpush1.msra.mxu0 0.0
        %484 = vmatprep.subr.mxu0 0.0
        %485 = vmatpush1.msra.mxu0 0.0
        %486 = vmatprep.subr.mxu0 0.0
        %487 = vmatpush1.msra.mxu0 0.0
        %488 = vmatprep.subr.mxu0 0.0
        %489 = vmatpush1.msra.mxu0 0.0
        %490 = vmatprep.subr.mxu0 0.0
        %491 = vmatpush1.msra.mxu0 0.0
        %492 = vmatprep.subr.mxu0 0.0
        %493 = vmatpush1.msra.mxu0 0.0
        %494 = vmatprep.subr.mxu0 0.0
        %495 = vmatpush1.msra.mxu0 0.0
        %496 = vmatprep.subr.mxu0 0.0
        %497 = vmatpush1.msra.mxu0 0.0
        %498 = vmatprep.subr.mxu0 0.0
        %499 = vmatpush1.msra.mxu0 0.0
        %500 = vmatprep.subr.mxu0 0.0
        %501 = vmatpush1.msra.mxu0 0.0
        %502 = vmatprep.subr.mxu0 0.0
        %503 = vmatpush1.msra.mxu0 0.0
        %504 = vmatprep.subr.mxu0 0.0
        %505 = vmatpush1.msra.mxu0 0.0
        %506 = vmatprep.subr.mxu0 0.0
        %507 = vmatpush1.msra.mxu0 0.0
        %508 = vmatprep.subr.mxu0 0.0
        %509 = vmatpush1.msra.mxu0 0.0
        %510 = vmatprep.subr.mxu0 0.0
        %511 = vmatpush1.msra.mxu0 0.0
        %512 = vmatprep.subr.mxu0 0.0
        %513 = vmatpush1.msra.mxu0 0.0
        %514 = vmatprep.subr.mxu0 0.0
        %515 = vmatpush1.msra.mxu0 0.0
        %516 = vmatprep.subr.mxu0 0.0
        %517 = vmatpush1.msra.mxu0 0.0
        %518 = vmatprep.subr.mxu0 0.0
        %519 = vmatpush1.msra.mxu0 0.0
        %520 = vmatprep.subr.mxu0 0.0
        %521 = vmatpush1.msra.mxu0 0.0
        %522 = vmatprep.subr.mxu0 0.0
        %523 = vmatpush1.msra.mxu0 0.0
        %524 = vmatprep.subr.mxu0 0.0
        %525 = vmatpush1.msra.mxu0 0.0
        %526 = vmatprep.subr.mxu0 0.0
        %527 = vmatpush1.msra.mxu0 0.0
        %528 = vmatprep.subr.mxu0 0.0
        %529 = vmatpush1.msra.mxu0 0.0
        %530 = vmatprep.subr.mxu0 0.0
        %531 = vmatpush1.msra.mxu0 0.0
        %532 = vmatprep.mubr.f32.mxu0 0.0
        %533 = vmatmul.mubr.f32.gmra.mrb[0].mxu0 %v466
        %v534 = vpop.f32.mrb[0].mxu0
        %v535 = vadd.f32 0.0, %v534
        %v536 = vpop.f32.mrb[0].mxu0
        %v537 = vadd.f32 0.0, %v536
        %538 = vdwg.mxu0
        %v539 = vlaneseq
        %v540 = vshrl.u32 %v539, 7
        %v541 = vsub.s32 0, %v540
        %v542 = vrot.slane %v535, %v541
        %v543 = vlaneseq
        %v544 = vshrl.u32 %v543, 7
        %v545 = vsub.s32 0, %v544
        %v546 = vrot.slane %v537, %v545
        %v547 = vsub.f32 %v455, %v542
        %v548 = vsub.f32 %v456, %v546
        %v549 = vsub.f32 %v457, %v542
        %v550 = vsub.f32 %v458, %v546
        %v551 = vsub.f32 %v459, %v542
        %v552 = vsub.f32 %v460, %v546
        %v553 = vsub.f32 %v461, %v542
        %v554 = vsub.f32 %v462, %v546
        %v555 = vmul.f32 %v547, %v547
        %v556 = vmul.f32 %v548, %v548
        %v557 = vmul.f32 %v549, %v549
        %v558 = vmul.f32 %v550, %v550
        %v559 = vmul.f32 %v551, %v551
        %v560 = vmul.f32 %v552, %v552
        %v561 = vmul.f32 %v553, %v553
        %v562 = vmul.f32 %v554, %v554
        %563 = vmatprep.subr.mxu0 %v556
        %564 = vmatpush1.msra.mxu0 %v555
        %565 = vmatprep.subr.mxu0 %v558
        %566 = vmatpush1.msra.mxu0 %v557
        %567 = vmatprep.subr.mxu0 %v560
        %568 = vmatpush1.msra.mxu0 %v559
        %569 = vmatprep.subr.mxu0 %v562
        %570 = vmatpush1.msra.mxu0 %v561
        %571 = vmatprep.subr.mxu0 0.0
        %572 = vmatpush1.msra.mxu0 0.0
        %573 = vmatprep.subr.mxu0 0.0
        %574 = vmatpush1.msra.mxu0 0.0
        %575 = vmatprep.subr.mxu0 0.0
        %576 = vmatpush1.msra.mxu0 0.0
        %577 = vmatprep.subr.mxu0 0.0
        %578 = vmatpush1.msra.mxu0 0.0
        %579 = vmatprep.subr.mxu0 0.0
        %580 = vmatpush1.msra.mxu0 0.0
        %581 = vmatprep.subr.mxu0 0.0
        %582 = vmatpush1.msra.mxu0 0.0
        %583 = vmatprep.subr.mxu0 0.0
        %584 = vmatpush1.msra.mxu0 0.0
        %585 = vmatprep.subr.mxu0 0.0
        %586 = vmatpush1.msra.mxu0 0.0
        %587 = vmatprep.subr.mxu0 0.0
        %588 = vmatpush1.msra.mxu0 0.0
        %589 = vmatprep.subr.mxu0 0.0
        %590 = vmatpush1.msra.mxu0 0.0
        %591 = vmatprep.subr.mxu0 0.0
        %592 = vmatpush1.msra.mxu0 0.0
        %593 = vmatprep.subr.mxu0 0.0
        %594 = vmatpush1.msra.mxu0 0.0
        %595 = vmatprep.subr.mxu0 0.0
        %596 = vmatpush1.msra.mxu0 0.0
        %597 = vmatprep.subr.mxu0 0.0
        %598 = vmatpush1.msra.mxu0 0.0
        %599 = vmatprep.subr.mxu0 0.0
        %600 = vmatpush1.msra.mxu0 0.0
        %601 = vmatprep.subr.mxu0 0.0
        %602 = vmatpush1.msra.mxu0 0.0
        %603 = vmatprep.subr.mxu0 0.0
        %604 = vmatpush1.msra.mxu0 0.0
        %605 = vmatprep.subr.mxu0 0.0
        %606 = vmatpush1.msra.mxu0 0.0
        %607 = vmatprep.subr.mxu0 0.0
        %608 = vmatpush1.msra.mxu0 0.0
        %609 = vmatprep.subr.mxu0 0.0
        %610 = vmatpush1.msra.mxu0 0.0
        %611 = vmatprep.subr.mxu0 0.0
        %612 = vmatpush1.msra.mxu0 0.0
        %613 = vmatprep.subr.mxu0 0.0
        %614 = vmatpush1.msra.mxu0 0.0
        %615 = vmatprep.subr.mxu0 0.0
        %616 = vmatpush1.msra.mxu0 0.0
        %617 = vmatprep.subr.mxu0 0.0
        %618 = vmatpush1.msra.mxu0 0.0
        %619 = vmatprep.subr.mxu0 0.0
        %620 = vmatpush1.msra.mxu0 0.0
        %621 = vmatprep.subr.mxu0 0.0
        %622 = vmatpush1.msra.mxu0 0.0
        %623 = vmatprep.subr.mxu0 0.0
        %624 = vmatpush1.msra.mxu0 0.0
        %625 = vmatprep.subr.mxu0 0.0
        %626 = vmatpush1.msra.mxu0 0.0
        %627 = vmatprep.mubr.f32.mxu0 0.0
        %628 = vmatmul.mubr.f32.gmra.mrb[0].mxu0 %v466
        %v629 = vpop.f32.mrb[0].mxu0
        %v630 = vadd.f32 0.0, %v629
        %v631 = vpop.f32.mrb[0].mxu0
        %v632 = vadd.f32 0.0, %v631
        %633 = vdwg.mxu0
        %v634 = vadd.f32 %v630, 1e-05
        %v635 = vadd.f32 %v632, 1e-05
        %v636 = vrsqrt.pop %v634
        %v637 = vrsqrt.pop %v635
        %v638 = vlaneseq
        %v639 = vshrl.u32 %v638, 7
        %v640 = vsub.s32 0, %v639
        %v641 = vrot.slane %v636, %v640
        %v642 = vlaneseq
        %v643 = vshrl.u32 %v642, 7
        %v644 = vsub.s32 0, %v643
        %v645 = vrot.slane %v637, %v644
        %v646 = vmul.f32 %v547, %v641
        %v647 = vmul.f32 %v548, %v645
        %v648 = vmul.f32 %v549, %v641
        %v649 = vmul.f32 %v550, %v645
        %v650 = vmul.f32 %v551, %v641
        %v651 = vmul.f32 %v552, %v645
        %v652 = vmul.f32 %v553, %v641
        %v653 = vmul.f32 %v554, %v645
        %v654 = vld [vmem:[%s1] sm:$0xff]
        %v655 = vld [vmem:[%s1 + $0x8] sm:$0xff]
        %v656 = vld [vmem:[%s1 + $0x10] sm:$0xff]
        %v657 = vld [vmem:[%s1 + $0x18] sm:$0xff]
        %v658 = vld [vmem:[%s1 + $0x20] sm:$0xff]
        %v659 = vld [vmem:[%s1 + $0x28] sm:$0xff]
        %v660 = vld [vmem:[%s1 + $0x30] sm:$0xff]
        %v661 = vld [vmem:[%s1 + $0x38] sm:$0xff]
        %v662 = vld [vmem:[%s1 + $0x40] sm:$0xff]
        %v663 = vld [vmem:[%s1 + $0x48] sm:$0xff]
        %v664 = vld [vmem:[%s1 + $0x50] sm:$0xff]
        %v665 = vld [vmem:[%s1 + $0x58] sm:$0xff]
        %667 = vset.pattern.permute.xlu0 0
        %668 = vperm.xlu0 %667, %v439
        %v669 = vpop.permute.xlu0 %668
        %672 = vset.pattern.permute.xlu0 0
        %673 = vperm.xlu0 %672, %v440
        %v674 = vpop.permute.xlu0 %673
        %677 = vset.pattern.permute.xlu0 0
        %678 = vperm.xlu0 %677, %v441
        %v679 = vpop.permute.xlu0 %678
        %682 = vset.pattern.permute.xlu0 0
        %683 = vperm.xlu0 %682, %v442
        %v684 = vpop.permute.xlu0 %683
        %687 = vset.pattern.permute.xlu0 0
        %688 = vperm.xlu0 %687, %v443
        %v689 = vpop.permute.xlu0 %688
        %692 = vset.pattern.permute.xlu0 0
        %693 = vperm.xlu0 %692, %v444
        %v694 = vpop.permute.xlu0 %693
        %697 = vset.pattern.permute.xlu0 0
        %698 = vperm.xlu0 %697, %v445
        %v699 = vpop.permute.xlu0 %698
        %702 = vset.pattern.permute.xlu0 0
        %703 = vperm.xlu0 %702, %v446
        %v704 = vpop.permute.xlu0 %703
        %707 = vset.pattern.permute.xlu0 0
        %708 = vperm.xlu0 %707, %v447
        %v709 = vpop.permute.xlu0 %708
        %712 = vset.pattern.permute.xlu0 0
        %713 = vperm.xlu0 %712, %v448
        %v714 = vpop.permute.xlu0 %713
        %717 = vset.pattern.permute.xlu0 0
        %718 = vperm.xlu0 %717, %v449
        %v719 = vpop.permute.xlu0 %718
        %722 = vset.pattern.permute.xlu0 0
        %723 = vperm.xlu0 %722, %v450
        %v724 = vpop.permute.xlu0 %723
        %v727 = vsel %vm464, %v654, 0
        %v730 = vsel %vm464, %v655, 0
        %v733 = vsel %vm464, %v656, 0
        %v736 = vsel %vm464, %v657, 0
        %v739 = vsel %vm464, %v658, 0
        %v742 = vsel %vm464, %v659, 0
        %v745 = vsel %vm464, %v660, 0
        %v748 = vsel %vm464, %v661, 0
        %v751 = vsel %vm464, %v662, 0
        %v754 = vsel %vm464, %v663, 0
        %v757 = vsel %vm464, %v664, 0
        %v760 = vsel %vm464, %v665, 0
        %762 = vmatprep.subr.mxu0 %v647
        %763 = vmatpush1.msra.mxu0 %v646
        %764 = vmatprep.subr.mxu0 %v649
        %765 = vmatpush1.msra.mxu0 %v648
        %766 = vmatprep.subr.mxu0 %v651
        %767 = vmatpush1.msra.mxu0 %v650
        %768 = vmatprep.subr.mxu0 %v653
        %769 = vmatpush1.msra.mxu0 %v652
        %770 = vmatprep.subr.mxu0 0.0
        %771 = vmatpush1.msra.mxu0 0.0
        %772 = vmatprep.subr.mxu0 0.0
        %773 = vmatpush1.msra.mxu0 0.0
        %774 = vmatprep.subr.mxu0 0.0
        %775 = vmatpush1.msra.mxu0 0.0
        %776 = vmatprep.subr.mxu0 0.0
        %777 = vmatpush1.msra.mxu0 0.0
        %778 = vmatprep.subr.mxu0 0.0
        %779 = vmatpush1.msra.mxu0 0.0
        %780 = vmatprep.subr.mxu0 0.0
        %781 = vmatpush1.msra.mxu0 0.0
        %782 = vmatprep.subr.mxu0 0.0
        %783 = vmatpush1.msra.mxu0 0.0
        %784 = vmatprep.subr.mxu0 0.0
        %785 = vmatpush1.msra.mxu0 0.0
        %786 = vmatprep.subr.mxu0 0.0
        %787 = vmatpush1.msra.mxu0 0.0
        %788 = vmatprep.subr.mxu0 0.0
        %789 = vmatpush1.msra.mxu0 0.0
        %790 = vmatprep.subr.mxu0 0.0
        %791 = vmatpush1.msra.mxu0 0.0
        %792 = vmatprep.subr.mxu0 0.0
        %793 = vmatpush1.msra.mxu0 0.0
        %794 = vmatprep.subr.mxu0 0.0
        %795 = vmatpush1.msra.mxu0 0.0
        %796 = vmatprep.subr.mxu0 0.0
        %797 = vmatpush1.msra.mxu0 0.0
        %798 = vmatprep.subr.mxu0 0.0
        %799 = vmatpush1.msra.mxu0 0.0
        %800 = vmatprep.subr.mxu0 0.0
        %801 = vmatpush1.msra.mxu0 0.0
        %802 = vmatprep.subr.mxu0 0.0
        %803 = vmatpush1.msra.mxu0 0.0
        %804 = vmatprep.subr.mxu0 0.0
        %805 = vmatpush1.msra.mxu0 0.0
        %806 = vmatprep.subr.mxu0 0.0
        %807 = vmatpush1.msra.mxu0 0.0
        %808 = vmatprep.subr.mxu0 0.0
        %809 = vmatpush1.msra.mxu0 0.0
        %810 = vmatprep.subr.mxu0 0.0
        %811 = vmatpush1.msra.mxu0 0.0
        %812 = vmatprep.subr.mxu0 0.0
        %813 = vmatpush1.msra.mxu0 0.0
        %814 = vmatprep.subr.mxu0 0.0
        %815 = vmatpush1.msra.mxu0 0.0
        %816 = vmatprep.subr.mxu0 0.0
        %817 = vmatpush1.msra.mxu0 0.0
        %818 = vmatprep.subr.mxu0 0.0
        %819 = vmatpush1.msra.mxu0 0.0
        %820 = vmatprep.subr.mxu0 0.0
        %821 = vmatpush1.msra.mxu0 0.0
        %822 = vmatprep.subr.mxu0 0.0
        %823 = vmatpush1.msra.mxu0 0.0
        %824 = vmatprep.subr.mxu0 0.0
        %825 = vmatpush1.msra.mxu0 0.0
        %826 = vmatprep.mubr.f32.mxu0 0.0
        %827 = vmatmul.mubr.f32.gmra.mrb[0].mxu0 %v727
        %v828 = vpop.f32.mrb[0].mxu0
        %v829 = vadd.f32 %v669, %v828
        %v830 = vpop.f32.mrb[0].mxu0
        %v831 = vadd.f32 %v669, %v830
        %832 = vmatprep.mubr.f32.mxu0 0.0
        %833 = vmatmul.mubr.f32.gmra.mrb[0].mxu0 %v730
        %v834 = vpop.f32.mrb[0].mxu0
        %v835 = vadd.f32 %v674, %v834
        %v836 = vpop.f32.mrb[0].mxu0
        %v837 = vadd.f32 %v674, %v836
        %838 = vmatprep.mubr.f32.mxu0 0.0
        %839 = vmatmul.mubr.f32.gmra.mrb[0].mxu0 %v733
        %v840 = vpop.f32.mrb[0].mxu0
        %v841 = vadd.f32 %v679, %v840
        %v842 = vpop.f32.mrb[0].mxu0
        %v843 = vadd.f32 %v679, %v842
        %844 = vmatprep.mubr.f32.mxu0 0.0
        %845 = vmatmul.mubr.f32.gmra.mrb[0].mxu0 %v736
        %v846 = vpop.f32.mrb[0].mxu0
        %v847 = vadd.f32 %v684, %v846
        %v848 = vpop.f32.mrb[0].mxu0
        %v849 = vadd.f32 %v684, %v848
        %850 = vmatprep.mubr.f32.mxu0 0.0
        %851 = vmatmul.mubr.f32.gmra.mrb[0].mxu0 %v739
        %v852 = vpop.f32.mrb[0].mxu0
        %v853 = vadd.f32 %v689, %v852
        %v854 = vpop.f32.mrb[0].mxu0
        %v855 = vadd.f32 %v689, %v854
        %856 = vmatprep.mubr.f32.mxu0 0.0
        %857 = vmatmul.mubr.f32.gmra.mrb[0].mxu0 %v742
        %v858 = vpop.f32.mrb[0].mxu0
        %v859 = vadd.f32 %v694, %v858
        %v860 = vpop.f32.mrb[0].mxu0
        %v861 = vadd.f32 %v694, %v860
        %862 = vmatprep.mubr.f32.mxu0 0.0
        %863 = vmatmul.mubr.f32.gmra.mrb[0].mxu0 %v745
        %v864 = vpop.f32.mrb[0].mxu0
        %v865 = vadd.f32 %v699, %v864
        %v866 = vpop.f32.mrb[0].mxu0
        %v867 = vadd.f32 %v699, %v866
        %868 = vmatprep.mubr.f32.mxu0 0.0
        %869 = vmatmul.mubr.f32.gmra.mrb[0].mxu0 %v748
        %v870 = vpop.f32.mrb[0].mxu0
        %v871 = vadd.f32 %v704, %v870
        %v872 = vpop.f32.mrb[0].mxu0
        %v873 = vadd.f32 %v704, %v872
        %874 = vmatprep.mubr.f32.mxu0 0.0
        %875 = vmatmul.mubr.f32.gmra.mrb[0].mxu0 %v751
        %v876 = vpop.f32.mrb[0].mxu0
        %v877 = vadd.f32 %v709, %v876
        %v878 = vpop.f32.mrb[0].mxu0
        %v879 = vadd.f32 %v709, %v878
        %880 = vmatprep.mubr.f32.mxu0 0.0
        %881 = vmatmul.mubr.f32.gmra.mrb[0].mxu0 %v754
        %v882 = vpop.f32.mrb[0].mxu0
        %v883 = vadd.f32 %v714, %v882
        %v884 = vpop.f32.mrb[0].mxu0
        %v885 = vadd.f32 %v714, %v884
        %886 = vmatprep.mubr.f32.mxu0 0.0
        %887 = vmatmul.mubr.f32.gmra.mrb[0].mxu0 %v757
        %v888 = vpop.f32.mrb[0].mxu0
        %v889 = vadd.f32 %v719, %v888
        %v890 = vpop.f32.mrb[0].mxu0
        %v891 = vadd.f32 %v719, %v890
        %892 = vmatprep.mubr.f32.mxu0 0.0
        %893 = vmatmul.mubr.f32.gmra.mrb[0].mxu0 %v760
        %v894 = vpop.f32.mrb[0].mxu0
        %v895 = vadd.f32 %v724, %v894
        %v896 = vpop.f32.mrb[0].mxu0
        %v897 = vadd.f32 %v724, %v896
        %898 = vdwg.mxu0
        %899 = vrot.lane.b32.xlu0 %v829, 17
        %v900 = vpop.permute.xlu0 %899
        %901 = vrot.lane.b32.xlu0 %v835, 17
        %v902 = vpop.permute.xlu0 %901
        %903 = vrot.lane.b32.xlu0 %v841, 17
        %v904 = vpop.permute.xlu0 %903
        %905 = vrot.lane.b32.xlu0 %v847, 17
        %v906 = vpop.permute.xlu0 %905
        %907 = vrot.lane.b32.xlu0 %v853, 17
        %v908 = vpop.permute.xlu0 %907
        %909 = vrot.lane.b32.xlu0 %v859, 17
        %v910 = vpop.permute.xlu0 %909
        %911 = vrot.lane.b32.xlu0 %v865, 17
        %v912 = vpop.permute.xlu0 %911
        %913 = vrot.lane.b32.xlu0 %v871, 17
        %v914 = vpop.permute.xlu0 %913
        %915 = vrot.lane.b32.xlu0 %v877, 17
        %v916 = vpop.permute.xlu0 %915
        %917 = vrot.lane.b32.xlu0 %v883, 17
        %v918 = vpop.permute.xlu0 %917
        %919 = vrot.lane.b32.xlu0 %v889, 17
        %v920 = vpop.permute.xlu0 %919
        %921 = vrot.lane.b32.xlu0 %v895, 17
        %v922 = vpop.permute.xlu0 %921
        %923 = vrot.lane.b32.xlu0 %v831, 17
        %v924 = vpop.permute.xlu0 %923
        %925 = vrot.lane.b32.xlu0 %v837, 17
        %v926 = vpop.permute.xlu0 %925
        %927 = vrot.lane.b32.xlu0 %v843, 17
        %v928 = vpop.permute.xlu0 %927
        %929 = vrot.lane.b32.xlu0 %v849, 17
        %v930 = vpop.permute.xlu0 %929
        %931 = vrot.lane.b32.xlu0 %v855, 17
        %v932 = vpop.permute.xlu0 %931
        %933 = vrot.lane.b32.xlu0 %v861, 17
        %v934 = vpop.permute.xlu0 %933
        %935 = vrot.lane.b32.xlu0 %v867, 17
        %v936 = vpop.permute.xlu0 %935
        %937 = vrot.lane.b32.xlu0 %v873, 17
        %v938 = vpop.permute.xlu0 %937
        %939 = vrot.lane.b32.xlu0 %v879, 17
        %v940 = vpop.permute.xlu0 %939
        %941 = vrot.lane.b32.xlu0 %v885, 17
        %v942 = vpop.permute.xlu0 %941
        %943 = vrot.lane.b32.xlu0 %v891, 17
        %v944 = vpop.permute.xlu0 %943
        %945 = vrot.lane.b32.xlu0 %v897, 17
        %v946 = vpop.permute.xlu0 %945
        %v947 = vlaneseq
        %v948 = vand.u32 %v947, 127
        %vm949 = vcmp.lt.s32.totalorder %v948, 17
        %v950 = vsel %vm949, %v900, %v924
        %v951 = vsel %vm949, %v902, %v926
        %v952 = vsel %vm949, %v904, %v928
        %v953 = vsel %vm949, %v906, %v930
        %v954 = vsel %vm949, %v908, %v932
        %v955 = vsel %vm949, %v910, %v934
        %v956 = vsel %vm949, %v912, %v936
        %v957 = vsel %vm949, %v914, %v938
        %v958 = vsel %vm949, %v916, %v940
        %v959 = vsel %vm949, %v918, %v942
        %v960 = vsel %vm949, %v920, %v944
        %v961 = vsel %vm949, %v922, %v946
        %v962 = vsel %vm949, %v924, %v900
        %v963 = vsel %vm949, %v926, %v902
        %v964 = vsel %vm949, %v928, %v904
        %v965 = vsel %vm949, %v930, %v906
        %v966 = vsel %vm949, %v932, %v908
        %v967 = vsel %vm949, %v934, %v910
        %v968 = vsel %vm949, %v936, %v912
        %v969 = vsel %vm949, %v938, %v914
        %v970 = vsel %vm949, %v940, %v916
        %v971 = vsel %vm949, %v942, %v918
        %v972 = vsel %vm949, %v944, %v920
        %v973 = vsel %vm949, %v946, %v922
        %v974 = vld [vmem:[%s11] ss:$8 sm:$0x3]
        %v976 = vlaneseq
        %v977 = vshrl.u32 %v976, 7
        %v978 = vsub.s32 0, %v977
        %v979 = vrot.slane %v974, %v978
        %v980 = vlaneseq
        %v981 = vshrl.u32 %v980, 7
        %v982 = vsub.s32 1, %v981
        %v983 = vrot.slane %v974, %v982
        %v986 = vmul.f32 %v962, %v979
        %v987 = vmul.f32 %v950, %v983
        %v988 = vmul.f32 %v963, %v979
        %v989 = vmul.f32 %v951, %v983
        %v990 = vmul.f32 %v964, %v979
        %v991 = vmul.f32 %v952, %v983
        %v992 = vmul.f32 %v965, %v979
        %v993 = vmul.f32 %v953, %v983
        %v994 = vmul.f32 %v966, %v979
        %v995 = vmul.f32 %v954, %v983
        %v996 = vmul.f32 %v967, %v979
        %v997 = vmul.f32 %v955, %v983
        %v998 = vmul.f32 %v968, %v979
        %v999 = vmul.f32 %v956, %v983
        %v1000 = vmul.f32 %v969, %v979
        %v1001 = vmul.f32 %v957, %v983
        %v1002 = vmul.f32 %v970, %v979
        %v1003 = vmul.f32 %v958, %v983
        %v1004 = vmul.f32 %v971, %v979
        %v1005 = vmul.f32 %v959, %v983
        %v1006 = vmul.f32 %v972, %v979
        %v1007 = vmul.f32 %v960, %v983
        %v1008 = vmul.f32 %v973, %v979
        %v1009 = vmul.f32 %v961, %v983
        %v1010 = vld [vmem:[%s2] sm:$0xff]
        %v1011 = vld [vmem:[%s2 + $0x8] sm:$0xff]
        %v1012 = vld [vmem:[%s2 + $0x10] sm:$0xff]
        %v1013 = vld [vmem:[%s2 + $0x18] sm:$0xff]
        %v1014 = vld [vmem:[%s2 + $0x20] sm:$0xff]
        %v1015 = vld [vmem:[%s2 + $0x28] sm:$0xff]
        %v1016 = vld [vmem:[%s2 + $0x30] sm:$0xff]
        %v1017 = vld [vmem:[%s2 + $0x38] sm:$0xff]
        %v1018 = vld [vmem:[%s2 + $0x40] sm:$0xff]
        %v1019 = vld [vmem:[%s2 + $0x48] sm:$0xff]
        %v1020 = vld [vmem:[%s2 + $0x50] sm:$0xff]
        %v1021 = vld [vmem:[%s2 + $0x58] sm:$0xff]
        %1023 = vset.pattern.permute.xlu0 0
        %1024 = vperm.xlu0 %1023, %v1010
        %v1025 = vpop.permute.xlu0 %1024
        %1028 = vset.pattern.permute.xlu0 0
        %1029 = vperm.xlu0 %1028, %v1011
        %v1030 = vpop.permute.xlu0 %1029
        %1033 = vset.pattern.permute.xlu0 0
        %1034 = vperm.xlu0 %1033, %v1012
        %v1035 = vpop.permute.xlu0 %1034
        %1038 = vset.pattern.permute.xlu0 0
        %1039 = vperm.xlu0 %1038, %v1013
        %v1040 = vpop.permute.xlu0 %1039
        %1043 = vset.pattern.permute.xlu0 0
        %1044 = vperm.xlu0 %1043, %v1014
        %v1045 = vpop.permute.xlu0 %1044
        %1048 = vset.pattern.permute.xlu0 0
        %1049 = vperm.xlu0 %1048, %v1015
        %v1050 = vpop.permute.xlu0 %1049
        %1053 = vset.pattern.permute.xlu0 0
        %1054 = vperm.xlu0 %1053, %v1016
        %v1055 = vpop.permute.xlu0 %1054
        %1058 = vset.pattern.permute.xlu0 0
        %1059 = vperm.xlu0 %1058, %v1017
        %v1060 = vpop.permute.xlu0 %1059
        %1063 = vset.pattern.permute.xlu0 0
        %1064 = vperm.xlu0 %1063, %v1018
        %v1065 = vpop.permute.xlu0 %1064
        %1068 = vset.pattern.permute.xlu0 0
        %1069 = vperm.xlu0 %1068, %v1019
        %v1070 = vpop.permute.xlu0 %1069
        %1073 = vset.pattern.permute.xlu0 0
        %1074 = vperm.xlu0 %1073, %v1020
        %v1075 = vpop.permute.xlu0 %1074
        %1078 = vset.pattern.permute.xlu0 0
        %1079 = vperm.xlu0 %1078, %v1021
        %v1080 = vpop.permute.xlu0 %1079
        %v1082 = vmul.f32 %v1025, %v986
        %v1083 = vmul.f32 %v1025, %v987
        %v1084 = vmul.f32 %v1030, %v988
        %v1085 = vmul.f32 %v1030, %v989
        %v1086 = vmul.f32 %v1035, %v990
        %v1087 = vmul.f32 %v1035, %v991
        %v1088 = vmul.f32 %v1040, %v992
        %v1089 = vmul.f32 %v1040, %v993
        %v1090 = vmul.f32 %v1045, %v994
        %v1091 = vmul.f32 %v1045, %v995
        %v1092 = vmul.f32 %v1050, %v996
        %v1093 = vmul.f32 %v1050, %v997
        %v1094 = vmul.f32 %v1055, %v998
        %v1095 = vmul.f32 %v1055, %v999
        %v1096 = vmul.f32 %v1060, %v1000
        %v1097 = vmul.f32 %v1060, %v1001
        %v1098 = vmul.f32 %v1065, %v1002
        %v1099 = vmul.f32 %v1065, %v1003
        %v1100 = vmul.f32 %v1070, %v1004
        %v1101 = vmul.f32 %v1070, %v1005
        %v1102 = vmul.f32 %v1075, %v1006
        %v1103 = vmul.f32 %v1075, %v1007
        %v1104 = vmul.f32 %v1080, %v1008
        %v1105 = vmul.f32 %v1080, %v1009
        %1106 = vrot.lane.b32.xlu0 %v829, 16
        %v1107 = vpop.permute.xlu0 %1106
        %1108 = vrot.lane.b32.xlu0 %v835, 16
        %v1109 = vpop.permute.xlu0 %1108
        %1110 = vrot.lane.b32.xlu0 %v841, 16
        %v1111 = vpop.permute.xlu0 %1110
        %1112 = vrot.lane.b32.xlu0 %v847, 16
        %v1113 = vpop.permute.xlu0 %1112
        %1114 = vrot.lane.b32.xlu0 %v853, 16
        %v1115 = vpop.permute.xlu0 %1114
        %1116 = vrot.lane.b32.xlu0 %v859, 16
        %v1117 = vpop.permute.xlu0 %1116
        %1118 = vrot.lane.b32.xlu0 %v865, 16
        %v1119 = vpop.permute.xlu0 %1118
        %1120 = vrot.lane.b32.xlu0 %v871, 16
        %v1121 = vpop.permute.xlu0 %1120
        %1122 = vrot.lane.b32.xlu0 %v877, 16
        %v1123 = vpop.permute.xlu0 %1122
        %1124 = vrot.lane.b32.xlu0 %v883, 16
        %v1125 = vpop.permute.xlu0 %1124
        %1126 = vrot.lane.b32.xlu0 %v889, 16
        %v1127 = vpop.permute.xlu0 %1126
        %1128 = vrot.lane.b32.xlu0 %v895, 16
        %v1129 = vpop.permute.xlu0 %1128
        %1130 = vrot.lane.b32.xlu0 %v831, 16
        %v1131 = vpop.permute.xlu0 %1130
        %1132 = vrot.lane.b32.xlu0 %v837, 16
        %v1133 = vpop.permute.xlu0 %1132
        %1134 = vrot.lane.b32.xlu0 %v843, 16
        %v1135 = vpop.permute.xlu0 %1134
        %1136 = vrot.lane.b32.xlu0 %v849, 16
        %v1137 = vpop.permute.xlu0 %1136
        %1138 = vrot.lane.b32.xlu0 %v855, 16
        %v1139 = vpop.permute.xlu0 %1138
        %1140 = vrot.lane.b32.xlu0 %v861, 16
        %v1141 = vpop.permute.xlu0 %1140
        %1142 = vrot.lane.b32.xlu0 %v867, 16
        %v1143 = vpop.permute.xlu0 %1142
        %1144 = vrot.lane.b32.xlu0 %v873, 16
        %v1145 = vpop.permute.xlu0 %1144
        %1146 = vrot.lane.b32.xlu0 %v879, 16
        %v1147 = vpop.permute.xlu0 %1146
        %1148 = vrot.lane.b32.xlu0 %v885, 16
        %v1149 = vpop.permute.xlu0 %1148
        %1150 = vrot.lane.b32.xlu0 %v891, 16
        %v1151 = vpop.permute.xlu0 %1150
        %1152 = vrot.lane.b32.xlu0 %v897, 16
        %v1153 = vpop.permute.xlu0 %1152
        %vm1154 = vcmp.lt.s32.totalorder %v948, 16
        %v1155 = vsel %vm1154, %v1107, %v1131
        %v1156 = vsel %vm1154, %v1109, %v1133
        %v1157 = vsel %vm1154, %v1111, %v1135
        %v1158 = vsel %vm1154, %v1113, %v1137
        %v1159 = vsel %vm1154, %v1115, %v1139
        %v1160 = vsel %vm1154, %v1117, %v1141
        %v1161 = vsel %vm1154, %v1119, %v1143
        %v1162 = vsel %vm1154, %v1121, %v1145
        %v1163 = vsel %vm1154, %v1123, %v1147
        %v1164 = vsel %vm1154, %v1125, %v1149
        %v1165 = vsel %vm1154, %v1127, %v1151
        %v1166 = vsel %vm1154, %v1129, %v1153
        %v1167 = vsel %vm1154, %v1131, %v1107
        %v1168 = vsel %vm1154, %v1133, %v1109
        %v1169 = vsel %vm1154, %v1135, %v1111
        %v1170 = vsel %vm1154, %v1137, %v1113
        %v1171 = vsel %vm1154, %v1139, %v1115
        %v1172 = vsel %vm1154, %v1141, %v1117
        %v1173 = vsel %vm1154, %v1143, %v1119
        %v1174 = vsel %vm1154, %v1145, %v1121
        %v1175 = vsel %vm1154, %v1147, %v1123
        %v1176 = vsel %vm1154, %v1149, %v1125
        %v1177 = vsel %vm1154, %v1151, %v1127
        %v1178 = vsel %vm1154, %v1153, %v1129
        %s1179 = scalar_lea.vmem %s11, 1
        %v1180 = vld [vmem:[%s1179] ss:$8 sm:$0x3]
        %v1182 = vlaneseq
        %v1183 = vshrl.u32 %v1182, 7
        %v1184 = vsub.s32 0, %v1183
        %v1185 = vrot.slane %v1180, %v1184
        %v1186 = vlaneseq
        %v1187 = vshrl.u32 %v1186, 7
        %v1188 = vsub.s32 1, %v1187
        %v1189 = vrot.slane %v1180, %v1188
        %v1192 = vmul.f32 %v1167, %v1185
        %v1193 = vmul.f32 %v1155, %v1189
        %v1194 = vmul.f32 %v1168, %v1185
        %v1195 = vmul.f32 %v1156, %v1189
        %v1196 = vmul.f32 %v1169, %v1185
        %v1197 = vmul.f32 %v1157, %v1189
        %v1198 = vmul.f32 %v1170, %v1185
        %v1199 = vmul.f32 %v1158, %v1189
        %v1200 = vmul.f32 %v1171, %v1185
        %v1201 = vmul.f32 %v1159, %v1189
        %v1202 = vmul.f32 %v1172, %v1185
        %v1203 = vmul.f32 %v1160, %v1189
        %v1204 = vmul.f32 %v1173, %v1185
        %v1205 = vmul.f32 %v1161, %v1189
        %v1206 = vmul.f32 %v1174, %v1185
        %v1207 = vmul.f32 %v1162, %v1189
        %v1208 = vmul.f32 %v1175, %v1185
        %v1209 = vmul.f32 %v1163, %v1189
        %v1210 = vmul.f32 %v1176, %v1185
        %v1211 = vmul.f32 %v1164, %v1189
        %v1212 = vmul.f32 %v1177, %v1185
        %v1213 = vmul.f32 %v1165, %v1189
        %v1214 = vmul.f32 %v1178, %v1185
        %v1215 = vmul.f32 %v1166, %v1189
        %1216 = vset.pattern.permute.xlu0 1
        %1217 = vperm.xlu0 %1216, %v1010
        %v1218 = vpop.permute.xlu0 %1217
        %1220 = vset.pattern.permute.xlu0 1
        %1221 = vperm.xlu0 %1220, %v1011
        %v1222 = vpop.permute.xlu0 %1221
        %1224 = vset.pattern.permute.xlu0 1
        %1225 = vperm.xlu0 %1224, %v1012
        %v1226 = vpop.permute.xlu0 %1225
        %1228 = vset.pattern.permute.xlu0 1
        %1229 = vperm.xlu0 %1228, %v1013
        %v1230 = vpop.permute.xlu0 %1229
        %1232 = vset.pattern.permute.xlu0 1
        %1233 = vperm.xlu0 %1232, %v1014
        %v1234 = vpop.permute.xlu0 %1233
        %1236 = vset.pattern.permute.xlu0 1
        %1237 = vperm.xlu0 %1236, %v1015
        %v1238 = vpop.permute.xlu0 %1237
        %1240 = vset.pattern.permute.xlu0 1
        %1241 = vperm.xlu0 %1240, %v1016
        %v1242 = vpop.permute.xlu0 %1241
        %1244 = vset.pattern.permute.xlu0 1
        %1245 = vperm.xlu0 %1244, %v1017
        %v1246 = vpop.permute.xlu0 %1245
        %1248 = vset.pattern.permute.xlu0 1
        %1249 = vperm.xlu0 %1248, %v1018
        %v1250 = vpop.permute.xlu0 %1249
        %1252 = vset.pattern.permute.xlu0 1
        %1253 = vperm.xlu0 %1252, %v1019
        %v1254 = vpop.permute.xlu0 %1253
        %1256 = vset.pattern.permute.xlu0 1
        %1257 = vperm.xlu0 %1256, %v1020
        %v1258 = vpop.permute.xlu0 %1257
        %1260 = vset.pattern.permute.xlu0 1
        %1261 = vperm.xlu0 %1260, %v1021
        %v1262 = vpop.permute.xlu0 %1261
        %v1264 = vmul.f32 %v1218, %v1192
        %v1265 = vmul.f32 %v1218, %v1193
        %v1266 = vmul.f32 %v1222, %v1194
        %v1267 = vmul.f32 %v1222, %v1195
        %v1268 = vmul.f32 %v1226, %v1196
        %v1269 = vmul.f32 %v1226, %v1197
        %v1270 = vmul.f32 %v1230, %v1198
        %v1271 = vmul.f32 %v1230, %v1199
        %v1272 = vmul.f32 %v1234, %v1200
        %v1273 = vmul.f32 %v1234, %v1201
        %v1274 = vmul.f32 %v1238, %v1202
        %v1275 = vmul.f32 %v1238, %v1203
        %v1276 = vmul.f32 %v1242, %v1204
        %v1277 = vmul.f32 %v1242, %v1205
        %v1278 = vmul.f32 %v1246, %v1206
        %v1279 = vmul.f32 %v1246, %v1207
        %v1280 = vmul.f32 %v1250, %v1208
        %v1281 = vmul.f32 %v1250, %v1209
        %v1282 = vmul.f32 %v1254, %v1210
        %v1283 = vmul.f32 %v1254, %v1211
        %v1284 = vmul.f32 %v1258, %v1212
        %v1285 = vmul.f32 %v1258, %v1213
        %v1286 = vmul.f32 %v1262, %v1214
        %v1287 = vmul.f32 %v1262, %v1215
        %v1288 = vadd.f32 %v1082, %v1264
        %v1289 = vadd.f32 %v1083, %v1265
        %v1290 = vadd.f32 %v1084, %v1266
        %v1291 = vadd.f32 %v1085, %v1267
        %v1292 = vadd.f32 %v1086, %v1268
        %v1293 = vadd.f32 %v1087, %v1269
        %v1294 = vadd.f32 %v1088, %v1270
        %v1295 = vadd.f32 %v1089, %v1271
        %v1296 = vadd.f32 %v1090, %v1272
        %v1297 = vadd.f32 %v1091, %v1273
        %v1298 = vadd.f32 %v1092, %v1274
        %v1299 = vadd.f32 %v1093, %v1275
        %v1300 = vadd.f32 %v1094, %v1276
        %v1301 = vadd.f32 %v1095, %v1277
        %v1302 = vadd.f32 %v1096, %v1278
        %v1303 = vadd.f32 %v1097, %v1279
        %v1304 = vadd.f32 %v1098, %v1280
        %v1305 = vadd.f32 %v1099, %v1281
        %v1306 = vadd.f32 %v1100, %v1282
        %v1307 = vadd.f32 %v1101, %v1283
        %v1308 = vadd.f32 %v1102, %v1284
        %v1309 = vadd.f32 %v1103, %v1285
        %v1310 = vadd.f32 %v1104, %v1286
        %v1311 = vadd.f32 %v1105, %v1287
        %1312 = vrot.lane.b32.xlu0 %v829, 15
        %v1313 = vpop.permute.xlu0 %1312
        %1314 = vrot.lane.b32.xlu0 %v835, 15
        %v1315 = vpop.permute.xlu0 %1314
        %1316 = vrot.lane.b32.xlu0 %v841, 15
        %v1317 = vpop.permute.xlu0 %1316
        %1318 = vrot.lane.b32.xlu0 %v847, 15
        %v1319 = vpop.permute.xlu0 %1318
        %1320 = vrot.lane.b32.xlu0 %v853, 15
        %v1321 = vpop.permute.xlu0 %1320
        %1322 = vrot.lane.b32.xlu0 %v859, 15
        %v1323 = vpop.permute.xlu0 %1322
        %1324 = vrot.lane.b32.xlu0 %v865, 15
        %v1325 = vpop.permute.xlu0 %1324
        %1326 = vrot.lane.b32.xlu0 %v871, 15
        %v1327 = vpop.permute.xlu0 %1326
        %1328 = vrot.lane.b32.xlu0 %v877, 15
        %v1329 = vpop.permute.xlu0 %1328
        %1330 = vrot.lane.b32.xlu0 %v883, 15
        %v1331 = vpop.permute.xlu0 %1330
        %1332 = vrot.lane.b32.xlu0 %v889, 15
        %v1333 = vpop.permute.xlu0 %1332
        %1334 = vrot.lane.b32.xlu0 %v895, 15
        %v1335 = vpop.permute.xlu0 %1334
        %1336 = vrot.lane.b32.xlu0 %v831, 15
        %v1337 = vpop.permute.xlu0 %1336
        %1338 = vrot.lane.b32.xlu0 %v837, 15
        %v1339 = vpop.permute.xlu0 %1338
        %1340 = vrot.lane.b32.xlu0 %v843, 15
        %v1341 = vpop.permute.xlu0 %1340
        %1342 = vrot.lane.b32.xlu0 %v849, 15
        %v1343 = vpop.permute.xlu0 %1342
        %1344 = vrot.lane.b32.xlu0 %v855, 15
        %v1345 = vpop.permute.xlu0 %1344
        %1346 = vrot.lane.b32.xlu0 %v861, 15
        %v1347 = vpop.permute.xlu0 %1346
        %1348 = vrot.lane.b32.xlu0 %v867, 15
        %v1349 = vpop.permute.xlu0 %1348
        %1350 = vrot.lane.b32.xlu0 %v873, 15
        %v1351 = vpop.permute.xlu0 %1350
        %1352 = vrot.lane.b32.xlu0 %v879, 15
        %v1353 = vpop.permute.xlu0 %1352
        %1354 = vrot.lane.b32.xlu0 %v885, 15
        %v1355 = vpop.permute.xlu0 %1354
        %1356 = vrot.lane.b32.xlu0 %v891, 15
        %v1357 = vpop.permute.xlu0 %1356
        %1358 = vrot.lane.b32.xlu0 %v897, 15
        %v1359 = vpop.permute.xlu0 %1358
        %vm1360 = vcmp.lt.s32.totalorder %v948, 15
        %v1361 = vsel %vm1360, %v1313, %v1337
        %v1362 = vsel %vm1360, %v1315, %v1339
        %v1363 = vsel %vm1360, %v1317, %v1341
        %v1364 = vsel %vm1360, %v1319, %v1343
        %v1365 = vsel %vm1360, %v1321, %v1345
        %v1366 = vsel %vm1360, %v1323, %v1347
        %v1367 = vsel %vm1360, %v1325, %v1349
        %v1368 = vsel %vm1360, %v1327, %v1351
        %v1369 = vsel %vm1360, %v1329, %v1353
        %v1370 = vsel %vm1360, %v1331, %v1355
        %v1371 = vsel %vm1360, %v1333, %v1357
        %v1372 = vsel %vm1360, %v1335, %v1359
        %v1373 = vsel %vm1360, %v1337, %v1313
        %v1374 = vsel %vm1360, %v1339, %v1315
        %v1375 = vsel %vm1360, %v1341, %v1317
        %v1376 = vsel %vm1360, %v1343, %v1319
        %v1377 = vsel %vm1360, %v1345, %v1321
        %v1378 = vsel %vm1360, %v1347, %v1323
        %v1379 = vsel %vm1360, %v1349, %v1325
        %v1380 = vsel %vm1360, %v1351, %v1327
        %v1381 = vsel %vm1360, %v1353, %v1329
        %v1382 = vsel %vm1360, %v1355, %v1331
        %v1383 = vsel %vm1360, %v1357, %v1333
        %v1384 = vsel %vm1360, %v1359, %v1335
        %s1385 = scalar_lea.vmem %s11, 2
        %v1386 = vld [vmem:[%s1385] ss:$8 sm:$0x3]
        %v1388 = vlaneseq
        %v1389 = vshrl.u32 %v1388, 7
        %v1390 = vsub.s32 0, %v1389
        %v1391 = vrot.slane %v1386, %v1390
        %v1392 = vlaneseq
        %v1393 = vshrl.u32 %v1392, 7
        %v1394 = vsub.s32 1, %v1393
        %v1395 = vrot.slane %v1386, %v1394
        %v1398 = vmul.f32 %v1373, %v1391
        %v1399 = vmul.f32 %v1361, %v1395
        %v1400 = vmul.f32 %v1374, %v1391
        %v1401 = vmul.f32 %v1362, %v1395
        %v1402 = vmul.f32 %v1375, %v1391
        %v1403 = vmul.f32 %v1363, %v1395
        %v1404 = vmul.f32 %v1376, %v1391
        %v1405 = vmul.f32 %v1364, %v1395
        %v1406 = vmul.f32 %v1377, %v1391
        %v1407 = vmul.f32 %v1365, %v1395
        %v1408 = vmul.f32 %v1378, %v1391
        %v1409 = vmul.f32 %v1366, %v1395
        %v1410 = vmul.f32 %v1379, %v1391
        %v1411 = vmul.f32 %v1367, %v1395
        %v1412 = vmul.f32 %v1380, %v1391
        %v1413 = vmul.f32 %v1368, %v1395
        %v1414 = vmul.f32 %v1381, %v1391
        %v1415 = vmul.f32 %v1369, %v1395
        %v1416 = vmul.f32 %v1382, %v1391
        %v1417 = vmul.f32 %v1370, %v1395
        %v1418 = vmul.f32 %v1383, %v1391
        %v1419 = vmul.f32 %v1371, %v1395
        %v1420 = vmul.f32 %v1384, %v1391
        %v1421 = vmul.f32 %v1372, %v1395
        %1422 = vset.pattern.permute.xlu0 2
        %1423 = vperm.xlu0 %1422, %v1010
        %v1424 = vpop.permute.xlu0 %1423
        %1426 = vset.pattern.permute.xlu0 2
        %1427 = vperm.xlu0 %1426, %v1011
        %v1428 = vpop.permute.xlu0 %1427
        %1430 = vset.pattern.permute.xlu0 2
        %1431 = vperm.xlu0 %1430, %v1012
        %v1432 = vpop.permute.xlu0 %1431
        %1434 = vset.pattern.permute.xlu0 2
        %1435 = vperm.xlu0 %1434, %v1013
        %v1436 = vpop.permute.xlu0 %1435
        %1438 = vset.pattern.permute.xlu0 2
        %1439 = vperm.xlu0 %1438, %v1014
        %v1440 = vpop.permute.xlu0 %1439
        %1442 = vset.pattern.permute.xlu0 2
        %1443 = vperm.xlu0 %1442, %v1015
        %v1444 = vpop.permute.xlu0 %1443
        %1446 = vset.pattern.permute.xlu0 2
        %1447 = vperm.xlu0 %1446, %v1016
        %v1448 = vpop.permute.xlu0 %1447
        %1450 = vset.pattern.permute.xlu0 2
        %1451 = vperm.xlu0 %1450, %v1017
        %v1452 = vpop.permute.xlu0 %1451
        %1454 = vset.pattern.permute.xlu0 2
        %1455 = vperm.xlu0 %1454, %v1018
        %v1456 = vpop.permute.xlu0 %1455
        %1458 = vset.pattern.permute.xlu0 2
        %1459 = vperm.xlu0 %1458, %v1019
        %v1460 = vpop.permute.xlu0 %1459
        %1462 = vset.pattern.permute.xlu0 2
        %1463 = vperm.xlu0 %1462, %v1020
        %v1464 = vpop.permute.xlu0 %1463
        %1466 = vset.pattern.permute.xlu0 2
        %1467 = vperm.xlu0 %1466, %v1021
        %v1468 = vpop.permute.xlu0 %1467
        %v1470 = vmul.f32 %v1424, %v1398
        %v1471 = vmul.f32 %v1424, %v1399
        %v1472 = vmul.f32 %v1428, %v1400
        %v1473 = vmul.f32 %v1428, %v1401
        %v1474 = vmul.f32 %v1432, %v1402
        %v1475 = vmul.f32 %v1432, %v1403
        %v1476 = vmul.f32 %v1436, %v1404
        %v1477 = vmul.f32 %v1436, %v1405
        %v1478 = vmul.f32 %v1440, %v1406
        %v1479 = vmul.f32 %v1440, %v1407
        %v1480 = vmul.f32 %v1444, %v1408
        %v1481 = vmul.f32 %v1444, %v1409
        %v1482 = vmul.f32 %v1448, %v1410
        %v1483 = vmul.f32 %v1448, %v1411
        %v1484 = vmul.f32 %v1452, %v1412
        %v1485 = vmul.f32 %v1452, %v1413
        %v1486 = vmul.f32 %v1456, %v1414
        %v1487 = vmul.f32 %v1456, %v1415
        %v1488 = vmul.f32 %v1460, %v1416
        %v1489 = vmul.f32 %v1460, %v1417
        %v1490 = vmul.f32 %v1464, %v1418
        %v1491 = vmul.f32 %v1464, %v1419
        %v1492 = vmul.f32 %v1468, %v1420
        %v1493 = vmul.f32 %v1468, %v1421
        %v1494 = vadd.f32 %v1288, %v1470
        %v1495 = vadd.f32 %v1289, %v1471
        %v1496 = vadd.f32 %v1290, %v1472
        %v1497 = vadd.f32 %v1291, %v1473
        %v1498 = vadd.f32 %v1292, %v1474
        %v1499 = vadd.f32 %v1293, %v1475
        %v1500 = vadd.f32 %v1294, %v1476
        %v1501 = vadd.f32 %v1295, %v1477
        %v1502 = vadd.f32 %v1296, %v1478
        %v1503 = vadd.f32 %v1297, %v1479
        %v1504 = vadd.f32 %v1298, %v1480
        %v1505 = vadd.f32 %v1299, %v1481
        %v1506 = vadd.f32 %v1300, %v1482
        %v1507 = vadd.f32 %v1301, %v1483
        %v1508 = vadd.f32 %v1302, %v1484
        %v1509 = vadd.f32 %v1303, %v1485
        %v1510 = vadd.f32 %v1304, %v1486
        %v1511 = vadd.f32 %v1305, %v1487
        %v1512 = vadd.f32 %v1306, %v1488
        %v1513 = vadd.f32 %v1307, %v1489
        %v1514 = vadd.f32 %v1308, %v1490
        %v1515 = vadd.f32 %v1309, %v1491
        %v1516 = vadd.f32 %v1310, %v1492
        %v1517 = vadd.f32 %v1311, %v1493
        %1518 = vrot.lane.b32.xlu0 %v829, 1
        %v1519 = vpop.permute.xlu0 %1518
        %1520 = vrot.lane.b32.xlu0 %v835, 1
        %v1521 = vpop.permute.xlu0 %1520
        %1522 = vrot.lane.b32.xlu0 %v841, 1
        %v1523 = vpop.permute.xlu0 %1522
        %1524 = vrot.lane.b32.xlu0 %v847, 1
        %v1525 = vpop.permute.xlu0 %1524
        %1526 = vrot.lane.b32.xlu0 %v853, 1
        %v1527 = vpop.permute.xlu0 %1526
        %1528 = vrot.lane.b32.xlu0 %v859, 1
        %v1529 = vpop.permute.xlu0 %1528
        %1530 = vrot.lane.b32.xlu0 %v865, 1
        %v1531 = vpop.permute.xlu0 %1530
        %1532 = vrot.lane.b32.xlu0 %v871, 1
        %v1533 = vpop.permute.xlu0 %1532
        %1534 = vrot.lane.b32.xlu0 %v877, 1
        %v1535 = vpop.permute.xlu0 %1534
        %1536 = vrot.lane.b32.xlu0 %v883, 1
        %v1537 = vpop.permute.xlu0 %1536
        %1538 = vrot.lane.b32.xlu0 %v889, 1
        %v1539 = vpop.permute.xlu0 %1538
        %1540 = vrot.lane.b32.xlu0 %v895, 1
        %v1541 = vpop.permute.xlu0 %1540
        %1542 = vrot.lane.b32.xlu0 %v831, 1
        %v1543 = vpop.permute.xlu0 %1542
        %1544 = vrot.lane.b32.xlu0 %v837, 1
        %v1545 = vpop.permute.xlu0 %1544
        %1546 = vrot.lane.b32.xlu0 %v843, 1
        %v1547 = vpop.permute.xlu0 %1546
        %1548 = vrot.lane.b32.xlu0 %v849, 1
        %v1549 = vpop.permute.xlu0 %1548
        %1550 = vrot.lane.b32.xlu0 %v855, 1
        %v1551 = vpop.permute.xlu0 %1550
        %1552 = vrot.lane.b32.xlu0 %v861, 1
        %v1553 = vpop.permute.xlu0 %1552
        %1554 = vrot.lane.b32.xlu0 %v867, 1
        %v1555 = vpop.permute.xlu0 %1554
        %1556 = vrot.lane.b32.xlu0 %v873, 1
        %v1557 = vpop.permute.xlu0 %1556
        %1558 = vrot.lane.b32.xlu0 %v879, 1
        %v1559 = vpop.permute.xlu0 %1558
        %1560 = vrot.lane.b32.xlu0 %v885, 1
        %v1561 = vpop.permute.xlu0 %1560
        %1562 = vrot.lane.b32.xlu0 %v891, 1
        %v1563 = vpop.permute.xlu0 %1562
        %1564 = vrot.lane.b32.xlu0 %v897, 1
        %v1565 = vpop.permute.xlu0 %1564
        %vm1566 = vcmp.lt.s32.totalorder %v948, 1
        %v1567 = vsel %vm1566, %v1519, %v1543
        %v1568 = vsel %vm1566, %v1521, %v1545
        %v1569 = vsel %vm1566, %v1523, %v1547
        %v1570 = vsel %vm1566, %v1525, %v1549
        %v1571 = vsel %vm1566, %v1527, %v1551
        %v1572 = vsel %vm1566, %v1529, %v1553
        %v1573 = vsel %vm1566, %v1531, %v1555
        %v1574 = vsel %vm1566, %v1533, %v1557
        %v1575 = vsel %vm1566, %v1535, %v1559
        %v1576 = vsel %vm1566, %v1537, %v1561
        %v1577 = vsel %vm1566, %v1539, %v1563
        %v1578 = vsel %vm1566, %v1541, %v1565
        %v1579 = vsel %vm1566, %v1543, %v1519
        %v1580 = vsel %vm1566, %v1545, %v1521
        %v1581 = vsel %vm1566, %v1547, %v1523
        %v1582 = vsel %vm1566, %v1549, %v1525
        %v1583 = vsel %vm1566, %v1551, %v1527
        %v1584 = vsel %vm1566, %v1553, %v1529
        %v1585 = vsel %vm1566, %v1555, %v1531
        %v1586 = vsel %vm1566, %v1557, %v1533
        %v1587 = vsel %vm1566, %v1559, %v1535
        %v1588 = vsel %vm1566, %v1561, %v1537
        %v1589 = vsel %vm1566, %v1563, %v1539
        %v1590 = vsel %vm1566, %v1565, %v1541
        %s1591 = scalar_lea.vmem %s11, 3
        %v1592 = vld [vmem:[%s1591] ss:$8 sm:$0x3]
        %v1594 = vlaneseq
        %v1595 = vshrl.u32 %v1594, 7
        %v1596 = vsub.s32 0, %v1595
        %v1597 = vrot.slane %v1592, %v1596
        %v1598 = vlaneseq
        %v1599 = vshrl.u32 %v1598, 7
        %v1600 = vsub.s32 1, %v1599
        %v1601 = vrot.slane %v1592, %v1600
        %v1604 = vmul.f32 %v1579, %v1597
        %v1605 = vmul.f32 %v1567, %v1601
        %v1606 = vmul.f32 %v1580, %v1597
        %v1607 = vmul.f32 %v1568, %v1601
        %v1608 = vmul.f32 %v1581, %v1597
        %v1609 = vmul.f32 %v1569, %v1601
        %v1610 = vmul.f32 %v1582, %v1597
        %v1611 = vmul.f32 %v1570, %v1601
        %v1612 = vmul.f32 %v1583, %v1597
        %v1613 = vmul.f32 %v1571, %v1601
        %v1614 = vmul.f32 %v1584, %v1597
        %v1615 = vmul.f32 %v1572, %v1601
        %v1616 = vmul.f32 %v1585, %v1597
        %v1617 = vmul.f32 %v1573, %v1601
        %v1618 = vmul.f32 %v1586, %v1597
        %v1619 = vmul.f32 %v1574, %v1601
        %v1620 = vmul.f32 %v1587, %v1597
        %v1621 = vmul.f32 %v1575, %v1601
        %v1622 = vmul.f32 %v1588, %v1597
        %v1623 = vmul.f32 %v1576, %v1601
        %v1624 = vmul.f32 %v1589, %v1597
        %v1625 = vmul.f32 %v1577, %v1601
        %v1626 = vmul.f32 %v1590, %v1597
        %v1627 = vmul.f32 %v1578, %v1601
        %1628 = vset.pattern.permute.xlu0 3
        %1629 = vperm.xlu0 %1628, %v1010
        %v1630 = vpop.permute.xlu0 %1629
        %1632 = vset.pattern.permute.xlu0 3
        %1633 = vperm.xlu0 %1632, %v1011
        %v1634 = vpop.permute.xlu0 %1633
        %1636 = vset.pattern.permute.xlu0 3
        %1637 = vperm.xlu0 %1636, %v1012
        %v1638 = vpop.permute.xlu0 %1637
        %1640 = vset.pattern.permute.xlu0 3
        %1641 = vperm.xlu0 %1640, %v1013
        %v1642 = vpop.permute.xlu0 %1641
        %1644 = vset.pattern.permute.xlu0 3
        %1645 = vperm.xlu0 %1644, %v1014
        %v1646 = vpop.permute.xlu0 %1645
        %1648 = vset.pattern.permute.xlu0 3
        %1649 = vperm.xlu0 %1648, %v1015
        %v1650 = vpop.permute.xlu0 %1649
        %1652 = vset.pattern.permute.xlu0 3
        %1653 = vperm.xlu0 %1652, %v1016
        %v1654 = vpop.permute.xlu0 %1653
        %1656 = vset.pattern.permute.xlu0 3
        %1657 = vperm.xlu0 %1656, %v1017
        %v1658 = vpop.permute.xlu0 %1657
        %1660 = vset.pattern.permute.xlu0 3
        %1661 = vperm.xlu0 %1660, %v1018
        %v1662 = vpop.permute.xlu0 %1661
        %1664 = vset.pattern.permute.xlu0 3
        %1665 = vperm.xlu0 %1664, %v1019
        %v1666 = vpop.permute.xlu0 %1665
        %1668 = vset.pattern.permute.xlu0 3
        %1669 = vperm.xlu0 %1668, %v1020
        %v1670 = vpop.permute.xlu0 %1669
        %1672 = vset.pattern.permute.xlu0 3
        %1673 = vperm.xlu0 %1672, %v1021
        %v1674 = vpop.permute.xlu0 %1673
        %v1676 = vmul.f32 %v1630, %v1604
        %v1677 = vmul.f32 %v1630, %v1605
        %v1678 = vmul.f32 %v1634, %v1606
        %v1679 = vmul.f32 %v1634, %v1607
        %v1680 = vmul.f32 %v1638, %v1608
        %v1681 = vmul.f32 %v1638, %v1609
        %v1682 = vmul.f32 %v1642, %v1610
        %v1683 = vmul.f32 %v1642, %v1611
        %v1684 = vmul.f32 %v1646, %v1612
        %v1685 = vmul.f32 %v1646, %v1613
        %v1686 = vmul.f32 %v1650, %v1614
        %v1687 = vmul.f32 %v1650, %v1615
        %v1688 = vmul.f32 %v1654, %v1616
        %v1689 = vmul.f32 %v1654, %v1617
        %v1690 = vmul.f32 %v1658, %v1618
        %v1691 = vmul.f32 %v1658, %v1619
        %v1692 = vmul.f32 %v1662, %v1620
        %v1693 = vmul.f32 %v1662, %v1621
        %v1694 = vmul.f32 %v1666, %v1622
        %v1695 = vmul.f32 %v1666, %v1623
        %v1696 = vmul.f32 %v1670, %v1624
        %v1697 = vmul.f32 %v1670, %v1625
        %v1698 = vmul.f32 %v1674, %v1626
        %v1699 = vmul.f32 %v1674, %v1627
        %v1700 = vadd.f32 %v1494, %v1676
        %v1701 = vadd.f32 %v1495, %v1677
        %v1702 = vadd.f32 %v1496, %v1678
        %v1703 = vadd.f32 %v1497, %v1679
        %v1704 = vadd.f32 %v1498, %v1680
        %v1705 = vadd.f32 %v1499, %v1681
        %v1706 = vadd.f32 %v1500, %v1682
        %v1707 = vadd.f32 %v1501, %v1683
        %v1708 = vadd.f32 %v1502, %v1684
        %v1709 = vadd.f32 %v1503, %v1685
        %v1710 = vadd.f32 %v1504, %v1686
        %v1711 = vadd.f32 %v1505, %v1687
        %v1712 = vadd.f32 %v1506, %v1688
        %v1713 = vadd.f32 %v1507, %v1689
        %v1714 = vadd.f32 %v1508, %v1690
        %v1715 = vadd.f32 %v1509, %v1691
        %v1716 = vadd.f32 %v1510, %v1692
        %v1717 = vadd.f32 %v1511, %v1693
        %v1718 = vadd.f32 %v1512, %v1694
        %v1719 = vadd.f32 %v1513, %v1695
        %v1720 = vadd.f32 %v1514, %v1696
        %v1721 = vadd.f32 %v1515, %v1697
        %v1722 = vadd.f32 %v1516, %v1698
        %v1723 = vadd.f32 %v1517, %v1699
        %1724 = vset.pattern.permute.xlu0 4
        %1725 = vperm.xlu0 %1724, %v1010
        %v1726 = vpop.permute.xlu0 %1725
        %1728 = vset.pattern.permute.xlu0 4
        %1729 = vperm.xlu0 %1728, %v1011
        %v1730 = vpop.permute.xlu0 %1729
        %1732 = vset.pattern.permute.xlu0 4
        %1733 = vperm.xlu0 %1732, %v1012
        %v1734 = vpop.permute.xlu0 %1733
        %1736 = vset.pattern.permute.xlu0 4
        %1737 = vperm.xlu0 %1736, %v1013
        %v1738 = vpop.permute.xlu0 %1737
        %1740 = vset.pattern.permute.xlu0 4
        %1741 = vperm.xlu0 %1740, %v1014
        %v1742 = vpop.permute.xlu0 %1741
        %1744 = vset.pattern.permute.xlu0 4
        %1745 = vperm.xlu0 %1744, %v1015
        %v1746 = vpop.permute.xlu0 %1745
        %1748 = vset.pattern.permute.xlu0 4
        %1749 = vperm.xlu0 %1748, %v1016
        %v1750 = vpop.permute.xlu0 %1749
        %1752 = vset.pattern.permute.xlu0 4
        %1753 = vperm.xlu0 %1752, %v1017
        %v1754 = vpop.permute.xlu0 %1753
        %1756 = vset.pattern.permute.xlu0 4
        %1757 = vperm.xlu0 %1756, %v1018
        %v1758 = vpop.permute.xlu0 %1757
        %1760 = vset.pattern.permute.xlu0 4
        %1761 = vperm.xlu0 %1760, %v1019
        %v1762 = vpop.permute.xlu0 %1761
        %1764 = vset.pattern.permute.xlu0 4
        %1765 = vperm.xlu0 %1764, %v1020
        %v1766 = vpop.permute.xlu0 %1765
        %1768 = vset.pattern.permute.xlu0 4
        %1769 = vperm.xlu0 %1768, %v1021
        %v1770 = vpop.permute.xlu0 %1769
        %v1772 = vmul.f32 %v1726, %v829
        %v1773 = vmul.f32 %v1726, %v831
        %v1774 = vmul.f32 %v1730, %v835
        %v1775 = vmul.f32 %v1730, %v837
        %v1776 = vmul.f32 %v1734, %v841
        %v1777 = vmul.f32 %v1734, %v843
        %v1778 = vmul.f32 %v1738, %v847
        %v1779 = vmul.f32 %v1738, %v849
        %v1780 = vmul.f32 %v1742, %v853
        %v1781 = vmul.f32 %v1742, %v855
        %v1782 = vmul.f32 %v1746, %v859
        %v1783 = vmul.f32 %v1746, %v861
        %v1784 = vmul.f32 %v1750, %v865
        %v1785 = vmul.f32 %v1750, %v867
        %v1786 = vmul.f32 %v1754, %v871
        %v1787 = vmul.f32 %v1754, %v873
        %v1788 = vmul.f32 %v1758, %v877
        %v1789 = vmul.f32 %v1758, %v879
        %v1790 = vmul.f32 %v1762, %v883
        %v1791 = vmul.f32 %v1762, %v885
        %v1792 = vmul.f32 %v1766, %v889
        %v1793 = vmul.f32 %v1766, %v891
        %v1794 = vmul.f32 %v1770, %v895
        %v1795 = vmul.f32 %v1770, %v897
        %v1796 = vadd.f32 %v1700, %v1772
        %v1797 = vadd.f32 %v1701, %v1773
        %v1798 = vadd.f32 %v1702, %v1774
        %v1799 = vadd.f32 %v1703, %v1775
        %v1800 = vadd.f32 %v1704, %v1776
        %v1801 = vadd.f32 %v1705, %v1777
        %v1802 = vadd.f32 %v1706, %v1778
        %v1803 = vadd.f32 %v1707, %v1779
        %v1804 = vadd.f32 %v1708, %v1780
        %v1805 = vadd.f32 %v1709, %v1781
        %v1806 = vadd.f32 %v1710, %v1782
        %v1807 = vadd.f32 %v1711, %v1783
        %v1808 = vadd.f32 %v1712, %v1784
        %v1809 = vadd.f32 %v1713, %v1785
        %v1810 = vadd.f32 %v1714, %v1786
        %v1811 = vadd.f32 %v1715, %v1787
        %v1812 = vadd.f32 %v1716, %v1788
        %v1813 = vadd.f32 %v1717, %v1789
        %v1814 = vadd.f32 %v1718, %v1790
        %v1815 = vadd.f32 %v1719, %v1791
        %v1816 = vadd.f32 %v1720, %v1792
        %v1817 = vadd.f32 %v1721, %v1793
        %v1818 = vadd.f32 %v1722, %v1794
        %v1819 = vadd.f32 %v1723, %v1795
        %1820 = vrot.lane.b32.xlu0 %v829, 127
        %v1821 = vpop.permute.xlu0 %1820
        %1822 = vrot.lane.b32.xlu0 %v835, 127
        %v1823 = vpop.permute.xlu0 %1822
        %1824 = vrot.lane.b32.xlu0 %v841, 127
        %v1825 = vpop.permute.xlu0 %1824
        %1826 = vrot.lane.b32.xlu0 %v847, 127
        %v1827 = vpop.permute.xlu0 %1826
        %1828 = vrot.lane.b32.xlu0 %v853, 127
        %v1829 = vpop.permute.xlu0 %1828
        %1830 = vrot.lane.b32.xlu0 %v859, 127
        %v1831 = vpop.permute.xlu0 %1830
        %1832 = vrot.lane.b32.xlu0 %v865, 127
        %v1833 = vpop.permute.xlu0 %1832
        %1834 = vrot.lane.b32.xlu0 %v871, 127
        %v1835 = vpop.permute.xlu0 %1834
        %1836 = vrot.lane.b32.xlu0 %v877, 127
        %v1837 = vpop.permute.xlu0 %1836
        %1838 = vrot.lane.b32.xlu0 %v883, 127
        %v1839 = vpop.permute.xlu0 %1838
        %1840 = vrot.lane.b32.xlu0 %v889, 127
        %v1841 = vpop.permute.xlu0 %1840
        %1842 = vrot.lane.b32.xlu0 %v895, 127
        %v1843 = vpop.permute.xlu0 %1842
        %1844 = vrot.lane.b32.xlu0 %v831, 127
        %v1845 = vpop.permute.xlu0 %1844
        %1846 = vrot.lane.b32.xlu0 %v837, 127
        %v1847 = vpop.permute.xlu0 %1846
        %1848 = vrot.lane.b32.xlu0 %v843, 127
        %v1849 = vpop.permute.xlu0 %1848
        %1850 = vrot.lane.b32.xlu0 %v849, 127
        %v1851 = vpop.permute.xlu0 %1850
        %1852 = vrot.lane.b32.xlu0 %v855, 127
        %v1853 = vpop.permute.xlu0 %1852
        %1854 = vrot.lane.b32.xlu0 %v861, 127
        %v1855 = vpop.permute.xlu0 %1854
        %1856 = vrot.lane.b32.xlu0 %v867, 127
        %v1857 = vpop.permute.xlu0 %1856
        %1858 = vrot.lane.b32.xlu0 %v873, 127
        %v1859 = vpop.permute.xlu0 %1858
        %1860 = vrot.lane.b32.xlu0 %v879, 127
        %v1861 = vpop.permute.xlu0 %1860
        %1862 = vrot.lane.b32.xlu0 %v885, 127
        %v1863 = vpop.permute.xlu0 %1862
        %1864 = vrot.lane.b32.xlu0 %v891, 127
        %v1865 = vpop.permute.xlu0 %1864
        %1866 = vrot.lane.b32.xlu0 %v897, 127
        %v1867 = vpop.permute.xlu0 %1866
        %vm1868 = vcmp.lt.s32.totalorder %v948, 127
        %v1869 = vsel %vm1868, %v1821, %v1845
        %v1870 = vsel %vm1868, %v1823, %v1847
        %v1871 = vsel %vm1868, %v1825, %v1849
        %v1872 = vsel %vm1868, %v1827, %v1851
        %v1873 = vsel %vm1868, %v1829, %v1853
        %v1874 = vsel %vm1868, %v1831, %v1855
        %v1875 = vsel %vm1868, %v1833, %v1857
        %v1876 = vsel %vm1868, %v1835, %v1859
        %v1877 = vsel %vm1868, %v1837, %v1861
        %v1878 = vsel %vm1868, %v1839, %v1863
        %v1879 = vsel %vm1868, %v1841, %v1865
        %v1880 = vsel %vm1868, %v1843, %v1867
        %v1881 = vsel %vm1868, %v1845, %v1821
        %v1882 = vsel %vm1868, %v1847, %v1823
        %v1883 = vsel %vm1868, %v1849, %v1825
        %v1884 = vsel %vm1868, %v1851, %v1827
        %v1885 = vsel %vm1868, %v1853, %v1829
        %v1886 = vsel %vm1868, %v1855, %v1831
        %v1887 = vsel %vm1868, %v1857, %v1833
        %v1888 = vsel %vm1868, %v1859, %v1835
        %v1889 = vsel %vm1868, %v1861, %v1837
        %v1890 = vsel %vm1868, %v1863, %v1839
        %v1891 = vsel %vm1868, %v1865, %v1841
        %v1892 = vsel %vm1868, %v1867, %v1843
        %s1893 = scalar_lea.vmem %s11, 5
        %v1894 = vld [vmem:[%s1893] ss:$8 sm:$0x3]
        %v1896 = vlaneseq
        %v1897 = vshrl.u32 %v1896, 7
        %v1898 = vsub.s32 0, %v1897
        %v1899 = vrot.slane %v1894, %v1898
        %v1900 = vlaneseq
        %v1901 = vshrl.u32 %v1900, 7
        %v1902 = vsub.s32 1, %v1901
        %v1903 = vrot.slane %v1894, %v1902
        %v1906 = vmul.f32 %v1869, %v1899
        %v1907 = vmul.f32 %v1881, %v1903
        %v1908 = vmul.f32 %v1870, %v1899
        %v1909 = vmul.f32 %v1882, %v1903
        %v1910 = vmul.f32 %v1871, %v1899
        %v1911 = vmul.f32 %v1883, %v1903
        %v1912 = vmul.f32 %v1872, %v1899
        %v1913 = vmul.f32 %v1884, %v1903
        %v1914 = vmul.f32 %v1873, %v1899
        %v1915 = vmul.f32 %v1885, %v1903
        %v1916 = vmul.f32 %v1874, %v1899
        %v1917 = vmul.f32 %v1886, %v1903
        %v1918 = vmul.f32 %v1875, %v1899
        %v1919 = vmul.f32 %v1887, %v1903
        %v1920 = vmul.f32 %v1876, %v1899
        %v1921 = vmul.f32 %v1888, %v1903
        %v1922 = vmul.f32 %v1877, %v1899
        %v1923 = vmul.f32 %v1889, %v1903
        %v1924 = vmul.f32 %v1878, %v1899
        %v1925 = vmul.f32 %v1890, %v1903
        %v1926 = vmul.f32 %v1879, %v1899
        %v1927 = vmul.f32 %v1891, %v1903
        %v1928 = vmul.f32 %v1880, %v1899
        %v1929 = vmul.f32 %v1892, %v1903
        %1930 = vset.pattern.permute.xlu0 5
        %1931 = vperm.xlu0 %1930, %v1010
        %v1932 = vpop.permute.xlu0 %1931
        %1934 = vset.pattern.permute.xlu0 5
        %1935 = vperm.xlu0 %1934, %v1011
        %v1936 = vpop.permute.xlu0 %1935
        %1938 = vset.pattern.permute.xlu0 5
        %1939 = vperm.xlu0 %1938, %v1012
        %v1940 = vpop.permute.xlu0 %1939
        %1942 = vset.pattern.permute.xlu0 5
        %1943 = vperm.xlu0 %1942, %v1013
        %v1944 = vpop.permute.xlu0 %1943
        %1946 = vset.pattern.permute.xlu0 5
        %1947 = vperm.xlu0 %1946, %v1014
        %v1948 = vpop.permute.xlu0 %1947
        %1950 = vset.pattern.permute.xlu0 5
        %1951 = vperm.xlu0 %1950, %v1015
        %v1952 = vpop.permute.xlu0 %1951
        %1954 = vset.pattern.permute.xlu0 5
        %1955 = vperm.xlu0 %1954, %v1016
        %v1956 = vpop.permute.xlu0 %1955
        %1958 = vset.pattern.permute.xlu0 5
        %1959 = vperm.xlu0 %1958, %v1017
        %v1960 = vpop.permute.xlu0 %1959
        %1962 = vset.pattern.permute.xlu0 5
        %1963 = vperm.xlu0 %1962, %v1018
        %v1964 = vpop.permute.xlu0 %1963
        %1966 = vset.pattern.permute.xlu0 5
        %1967 = vperm.xlu0 %1966, %v1019
        %v1968 = vpop.permute.xlu0 %1967
        %1970 = vset.pattern.permute.xlu0 5
        %1971 = vperm.xlu0 %1970, %v1020
        %v1972 = vpop.permute.xlu0 %1971
        %1974 = vset.pattern.permute.xlu0 5
        %1975 = vperm.xlu0 %1974, %v1021
        %v1976 = vpop.permute.xlu0 %1975
        %v1978 = vmul.f32 %v1932, %v1906
        %v1979 = vmul.f32 %v1932, %v1907
        %v1980 = vmul.f32 %v1936, %v1908
        %v1981 = vmul.f32 %v1936, %v1909
        %v1982 = vmul.f32 %v1940, %v1910
        %v1983 = vmul.f32 %v1940, %v1911
        %v1984 = vmul.f32 %v1944, %v1912
        %v1985 = vmul.f32 %v1944, %v1913
        %v1986 = vmul.f32 %v1948, %v1914
        %v1987 = vmul.f32 %v1948, %v1915
        %v1988 = vmul.f32 %v1952, %v1916
        %v1989 = vmul.f32 %v1952, %v1917
        %v1990 = vmul.f32 %v1956, %v1918
        %v1991 = vmul.f32 %v1956, %v1919
        %v1992 = vmul.f32 %v1960, %v1920
        %v1993 = vmul.f32 %v1960, %v1921
        %v1994 = vmul.f32 %v1964, %v1922
        %v1995 = vmul.f32 %v1964, %v1923
        %v1996 = vmul.f32 %v1968, %v1924
        %v1997 = vmul.f32 %v1968, %v1925
        %v1998 = vmul.f32 %v1972, %v1926
        %v1999 = vmul.f32 %v1972, %v1927
        %v2000 = vmul.f32 %v1976, %v1928
        %v2001 = vmul.f32 %v1976, %v1929
        %v2002 = vadd.f32 %v1796, %v1978
        %v2003 = vadd.f32 %v1797, %v1979
        %v2004 = vadd.f32 %v1798, %v1980
        %v2005 = vadd.f32 %v1799, %v1981
        %v2006 = vadd.f32 %v1800, %v1982
        %v2007 = vadd.f32 %v1801, %v1983
        %v2008 = vadd.f32 %v1802, %v1984
        %v2009 = vadd.f32 %v1803, %v1985
        %v2010 = vadd.f32 %v1804, %v1986
        %v2011 = vadd.f32 %v1805, %v1987
        %v2012 = vadd.f32 %v1806, %v1988
        %v2013 = vadd.f32 %v1807, %v1989
        %v2014 = vadd.f32 %v1808, %v1990
        %v2015 = vadd.f32 %v1809, %v1991
        %v2016 = vadd.f32 %v1810, %v1992
        %v2017 = vadd.f32 %v1811, %v1993
        %v2018 = vadd.f32 %v1812, %v1994
        %v2019 = vadd.f32 %v1813, %v1995
        %v2020 = vadd.f32 %v1814, %v1996
        %v2021 = vadd.f32 %v1815, %v1997
        %v2022 = vadd.f32 %v1816, %v1998
        %v2023 = vadd.f32 %v1817, %v1999
        %v2024 = vadd.f32 %v1818, %v2000
        %v2025 = vadd.f32 %v1819, %v2001
        %2026 = vrot.lane.b32.xlu0 %v829, 113
        %v2027 = vpop.permute.xlu0 %2026
        %2028 = vrot.lane.b32.xlu0 %v835, 113
        %v2029 = vpop.permute.xlu0 %2028
        %2030 = vrot.lane.b32.xlu0 %v841, 113
        %v2031 = vpop.permute.xlu0 %2030
        %2032 = vrot.lane.b32.xlu0 %v847, 113
        %v2033 = vpop.permute.xlu0 %2032
        %2034 = vrot.lane.b32.xlu0 %v853, 113
        %v2035 = vpop.permute.xlu0 %2034
        %2036 = vrot.lane.b32.xlu0 %v859, 113
        %v2037 = vpop.permute.xlu0 %2036
        %2038 = vrot.lane.b32.xlu0 %v865, 113
        %v2039 = vpop.permute.xlu0 %2038
        %2040 = vrot.lane.b32.xlu0 %v871, 113
        %v2041 = vpop.permute.xlu0 %2040
        %2042 = vrot.lane.b32.xlu0 %v877, 113
        %v2043 = vpop.permute.xlu0 %2042
        %2044 = vrot.lane.b32.xlu0 %v883, 113
        %v2045 = vpop.permute.xlu0 %2044
        %2046 = vrot.lane.b32.xlu0 %v889, 113
        %v2047 = vpop.permute.xlu0 %2046
        %2048 = vrot.lane.b32.xlu0 %v895, 113
        %v2049 = vpop.permute.xlu0 %2048
        %2050 = vrot.lane.b32.xlu0 %v831, 113
        %v2051 = vpop.permute.xlu0 %2050
        %2052 = vrot.lane.b32.xlu0 %v837, 113
        %v2053 = vpop.permute.xlu0 %2052
        %2054 = vrot.lane.b32.xlu0 %v843, 113
        %v2055 = vpop.permute.xlu0 %2054
        %2056 = vrot.lane.b32.xlu0 %v849, 113
        %v2057 = vpop.permute.xlu0 %2056
        %2058 = vrot.lane.b32.xlu0 %v855, 113
        %v2059 = vpop.permute.xlu0 %2058
        %2060 = vrot.lane.b32.xlu0 %v861, 113
        %v2061 = vpop.permute.xlu0 %2060
        %2062 = vrot.lane.b32.xlu0 %v867, 113
        %v2063 = vpop.permute.xlu0 %2062
        %2064 = vrot.lane.b32.xlu0 %v873, 113
        %v2065 = vpop.permute.xlu0 %2064
        %2066 = vrot.lane.b32.xlu0 %v879, 113
        %v2067 = vpop.permute.xlu0 %2066
        %2068 = vrot.lane.b32.xlu0 %v885, 113
        %v2069 = vpop.permute.xlu0 %2068
        %2070 = vrot.lane.b32.xlu0 %v891, 113
        %v2071 = vpop.permute.xlu0 %2070
        %2072 = vrot.lane.b32.xlu0 %v897, 113
        %v2073 = vpop.permute.xlu0 %2072
        %vm2074 = vcmp.lt.s32.totalorder %v948, 113
        %v2075 = vsel %vm2074, %v2027, %v2051
        %v2076 = vsel %vm2074, %v2029, %v2053
        %v2077 = vsel %vm2074, %v2031, %v2055
        %v2078 = vsel %vm2074, %v2033, %v2057
        %v2079 = vsel %vm2074, %v2035, %v2059
        %v2080 = vsel %vm2074, %v2037, %v2061
        %v2081 = vsel %vm2074, %v2039, %v2063
        %v2082 = vsel %vm2074, %v2041, %v2065
        %v2083 = vsel %vm2074, %v2043, %v2067
        %v2084 = vsel %vm2074, %v2045, %v2069
        %v2085 = vsel %vm2074, %v2047, %v2071
        %v2086 = vsel %vm2074, %v2049, %v2073
        %v2087 = vsel %vm2074, %v2051, %v2027
        %v2088 = vsel %vm2074, %v2053, %v2029
        %v2089 = vsel %vm2074, %v2055, %v2031
        %v2090 = vsel %vm2074, %v2057, %v2033
        %v2091 = vsel %vm2074, %v2059, %v2035
        %v2092 = vsel %vm2074, %v2061, %v2037
        %v2093 = vsel %vm2074, %v2063, %v2039
        %v2094 = vsel %vm2074, %v2065, %v2041
        %v2095 = vsel %vm2074, %v2067, %v2043
        %v2096 = vsel %vm2074, %v2069, %v2045
        %v2097 = vsel %vm2074, %v2071, %v2047
        %v2098 = vsel %vm2074, %v2073, %v2049
        %s2099 = scalar_lea.vmem %s11, 6
        %v2100 = vld [vmem:[%s2099] ss:$8 sm:$0x3]
        %v2102 = vlaneseq
        %v2103 = vshrl.u32 %v2102, 7
        %v2104 = vsub.s32 0, %v2103
        %v2105 = vrot.slane %v2100, %v2104
        %v2106 = vlaneseq
        %v2107 = vshrl.u32 %v2106, 7
        %v2108 = vsub.s32 1, %v2107
        %v2109 = vrot.slane %v2100, %v2108
        %v2112 = vmul.f32 %v2075, %v2105
        %v2113 = vmul.f32 %v2087, %v2109
        %v2114 = vmul.f32 %v2076, %v2105
        %v2115 = vmul.f32 %v2088, %v2109
        %v2116 = vmul.f32 %v2077, %v2105
        %v2117 = vmul.f32 %v2089, %v2109
        %v2118 = vmul.f32 %v2078, %v2105
        %v2119 = vmul.f32 %v2090, %v2109
        %v2120 = vmul.f32 %v2079, %v2105
        %v2121 = vmul.f32 %v2091, %v2109
        %v2122 = vmul.f32 %v2080, %v2105
        %v2123 = vmul.f32 %v2092, %v2109
        %v2124 = vmul.f32 %v2081, %v2105
        %v2125 = vmul.f32 %v2093, %v2109
        %v2126 = vmul.f32 %v2082, %v2105
        %v2127 = vmul.f32 %v2094, %v2109
        %v2128 = vmul.f32 %v2083, %v2105
        %v2129 = vmul.f32 %v2095, %v2109
        %v2130 = vmul.f32 %v2084, %v2105
        %v2131 = vmul.f32 %v2096, %v2109
        %v2132 = vmul.f32 %v2085, %v2105
        %v2133 = vmul.f32 %v2097, %v2109
        %v2134 = vmul.f32 %v2086, %v2105
        %v2135 = vmul.f32 %v2098, %v2109
        %2136 = vset.pattern.permute.xlu0 6
        %2137 = vperm.xlu0 %2136, %v1010
        %v2138 = vpop.permute.xlu0 %2137
        %2140 = vset.pattern.permute.xlu0 6
        %2141 = vperm.xlu0 %2140, %v1011
        %v2142 = vpop.permute.xlu0 %2141
        %2144 = vset.pattern.permute.xlu0 6
        %2145 = vperm.xlu0 %2144, %v1012
        %v2146 = vpop.permute.xlu0 %2145
        %2148 = vset.pattern.permute.xlu0 6
        %2149 = vperm.xlu0 %2148, %v1013
        %v2150 = vpop.permute.xlu0 %2149
        %2152 = vset.pattern.permute.xlu0 6
        %2153 = vperm.xlu0 %2152, %v1014
        %v2154 = vpop.permute.xlu0 %2153
        %2156 = vset.pattern.permute.xlu0 6
        %2157 = vperm.xlu0 %2156, %v1015
        %v2158 = vpop.permute.xlu0 %2157
        %2160 = vset.pattern.permute.xlu0 6
        %2161 = vperm.xlu0 %2160, %v1016
        %v2162 = vpop.permute.xlu0 %2161
        %2164 = vset.pattern.permute.xlu0 6
        %2165 = vperm.xlu0 %2164, %v1017
        %v2166 = vpop.permute.xlu0 %2165
        %2168 = vset.pattern.permute.xlu0 6
        %2169 = vperm.xlu0 %2168, %v1018
        %v2170 = vpop.permute.xlu0 %2169
        %2172 = vset.pattern.permute.xlu0 6
        %2173 = vperm.xlu0 %2172, %v1019
        %v2174 = vpop.permute.xlu0 %2173
        %2176 = vset.pattern.permute.xlu0 6
        %2177 = vperm.xlu0 %2176, %v1020
        %v2178 = vpop.permute.xlu0 %2177
        %2180 = vset.pattern.permute.xlu0 6
        %2181 = vperm.xlu0 %2180, %v1021
        %v2182 = vpop.permute.xlu0 %2181
        %v2184 = vmul.f32 %v2138, %v2112
        %v2185 = vmul.f32 %v2138, %v2113
        %v2186 = vmul.f32 %v2142, %v2114
        %v2187 = vmul.f32 %v2142, %v2115
        %v2188 = vmul.f32 %v2146, %v2116
        %v2189 = vmul.f32 %v2146, %v2117
        %v2190 = vmul.f32 %v2150, %v2118
        %v2191 = vmul.f32 %v2150, %v2119
        %v2192 = vmul.f32 %v2154, %v2120
        %v2193 = vmul.f32 %v2154, %v2121
        %v2194 = vmul.f32 %v2158, %v2122
        %v2195 = vmul.f32 %v2158, %v2123
        %v2196 = vmul.f32 %v2162, %v2124
        %v2197 = vmul.f32 %v2162, %v2125
        %v2198 = vmul.f32 %v2166, %v2126
        %v2199 = vmul.f32 %v2166, %v2127
        %v2200 = vmul.f32 %v2170, %v2128
        %v2201 = vmul.f32 %v2170, %v2129
        %v2202 = vmul.f32 %v2174, %v2130
        %v2203 = vmul.f32 %v2174, %v2131
        %v2204 = vmul.f32 %v2178, %v2132
        %v2205 = vmul.f32 %v2178, %v2133
        %v2206 = vmul.f32 %v2182, %v2134
        %v2207 = vmul.f32 %v2182, %v2135
        %v2208 = vadd.f32 %v2002, %v2184
        %v2209 = vadd.f32 %v2003, %v2185
        %v2210 = vadd.f32 %v2004, %v2186
        %v2211 = vadd.f32 %v2005, %v2187
        %v2212 = vadd.f32 %v2006, %v2188
        %v2213 = vadd.f32 %v2007, %v2189
        %v2214 = vadd.f32 %v2008, %v2190
        %v2215 = vadd.f32 %v2009, %v2191
        %v2216 = vadd.f32 %v2010, %v2192
        %v2217 = vadd.f32 %v2011, %v2193
        %v2218 = vadd.f32 %v2012, %v2194
        %v2219 = vadd.f32 %v2013, %v2195
        %v2220 = vadd.f32 %v2014, %v2196
        %v2221 = vadd.f32 %v2015, %v2197
        %v2222 = vadd.f32 %v2016, %v2198
        %v2223 = vadd.f32 %v2017, %v2199
        %v2224 = vadd.f32 %v2018, %v2200
        %v2225 = vadd.f32 %v2019, %v2201
        %v2226 = vadd.f32 %v2020, %v2202
        %v2227 = vadd.f32 %v2021, %v2203
        %v2228 = vadd.f32 %v2022, %v2204
        %v2229 = vadd.f32 %v2023, %v2205
        %v2230 = vadd.f32 %v2024, %v2206
        %v2231 = vadd.f32 %v2025, %v2207
        %2232 = vrot.lane.b32.xlu0 %v829, 112
        %v2233 = vpop.permute.xlu0 %2232
        %2234 = vrot.lane.b32.xlu0 %v835, 112
        %v2235 = vpop.permute.xlu0 %2234
        %2236 = vrot.lane.b32.xlu0 %v841, 112
        %v2237 = vpop.permute.xlu0 %2236
        %2238 = vrot.lane.b32.xlu0 %v847, 112
        %v2239 = vpop.permute.xlu0 %2238
        %2240 = vrot.lane.b32.xlu0 %v853, 112
        %v2241 = vpop.permute.xlu0 %2240
        %2242 = vrot.lane.b32.xlu0 %v859, 112
        %v2243 = vpop.permute.xlu0 %2242
        %2244 = vrot.lane.b32.xlu0 %v865, 112
        %v2245 = vpop.permute.xlu0 %2244
        %2246 = vrot.lane.b32.xlu0 %v871, 112
        %v2247 = vpop.permute.xlu0 %2246
        %2248 = vrot.lane.b32.xlu0 %v877, 112
        %v2249 = vpop.permute.xlu0 %2248
        %2250 = vrot.lane.b32.xlu0 %v883, 112
        %v2251 = vpop.permute.xlu0 %2250
        %2252 = vrot.lane.b32.xlu0 %v889, 112
        %v2253 = vpop.permute.xlu0 %2252
        %2254 = vrot.lane.b32.xlu0 %v895, 112
        %v2255 = vpop.permute.xlu0 %2254
        %2256 = vrot.lane.b32.xlu0 %v831, 112
        %v2257 = vpop.permute.xlu0 %2256
        %2258 = vrot.lane.b32.xlu0 %v837, 112
        %v2259 = vpop.permute.xlu0 %2258
        %2260 = vrot.lane.b32.xlu0 %v843, 112
        %v2261 = vpop.permute.xlu0 %2260
        %2262 = vrot.lane.b32.xlu0 %v849, 112
        %v2263 = vpop.permute.xlu0 %2262
        %2264 = vrot.lane.b32.xlu0 %v855, 112
        %v2265 = vpop.permute.xlu0 %2264
        %2266 = vrot.lane.b32.xlu0 %v861, 112
        %v2267 = vpop.permute.xlu0 %2266
        %2268 = vrot.lane.b32.xlu0 %v867, 112
        %v2269 = vpop.permute.xlu0 %2268
        %2270 = vrot.lane.b32.xlu0 %v873, 112
        %v2271 = vpop.permute.xlu0 %2270
        %2272 = vrot.lane.b32.xlu0 %v879, 112
        %v2273 = vpop.permute.xlu0 %2272
        %2274 = vrot.lane.b32.xlu0 %v885, 112
        %v2275 = vpop.permute.xlu0 %2274
        %2276 = vrot.lane.b32.xlu0 %v891, 112
        %v2277 = vpop.permute.xlu0 %2276
        %2278 = vrot.lane.b32.xlu0 %v897, 112
        %v2279 = vpop.permute.xlu0 %2278
        %vm2280 = vcmp.lt.s32.totalorder %v948, 112
        %v2281 = vsel %vm2280, %v2233, %v2257
        %v2282 = vsel %vm2280, %v2235, %v2259
        %v2283 = vsel %vm2280, %v2237, %v2261
        %v2284 = vsel %vm2280, %v2239, %v2263
        %v2285 = vsel %vm2280, %v2241, %v2265
        %v2286 = vsel %vm2280, %v2243, %v2267
        %v2287 = vsel %vm2280, %v2245, %v2269
        %v2288 = vsel %vm2280, %v2247, %v2271
        %v2289 = vsel %vm2280, %v2249, %v2273
        %v2290 = vsel %vm2280, %v2251, %v2275
        %v2291 = vsel %vm2280, %v2253, %v2277
        %v2292 = vsel %vm2280, %v2255, %v2279
        %v2293 = vsel %vm2280, %v2257, %v2233
        %v2294 = vsel %vm2280, %v2259, %v2235
        %v2295 = vsel %vm2280, %v2261, %v2237
        %v2296 = vsel %vm2280, %v2263, %v2239
        %v2297 = vsel %vm2280, %v2265, %v2241
        %v2298 = vsel %vm2280, %v2267, %v2243
        %v2299 = vsel %vm2280, %v2269, %v2245
        %v2300 = vsel %vm2280, %v2271, %v2247
        %v2301 = vsel %vm2280, %v2273, %v2249
        %v2302 = vsel %vm2280, %v2275, %v2251
        %v2303 = vsel %vm2280, %v2277, %v2253
        %v2304 = vsel %vm2280, %v2279, %v2255
        %s2305 = scalar_lea.vmem %s11, 7
        %v2306 = vld [vmem:[%s2305] ss:$8 sm:$0x3]
        %v2308 = vlaneseq
        %v2309 = vshrl.u32 %v2308, 7
        %v2310 = vsub.s32 0, %v2309
        %v2311 = vrot.slane %v2306, %v2310
        %v2312 = vlaneseq
        %v2313 = vshrl.u32 %v2312, 7
        %v2314 = vsub.s32 1, %v2313
        %v2315 = vrot.slane %v2306, %v2314
        %v2318 = vmul.f32 %v2281, %v2311
        %v2319 = vmul.f32 %v2293, %v2315
        %v2320 = vmul.f32 %v2282, %v2311
        %v2321 = vmul.f32 %v2294, %v2315
        %v2322 = vmul.f32 %v2283, %v2311
        %v2323 = vmul.f32 %v2295, %v2315
        %v2324 = vmul.f32 %v2284, %v2311
        %v2325 = vmul.f32 %v2296, %v2315
        %v2326 = vmul.f32 %v2285, %v2311
        %v2327 = vmul.f32 %v2297, %v2315
        %v2328 = vmul.f32 %v2286, %v2311
        %v2329 = vmul.f32 %v2298, %v2315
        %v2330 = vmul.f32 %v2287, %v2311
        %v2331 = vmul.f32 %v2299, %v2315
        %v2332 = vmul.f32 %v2288, %v2311
        %v2333 = vmul.f32 %v2300, %v2315
        %v2334 = vmul.f32 %v2289, %v2311
        %v2335 = vmul.f32 %v2301, %v2315
        %v2336 = vmul.f32 %v2290, %v2311
        %v2337 = vmul.f32 %v2302, %v2315
        %v2338 = vmul.f32 %v2291, %v2311
        %v2339 = vmul.f32 %v2303, %v2315
        %v2340 = vmul.f32 %v2292, %v2311
        %v2341 = vmul.f32 %v2304, %v2315
        %2342 = vset.pattern.permute.xlu0 7
        %2343 = vperm.xlu0 %2342, %v1010
        %v2344 = vpop.permute.xlu0 %2343
        %2346 = vset.pattern.permute.xlu0 7
        %2347 = vperm.xlu0 %2346, %v1011
        %v2348 = vpop.permute.xlu0 %2347
        %2350 = vset.pattern.permute.xlu0 7
        %2351 = vperm.xlu0 %2350, %v1012
        %v2352 = vpop.permute.xlu0 %2351
        %2354 = vset.pattern.permute.xlu0 7
        %2355 = vperm.xlu0 %2354, %v1013
        %v2356 = vpop.permute.xlu0 %2355
        %2358 = vset.pattern.permute.xlu0 7
        %2359 = vperm.xlu0 %2358, %v1014
        %v2360 = vpop.permute.xlu0 %2359
        %2362 = vset.pattern.permute.xlu0 7
        %2363 = vperm.xlu0 %2362, %v1015
        %v2364 = vpop.permute.xlu0 %2363
        %2366 = vset.pattern.permute.xlu0 7
        %2367 = vperm.xlu0 %2366, %v1016
        %v2368 = vpop.permute.xlu0 %2367
        %2370 = vset.pattern.permute.xlu0 7
        %2371 = vperm.xlu0 %2370, %v1017
        %v2372 = vpop.permute.xlu0 %2371
        %2374 = vset.pattern.permute.xlu0 7
        %2375 = vperm.xlu0 %2374, %v1018
        %v2376 = vpop.permute.xlu0 %2375
        %2378 = vset.pattern.permute.xlu0 7
        %2379 = vperm.xlu0 %2378, %v1019
        %v2380 = vpop.permute.xlu0 %2379
        %2382 = vset.pattern.permute.xlu0 7
        %2383 = vperm.xlu0 %2382, %v1020
        %v2384 = vpop.permute.xlu0 %2383
        %2386 = vset.pattern.permute.xlu0 7
        %2387 = vperm.xlu0 %2386, %v1021
        %v2388 = vpop.permute.xlu0 %2387
        %v2390 = vmul.f32 %v2344, %v2318
        %v2391 = vmul.f32 %v2344, %v2319
        %v2392 = vmul.f32 %v2348, %v2320
        %v2393 = vmul.f32 %v2348, %v2321
        %v2394 = vmul.f32 %v2352, %v2322
        %v2395 = vmul.f32 %v2352, %v2323
        %v2396 = vmul.f32 %v2356, %v2324
        %v2397 = vmul.f32 %v2356, %v2325
        %v2398 = vmul.f32 %v2360, %v2326
        %v2399 = vmul.f32 %v2360, %v2327
        %v2400 = vmul.f32 %v2364, %v2328
        %v2401 = vmul.f32 %v2364, %v2329
        %v2402 = vmul.f32 %v2368, %v2330
        %v2403 = vmul.f32 %v2368, %v2331
        %v2404 = vmul.f32 %v2372, %v2332
        %v2405 = vmul.f32 %v2372, %v2333
        %v2406 = vmul.f32 %v2376, %v2334
        %v2407 = vmul.f32 %v2376, %v2335
        %v2408 = vmul.f32 %v2380, %v2336
        %v2409 = vmul.f32 %v2380, %v2337
        %v2410 = vmul.f32 %v2384, %v2338
        %v2411 = vmul.f32 %v2384, %v2339
        %v2412 = vmul.f32 %v2388, %v2340
        %v2413 = vmul.f32 %v2388, %v2341
        %v2414 = vadd.f32 %v2208, %v2390
        %v2415 = vadd.f32 %v2209, %v2391
        %v2416 = vadd.f32 %v2210, %v2392
        %v2417 = vadd.f32 %v2211, %v2393
        %v2418 = vadd.f32 %v2212, %v2394
        %v2419 = vadd.f32 %v2213, %v2395
        %v2420 = vadd.f32 %v2214, %v2396
        %v2421 = vadd.f32 %v2215, %v2397
        %v2422 = vadd.f32 %v2216, %v2398
        %v2423 = vadd.f32 %v2217, %v2399
        %v2424 = vadd.f32 %v2218, %v2400
        %v2425 = vadd.f32 %v2219, %v2401
        %v2426 = vadd.f32 %v2220, %v2402
        %v2427 = vadd.f32 %v2221, %v2403
        %v2428 = vadd.f32 %v2222, %v2404
        %v2429 = vadd.f32 %v2223, %v2405
        %v2430 = vadd.f32 %v2224, %v2406
        %v2431 = vadd.f32 %v2225, %v2407
        %v2432 = vadd.f32 %v2226, %v2408
        %v2433 = vadd.f32 %v2227, %v2409
        %v2434 = vadd.f32 %v2228, %v2410
        %v2435 = vadd.f32 %v2229, %v2411
        %v2436 = vadd.f32 %v2230, %v2412
        %v2437 = vadd.f32 %v2231, %v2413
        %2438 = vrot.lane.b32.xlu0 %v829, 111
        %v2439 = vpop.permute.xlu0 %2438
        %2440 = vrot.lane.b32.xlu0 %v835, 111
        %v2441 = vpop.permute.xlu0 %2440
        %2442 = vrot.lane.b32.xlu0 %v841, 111
        %v2443 = vpop.permute.xlu0 %2442
        %2444 = vrot.lane.b32.xlu0 %v847, 111
        %v2445 = vpop.permute.xlu0 %2444
        %2446 = vrot.lane.b32.xlu0 %v853, 111
        %v2447 = vpop.permute.xlu0 %2446
        %2448 = vrot.lane.b32.xlu0 %v859, 111
        %v2449 = vpop.permute.xlu0 %2448
        %2450 = vrot.lane.b32.xlu0 %v865, 111
        %v2451 = vpop.permute.xlu0 %2450
        %2452 = vrot.lane.b32.xlu0 %v871, 111
        %v2453 = vpop.permute.xlu0 %2452
        %2454 = vrot.lane.b32.xlu0 %v877, 111
        %v2455 = vpop.permute.xlu0 %2454
        %2456 = vrot.lane.b32.xlu0 %v883, 111
        %v2457 = vpop.permute.xlu0 %2456
        %2458 = vrot.lane.b32.xlu0 %v889, 111
        %v2459 = vpop.permute.xlu0 %2458
        %2460 = vrot.lane.b32.xlu0 %v895, 111
        %v2461 = vpop.permute.xlu0 %2460
        %2462 = vrot.lane.b32.xlu0 %v831, 111
        %v2463 = vpop.permute.xlu0 %2462
        %2464 = vrot.lane.b32.xlu0 %v837, 111
        %v2465 = vpop.permute.xlu0 %2464
        %2466 = vrot.lane.b32.xlu0 %v843, 111
        %v2467 = vpop.permute.xlu0 %2466
        %2468 = vrot.lane.b32.xlu0 %v849, 111
        %v2469 = vpop.permute.xlu0 %2468
        %2470 = vrot.lane.b32.xlu0 %v855, 111
        %v2471 = vpop.permute.xlu0 %2470
        %2472 = vrot.lane.b32.xlu0 %v861, 111
        %v2473 = vpop.permute.xlu0 %2472
        %2474 = vrot.lane.b32.xlu0 %v867, 111
        %v2475 = vpop.permute.xlu0 %2474
        %2476 = vrot.lane.b32.xlu0 %v873, 111
        %v2477 = vpop.permute.xlu0 %2476
        %2478 = vrot.lane.b32.xlu0 %v879, 111
        %v2479 = vpop.permute.xlu0 %2478
        %2480 = vrot.lane.b32.xlu0 %v885, 111
        %v2481 = vpop.permute.xlu0 %2480
        %2482 = vrot.lane.b32.xlu0 %v891, 111
        %v2483 = vpop.permute.xlu0 %2482
        %2484 = vrot.lane.b32.xlu0 %v897, 111
        %v2485 = vpop.permute.xlu0 %2484
        %vm2486 = vcmp.lt.s32.totalorder %v948, 111
        %v2487 = vsel %vm2486, %v2439, %v2463
        %v2488 = vsel %vm2486, %v2441, %v2465
        %v2489 = vsel %vm2486, %v2443, %v2467
        %v2490 = vsel %vm2486, %v2445, %v2469
        %v2491 = vsel %vm2486, %v2447, %v2471
        %v2492 = vsel %vm2486, %v2449, %v2473
        %v2493 = vsel %vm2486, %v2451, %v2475
        %v2494 = vsel %vm2486, %v2453, %v2477
        %v2495 = vsel %vm2486, %v2455, %v2479
        %v2496 = vsel %vm2486, %v2457, %v2481
        %v2497 = vsel %vm2486, %v2459, %v2483
        %v2498 = vsel %vm2486, %v2461, %v2485
        %v2499 = vsel %vm2486, %v2463, %v2439
        %v2500 = vsel %vm2486, %v2465, %v2441
        %v2501 = vsel %vm2486, %v2467, %v2443
        %v2502 = vsel %vm2486, %v2469, %v2445
        %v2503 = vsel %vm2486, %v2471, %v2447
        %v2504 = vsel %vm2486, %v2473, %v2449
        %v2505 = vsel %vm2486, %v2475, %v2451
        %v2506 = vsel %vm2486, %v2477, %v2453
        %v2507 = vsel %vm2486, %v2479, %v2455
        %v2508 = vsel %vm2486, %v2481, %v2457
        %v2509 = vsel %vm2486, %v2483, %v2459
        %v2510 = vsel %vm2486, %v2485, %v2461
        %s2511 = scalar_lea.vmem %s11, 16
        %v2512 = vld [vmem:[%s2511] ss:$8 sm:$0x3]
        %v2514 = vlaneseq
        %v2515 = vshrl.u32 %v2514, 7
        %v2516 = vsub.s32 0, %v2515
        %v2517 = vrot.slane %v2512, %v2516
        %v2518 = vlaneseq
        %v2519 = vshrl.u32 %v2518, 7
        %v2520 = vsub.s32 1, %v2519
        %v2521 = vrot.slane %v2512, %v2520
        %v2524 = vmul.f32 %v2487, %v2517
        %v2525 = vmul.f32 %v2499, %v2521
        %v2526 = vmul.f32 %v2488, %v2517
        %v2527 = vmul.f32 %v2500, %v2521
        %v2528 = vmul.f32 %v2489, %v2517
        %v2529 = vmul.f32 %v2501, %v2521
        %v2530 = vmul.f32 %v2490, %v2517
        %v2531 = vmul.f32 %v2502, %v2521
        %v2532 = vmul.f32 %v2491, %v2517
        %v2533 = vmul.f32 %v2503, %v2521
        %v2534 = vmul.f32 %v2492, %v2517
        %v2535 = vmul.f32 %v2504, %v2521
        %v2536 = vmul.f32 %v2493, %v2517
        %v2537 = vmul.f32 %v2505, %v2521
        %v2538 = vmul.f32 %v2494, %v2517
        %v2539 = vmul.f32 %v2506, %v2521
        %v2540 = vmul.f32 %v2495, %v2517
        %v2541 = vmul.f32 %v2507, %v2521
        %v2542 = vmul.f32 %v2496, %v2517
        %v2543 = vmul.f32 %v2508, %v2521
        %v2544 = vmul.f32 %v2497, %v2517
        %v2545 = vmul.f32 %v2509, %v2521
        %v2546 = vmul.f32 %v2498, %v2517
        %v2547 = vmul.f32 %v2510, %v2521
        %2548 = vset.pattern.permute.xlu0 8
        %2549 = vperm.xlu0 %2548, %v1010
        %v2550 = vpop.permute.xlu0 %2549
        %2552 = vset.pattern.permute.xlu0 8
        %2553 = vperm.xlu0 %2552, %v1011
        %v2554 = vpop.permute.xlu0 %2553
        %2556 = vset.pattern.permute.xlu0 8
        %2557 = vperm.xlu0 %2556, %v1012
        %v2558 = vpop.permute.xlu0 %2557
        %2560 = vset.pattern.permute.xlu0 8
        %2561 = vperm.xlu0 %2560, %v1013
        %v2562 = vpop.permute.xlu0 %2561
        %2564 = vset.pattern.permute.xlu0 8
        %2565 = vperm.xlu0 %2564, %v1014
        %v2566 = vpop.permute.xlu0 %2565
        %2568 = vset.pattern.permute.xlu0 8
        %2569 = vperm.xlu0 %2568, %v1015
        %v2570 = vpop.permute.xlu0 %2569
        %2572 = vset.pattern.permute.xlu0 8
        %2573 = vperm.xlu0 %2572, %v1016
        %v2574 = vpop.permute.xlu0 %2573
        %2576 = vset.pattern.permute.xlu0 8
        %2577 = vperm.xlu0 %2576, %v1017
        %v2578 = vpop.permute.xlu0 %2577
        %2580 = vset.pattern.permute.xlu0 8
        %2581 = vperm.xlu0 %2580, %v1018
        %v2582 = vpop.permute.xlu0 %2581
        %2584 = vset.pattern.permute.xlu0 8
        %2585 = vperm.xlu0 %2584, %v1019
        %v2586 = vpop.permute.xlu0 %2585
        %2588 = vset.pattern.permute.xlu0 8
        %2589 = vperm.xlu0 %2588, %v1020
        %v2590 = vpop.permute.xlu0 %2589
        %2592 = vset.pattern.permute.xlu0 8
        %2593 = vperm.xlu0 %2592, %v1021
        %v2594 = vpop.permute.xlu0 %2593
        %v2596 = vmul.f32 %v2550, %v2524
        %v2597 = vmul.f32 %v2550, %v2525
        %v2598 = vmul.f32 %v2554, %v2526
        %v2599 = vmul.f32 %v2554, %v2527
        %v2600 = vmul.f32 %v2558, %v2528
        %v2601 = vmul.f32 %v2558, %v2529
        %v2602 = vmul.f32 %v2562, %v2530
        %v2603 = vmul.f32 %v2562, %v2531
        %v2604 = vmul.f32 %v2566, %v2532
        %v2605 = vmul.f32 %v2566, %v2533
        %v2606 = vmul.f32 %v2570, %v2534
        %v2607 = vmul.f32 %v2570, %v2535
        %v2608 = vmul.f32 %v2574, %v2536
        %v2609 = vmul.f32 %v2574, %v2537
        %v2610 = vmul.f32 %v2578, %v2538
        %v2611 = vmul.f32 %v2578, %v2539
        %v2612 = vmul.f32 %v2582, %v2540
        %v2613 = vmul.f32 %v2582, %v2541
        %v2614 = vmul.f32 %v2586, %v2542
        %v2615 = vmul.f32 %v2586, %v2543
        %v2616 = vmul.f32 %v2590, %v2544
        %v2617 = vmul.f32 %v2590, %v2545
        %v2618 = vmul.f32 %v2594, %v2546
        %v2619 = vmul.f32 %v2594, %v2547
        %v2620 = vadd.f32 %v2414, %v2596
        %v2621 = vadd.f32 %v2415, %v2597
        %v2622 = vadd.f32 %v2416, %v2598
        %v2623 = vadd.f32 %v2417, %v2599
        %v2624 = vadd.f32 %v2418, %v2600
        %v2625 = vadd.f32 %v2419, %v2601
        %v2626 = vadd.f32 %v2420, %v2602
        %v2627 = vadd.f32 %v2421, %v2603
        %v2628 = vadd.f32 %v2422, %v2604
        %v2629 = vadd.f32 %v2423, %v2605
        %v2630 = vadd.f32 %v2424, %v2606
        %v2631 = vadd.f32 %v2425, %v2607
        %v2632 = vadd.f32 %v2426, %v2608
        %v2633 = vadd.f32 %v2427, %v2609
        %v2634 = vadd.f32 %v2428, %v2610
        %v2635 = vadd.f32 %v2429, %v2611
        %v2636 = vadd.f32 %v2430, %v2612
        %v2637 = vadd.f32 %v2431, %v2613
        %v2638 = vadd.f32 %v2432, %v2614
        %v2639 = vadd.f32 %v2433, %v2615
        %v2640 = vadd.f32 %v2434, %v2616
        %v2641 = vadd.f32 %v2435, %v2617
        %v2642 = vadd.f32 %v2436, %v2618
        %v2643 = vadd.f32 %v2437, %v2619
        %v2644 = vmul.f32 %v2620, %v2620
        %v2645 = vmul.f32 %v2621, %v2621
        %v2646 = vmul.f32 %v2622, %v2622
        %v2647 = vmul.f32 %v2623, %v2623
        %v2648 = vmul.f32 %v2624, %v2624
        %v2649 = vmul.f32 %v2625, %v2625
        %v2650 = vmul.f32 %v2626, %v2626
        %v2651 = vmul.f32 %v2627, %v2627
        %v2652 = vadd.f32 %v2644, %v2645
        %2653 = vadd.xlane.f32.xlu0 %v2652
        %v2654 = vpop.xlane.xlu0 %2653
        %v2655 = vadd.f32 %v2646, %v2647
        %2656 = vadd.xlane.f32.xlu0 %v2655
        %v2657 = vpop.xlane.xlu0 %2656
        %v2658 = vadd.f32 %v2648, %v2649
        %2659 = vadd.xlane.f32.xlu0 %v2658
        %v2660 = vpop.xlane.xlu0 %2659
        %v2661 = vadd.f32 %v2650, %v2651
        %2662 = vadd.xlane.f32.xlu0 %v2661
        %v2663 = vpop.xlane.xlu0 %2662
        %v2664 = vmax.f32 %v2654, 1e-24
        %v2665 = vmax.f32 %v2657, 1e-24
        %v2666 = vmax.f32 %v2660, 1e-24
        %v2667 = vmax.f32 %v2663, 1e-24
        %v2668 = vrsqrt.pop %v2664
        %v2669 = vrsqrt.pop %v2665
        %v2670 = vrsqrt.pop %v2666
        %v2671 = vrsqrt.pop %v2667
        %v2672 = vmul.f32 %v2620, %v2668
        %v2673 = vmul.f32 %v2621, %v2668
        %v2674 = vmul.f32 %v2622, %v2669
        %v2675 = vmul.f32 %v2623, %v2669
        %v2676 = vmul.f32 %v2624, %v2670
        %v2677 = vmul.f32 %v2625, %v2670
        %v2678 = vmul.f32 %v2626, %v2671
        %v2679 = vmul.f32 %v2627, %v2671
        %v2680 = vmul.f32 %v2628, %v2628
        %v2681 = vmul.f32 %v2629, %v2629
        %v2682 = vmul.f32 %v2630, %v2630
        %v2683 = vmul.f32 %v2631, %v2631
        %v2684 = vmul.f32 %v2632, %v2632
        %v2685 = vmul.f32 %v2633, %v2633
        %v2686 = vmul.f32 %v2634, %v2634
        %v2687 = vmul.f32 %v2635, %v2635
        %v2688 = vadd.f32 %v2680, %v2681
        %2689 = vadd.xlane.f32.xlu0 %v2688
        %v2690 = vpop.xlane.xlu0 %2689
        %v2691 = vadd.f32 %v2682, %v2683
        %2692 = vadd.xlane.f32.xlu0 %v2691
        %v2693 = vpop.xlane.xlu0 %2692
        %v2694 = vadd.f32 %v2684, %v2685
        %2695 = vadd.xlane.f32.xlu0 %v2694
        %v2696 = vpop.xlane.xlu0 %2695
        %v2697 = vadd.f32 %v2686, %v2687
        %2698 = vadd.xlane.f32.xlu0 %v2697
        %v2699 = vpop.xlane.xlu0 %2698
        %v2700 = vmax.f32 %v2690, 1e-24
        %v2701 = vmax.f32 %v2693, 1e-24
        %v2702 = vmax.f32 %v2696, 1e-24
        %v2703 = vmax.f32 %v2699, 1e-24
        %v2704 = vrsqrt.pop %v2700
        %v2705 = vrsqrt.pop %v2701
        %v2706 = vrsqrt.pop %v2702
        %v2707 = vrsqrt.pop %v2703
        %v2708 = vmul.f32 %v2628, %v2704
        %v2709 = vmul.f32 %v2629, %v2704
        %v2710 = vmul.f32 %v2630, %v2705
        %v2711 = vmul.f32 %v2631, %v2705
        %v2712 = vmul.f32 %v2632, %v2706
        %v2713 = vmul.f32 %v2633, %v2706
        %v2714 = vmul.f32 %v2634, %v2707
        %v2715 = vmul.f32 %v2635, %v2707
        %2716 = vmatprep.subr.mxu0 %v2709
        %2717 = vmatpush1.xpose.msra.mxu0 %v2708
        %2718 = vmatprep.subr.mxu0 %v2711
        %2719 = vmatpush1.xpose.msra.mxu0 %v2710
        %2720 = vmatprep.subr.mxu0 %v2713
        %2721 = vmatpush1.xpose.msra.mxu0 %v2712
        %2722 = vmatprep.subr.mxu0 %v2715
        %2723 = vmatpush1.xpose.msra.mxu0 %v2714
        %2724 = vmatprep.subr.mxu0 0.0
        %2725 = vmatpush1.xpose.msra.mxu0 0.0
        %2726 = vmatprep.subr.mxu0 0.0
        %2727 = vmatpush1.xpose.msra.mxu0 0.0
        %2728 = vmatprep.subr.mxu0 0.0
        %2729 = vmatpush1.xpose.msra.mxu0 0.0
        %2730 = vmatprep.subr.mxu0 0.0
        %2731 = vmatpush1.xpose.msra.mxu0 0.0
        %2732 = vmatprep.subr.mxu0 0.0
        %2733 = vmatpush1.xpose.msra.mxu0 0.0
        %2734 = vmatprep.subr.mxu0 0.0
        %2735 = vmatpush1.xpose.msra.mxu0 0.0
        %2736 = vmatprep.subr.mxu0 0.0
        %2737 = vmatpush1.xpose.msra.mxu0 0.0
        %2738 = vmatprep.subr.mxu0 0.0
        %2739 = vmatpush1.xpose.msra.mxu0 0.0
        %2740 = vmatprep.subr.mxu0 0.0
        %2741 = vmatpush1.xpose.msra.mxu0 0.0
        %2742 = vmatprep.subr.mxu0 0.0
        %2743 = vmatpush1.xpose.msra.mxu0 0.0
        %2744 = vmatprep.subr.mxu0 0.0
        %2745 = vmatpush1.xpose.msra.mxu0 0.0
        %2746 = vmatprep.subr.mxu0 0.0
        %2747 = vmatpush1.xpose.msra.mxu0 0.0
        %2748 = vmatprep.subr.mxu0 0.0
        %2749 = vmatpush1.xpose.msra.mxu0 0.0
        %2750 = vmatprep.subr.mxu0 0.0
        %2751 = vmatpush1.xpose.msra.mxu0 0.0
        %2752 = vmatprep.subr.mxu0 0.0
        %2753 = vmatpush1.xpose.msra.mxu0 0.0
        %2754 = vmatprep.subr.mxu0 0.0
        %2755 = vmatpush1.xpose.msra.mxu0 0.0
        %2756 = vmatprep.subr.mxu0 0.0
        %2757 = vmatpush1.xpose.msra.mxu0 0.0
        %2758 = vmatprep.subr.mxu0 0.0
        %2759 = vmatpush1.xpose.msra.mxu0 0.0
        %2760 = vmatprep.subr.mxu0 0.0
        %2761 = vmatpush1.xpose.msra.mxu0 0.0
        %2762 = vmatprep.subr.mxu0 0.0
        %2763 = vmatpush1.xpose.msra.mxu0 0.0
        %2764 = vmatprep.subr.mxu0 0.0
        %2765 = vmatpush1.xpose.msra.mxu0 0.0
        %2766 = vmatprep.subr.mxu0 0.0
        %2767 = vmatpush1.xpose.msra.mxu0 0.0
        %2768 = vmatprep.subr.mxu0 0.0
        %2769 = vmatpush1.xpose.msra.mxu0 0.0
        %2770 = vmatprep.subr.mxu0 0.0
        %2771 = vmatpush1.xpose.msra.mxu0 0.0
        %2772 = vmatprep.subr.mxu0 0.0
        %2773 = vmatpush1.xpose.msra.mxu0 0.0
        %2774 = vmatprep.subr.mxu0 0.0
        %2775 = vmatpush1.xpose.msra.mxu0 0.0
        %2776 = vmatprep.subr.mxu0 0.0
        %2777 = vmatpush1.xpose.msra.mxu0 0.0
        %2778 = vmatprep.subr.mxu0 0.0
        %2779 = vmatpush1.xpose.msra.mxu0 0.0
        %2780 = vmatprep.mubr.f32.mxu0 %v2673
        %2781 = vmatmul.mubr.f32.gmra.mrb[0].mxu0 %v2672
        %v2782 = vpop.f32.mrb[0].mxu0
        %v2783 = vadd.f32 0.0, %v2782
        %v2784 = vpop.f32.mrb[0].mxu0
        %2785 = vmatprep.mubr.f32.mxu0 %v2675
        %2786 = vmatmul.mubr.f32.gmra.mrb[0].mxu0 %v2674
        %v2787 = vpop.f32.mrb[0].mxu0
        %v2788 = vadd.f32 0.0, %v2787
        %v2789 = vpop.f32.mrb[0].mxu0
        %2790 = vmatprep.mubr.f32.mxu0 %v2677
        %2791 = vmatmul.mubr.f32.gmra.mrb[0].mxu0 %v2676
        %v2792 = vpop.f32.mrb[0].mxu0
        %v2793 = vadd.f32 0.0, %v2792
        %v2794 = vpop.f32.mrb[0].mxu0
        %2795 = vmatprep.mubr.f32.mxu0 %v2679
        %2796 = vmatmul.mubr.f32.gmra.mrb[0].mxu0 %v2678
        %v2797 = vpop.f32.mrb[0].mxu0
        %v2798 = vadd.f32 0.0, %v2797
        %v2799 = vpop.f32.mrb[0].mxu0
        %2800 = vdwg.mxu0
        %2801 = vset.pattern.permute.xlu0 3
        %2802 = vperm.xlu0 %2801, %v439
        %v2803 = vpop.permute.xlu0 %2802
        %2805 = vset.pattern.permute.xlu0 3
        %2806 = vperm.xlu0 %2805, %v440
        %v2807 = vpop.permute.xlu0 %2806
        %2809 = vset.pattern.permute.xlu0 3
        %2810 = vperm.xlu0 %2809, %v441
        %v2811 = vpop.permute.xlu0 %2810
        %2813 = vset.pattern.permute.xlu0 3
        %2814 = vperm.xlu0 %2813, %v442
        %v2815 = vpop.permute.xlu0 %2814
        %v2817 = vmul.f32 %v2783, %v2803
        %v2818 = vmul.f32 %v2788, %v2807
        %v2819 = vmul.f32 %v2793, %v2811
        %v2820 = vmul.f32 %v2798, %v2815
        %v2821 = vsel %vm464, %v2817, -inf
        %2822 = vmax.xlane.f32.xlu0 %v2821
        %v2823 = vpop.xlane.xlu0 %2822
        %v2824 = vsel %vm464, %v2818, -inf
        %2825 = vmax.xlane.f32.xlu0 %v2824
        %v2826 = vpop.xlane.xlu0 %2825
        %v2827 = vsel %vm464, %v2819, -inf
        %2828 = vmax.xlane.f32.xlu0 %v2827
        %v2829 = vpop.xlane.xlu0 %2828
        %v2830 = vsel %vm464, %v2820, -inf
        %2831 = vmax.xlane.f32.xlu0 %v2830
        %v2832 = vpop.xlane.xlu0 %2831
        %v2833 = vsub.f32 %v2817, %v2823
        %v2834 = vsub.f32 %v2818, %v2826
        %v2835 = vsub.f32 %v2819, %v2829
        %v2836 = vsub.f32 %v2820, %v2832
        %v2837 = vmul.f32 %v2833, 1.442695
        %v2838 = vpow.pop %v2837
        %v2839 = vmul.f32 %v2834, 1.442695
        %v2840 = vpow.pop %v2839
        %v2841 = vmul.f32 %v2835, 1.442695
        %v2842 = vpow.pop %v2841
        %v2843 = vmul.f32 %v2836, 1.442695
        %v2844 = vpow.pop %v2843
        %v2845 = vmul.f32 %v2838, %v451
        %v2846 = vmul.f32 %v2840, %v452
        %v2847 = vmul.f32 %v2842, %v453
        %v2848 = vmul.f32 %v2844, %v454
        %v2849 = vsel %vm464, %v2845, 0.0
        %2850 = vadd.xlane.f32.xlu0 %v2849
        %v2851 = vpop.xlane.xlu0 %2850
        %v2852 = vsel %vm464, %v2846, 0.0
        %2853 = vadd.xlane.f32.xlu0 %v2852
        %v2854 = vpop.xlane.xlu0 %2853
        %v2855 = vsel %vm464, %v2847, 0.0
        %2856 = vadd.xlane.f32.xlu0 %v2855
        %v2857 = vpop.xlane.xlu0 %2856
        %v2858 = vsel %vm464, %v2848, 0.0
        %2859 = vadd.xlane.f32.xlu0 %v2858
        %v2860 = vpop.xlane.xlu0 %2859
        %v2861 = vrcp.pop %v2851
        %v2862 = vrcp.pop %v2854
        %v2863 = vrcp.pop %v2857
        %v2864 = vrcp.pop %v2860
        %v2865 = vmul.f32 %v2845, %v2861
        %v2866 = vmul.f32 %v2846, %v2862
        %v2867 = vmul.f32 %v2847, %v2863
        %v2868 = vmul.f32 %v2848, %v2864
        %v2870 = vsel %vm464, %v2865, 0
        %v2873 = vsel %vm464, %v2866, 0
        %v2876 = vsel %vm464, %v2867, 0
        %v2879 = vsel %vm464, %v2868, 0
        %2881 = vmatprep.subr.mxu0 %v2637
        %2882 = vmatpush1.msra.mxu0 %v2636
        %2883 = vmatprep.subr.mxu0 %v2639
        %2884 = vmatpush1.msra.mxu0 %v2638
        %2885 = vmatprep.subr.mxu0 %v2641
        %2886 = vmatpush1.msra.mxu0 %v2640
        %2887 = vmatprep.subr.mxu0 %v2643
        %2888 = vmatpush1.msra.mxu0 %v2642
        %2889 = vmatprep.subr.mxu0 0.0
        %2890 = vmatpush1.msra.mxu0 0.0
        %2891 = vmatprep.subr.mxu0 0.0
        %2892 = vmatpush1.msra.mxu0 0.0
        %2893 = vmatprep.subr.mxu0 0.0
        %2894 = vmatpush1.msra.mxu0 0.0
        %2895 = vmatprep.subr.mxu0 0.0
        %2896 = vmatpush1.msra.mxu0 0.0
        %2897 = vmatprep.subr.mxu0 0.0
        %2898 = vmatpush1.msra.mxu0 0.0
        %2899 = vmatprep.subr.mxu0 0.0
        %2900 = vmatpush1.msra.mxu0 0.0
        %2901 = vmatprep.subr.mxu0 0.0
        %2902 = vmatpush1.msra.mxu0 0.0
        %2903 = vmatprep.subr.mxu0 0.0
        %2904 = vmatpush1.msra.mxu0 0.0
        %2905 = vmatprep.subr.mxu0 0.0
        %2906 = vmatpush1.msra.mxu0 0.0
        %2907 = vmatprep.subr.mxu0 0.0
        %2908 = vmatpush1.msra.mxu0 0.0
        %2909 = vmatprep.subr.mxu0 0.0
        %2910 = vmatpush1.msra.mxu0 0.0
        %2911 = vmatprep.subr.mxu0 0.0
        %2912 = vmatpush1.msra.mxu0 0.0
        %2913 = vmatprep.subr.mxu0 0.0
        %2914 = vmatpush1.msra.mxu0 0.0
        %2915 = vmatprep.subr.mxu0 0.0
        %2916 = vmatpush1.msra.mxu0 0.0
        %2917 = vmatprep.subr.mxu0 0.0
        %2918 = vmatpush1.msra.mxu0 0.0
        %2919 = vmatprep.subr.mxu0 0.0
        %2920 = vmatpush1.msra.mxu0 0.0
        %2921 = vmatprep.subr.mxu0 0.0
        %2922 = vmatpush1.msra.mxu0 0.0
        %2923 = vmatprep.subr.mxu0 0.0
        %2924 = vmatpush1.msra.mxu0 0.0
        %2925 = vmatprep.subr.mxu0 0.0
        %2926 = vmatpush1.msra.mxu0 0.0
        %2927 = vmatprep.subr.mxu0 0.0
        %2928 = vmatpush1.msra.mxu0 0.0
        %2929 = vmatprep.subr.mxu0 0.0
        %2930 = vmatpush1.msra.mxu0 0.0
        %2931 = vmatprep.subr.mxu0 0.0
        %2932 = vmatpush1.msra.mxu0 0.0
        %2933 = vmatprep.subr.mxu0 0.0
        %2934 = vmatpush1.msra.mxu0 0.0
        %2935 = vmatprep.subr.mxu0 0.0
        %2936 = vmatpush1.msra.mxu0 0.0
        %2937 = vmatprep.subr.mxu0 0.0
        %2938 = vmatpush1.msra.mxu0 0.0
        %2939 = vmatprep.subr.mxu0 0.0
        %2940 = vmatpush1.msra.mxu0 0.0
        %2941 = vmatprep.subr.mxu0 0.0
        %2942 = vmatpush1.msra.mxu0 0.0
        %2943 = vmatprep.subr.mxu0 0.0
        %2944 = vmatpush1.msra.mxu0 0.0
        %2945 = vmatprep.mubr.f32.mxu0 0.0
        %2946 = vmatmul.mubr.f32.gmra.mrb[0].mxu0 %v2870
        %v2947 = vpop.f32.mrb[0].mxu0
        %v2948 = vadd.f32 0.0, %v2947
        %v2949 = vpop.f32.mrb[0].mxu0
        %v2950 = vadd.f32 0.0, %v2949
        %2951 = vmatprep.mubr.f32.mxu0 0.0
        %2952 = vmatmul.mubr.f32.gmra.mrb[0].mxu0 %v2873
        %v2953 = vpop.f32.mrb[0].mxu0
        %v2954 = vadd.f32 0.0, %v2953
        %v2955 = vpop.f32.mrb[0].mxu0
        %v2956 = vadd.f32 0.0, %v2955
        %2957 = vmatprep.mubr.f32.mxu0 0.0
        %2958 = vmatmul.mubr.f32.gmra.mrb[0].mxu0 %v2876
        %v2959 = vpop.f32.mrb[0].mxu0
        %v2960 = vadd.f32 0.0, %v2959
        %v2961 = vpop.f32.mrb[0].mxu0
        %v2962 = vadd.f32 0.0, %v2961
        %2963 = vmatprep.mubr.f32.mxu0 0.0
        %2964 = vmatmul.mubr.f32.gmra.mrb[0].mxu0 %v2879
        %v2965 = vpop.f32.mrb[0].mxu0
        %v2966 = vadd.f32 0.0, %v2965
        %v2967 = vpop.f32.mrb[0].mxu0
        %v2968 = vadd.f32 0.0, %v2967
        %2969 = vdwg.mxu0
        %v2970 = vld [vmem:[%s4] sm:$0xff]
        %v2971 = vld [vmem:[%s4 + $0x8] sm:$0xff]
        %v2972 = vld [vmem:[%s4 + $0x10] sm:$0xff]
        %v2973 = vld [vmem:[%s4 + $0x18] sm:$0xff]
        %v2975 = vsel %vm464, %v2970, 0
        %v2978 = vsel %vm464, %v2971, 0
        %v2981 = vsel %vm464, %v2972, 0
        %v2984 = vsel %vm464, %v2973, 0
        %2986 = vmatprep.subr.mxu0 %v2950
        %2987 = vmatpush1.msra.mxu0 %v2948
        %2988 = vmatprep.subr.mxu0 %v2956
        %2989 = vmatpush1.msra.mxu0 %v2954
        %2990 = vmatprep.subr.mxu0 %v2962
        %2991 = vmatpush1.msra.mxu0 %v2960
        %2992 = vmatprep.subr.mxu0 %v2968
        %2993 = vmatpush1.msra.mxu0 %v2966
        %2994 = vmatprep.subr.mxu0 0.0
        %2995 = vmatpush1.msra.mxu0 0.0
        %2996 = vmatprep.subr.mxu0 0.0
        %2997 = vmatpush1.msra.mxu0 0.0
        %2998 = vmatprep.subr.mxu0 0.0
        %2999 = vmatpush1.msra.mxu0 0.0
        %3000 = vmatprep.subr.mxu0 0.0
        %3001 = vmatpush1.msra.mxu0 0.0
        %3002 = vmatprep.subr.mxu0 0.0
        %3003 = vmatpush1.msra.mxu0 0.0
        %3004 = vmatprep.subr.mxu0 0.0
        %3005 = vmatpush1.msra.mxu0 0.0
        %3006 = vmatprep.subr.mxu0 0.0
        %3007 = vmatpush1.msra.mxu0 0.0
        %3008 = vmatprep.subr.mxu0 0.0
        %3009 = vmatpush1.msra.mxu0 0.0
        %3010 = vmatprep.subr.mxu0 0.0
        %3011 = vmatpush1.msra.mxu0 0.0
        %3012 = vmatprep.subr.mxu0 0.0
        %3013 = vmatpush1.msra.mxu0 0.0
        %3014 = vmatprep.subr.mxu0 0.0
        %3015 = vmatpush1.msra.mxu0 0.0
        %3016 = vmatprep.subr.mxu0 0.0
        %3017 = vmatpush1.msra.mxu0 0.0
        %3018 = vmatprep.subr.mxu0 0.0
        %3019 = vmatpush1.msra.mxu0 0.0
        %3020 = vmatprep.subr.mxu0 0.0
        %3021 = vmatpush1.msra.mxu0 0.0
        %3022 = vmatprep.subr.mxu0 0.0
        %3023 = vmatpush1.msra.mxu0 0.0
        %3024 = vmatprep.subr.mxu0 0.0
        %3025 = vmatpush1.msra.mxu0 0.0
        %3026 = vmatprep.subr.mxu0 0.0
        %3027 = vmatpush1.msra.mxu0 0.0
        %3028 = vmatprep.subr.mxu0 0.0
        %3029 = vmatpush1.msra.mxu0 0.0
        %3030 = vmatprep.subr.mxu0 0.0
        %3031 = vmatpush1.msra.mxu0 0.0
        %3032 = vmatprep.subr.mxu0 0.0
        %3033 = vmatpush1.msra.mxu0 0.0
        %3034 = vmatprep.subr.mxu0 0.0
        %3035 = vmatpush1.msra.mxu0 0.0
        %3036 = vmatprep.subr.mxu0 0.0
        %3037 = vmatpush1.msra.mxu0 0.0
        %3038 = vmatprep.subr.mxu0 0.0
        %3039 = vmatpush1.msra.mxu0 0.0
        %3040 = vmatprep.subr.mxu0 0.0
        %3041 = vmatpush1.msra.mxu0 0.0
        %3042 = vmatprep.subr.mxu0 0.0
        %3043 = vmatpush1.msra.mxu0 0.0
        %3044 = vmatprep.subr.mxu0 0.0
        %3045 = vmatpush1.msra.mxu0 0.0
        %3046 = vmatprep.subr.mxu0 0.0
        %3047 = vmatpush1.msra.mxu0 0.0
        %3048 = vmatprep.subr.mxu0 0.0
        %3049 = vmatpush1.msra.mxu0 0.0
        %3050 = vmatprep.mubr.f32.mxu0 0.0
        %3051 = vmatmul.mubr.f32.gmra.mrb[0].mxu0 %v2975
        %v3052 = vpop.f32.mrb[0].mxu0
        %v3053 = vadd.f32 0.0, %v3052
        %v3054 = vpop.f32.mrb[0].mxu0
        %v3055 = vadd.f32 0.0, %v3054
        %3056 = vmatprep.mubr.f32.mxu0 0.0
        %3057 = vmatmul.mubr.f32.gmra.mrb[0].mxu0 %v2978
        %v3058 = vpop.f32.mrb[0].mxu0
        %v3059 = vadd.f32 0.0, %v3058
        %v3060 = vpop.f32.mrb[0].mxu0
        %v3061 = vadd.f32 0.0, %v3060
        %3062 = vmatprep.mubr.f32.mxu0 0.0
        %3063 = vmatmul.mubr.f32.gmra.mrb[0].mxu0 %v2981
        %v3064 = vpop.f32.mrb[0].mxu0
        %v3065 = vadd.f32 0.0, %v3064
        %v3066 = vpop.f32.mrb[0].mxu0
        %v3067 = vadd.f32 0.0, %v3066
        %3068 = vmatprep.mubr.f32.mxu0 0.0
        %3069 = vmatmul.mubr.f32.gmra.mrb[0].mxu0 %v2984
        %v3070 = vpop.f32.mrb[0].mxu0
        %v3071 = vadd.f32 0.0, %v3070
        %v3072 = vpop.f32.mrb[0].mxu0
        %v3073 = vadd.f32 0.0, %v3072
        %3074 = vdwg.mxu0
        %v3075 = vadd.f32 %v455, %v3053
        %v3076 = vadd.f32 %v456, %v3055
        %v3077 = vadd.f32 %v457, %v3059
        %v3078 = vadd.f32 %v458, %v3061
        %v3079 = vadd.f32 %v459, %v3065
        %v3080 = vadd.f32 %v460, %v3067
        %v3081 = vadd.f32 %v461, %v3071
        %v3082 = vadd.f32 %v462, %v3073
        %3083 = vmatprep.subr.mxu0 %v3076
        %3084 = vmatpush1.msra.mxu0 %v3075
        %3085 = vmatprep.subr.mxu0 %v3078
        %3086 = vmatpush1.msra.mxu0 %v3077
        %3087 = vmatprep.subr.mxu0 %v3080
        %3088 = vmatpush1.msra.mxu0 %v3079
        %3089 = vmatprep.subr.mxu0 %v3082
        %3090 = vmatpush1.msra.mxu0 %v3081
        %3091 = vmatprep.subr.mxu0 0.0
        %3092 = vmatpush1.msra.mxu0 0.0
        %3093 = vmatprep.subr.mxu0 0.0
        %3094 = vmatpush1.msra.mxu0 0.0
        %3095 = vmatprep.subr.mxu0 0.0
        %3096 = vmatpush1.msra.mxu0 0.0
        %3097 = vmatprep.subr.mxu0 0.0
        %3098 = vmatpush1.msra.mxu0 0.0
        %3099 = vmatprep.subr.mxu0 0.0
        %3100 = vmatpush1.msra.mxu0 0.0
        %3101 = vmatprep.subr.mxu0 0.0
        %3102 = vmatpush1.msra.mxu0 0.0
        %3103 = vmatprep.subr.mxu0 0.0
        %3104 = vmatpush1.msra.mxu0 0.0
        %3105 = vmatprep.subr.mxu0 0.0
        %3106 = vmatpush1.msra.mxu0 0.0
        %3107 = vmatprep.subr.mxu0 0.0
        %3108 = vmatpush1.msra.mxu0 0.0
        %3109 = vmatprep.subr.mxu0 0.0
        %3110 = vmatpush1.msra.mxu0 0.0
        %3111 = vmatprep.subr.mxu0 0.0
        %3112 = vmatpush1.msra.mxu0 0.0
        %3113 = vmatprep.subr.mxu0 0.0
        %3114 = vmatpush1.msra.mxu0 0.0
        %3115 = vmatprep.subr.mxu0 0.0
        %3116 = vmatpush1.msra.mxu0 0.0
        %3117 = vmatprep.subr.mxu0 0.0
        %3118 = vmatpush1.msra.mxu0 0.0
        %3119 = vmatprep.subr.mxu0 0.0
        %3120 = vmatpush1.msra.mxu0 0.0
        %3121 = vmatprep.subr.mxu0 0.0
        %3122 = vmatpush1.msra.mxu0 0.0
        %3123 = vmatprep.subr.mxu0 0.0
        %3124 = vmatpush1.msra.mxu0 0.0
        %3125 = vmatprep.subr.mxu0 0.0
        %3126 = vmatpush1.msra.mxu0 0.0
        %3127 = vmatprep.subr.mxu0 0.0
        %3128 = vmatpush1.msra.mxu0 0.0
        %3129 = vmatprep.subr.mxu0 0.0
        %3130 = vmatpush1.msra.mxu0 0.0
        %3131 = vmatprep.subr.mxu0 0.0
        %3132 = vmatpush1.msra.mxu0 0.0
        %3133 = vmatprep.subr.mxu0 0.0
        %3134 = vmatpush1.msra.mxu0 0.0
        %3135 = vmatprep.subr.mxu0 0.0
        %3136 = vmatpush1.msra.mxu0 0.0
        %3137 = vmatprep.subr.mxu0 0.0
        %3138 = vmatpush1.msra.mxu0 0.0
        %3139 = vmatprep.subr.mxu0 0.0
        %3140 = vmatpush1.msra.mxu0 0.0
        %3141 = vmatprep.subr.mxu0 0.0
        %3142 = vmatpush1.msra.mxu0 0.0
        %3143 = vmatprep.subr.mxu0 0.0
        %3144 = vmatpush1.msra.mxu0 0.0
        %3145 = vmatprep.subr.mxu0 0.0
        %3146 = vmatpush1.msra.mxu0 0.0
        %3147 = vmatprep.mubr.f32.mxu0 0.0
        %3148 = vmatmul.mubr.f32.gmra.mrb[0].mxu0 %v466
        %v3149 = vpop.f32.mrb[0].mxu0
        %v3150 = vadd.f32 0.0, %v3149
        %v3151 = vpop.f32.mrb[0].mxu0
        %v3152 = vadd.f32 0.0, %v3151
        %3153 = vdwg.mxu0
        %v3154 = vlaneseq
        %v3155 = vshrl.u32 %v3154, 7
        %v3156 = vsub.s32 0, %v3155
        %v3157 = vrot.slane %v3150, %v3156
        %v3158 = vlaneseq
        %v3159 = vshrl.u32 %v3158, 7
        %v3160 = vsub.s32 0, %v3159
        %v3161 = vrot.slane %v3152, %v3160
        %v3162 = vsub.f32 %v3075, %v3157
        %v3163 = vsub.f32 %v3076, %v3161
        %v3164 = vsub.f32 %v3077, %v3157
        %v3165 = vsub.f32 %v3078, %v3161
        %v3166 = vsub.f32 %v3079, %v3157
        %v3167 = vsub.f32 %v3080, %v3161
        %v3168 = vsub.f32 %v3081, %v3157
        %v3169 = vsub.f32 %v3082, %v3161
        %v3170 = vmul.f32 %v3162, %v3162
        %v3171 = vmul.f32 %v3163, %v3163
        %v3172 = vmul.f32 %v3164, %v3164
        %v3173 = vmul.f32 %v3165, %v3165
        %v3174 = vmul.f32 %v3166, %v3166
        %v3175 = vmul.f32 %v3167, %v3167
        %v3176 = vmul.f32 %v3168, %v3168
        %v3177 = vmul.f32 %v3169, %v3169
        %3178 = vmatprep.subr.mxu0 %v3171
        %3179 = vmatpush1.msra.mxu0 %v3170
        %3180 = vmatprep.subr.mxu0 %v3173
        %3181 = vmatpush1.msra.mxu0 %v3172
        %3182 = vmatprep.subr.mxu0 %v3175
        %3183 = vmatpush1.msra.mxu0 %v3174
        %3184 = vmatprep.subr.mxu0 %v3177
        %3185 = vmatpush1.msra.mxu0 %v3176
        %3186 = vmatprep.subr.mxu0 0.0
        %3187 = vmatpush1.msra.mxu0 0.0
        %3188 = vmatprep.subr.mxu0 0.0
        %3189 = vmatpush1.msra.mxu0 0.0
        %3190 = vmatprep.subr.mxu0 0.0
        %3191 = vmatpush1.msra.mxu0 0.0
        %3192 = vmatprep.subr.mxu0 0.0
        %3193 = vmatpush1.msra.mxu0 0.0
        %3194 = vmatprep.subr.mxu0 0.0
        %3195 = vmatpush1.msra.mxu0 0.0
        %3196 = vmatprep.subr.mxu0 0.0
        %3197 = vmatpush1.msra.mxu0 0.0
        %3198 = vmatprep.subr.mxu0 0.0
        %3199 = vmatpush1.msra.mxu0 0.0
        %3200 = vmatprep.subr.mxu0 0.0
        %3201 = vmatpush1.msra.mxu0 0.0
        %3202 = vmatprep.subr.mxu0 0.0
        %3203 = vmatpush1.msra.mxu0 0.0
        %3204 = vmatprep.subr.mxu0 0.0
        %3205 = vmatpush1.msra.mxu0 0.0
        %3206 = vmatprep.subr.mxu0 0.0
        %3207 = vmatpush1.msra.mxu0 0.0
        %3208 = vmatprep.subr.mxu0 0.0
        %3209 = vmatpush1.msra.mxu0 0.0
        %3210 = vmatprep.subr.mxu0 0.0
        %3211 = vmatpush1.msra.mxu0 0.0
        %3212 = vmatprep.subr.mxu0 0.0
        %3213 = vmatpush1.msra.mxu0 0.0
        %3214 = vmatprep.subr.mxu0 0.0
        %3215 = vmatpush1.msra.mxu0 0.0
        %3216 = vmatprep.subr.mxu0 0.0
        %3217 = vmatpush1.msra.mxu0 0.0
        %3218 = vmatprep.subr.mxu0 0.0
        %3219 = vmatpush1.msra.mxu0 0.0
        %3220 = vmatprep.subr.mxu0 0.0
        %3221 = vmatpush1.msra.mxu0 0.0
        %3222 = vmatprep.subr.mxu0 0.0
        %3223 = vmatpush1.msra.mxu0 0.0
        %3224 = vmatprep.subr.mxu0 0.0
        %3225 = vmatpush1.msra.mxu0 0.0
        %3226 = vmatprep.subr.mxu0 0.0
        %3227 = vmatpush1.msra.mxu0 0.0
        %3228 = vmatprep.subr.mxu0 0.0
        %3229 = vmatpush1.msra.mxu0 0.0
        %3230 = vmatprep.subr.mxu0 0.0
        %3231 = vmatpush1.msra.mxu0 0.0
        %3232 = vmatprep.subr.mxu0 0.0
        %3233 = vmatpush1.msra.mxu0 0.0
        %3234 = vmatprep.subr.mxu0 0.0
        %3235 = vmatpush1.msra.mxu0 0.0
        %3236 = vmatprep.subr.mxu0 0.0
        %3237 = vmatpush1.msra.mxu0 0.0
        %3238 = vmatprep.subr.mxu0 0.0
        %3239 = vmatpush1.msra.mxu0 0.0
        %3240 = vmatprep.subr.mxu0 0.0
        %3241 = vmatpush1.msra.mxu0 0.0
        %3242 = vmatprep.mubr.f32.mxu0 0.0
        %3243 = vmatmul.mubr.f32.gmra.mrb[0].mxu0 %v466
        %v3244 = vpop.f32.mrb[0].mxu0
        %v3245 = vadd.f32 0.0, %v3244
        %v3246 = vpop.f32.mrb[0].mxu0
        %v3247 = vadd.f32 0.0, %v3246
        %3248 = vdwg.mxu0
        %v3249 = vadd.f32 %v3245, 1e-05
        %v3250 = vadd.f32 %v3247, 1e-05
        %v3251 = vrsqrt.pop %v3249
        %v3252 = vrsqrt.pop %v3250
        %v3253 = vlaneseq
        %v3254 = vshrl.u32 %v3253, 7
        %v3255 = vsub.s32 0, %v3254
        %v3256 = vrot.slane %v3251, %v3255
        %v3257 = vlaneseq
        %v3258 = vshrl.u32 %v3257, 7
        %v3259 = vsub.s32 0, %v3258
        %v3260 = vrot.slane %v3252, %v3259
        %v3261 = vmul.f32 %v3162, %v3256
        %v3262 = vmul.f32 %v3163, %v3260
        %v3263 = vmul.f32 %v3164, %v3256
        %v3264 = vmul.f32 %v3165, %v3260
        %v3265 = vmul.f32 %v3166, %v3256
        %v3266 = vmul.f32 %v3167, %v3260
        %v3267 = vmul.f32 %v3168, %v3256
        %v3268 = vmul.f32 %v3169, %v3260
        %v3269 = vld [vmem:[%s5] sm:$0xff]
        %v3270 = vld [vmem:[%s5 + $0x8] sm:$0xff]
        %v3271 = vld [vmem:[%s5 + $0x10] sm:$0xff]
        %v3272 = vld [vmem:[%s5 + $0x18] sm:$0xff]
        %v3273 = vld [vmem:[%s5 + $0x20] sm:$0xff]
        %v3274 = vld [vmem:[%s5 + $0x28] sm:$0xff]
        %v3275 = vld [vmem:[%s5 + $0x30] sm:$0xff]
        %v3276 = vld [vmem:[%s5 + $0x38] sm:$0xff]
        %v3277 = vld [vmem:[%s5 + $0x40] sm:$0xff]
        %v3278 = vld [vmem:[%s5 + $0x48] sm:$0xff]
        %3279 = vset.pattern.permute.xlu0 1
        %3280 = vperm.xlu0 %3279, %v439
        %v3281 = vpop.permute.xlu0 %3280
        %3283 = vset.pattern.permute.xlu0 1
        %3284 = vperm.xlu0 %3283, %v440
        %v3285 = vpop.permute.xlu0 %3284
        %3287 = vset.pattern.permute.xlu0 1
        %3288 = vperm.xlu0 %3287, %v441
        %v3289 = vpop.permute.xlu0 %3288
        %3291 = vset.pattern.permute.xlu0 1
        %3292 = vperm.xlu0 %3291, %v442
        %v3293 = vpop.permute.xlu0 %3292
        %3295 = vset.pattern.permute.xlu0 1
        %3296 = vperm.xlu0 %3295, %v443
        %v3297 = vpop.permute.xlu0 %3296
        %3299 = vset.pattern.permute.xlu0 1
        %3300 = vperm.xlu0 %3299, %v444
        %v3301 = vpop.permute.xlu0 %3300
        %3303 = vset.pattern.permute.xlu0 1
        %3304 = vperm.xlu0 %3303, %v445
        %v3305 = vpop.permute.xlu0 %3304
        %3307 = vset.pattern.permute.xlu0 1
        %3308 = vperm.xlu0 %3307, %v446
        %v3309 = vpop.permute.xlu0 %3308
        %3311 = vset.pattern.permute.xlu0 1
        %3312 = vperm.xlu0 %3311, %v447
        %v3313 = vpop.permute.xlu0 %3312
        %3315 = vset.pattern.permute.xlu0 1
        %3316 = vperm.xlu0 %3315, %v448
        %v3317 = vpop.permute.xlu0 %3316
        %v3320 = vsel %vm464, %v3269, 0
        %v3323 = vsel %vm464, %v3270, 0
        %v3326 = vsel %vm464, %v3271, 0
        %v3329 = vsel %vm464, %v3272, 0
        %v3332 = vsel %vm464, %v3273, 0
        %v3335 = vsel %vm464, %v3274, 0
        %v3338 = vsel %vm464, %v3275, 0
        %v3341 = vsel %vm464, %v3276, 0
        %v3344 = vsel %vm464, %v3277, 0
        %v3347 = vsel %vm464, %v3278, 0
        %3349 = vmatprep.subr.mxu0 %v3262
        %3350 = vmatpush1.msra.mxu0 %v3261
        %3351 = vmatprep.subr.mxu0 %v3264
        %3352 = vmatpush1.msra.mxu0 %v3263
        %3353 = vmatprep.subr.mxu0 %v3266
        %3354 = vmatpush1.msra.mxu0 %v3265
        %3355 = vmatprep.subr.mxu0 %v3268
        %3356 = vmatpush1.msra.mxu0 %v3267
        %3357 = vmatprep.subr.mxu0 0.0
        %3358 = vmatpush1.msra.mxu0 0.0
        %3359 = vmatprep.subr.mxu0 0.0
        %3360 = vmatpush1.msra.mxu0 0.0
        %3361 = vmatprep.subr.mxu0 0.0
        %3362 = vmatpush1.msra.mxu0 0.0
        %3363 = vmatprep.subr.mxu0 0.0
        %3364 = vmatpush1.msra.mxu0 0.0
        %3365 = vmatprep.subr.mxu0 0.0
        %3366 = vmatpush1.msra.mxu0 0.0
        %3367 = vmatprep.subr.mxu0 0.0
        %3368 = vmatpush1.msra.mxu0 0.0
        %3369 = vmatprep.subr.mxu0 0.0
        %3370 = vmatpush1.msra.mxu0 0.0
        %3371 = vmatprep.subr.mxu0 0.0
        %3372 = vmatpush1.msra.mxu0 0.0
        %3373 = vmatprep.subr.mxu0 0.0
        %3374 = vmatpush1.msra.mxu0 0.0
        %3375 = vmatprep.subr.mxu0 0.0
        %3376 = vmatpush1.msra.mxu0 0.0
        %3377 = vmatprep.subr.mxu0 0.0
        %3378 = vmatpush1.msra.mxu0 0.0
        %3379 = vmatprep.subr.mxu0 0.0
        %3380 = vmatpush1.msra.mxu0 0.0
        %3381 = vmatprep.subr.mxu0 0.0
        %3382 = vmatpush1.msra.mxu0 0.0
        %3383 = vmatprep.subr.mxu0 0.0
        %3384 = vmatpush1.msra.mxu0 0.0
        %3385 = vmatprep.subr.mxu0 0.0
        %3386 = vmatpush1.msra.mxu0 0.0
        %3387 = vmatprep.subr.mxu0 0.0
        %3388 = vmatpush1.msra.mxu0 0.0
        %3389 = vmatprep.subr.mxu0 0.0
        %3390 = vmatpush1.msra.mxu0 0.0
        %3391 = vmatprep.subr.mxu0 0.0
        %3392 = vmatpush1.msra.mxu0 0.0
        %3393 = vmatprep.subr.mxu0 0.0
        %3394 = vmatpush1.msra.mxu0 0.0
        %3395 = vmatprep.subr.mxu0 0.0
        %3396 = vmatpush1.msra.mxu0 0.0
        %3397 = vmatprep.subr.mxu0 0.0
        %3398 = vmatpush1.msra.mxu0 0.0
        %3399 = vmatprep.subr.mxu0 0.0
        %3400 = vmatpush1.msra.mxu0 0.0
        %3401 = vmatprep.subr.mxu0 0.0
        %3402 = vmatpush1.msra.mxu0 0.0
        %3403 = vmatprep.subr.mxu0 0.0
        %3404 = vmatpush1.msra.mxu0 0.0
        %3405 = vmatprep.subr.mxu0 0.0
        %3406 = vmatpush1.msra.mxu0 0.0
        %3407 = vmatprep.subr.mxu0 0.0
        %3408 = vmatpush1.msra.mxu0 0.0
        %3409 = vmatprep.subr.mxu0 0.0
        %3410 = vmatpush1.msra.mxu0 0.0
        %3411 = vmatprep.subr.mxu0 0.0
        %3412 = vmatpush1.msra.mxu0 0.0
        %3413 = vmatprep.mubr.f32.mxu0 0.0
        %3414 = vmatmul.mubr.f32.gmra.mrb[0].mxu0 %v3320
        %v3415 = vpop.f32.mrb[0].mxu0
        %v3416 = vadd.f32 %v3281, %v3415
        %v3417 = vpop.f32.mrb[0].mxu0
        %v3418 = vadd.f32 %v3281, %v3417
        %3419 = vmatprep.mubr.f32.mxu0 0.0
        %3420 = vmatmul.mubr.f32.gmra.mrb[0].mxu0 %v3323
        %v3421 = vpop.f32.mrb[0].mxu0
        %v3422 = vadd.f32 %v3285, %v3421
        %v3423 = vpop.f32.mrb[0].mxu0
        %v3424 = vadd.f32 %v3285, %v3423
        %3425 = vmatprep.mubr.f32.mxu0 0.0
        %3426 = vmatmul.mubr.f32.gmra.mrb[0].mxu0 %v3326
        %v3427 = vpop.f32.mrb[0].mxu0
        %v3428 = vadd.f32 %v3289, %v3427
        %v3429 = vpop.f32.mrb[0].mxu0
        %v3430 = vadd.f32 %v3289, %v3429
        %3431 = vmatprep.mubr.f32.mxu0 0.0
        %3432 = vmatmul.mubr.f32.gmra.mrb[0].mxu0 %v3329
        %v3433 = vpop.f32.mrb[0].mxu0
        %v3434 = vadd.f32 %v3293, %v3433
        %v3435 = vpop.f32.mrb[0].mxu0
        %v3436 = vadd.f32 %v3293, %v3435
        %3437 = vmatprep.mubr.f32.mxu0 0.0
        %3438 = vmatmul.mubr.f32.gmra.mrb[0].mxu0 %v3332
        %v3439 = vpop.f32.mrb[0].mxu0
        %v3440 = vadd.f32 %v3297, %v3439
        %v3441 = vpop.f32.mrb[0].mxu0
        %v3442 = vadd.f32 %v3297, %v3441
        %3443 = vmatprep.mubr.f32.mxu0 0.0
        %3444 = vmatmul.mubr.f32.gmra.mrb[0].mxu0 %v3335
        %v3445 = vpop.f32.mrb[0].mxu0
        %v3446 = vadd.f32 %v3301, %v3445
        %v3447 = vpop.f32.mrb[0].mxu0
        %v3448 = vadd.f32 %v3301, %v3447
        %3449 = vmatprep.mubr.f32.mxu0 0.0
        %3450 = vmatmul.mubr.f32.gmra.mrb[0].mxu0 %v3338
        %v3451 = vpop.f32.mrb[0].mxu0
        %v3452 = vadd.f32 %v3305, %v3451
        %v3453 = vpop.f32.mrb[0].mxu0
        %v3454 = vadd.f32 %v3305, %v3453
        %3455 = vmatprep.mubr.f32.mxu0 0.0
        %3456 = vmatmul.mubr.f32.gmra.mrb[0].mxu0 %v3341
        %v3457 = vpop.f32.mrb[0].mxu0
        %v3458 = vadd.f32 %v3309, %v3457
        %v3459 = vpop.f32.mrb[0].mxu0
        %v3460 = vadd.f32 %v3309, %v3459
        %3461 = vmatprep.mubr.f32.mxu0 0.0
        %3462 = vmatmul.mubr.f32.gmra.mrb[0].mxu0 %v3344
        %v3463 = vpop.f32.mrb[0].mxu0
        %v3464 = vadd.f32 %v3313, %v3463
        %v3465 = vpop.f32.mrb[0].mxu0
        %v3466 = vadd.f32 %v3313, %v3465
        %3467 = vmatprep.mubr.f32.mxu0 0.0
        %3468 = vmatmul.mubr.f32.gmra.mrb[0].mxu0 %v3347
        %v3469 = vpop.f32.mrb[0].mxu0
        %v3470 = vadd.f32 %v3317, %v3469
        %v3471 = vpop.f32.mrb[0].mxu0
        %v3472 = vadd.f32 %v3317, %v3471
        %3473 = vdwg.mxu0
        %3474 = vrot.lane.b32.xlu0 %v3416, 17
        %v3475 = vpop.permute.xlu0 %3474
        %3476 = vrot.lane.b32.xlu0 %v3422, 17
        %v3477 = vpop.permute.xlu0 %3476
        %3478 = vrot.lane.b32.xlu0 %v3428, 17
        %v3479 = vpop.permute.xlu0 %3478
        %3480 = vrot.lane.b32.xlu0 %v3434, 17
        %v3481 = vpop.permute.xlu0 %3480
        %3482 = vrot.lane.b32.xlu0 %v3440, 17
        %v3483 = vpop.permute.xlu0 %3482
        %3484 = vrot.lane.b32.xlu0 %v3446, 17
        %v3485 = vpop.permute.xlu0 %3484
        %3486 = vrot.lane.b32.xlu0 %v3452, 17
        %v3487 = vpop.permute.xlu0 %3486
        %3488 = vrot.lane.b32.xlu0 %v3458, 17
        %v3489 = vpop.permute.xlu0 %3488
        %3490 = vrot.lane.b32.xlu0 %v3464, 17
        %v3491 = vpop.permute.xlu0 %3490
        %3492 = vrot.lane.b32.xlu0 %v3470, 17
        %v3493 = vpop.permute.xlu0 %3492
        %3494 = vrot.lane.b32.xlu0 %v3418, 17
        %v3495 = vpop.permute.xlu0 %3494
        %3496 = vrot.lane.b32.xlu0 %v3424, 17
        %v3497 = vpop.permute.xlu0 %3496
        %3498 = vrot.lane.b32.xlu0 %v3430, 17
        %v3499 = vpop.permute.xlu0 %3498
        %3500 = vrot.lane.b32.xlu0 %v3436, 17
        %v3501 = vpop.permute.xlu0 %3500
        %3502 = vrot.lane.b32.xlu0 %v3442, 17
        %v3503 = vpop.permute.xlu0 %3502
        %3504 = vrot.lane.b32.xlu0 %v3448, 17
        %v3505 = vpop.permute.xlu0 %3504
        %3506 = vrot.lane.b32.xlu0 %v3454, 17
        %v3507 = vpop.permute.xlu0 %3506
        %3508 = vrot.lane.b32.xlu0 %v3460, 17
        %v3509 = vpop.permute.xlu0 %3508
        %3510 = vrot.lane.b32.xlu0 %v3466, 17
        %v3511 = vpop.permute.xlu0 %3510
        %3512 = vrot.lane.b32.xlu0 %v3472, 17
        %v3513 = vpop.permute.xlu0 %3512
        %v3514 = vsel %vm949, %v3475, %v3495
        %v3515 = vsel %vm949, %v3477, %v3497
        %v3516 = vsel %vm949, %v3479, %v3499
        %v3517 = vsel %vm949, %v3481, %v3501
        %v3518 = vsel %vm949, %v3483, %v3503
        %v3519 = vsel %vm949, %v3485, %v3505
        %v3520 = vsel %vm949, %v3487, %v3507
        %v3521 = vsel %vm949, %v3489, %v3509
        %v3522 = vsel %vm949, %v3491, %v3511
        %v3523 = vsel %vm949, %v3493, %v3513
        %v3524 = vsel %vm949, %v3495, %v3475
        %v3525 = vsel %vm949, %v3497, %v3477
        %v3526 = vsel %vm949, %v3499, %v3479
        %v3527 = vsel %vm949, %v3501, %v3481
        %v3528 = vsel %vm949, %v3503, %v3483
        %v3529 = vsel %vm949, %v3505, %v3485
        %v3530 = vsel %vm949, %v3507, %v3487
        %v3531 = vsel %vm949, %v3509, %v3489
        %v3532 = vsel %vm949, %v3511, %v3491
        %v3533 = vsel %vm949, %v3513, %v3493
        %v3534 = vmul.f32 %v3524, %v979
        %v3535 = vmul.f32 %v3514, %v983
        %v3536 = vmul.f32 %v3525, %v979
        %v3537 = vmul.f32 %v3515, %v983
        %v3538 = vmul.f32 %v3526, %v979
        %v3539 = vmul.f32 %v3516, %v983
        %v3540 = vmul.f32 %v3527, %v979
        %v3541 = vmul.f32 %v3517, %v983
        %v3542 = vmul.f32 %v3528, %v979
        %v3543 = vmul.f32 %v3518, %v983
        %v3544 = vmul.f32 %v3529, %v979
        %v3545 = vmul.f32 %v3519, %v983
        %v3546 = vmul.f32 %v3530, %v979
        %v3547 = vmul.f32 %v3520, %v983
        %v3548 = vmul.f32 %v3531, %v979
        %v3549 = vmul.f32 %v3521, %v983
        %v3550 = vmul.f32 %v3532, %v979
        %v3551 = vmul.f32 %v3522, %v983
        %v3552 = vmul.f32 %v3533, %v979
        %v3553 = vmul.f32 %v3523, %v983
        %v3554 = vld [vmem:[%s6] sm:$0xff]
        %v3555 = vld [vmem:[%s6 + $0x8] sm:$0xff]
        %v3556 = vld [vmem:[%s6 + $0x10] sm:$0xff]
        %v3557 = vld [vmem:[%s6 + $0x18] sm:$0xff]
        %v3558 = vld [vmem:[%s6 + $0x20] sm:$0xff]
        %v3559 = vld [vmem:[%s6 + $0x28] sm:$0xff]
        %v3560 = vld [vmem:[%s6 + $0x30] sm:$0xff]
        %v3561 = vld [vmem:[%s6 + $0x38] sm:$0xff]
        %v3562 = vld [vmem:[%s6 + $0x40] sm:$0xff]
        %v3563 = vld [vmem:[%s6 + $0x48] sm:$0xff]
        %3565 = vset.pattern.permute.xlu0 0
        %3566 = vperm.xlu0 %3565, %v3554
        %v3567 = vpop.permute.xlu0 %3566
        %3570 = vset.pattern.permute.xlu0 0
        %3571 = vperm.xlu0 %3570, %v3555
        %v3572 = vpop.permute.xlu0 %3571
        %3575 = vset.pattern.permute.xlu0 0
        %3576 = vperm.xlu0 %3575, %v3556
        %v3577 = vpop.permute.xlu0 %3576
        %3580 = vset.pattern.permute.xlu0 0
        %3581 = vperm.xlu0 %3580, %v3557
        %v3582 = vpop.permute.xlu0 %3581
        %3585 = vset.pattern.permute.xlu0 0
        %3586 = vperm.xlu0 %3585, %v3558
        %v3587 = vpop.permute.xlu0 %3586
        %3590 = vset.pattern.permute.xlu0 0
        %3591 = vperm.xlu0 %3590, %v3559
        %v3592 = vpop.permute.xlu0 %3591
        %3595 = vset.pattern.permute.xlu0 0
        %3596 = vperm.xlu0 %3595, %v3560
        %v3597 = vpop.permute.xlu0 %3596
        %3600 = vset.pattern.permute.xlu0 0
        %3601 = vperm.xlu0 %3600, %v3561
        %v3602 = vpop.permute.xlu0 %3601
        %3605 = vset.pattern.permute.xlu0 0
        %3606 = vperm.xlu0 %3605, %v3562
        %v3607 = vpop.permute.xlu0 %3606
        %3610 = vset.pattern.permute.xlu0 0
        %3611 = vperm.xlu0 %3610, %v3563
        %v3612 = vpop.permute.xlu0 %3611
        %v3614 = vmul.f32 %v3567, %v3534
        %v3615 = vmul.f32 %v3567, %v3535
        %v3616 = vmul.f32 %v3572, %v3536
        %v3617 = vmul.f32 %v3572, %v3537
        %v3618 = vmul.f32 %v3577, %v3538
        %v3619 = vmul.f32 %v3577, %v3539
        %v3620 = vmul.f32 %v3582, %v3540
        %v3621 = vmul.f32 %v3582, %v3541
        %v3622 = vmul.f32 %v3587, %v3542
        %v3623 = vmul.f32 %v3587, %v3543
        %v3624 = vmul.f32 %v3592, %v3544
        %v3625 = vmul.f32 %v3592, %v3545
        %v3626 = vmul.f32 %v3597, %v3546
        %v3627 = vmul.f32 %v3597, %v3547
        %v3628 = vmul.f32 %v3602, %v3548
        %v3629 = vmul.f32 %v3602, %v3549
        %v3630 = vmul.f32 %v3607, %v3550
        %v3631 = vmul.f32 %v3607, %v3551
        %v3632 = vmul.f32 %v3612, %v3552
        %v3633 = vmul.f32 %v3612, %v3553
        %3634 = vrot.lane.b32.xlu0 %v3416, 16
        %v3635 = vpop.permute.xlu0 %3634
        %3636 = vrot.lane.b32.xlu0 %v3422, 16
        %v3637 = vpop.permute.xlu0 %3636
        %3638 = vrot.lane.b32.xlu0 %v3428, 16
        %v3639 = vpop.permute.xlu0 %3638
        %3640 = vrot.lane.b32.xlu0 %v3434, 16
        %v3641 = vpop.permute.xlu0 %3640
        %3642 = vrot.lane.b32.xlu0 %v3440, 16
        %v3643 = vpop.permute.xlu0 %3642
        %3644 = vrot.lane.b32.xlu0 %v3446, 16
        %v3645 = vpop.permute.xlu0 %3644
        %3646 = vrot.lane.b32.xlu0 %v3452, 16
        %v3647 = vpop.permute.xlu0 %3646
        %3648 = vrot.lane.b32.xlu0 %v3458, 16
        %v3649 = vpop.permute.xlu0 %3648
        %3650 = vrot.lane.b32.xlu0 %v3464, 16
        %v3651 = vpop.permute.xlu0 %3650
        %3652 = vrot.lane.b32.xlu0 %v3470, 16
        %v3653 = vpop.permute.xlu0 %3652
        %3654 = vrot.lane.b32.xlu0 %v3418, 16
        %v3655 = vpop.permute.xlu0 %3654
        %3656 = vrot.lane.b32.xlu0 %v3424, 16
        %v3657 = vpop.permute.xlu0 %3656
        %3658 = vrot.lane.b32.xlu0 %v3430, 16
        %v3659 = vpop.permute.xlu0 %3658
        %3660 = vrot.lane.b32.xlu0 %v3436, 16
        %v3661 = vpop.permute.xlu0 %3660
        %3662 = vrot.lane.b32.xlu0 %v3442, 16
        %v3663 = vpop.permute.xlu0 %3662
        %3664 = vrot.lane.b32.xlu0 %v3448, 16
        %v3665 = vpop.permute.xlu0 %3664
        %3666 = vrot.lane.b32.xlu0 %v3454, 16
        %v3667 = vpop.permute.xlu0 %3666
        %3668 = vrot.lane.b32.xlu0 %v3460, 16
        %v3669 = vpop.permute.xlu0 %3668
        %3670 = vrot.lane.b32.xlu0 %v3466, 16
        %v3671 = vpop.permute.xlu0 %3670
        %3672 = vrot.lane.b32.xlu0 %v3472, 16
        %v3673 = vpop.permute.xlu0 %3672
        %v3674 = vsel %vm1154, %v3635, %v3655
        %v3675 = vsel %vm1154, %v3637, %v3657
        %v3676 = vsel %vm1154, %v3639, %v3659
        %v3677 = vsel %vm1154, %v3641, %v3661
        %v3678 = vsel %vm1154, %v3643, %v3663
        %v3679 = vsel %vm1154, %v3645, %v3665
        %v3680 = vsel %vm1154, %v3647, %v3667
        %v3681 = vsel %vm1154, %v3649, %v3669
        %v3682 = vsel %vm1154, %v3651, %v3671
        %v3683 = vsel %vm1154, %v3653, %v3673
        %v3684 = vsel %vm1154, %v3655, %v3635
        %v3685 = vsel %vm1154, %v3657, %v3637
        %v3686 = vsel %vm1154, %v3659, %v3639
        %v3687 = vsel %vm1154, %v3661, %v3641
        %v3688 = vsel %vm1154, %v3663, %v3643
        %v3689 = vsel %vm1154, %v3665, %v3645
        %v3690 = vsel %vm1154, %v3667, %v3647
        %v3691 = vsel %vm1154, %v3669, %v3649
        %v3692 = vsel %vm1154, %v3671, %v3651
        %v3693 = vsel %vm1154, %v3673, %v3653
        %v3694 = vmul.f32 %v3684, %v1185
        %v3695 = vmul.f32 %v3674, %v1189
        %v3696 = vmul.f32 %v3685, %v1185
        %v3697 = vmul.f32 %v3675, %v1189
        %v3698 = vmul.f32 %v3686, %v1185
        %v3699 = vmul.f32 %v3676, %v1189
        %v3700 = vmul.f32 %v3687, %v1185
        %v3701 = vmul.f32 %v3677, %v1189
        %v3702 = vmul.f32 %v3688, %v1185
        %v3703 = vmul.f32 %v3678, %v1189
        %v3704 = vmul.f32 %v3689, %v1185
        %v3705 = vmul.f32 %v3679, %v1189
        %v3706 = vmul.f32 %v3690, %v1185
        %v3707 = vmul.f32 %v3680, %v1189
        %v3708 = vmul.f32 %v3691, %v1185
        %v3709 = vmul.f32 %v3681, %v1189
        %v3710 = vmul.f32 %v3692, %v1185
        %v3711 = vmul.f32 %v3682, %v1189
        %v3712 = vmul.f32 %v3693, %v1185
        %v3713 = vmul.f32 %v3683, %v1189
        %3714 = vset.pattern.permute.xlu0 1
        %3715 = vperm.xlu0 %3714, %v3554
        %v3716 = vpop.permute.xlu0 %3715
        %3718 = vset.pattern.permute.xlu0 1
        %3719 = vperm.xlu0 %3718, %v3555
        %v3720 = vpop.permute.xlu0 %3719
        %3722 = vset.pattern.permute.xlu0 1
        %3723 = vperm.xlu0 %3722, %v3556
        %v3724 = vpop.permute.xlu0 %3723
        %3726 = vset.pattern.permute.xlu0 1
        %3727 = vperm.xlu0 %3726, %v3557
        %v3728 = vpop.permute.xlu0 %3727
        %3730 = vset.pattern.permute.xlu0 1
        %3731 = vperm.xlu0 %3730, %v3558
        %v3732 = vpop.permute.xlu0 %3731
        %3734 = vset.pattern.permute.xlu0 1
        %3735 = vperm.xlu0 %3734, %v3559
        %v3736 = vpop.permute.xlu0 %3735
        %3738 = vset.pattern.permute.xlu0 1
        %3739 = vperm.xlu0 %3738, %v3560
        %v3740 = vpop.permute.xlu0 %3739
        %3742 = vset.pattern.permute.xlu0 1
        %3743 = vperm.xlu0 %3742, %v3561
        %v3744 = vpop.permute.xlu0 %3743
        %3746 = vset.pattern.permute.xlu0 1
        %3747 = vperm.xlu0 %3746, %v3562
        %v3748 = vpop.permute.xlu0 %3747
        %3750 = vset.pattern.permute.xlu0 1
        %3751 = vperm.xlu0 %3750, %v3563
        %v3752 = vpop.permute.xlu0 %3751
        %v3754 = vmul.f32 %v3716, %v3694
        %v3755 = vmul.f32 %v3716, %v3695
        %v3756 = vmul.f32 %v3720, %v3696
        %v3757 = vmul.f32 %v3720, %v3697
        %v3758 = vmul.f32 %v3724, %v3698
        %v3759 = vmul.f32 %v3724, %v3699
        %v3760 = vmul.f32 %v3728, %v3700
        %v3761 = vmul.f32 %v3728, %v3701
        %v3762 = vmul.f32 %v3732, %v3702
        %v3763 = vmul.f32 %v3732, %v3703
        %v3764 = vmul.f32 %v3736, %v3704
        %v3765 = vmul.f32 %v3736, %v3705
        %v3766 = vmul.f32 %v3740, %v3706
        %v3767 = vmul.f32 %v3740, %v3707
        %v3768 = vmul.f32 %v3744, %v3708
        %v3769 = vmul.f32 %v3744, %v3709
        %v3770 = vmul.f32 %v3748, %v3710
        %v3771 = vmul.f32 %v3748, %v3711
        %v3772 = vmul.f32 %v3752, %v3712
        %v3773 = vmul.f32 %v3752, %v3713
        %v3774 = vadd.f32 %v3614, %v3754
        %v3775 = vadd.f32 %v3615, %v3755
        %v3776 = vadd.f32 %v3616, %v3756
        %v3777 = vadd.f32 %v3617, %v3757
        %v3778 = vadd.f32 %v3618, %v3758
        %v3779 = vadd.f32 %v3619, %v3759
        %v3780 = vadd.f32 %v3620, %v3760
        %v3781 = vadd.f32 %v3621, %v3761
        %v3782 = vadd.f32 %v3622, %v3762
        %v3783 = vadd.f32 %v3623, %v3763
        %v3784 = vadd.f32 %v3624, %v3764
        %v3785 = vadd.f32 %v3625, %v3765
        %v3786 = vadd.f32 %v3626, %v3766
        %v3787 = vadd.f32 %v3627, %v3767
        %v3788 = vadd.f32 %v3628, %v3768
        %v3789 = vadd.f32 %v3629, %v3769
        %v3790 = vadd.f32 %v3630, %v3770
        %v3791 = vadd.f32 %v3631, %v3771
        %v3792 = vadd.f32 %v3632, %v3772
        %v3793 = vadd.f32 %v3633, %v3773
        %3794 = vrot.lane.b32.xlu0 %v3416, 15
        %v3795 = vpop.permute.xlu0 %3794
        %3796 = vrot.lane.b32.xlu0 %v3422, 15
        %v3797 = vpop.permute.xlu0 %3796
        %3798 = vrot.lane.b32.xlu0 %v3428, 15
        %v3799 = vpop.permute.xlu0 %3798
        %3800 = vrot.lane.b32.xlu0 %v3434, 15
        %v3801 = vpop.permute.xlu0 %3800
        %3802 = vrot.lane.b32.xlu0 %v3440, 15
        %v3803 = vpop.permute.xlu0 %3802
        %3804 = vrot.lane.b32.xlu0 %v3446, 15
        %v3805 = vpop.permute.xlu0 %3804
        %3806 = vrot.lane.b32.xlu0 %v3452, 15
        %v3807 = vpop.permute.xlu0 %3806
        %3808 = vrot.lane.b32.xlu0 %v3458, 15
        %v3809 = vpop.permute.xlu0 %3808
        %3810 = vrot.lane.b32.xlu0 %v3464, 15
        %v3811 = vpop.permute.xlu0 %3810
        %3812 = vrot.lane.b32.xlu0 %v3470, 15
        %v3813 = vpop.permute.xlu0 %3812
        %3814 = vrot.lane.b32.xlu0 %v3418, 15
        %v3815 = vpop.permute.xlu0 %3814
        %3816 = vrot.lane.b32.xlu0 %v3424, 15
        %v3817 = vpop.permute.xlu0 %3816
        %3818 = vrot.lane.b32.xlu0 %v3430, 15
        %v3819 = vpop.permute.xlu0 %3818
        %3820 = vrot.lane.b32.xlu0 %v3436, 15
        %v3821 = vpop.permute.xlu0 %3820
        %3822 = vrot.lane.b32.xlu0 %v3442, 15
        %v3823 = vpop.permute.xlu0 %3822
        %3824 = vrot.lane.b32.xlu0 %v3448, 15
        %v3825 = vpop.permute.xlu0 %3824
        %3826 = vrot.lane.b32.xlu0 %v3454, 15
        %v3827 = vpop.permute.xlu0 %3826
        %3828 = vrot.lane.b32.xlu0 %v3460, 15
        %v3829 = vpop.permute.xlu0 %3828
        %3830 = vrot.lane.b32.xlu0 %v3466, 15
        %v3831 = vpop.permute.xlu0 %3830
        %3832 = vrot.lane.b32.xlu0 %v3472, 15
        %v3833 = vpop.permute.xlu0 %3832
        %v3834 = vsel %vm1360, %v3795, %v3815
        %v3835 = vsel %vm1360, %v3797, %v3817
        %v3836 = vsel %vm1360, %v3799, %v3819
        %v3837 = vsel %vm1360, %v3801, %v3821
        %v3838 = vsel %vm1360, %v3803, %v3823
        %v3839 = vsel %vm1360, %v3805, %v3825
        %v3840 = vsel %vm1360, %v3807, %v3827
        %v3841 = vsel %vm1360, %v3809, %v3829
        %v3842 = vsel %vm1360, %v3811, %v3831
        %v3843 = vsel %vm1360, %v3813, %v3833
        %v3844 = vsel %vm1360, %v3815, %v3795
        %v3845 = vsel %vm1360, %v3817, %v3797
        %v3846 = vsel %vm1360, %v3819, %v3799
        %v3847 = vsel %vm1360, %v3821, %v3801
        %v3848 = vsel %vm1360, %v3823, %v3803
        %v3849 = vsel %vm1360, %v3825, %v3805
        %v3850 = vsel %vm1360, %v3827, %v3807
        %v3851 = vsel %vm1360, %v3829, %v3809
        %v3852 = vsel %vm1360, %v3831, %v3811
        %v3853 = vsel %vm1360, %v3833, %v3813
        %v3854 = vmul.f32 %v3844, %v1391
        %v3855 = vmul.f32 %v3834, %v1395
        %v3856 = vmul.f32 %v3845, %v1391
        %v3857 = vmul.f32 %v3835, %v1395
        %v3858 = vmul.f32 %v3846, %v1391
        %v3859 = vmul.f32 %v3836, %v1395
        %v3860 = vmul.f32 %v3847, %v1391
        %v3861 = vmul.f32 %v3837, %v1395
        %v3862 = vmul.f32 %v3848, %v1391
        %v3863 = vmul.f32 %v3838, %v1395
        %v3864 = vmul.f32 %v3849, %v1391
        %v3865 = vmul.f32 %v3839, %v1395
        %v3866 = vmul.f32 %v3850, %v1391
        %v3867 = vmul.f32 %v3840, %v1395
        %v3868 = vmul.f32 %v3851, %v1391
        %v3869 = vmul.f32 %v3841, %v1395
        %v3870 = vmul.f32 %v3852, %v1391
        %v3871 = vmul.f32 %v3842, %v1395
        %v3872 = vmul.f32 %v3853, %v1391
        %v3873 = vmul.f32 %v3843, %v1395
        %3874 = vset.pattern.permute.xlu0 2
        %3875 = vperm.xlu0 %3874, %v3554
        %v3876 = vpop.permute.xlu0 %3875
        %3878 = vset.pattern.permute.xlu0 2
        %3879 = vperm.xlu0 %3878, %v3555
        %v3880 = vpop.permute.xlu0 %3879
        %3882 = vset.pattern.permute.xlu0 2
        %3883 = vperm.xlu0 %3882, %v3556
        %v3884 = vpop.permute.xlu0 %3883
        %3886 = vset.pattern.permute.xlu0 2
        %3887 = vperm.xlu0 %3886, %v3557
        %v3888 = vpop.permute.xlu0 %3887
        %3890 = vset.pattern.permute.xlu0 2
        %3891 = vperm.xlu0 %3890, %v3558
        %v3892 = vpop.permute.xlu0 %3891
        %3894 = vset.pattern.permute.xlu0 2
        %3895 = vperm.xlu0 %3894, %v3559
        %v3896 = vpop.permute.xlu0 %3895
        %3898 = vset.pattern.permute.xlu0 2
        %3899 = vperm.xlu0 %3898, %v3560
        %v3900 = vpop.permute.xlu0 %3899
        %3902 = vset.pattern.permute.xlu0 2
        %3903 = vperm.xlu0 %3902, %v3561
        %v3904 = vpop.permute.xlu0 %3903
        %3906 = vset.pattern.permute.xlu0 2
        %3907 = vperm.xlu0 %3906, %v3562
        %v3908 = vpop.permute.xlu0 %3907
        %3910 = vset.pattern.permute.xlu0 2
        %3911 = vperm.xlu0 %3910, %v3563
        %v3912 = vpop.permute.xlu0 %3911
        %v3914 = vmul.f32 %v3876, %v3854
        %v3915 = vmul.f32 %v3876, %v3855
        %v3916 = vmul.f32 %v3880, %v3856
        %v3917 = vmul.f32 %v3880, %v3857
        %v3918 = vmul.f32 %v3884, %v3858
        %v3919 = vmul.f32 %v3884, %v3859
        %v3920 = vmul.f32 %v3888, %v3860
        %v3921 = vmul.f32 %v3888, %v3861
        %v3922 = vmul.f32 %v3892, %v3862
        %v3923 = vmul.f32 %v3892, %v3863
        %v3924 = vmul.f32 %v3896, %v3864
        %v3925 = vmul.f32 %v3896, %v3865
        %v3926 = vmul.f32 %v3900, %v3866
        %v3927 = vmul.f32 %v3900, %v3867
        %v3928 = vmul.f32 %v3904, %v3868
        %v3929 = vmul.f32 %v3904, %v3869
        %v3930 = vmul.f32 %v3908, %v3870
        %v3931 = vmul.f32 %v3908, %v3871
        %v3932 = vmul.f32 %v3912, %v3872
        %v3933 = vmul.f32 %v3912, %v3873
        %v3934 = vadd.f32 %v3774, %v3914
        %v3935 = vadd.f32 %v3775, %v3915
        %v3936 = vadd.f32 %v3776, %v3916
        %v3937 = vadd.f32 %v3777, %v3917
        %v3938 = vadd.f32 %v3778, %v3918
        %v3939 = vadd.f32 %v3779, %v3919
        %v3940 = vadd.f32 %v3780, %v3920
        %v3941 = vadd.f32 %v3781, %v3921
        %v3942 = vadd.f32 %v3782, %v3922
        %v3943 = vadd.f32 %v3783, %v3923
        %v3944 = vadd.f32 %v3784, %v3924
        %v3945 = vadd.f32 %v3785, %v3925
        %v3946 = vadd.f32 %v3786, %v3926
        %v3947 = vadd.f32 %v3787, %v3927
        %v3948 = vadd.f32 %v3788, %v3928
        %v3949 = vadd.f32 %v3789, %v3929
        %v3950 = vadd.f32 %v3790, %v3930
        %v3951 = vadd.f32 %v3791, %v3931
        %v3952 = vadd.f32 %v3792, %v3932
        %v3953 = vadd.f32 %v3793, %v3933
        %3954 = vrot.lane.b32.xlu0 %v3416, 1
        %v3955 = vpop.permute.xlu0 %3954
        %3956 = vrot.lane.b32.xlu0 %v3422, 1
        %v3957 = vpop.permute.xlu0 %3956
        %3958 = vrot.lane.b32.xlu0 %v3428, 1
        %v3959 = vpop.permute.xlu0 %3958
        %3960 = vrot.lane.b32.xlu0 %v3434, 1
        %v3961 = vpop.permute.xlu0 %3960
        %3962 = vrot.lane.b32.xlu0 %v3440, 1
        %v3963 = vpop.permute.xlu0 %3962
        %3964 = vrot.lane.b32.xlu0 %v3446, 1
        %v3965 = vpop.permute.xlu0 %3964
        %3966 = vrot.lane.b32.xlu0 %v3452, 1
        %v3967 = vpop.permute.xlu0 %3966
        %3968 = vrot.lane.b32.xlu0 %v3458, 1
        %v3969 = vpop.permute.xlu0 %3968
        %3970 = vrot.lane.b32.xlu0 %v3464, 1
        %v3971 = vpop.permute.xlu0 %3970
        %3972 = vrot.lane.b32.xlu0 %v3470, 1
        %v3973 = vpop.permute.xlu0 %3972
        %3974 = vrot.lane.b32.xlu0 %v3418, 1
        %v3975 = vpop.permute.xlu0 %3974
        %3976 = vrot.lane.b32.xlu0 %v3424, 1
        %v3977 = vpop.permute.xlu0 %3976
        %3978 = vrot.lane.b32.xlu0 %v3430, 1
        %v3979 = vpop.permute.xlu0 %3978
        %3980 = vrot.lane.b32.xlu0 %v3436, 1
        %v3981 = vpop.permute.xlu0 %3980
        %3982 = vrot.lane.b32.xlu0 %v3442, 1
        %v3983 = vpop.permute.xlu0 %3982
        %3984 = vrot.lane.b32.xlu0 %v3448, 1
        %v3985 = vpop.permute.xlu0 %3984
        %3986 = vrot.lane.b32.xlu0 %v3454, 1
        %v3987 = vpop.permute.xlu0 %3986
        %3988 = vrot.lane.b32.xlu0 %v3460, 1
        %v3989 = vpop.permute.xlu0 %3988
        %3990 = vrot.lane.b32.xlu0 %v3466, 1
        %v3991 = vpop.permute.xlu0 %3990
        %3992 = vrot.lane.b32.xlu0 %v3472, 1
        %v3993 = vpop.permute.xlu0 %3992
        %v3994 = vsel %vm1566, %v3955, %v3975
        %v3995 = vsel %vm1566, %v3957, %v3977
        %v3996 = vsel %vm1566, %v3959, %v3979
        %v3997 = vsel %vm1566, %v3961, %v3981
        %v3998 = vsel %vm1566, %v3963, %v3983
        %v3999 = vsel %vm1566, %v3965, %v3985
        %v4000 = vsel %vm1566, %v3967, %v3987
        %v4001 = vsel %vm1566, %v3969, %v3989
        %v4002 = vsel %vm1566, %v3971, %v3991
        %v4003 = vsel %vm1566, %v3973, %v3993
        %v4004 = vsel %vm1566, %v3975, %v3955
        %v4005 = vsel %vm1566, %v3977, %v3957
        %v4006 = vsel %vm1566, %v3979, %v3959
        %v4007 = vsel %vm1566, %v3981, %v3961
        %v4008 = vsel %vm1566, %v3983, %v3963
        %v4009 = vsel %vm1566, %v3985, %v3965
        %v4010 = vsel %vm1566, %v3987, %v3967
        %v4011 = vsel %vm1566, %v3989, %v3969
        %v4012 = vsel %vm1566, %v3991, %v3971
        %v4013 = vsel %vm1566, %v3993, %v3973
        %v4014 = vmul.f32 %v4004, %v1597
        %v4015 = vmul.f32 %v3994, %v1601
        %v4016 = vmul.f32 %v4005, %v1597
        %v4017 = vmul.f32 %v3995, %v1601
        %v4018 = vmul.f32 %v4006, %v1597
        %v4019 = vmul.f32 %v3996, %v1601
        %v4020 = vmul.f32 %v4007, %v1597
        %v4021 = vmul.f32 %v3997, %v1601
        %v4022 = vmul.f32 %v4008, %v1597
        %v4023 = vmul.f32 %v3998, %v1601
        %v4024 = vmul.f32 %v4009, %v1597
        %v4025 = vmul.f32 %v3999, %v1601
        %v4026 = vmul.f32 %v4010, %v1597
        %v4027 = vmul.f32 %v4000, %v1601
        %v4028 = vmul.f32 %v4011, %v1597
        %v4029 = vmul.f32 %v4001, %v1601
        %v4030 = vmul.f32 %v4012, %v1597
        %v4031 = vmul.f32 %v4002, %v1601
        %v4032 = vmul.f32 %v4013, %v1597
        %v4033 = vmul.f32 %v4003, %v1601
        %4034 = vset.pattern.permute.xlu0 3
        %4035 = vperm.xlu0 %4034, %v3554
        %v4036 = vpop.permute.xlu0 %4035
        %4038 = vset.pattern.permute.xlu0 3
        %4039 = vperm.xlu0 %4038, %v3555
        %v4040 = vpop.permute.xlu0 %4039
        %4042 = vset.pattern.permute.xlu0 3
        %4043 = vperm.xlu0 %4042, %v3556
        %v4044 = vpop.permute.xlu0 %4043
        %4046 = vset.pattern.permute.xlu0 3
        %4047 = vperm.xlu0 %4046, %v3557
        %v4048 = vpop.permute.xlu0 %4047
        %4050 = vset.pattern.permute.xlu0 3
        %4051 = vperm.xlu0 %4050, %v3558
        %v4052 = vpop.permute.xlu0 %4051
        %4054 = vset.pattern.permute.xlu0 3
        %4055 = vperm.xlu0 %4054, %v3559
        %v4056 = vpop.permute.xlu0 %4055
        %4058 = vset.pattern.permute.xlu0 3
        %4059 = vperm.xlu0 %4058, %v3560
        %v4060 = vpop.permute.xlu0 %4059
        %4062 = vset.pattern.permute.xlu0 3
        %4063 = vperm.xlu0 %4062, %v3561
        %v4064 = vpop.permute.xlu0 %4063
        %4066 = vset.pattern.permute.xlu0 3
        %4067 = vperm.xlu0 %4066, %v3562
        %v4068 = vpop.permute.xlu0 %4067
        %4070 = vset.pattern.permute.xlu0 3
        %4071 = vperm.xlu0 %4070, %v3563
        %v4072 = vpop.permute.xlu0 %4071
        %v4074 = vmul.f32 %v4036, %v4014
        %v4075 = vmul.f32 %v4036, %v4015
        %v4076 = vmul.f32 %v4040, %v4016
        %v4077 = vmul.f32 %v4040, %v4017
        %v4078 = vmul.f32 %v4044, %v4018
        %v4079 = vmul.f32 %v4044, %v4019
        %v4080 = vmul.f32 %v4048, %v4020
        %v4081 = vmul.f32 %v4048, %v4021
        %v4082 = vmul.f32 %v4052, %v4022
        %v4083 = vmul.f32 %v4052, %v4023
        %v4084 = vmul.f32 %v4056, %v4024
        %v4085 = vmul.f32 %v4056, %v4025
        %v4086 = vmul.f32 %v4060, %v4026
        %v4087 = vmul.f32 %v4060, %v4027
        %v4088 = vmul.f32 %v4064, %v4028
        %v4089 = vmul.f32 %v4064, %v4029
        %v4090 = vmul.f32 %v4068, %v4030
        %v4091 = vmul.f32 %v4068, %v4031
        %v4092 = vmul.f32 %v4072, %v4032
        %v4093 = vmul.f32 %v4072, %v4033
        %v4094 = vadd.f32 %v3934, %v4074
        %v4095 = vadd.f32 %v3935, %v4075
        %v4096 = vadd.f32 %v3936, %v4076
        %v4097 = vadd.f32 %v3937, %v4077
        %v4098 = vadd.f32 %v3938, %v4078
        %v4099 = vadd.f32 %v3939, %v4079
        %v4100 = vadd.f32 %v3940, %v4080
        %v4101 = vadd.f32 %v3941, %v4081
        %v4102 = vadd.f32 %v3942, %v4082
        %v4103 = vadd.f32 %v3943, %v4083
        %v4104 = vadd.f32 %v3944, %v4084
        %v4105 = vadd.f32 %v3945, %v4085
        %v4106 = vadd.f32 %v3946, %v4086
        %v4107 = vadd.f32 %v3947, %v4087
        %v4108 = vadd.f32 %v3948, %v4088
        %v4109 = vadd.f32 %v3949, %v4089
        %v4110 = vadd.f32 %v3950, %v4090
        %v4111 = vadd.f32 %v3951, %v4091
        %v4112 = vadd.f32 %v3952, %v4092
        %v4113 = vadd.f32 %v3953, %v4093
        %4114 = vset.pattern.permute.xlu0 4
        %4115 = vperm.xlu0 %4114, %v3554
        %v4116 = vpop.permute.xlu0 %4115
        %4118 = vset.pattern.permute.xlu0 4
        %4119 = vperm.xlu0 %4118, %v3555
        %v4120 = vpop.permute.xlu0 %4119
        %4122 = vset.pattern.permute.xlu0 4
        %4123 = vperm.xlu0 %4122, %v3556
        %v4124 = vpop.permute.xlu0 %4123
        %4126 = vset.pattern.permute.xlu0 4
        %4127 = vperm.xlu0 %4126, %v3557
        %v4128 = vpop.permute.xlu0 %4127
        %4130 = vset.pattern.permute.xlu0 4
        %4131 = vperm.xlu0 %4130, %v3558
        %v4132 = vpop.permute.xlu0 %4131
        %4134 = vset.pattern.permute.xlu0 4
        %4135 = vperm.xlu0 %4134, %v3559
        %v4136 = vpop.permute.xlu0 %4135
        %4138 = vset.pattern.permute.xlu0 4
        %4139 = vperm.xlu0 %4138, %v3560
        %v4140 = vpop.permute.xlu0 %4139
        %4142 = vset.pattern.permute.xlu0 4
        %4143 = vperm.xlu0 %4142, %v3561
        %v4144 = vpop.permute.xlu0 %4143
        %4146 = vset.pattern.permute.xlu0 4
        %4147 = vperm.xlu0 %4146, %v3562
        %v4148 = vpop.permute.xlu0 %4147
        %4150 = vset.pattern.permute.xlu0 4
        %4151 = vperm.xlu0 %4150, %v3563
        %v4152 = vpop.permute.xlu0 %4151
        %v4154 = vmul.f32 %v4116, %v3416
        %v4155 = vmul.f32 %v4116, %v3418
        %v4156 = vmul.f32 %v4120, %v3422
        %v4157 = vmul.f32 %v4120, %v3424
        %v4158 = vmul.f32 %v4124, %v3428
        %v4159 = vmul.f32 %v4124, %v3430
        %v4160 = vmul.f32 %v4128, %v3434
        %v4161 = vmul.f32 %v4128, %v3436
        %v4162 = vmul.f32 %v4132, %v3440
        %v4163 = vmul.f32 %v4132, %v3442
        %v4164 = vmul.f32 %v4136, %v3446
        %v4165 = vmul.f32 %v4136, %v3448
        %v4166 = vmul.f32 %v4140, %v3452
        %v4167 = vmul.f32 %v4140, %v3454
        %v4168 = vmul.f32 %v4144, %v3458
        %v4169 = vmul.f32 %v4144, %v3460
        %v4170 = vmul.f32 %v4148, %v3464
        %v4171 = vmul.f32 %v4148, %v3466
        %v4172 = vmul.f32 %v4152, %v3470
        %v4173 = vmul.f32 %v4152, %v3472
        %v4174 = vadd.f32 %v4094, %v4154
        %v4175 = vadd.f32 %v4095, %v4155
        %v4176 = vadd.f32 %v4096, %v4156
        %v4177 = vadd.f32 %v4097, %v4157
        %v4178 = vadd.f32 %v4098, %v4158
        %v4179 = vadd.f32 %v4099, %v4159
        %v4180 = vadd.f32 %v4100, %v4160
        %v4181 = vadd.f32 %v4101, %v4161
        %v4182 = vadd.f32 %v4102, %v4162
        %v4183 = vadd.f32 %v4103, %v4163
        %v4184 = vadd.f32 %v4104, %v4164
        %v4185 = vadd.f32 %v4105, %v4165
        %v4186 = vadd.f32 %v4106, %v4166
        %v4187 = vadd.f32 %v4107, %v4167
        %v4188 = vadd.f32 %v4108, %v4168
        %v4189 = vadd.f32 %v4109, %v4169
        %v4190 = vadd.f32 %v4110, %v4170
        %v4191 = vadd.f32 %v4111, %v4171
        %v4192 = vadd.f32 %v4112, %v4172
        %v4193 = vadd.f32 %v4113, %v4173
        %4194 = vrot.lane.b32.xlu0 %v3416, 127
        %v4195 = vpop.permute.xlu0 %4194
        %4196 = vrot.lane.b32.xlu0 %v3422, 127
        %v4197 = vpop.permute.xlu0 %4196
        %4198 = vrot.lane.b32.xlu0 %v3428, 127
        %v4199 = vpop.permute.xlu0 %4198
        %4200 = vrot.lane.b32.xlu0 %v3434, 127
        %v4201 = vpop.permute.xlu0 %4200
        %4202 = vrot.lane.b32.xlu0 %v3440, 127
        %v4203 = vpop.permute.xlu0 %4202
        %4204 = vrot.lane.b32.xlu0 %v3446, 127
        %v4205 = vpop.permute.xlu0 %4204
        %4206 = vrot.lane.b32.xlu0 %v3452, 127
        %v4207 = vpop.permute.xlu0 %4206
        %4208 = vrot.lane.b32.xlu0 %v3458, 127
        %v4209 = vpop.permute.xlu0 %4208
        %4210 = vrot.lane.b32.xlu0 %v3464, 127
        %v4211 = vpop.permute.xlu0 %4210
        %4212 = vrot.lane.b32.xlu0 %v3470, 127
        %v4213 = vpop.permute.xlu0 %4212
        %4214 = vrot.lane.b32.xlu0 %v3418, 127
        %v4215 = vpop.permute.xlu0 %4214
        %4216 = vrot.lane.b32.xlu0 %v3424, 127
        %v4217 = vpop.permute.xlu0 %4216
        %4218 = vrot.lane.b32.xlu0 %v3430, 127
        %v4219 = vpop.permute.xlu0 %4218
        %4220 = vrot.lane.b32.xlu0 %v3436, 127
        %v4221 = vpop.permute.xlu0 %4220
        %4222 = vrot.lane.b32.xlu0 %v3442, 127
        %v4223 = vpop.permute.xlu0 %4222
        %4224 = vrot.lane.b32.xlu0 %v3448, 127
        %v4225 = vpop.permute.xlu0 %4224
        %4226 = vrot.lane.b32.xlu0 %v3454, 127
        %v4227 = vpop.permute.xlu0 %4226
        %4228 = vrot.lane.b32.xlu0 %v3460, 127
        %v4229 = vpop.permute.xlu0 %4228
        %4230 = vrot.lane.b32.xlu0 %v3466, 127
        %v4231 = vpop.permute.xlu0 %4230
        %4232 = vrot.lane.b32.xlu0 %v3472, 127
        %v4233 = vpop.permute.xlu0 %4232
        %v4234 = vsel %vm1868, %v4195, %v4215
        %v4235 = vsel %vm1868, %v4197, %v4217
        %v4236 = vsel %vm1868, %v4199, %v4219
        %v4237 = vsel %vm1868, %v4201, %v4221
        %v4238 = vsel %vm1868, %v4203, %v4223
        %v4239 = vsel %vm1868, %v4205, %v4225
        %v4240 = vsel %vm1868, %v4207, %v4227
        %v4241 = vsel %vm1868, %v4209, %v4229
        %v4242 = vsel %vm1868, %v4211, %v4231
        %v4243 = vsel %vm1868, %v4213, %v4233
        %v4244 = vsel %vm1868, %v4215, %v4195
        %v4245 = vsel %vm1868, %v4217, %v4197
        %v4246 = vsel %vm1868, %v4219, %v4199
        %v4247 = vsel %vm1868, %v4221, %v4201
        %v4248 = vsel %vm1868, %v4223, %v4203
        %v4249 = vsel %vm1868, %v4225, %v4205
        %v4250 = vsel %vm1868, %v4227, %v4207
        %v4251 = vsel %vm1868, %v4229, %v4209
        %v4252 = vsel %vm1868, %v4231, %v4211
        %v4253 = vsel %vm1868, %v4233, %v4213
        %v4254 = vmul.f32 %v4234, %v1899
        %v4255 = vmul.f32 %v4244, %v1903
        %v4256 = vmul.f32 %v4235, %v1899
        %v4257 = vmul.f32 %v4245, %v1903
        %v4258 = vmul.f32 %v4236, %v1899
        %v4259 = vmul.f32 %v4246, %v1903
        %v4260 = vmul.f32 %v4237, %v1899
        %v4261 = vmul.f32 %v4247, %v1903
        %v4262 = vmul.f32 %v4238, %v1899
        %v4263 = vmul.f32 %v4248, %v1903
        %v4264 = vmul.f32 %v4239, %v1899
        %v4265 = vmul.f32 %v4249, %v1903
        %v4266 = vmul.f32 %v4240, %v1899
        %v4267 = vmul.f32 %v4250, %v1903
        %v4268 = vmul.f32 %v4241, %v1899
        %v4269 = vmul.f32 %v4251, %v1903
        %v4270 = vmul.f32 %v4242, %v1899
        %v4271 = vmul.f32 %v4252, %v1903
        %v4272 = vmul.f32 %v4243, %v1899
        %v4273 = vmul.f32 %v4253, %v1903
        %4274 = vset.pattern.permute.xlu0 5
        %4275 = vperm.xlu0 %4274, %v3554
        %v4276 = vpop.permute.xlu0 %4275
        %4278 = vset.pattern.permute.xlu0 5
        %4279 = vperm.xlu0 %4278, %v3555
        %v4280 = vpop.permute.xlu0 %4279
        %4282 = vset.pattern.permute.xlu0 5
        %4283 = vperm.xlu0 %4282, %v3556
        %v4284 = vpop.permute.xlu0 %4283
        %4286 = vset.pattern.permute.xlu0 5
        %4287 = vperm.xlu0 %4286, %v3557
        %v4288 = vpop.permute.xlu0 %4287
        %4290 = vset.pattern.permute.xlu0 5
        %4291 = vperm.xlu0 %4290, %v3558
        %v4292 = vpop.permute.xlu0 %4291
        %4294 = vset.pattern.permute.xlu0 5
        %4295 = vperm.xlu0 %4294, %v3559
        %v4296 = vpop.permute.xlu0 %4295
        %4298 = vset.pattern.permute.xlu0 5
        %4299 = vperm.xlu0 %4298, %v3560
        %v4300 = vpop.permute.xlu0 %4299
        %4302 = vset.pattern.permute.xlu0 5
        %4303 = vperm.xlu0 %4302, %v3561
        %v4304 = vpop.permute.xlu0 %4303
        %4306 = vset.pattern.permute.xlu0 5
        %4307 = vperm.xlu0 %4306, %v3562
        %v4308 = vpop.permute.xlu0 %4307
        %4310 = vset.pattern.permute.xlu0 5
        %4311 = vperm.xlu0 %4310, %v3563
        %v4312 = vpop.permute.xlu0 %4311
        %v4314 = vmul.f32 %v4276, %v4254
        %v4315 = vmul.f32 %v4276, %v4255
        %v4316 = vmul.f32 %v4280, %v4256
        %v4317 = vmul.f32 %v4280, %v4257
        %v4318 = vmul.f32 %v4284, %v4258
        %v4319 = vmul.f32 %v4284, %v4259
        %v4320 = vmul.f32 %v4288, %v4260
        %v4321 = vmul.f32 %v4288, %v4261
        %v4322 = vmul.f32 %v4292, %v4262
        %v4323 = vmul.f32 %v4292, %v4263
        %v4324 = vmul.f32 %v4296, %v4264
        %v4325 = vmul.f32 %v4296, %v4265
        %v4326 = vmul.f32 %v4300, %v4266
        %v4327 = vmul.f32 %v4300, %v4267
        %v4328 = vmul.f32 %v4304, %v4268
        %v4329 = vmul.f32 %v4304, %v4269
        %v4330 = vmul.f32 %v4308, %v4270
        %v4331 = vmul.f32 %v4308, %v4271
        %v4332 = vmul.f32 %v4312, %v4272
        %v4333 = vmul.f32 %v4312, %v4273
        %v4334 = vadd.f32 %v4174, %v4314
        %v4335 = vadd.f32 %v4175, %v4315
        %v4336 = vadd.f32 %v4176, %v4316
        %v4337 = vadd.f32 %v4177, %v4317
        %v4338 = vadd.f32 %v4178, %v4318
        %v4339 = vadd.f32 %v4179, %v4319
        %v4340 = vadd.f32 %v4180, %v4320
        %v4341 = vadd.f32 %v4181, %v4321
        %v4342 = vadd.f32 %v4182, %v4322
        %v4343 = vadd.f32 %v4183, %v4323
        %v4344 = vadd.f32 %v4184, %v4324
        %v4345 = vadd.f32 %v4185, %v4325
        %v4346 = vadd.f32 %v4186, %v4326
        %v4347 = vadd.f32 %v4187, %v4327
        %v4348 = vadd.f32 %v4188, %v4328
        %v4349 = vadd.f32 %v4189, %v4329
        %v4350 = vadd.f32 %v4190, %v4330
        %v4351 = vadd.f32 %v4191, %v4331
        %v4352 = vadd.f32 %v4192, %v4332
        %v4353 = vadd.f32 %v4193, %v4333
        %4354 = vrot.lane.b32.xlu0 %v3416, 113
        %v4355 = vpop.permute.xlu0 %4354
        %4356 = vrot.lane.b32.xlu0 %v3422, 113
        %v4357 = vpop.permute.xlu0 %4356
        %4358 = vrot.lane.b32.xlu0 %v3428, 113
        %v4359 = vpop.permute.xlu0 %4358
        %4360 = vrot.lane.b32.xlu0 %v3434, 113
        %v4361 = vpop.permute.xlu0 %4360
        %4362 = vrot.lane.b32.xlu0 %v3440, 113
        %v4363 = vpop.permute.xlu0 %4362
        %4364 = vrot.lane.b32.xlu0 %v3446, 113
        %v4365 = vpop.permute.xlu0 %4364
        %4366 = vrot.lane.b32.xlu0 %v3452, 113
        %v4367 = vpop.permute.xlu0 %4366
        %4368 = vrot.lane.b32.xlu0 %v3458, 113
        %v4369 = vpop.permute.xlu0 %4368
        %4370 = vrot.lane.b32.xlu0 %v3464, 113
        %v4371 = vpop.permute.xlu0 %4370
        %4372 = vrot.lane.b32.xlu0 %v3470, 113
        %v4373 = vpop.permute.xlu0 %4372
        %4374 = vrot.lane.b32.xlu0 %v3418, 113
        %v4375 = vpop.permute.xlu0 %4374
        %4376 = vrot.lane.b32.xlu0 %v3424, 113
        %v4377 = vpop.permute.xlu0 %4376
        %4378 = vrot.lane.b32.xlu0 %v3430, 113
        %v4379 = vpop.permute.xlu0 %4378
        %4380 = vrot.lane.b32.xlu0 %v3436, 113
        %v4381 = vpop.permute.xlu0 %4380
        %4382 = vrot.lane.b32.xlu0 %v3442, 113
        %v4383 = vpop.permute.xlu0 %4382
        %4384 = vrot.lane.b32.xlu0 %v3448, 113
        %v4385 = vpop.permute.xlu0 %4384
        %4386 = vrot.lane.b32.xlu0 %v3454, 113
        %v4387 = vpop.permute.xlu0 %4386
        %4388 = vrot.lane.b32.xlu0 %v3460, 113
        %v4389 = vpop.permute.xlu0 %4388
        %4390 = vrot.lane.b32.xlu0 %v3466, 113
        %v4391 = vpop.permute.xlu0 %4390
        %4392 = vrot.lane.b32.xlu0 %v3472, 113
        %v4393 = vpop.permute.xlu0 %4392
        %v4394 = vsel %vm2074, %v4355, %v4375
        %v4395 = vsel %vm2074, %v4357, %v4377
        %v4396 = vsel %vm2074, %v4359, %v4379
        %v4397 = vsel %vm2074, %v4361, %v4381
        %v4398 = vsel %vm2074, %v4363, %v4383
        %v4399 = vsel %vm2074, %v4365, %v4385
        %v4400 = vsel %vm2074, %v4367, %v4387
        %v4401 = vsel %vm2074, %v4369, %v4389
        %v4402 = vsel %vm2074, %v4371, %v4391
        %v4403 = vsel %vm2074, %v4373, %v4393
        %v4404 = vsel %vm2074, %v4375, %v4355
        %v4405 = vsel %vm2074, %v4377, %v4357
        %v4406 = vsel %vm2074, %v4379, %v4359
        %v4407 = vsel %vm2074, %v4381, %v4361
        %v4408 = vsel %vm2074, %v4383, %v4363
        %v4409 = vsel %vm2074, %v4385, %v4365
        %v4410 = vsel %vm2074, %v4387, %v4367
        %v4411 = vsel %vm2074, %v4389, %v4369
        %v4412 = vsel %vm2074, %v4391, %v4371
        %v4413 = vsel %vm2074, %v4393, %v4373
        %v4414 = vmul.f32 %v4394, %v2105
        %v4415 = vmul.f32 %v4404, %v2109
        %v4416 = vmul.f32 %v4395, %v2105
        %v4417 = vmul.f32 %v4405, %v2109
        %v4418 = vmul.f32 %v4396, %v2105
        %v4419 = vmul.f32 %v4406, %v2109
        %v4420 = vmul.f32 %v4397, %v2105
        %v4421 = vmul.f32 %v4407, %v2109
        %v4422 = vmul.f32 %v4398, %v2105
        %v4423 = vmul.f32 %v4408, %v2109
        %v4424 = vmul.f32 %v4399, %v2105
        %v4425 = vmul.f32 %v4409, %v2109
        %v4426 = vmul.f32 %v4400, %v2105
        %v4427 = vmul.f32 %v4410, %v2109
        %v4428 = vmul.f32 %v4401, %v2105
        %v4429 = vmul.f32 %v4411, %v2109
        %v4430 = vmul.f32 %v4402, %v2105
        %v4431 = vmul.f32 %v4412, %v2109
        %v4432 = vmul.f32 %v4403, %v2105
        %v4433 = vmul.f32 %v4413, %v2109
        %4434 = vset.pattern.permute.xlu0 6
        %4435 = vperm.xlu0 %4434, %v3554
        %v4436 = vpop.permute.xlu0 %4435
        %4438 = vset.pattern.permute.xlu0 6
        %4439 = vperm.xlu0 %4438, %v3555
        %v4440 = vpop.permute.xlu0 %4439
        %4442 = vset.pattern.permute.xlu0 6
        %4443 = vperm.xlu0 %4442, %v3556
        %v4444 = vpop.permute.xlu0 %4443
        %4446 = vset.pattern.permute.xlu0 6
        %4447 = vperm.xlu0 %4446, %v3557
        %v4448 = vpop.permute.xlu0 %4447
        %4450 = vset.pattern.permute.xlu0 6
        %4451 = vperm.xlu0 %4450, %v3558
        %v4452 = vpop.permute.xlu0 %4451
        %4454 = vset.pattern.permute.xlu0 6
        %4455 = vperm.xlu0 %4454, %v3559
        %v4456 = vpop.permute.xlu0 %4455
        %4458 = vset.pattern.permute.xlu0 6
        %4459 = vperm.xlu0 %4458, %v3560
        %v4460 = vpop.permute.xlu0 %4459
        %4462 = vset.pattern.permute.xlu0 6
        %4463 = vperm.xlu0 %4462, %v3561
        %v4464 = vpop.permute.xlu0 %4463
        %4466 = vset.pattern.permute.xlu0 6
        %4467 = vperm.xlu0 %4466, %v3562
        %v4468 = vpop.permute.xlu0 %4467
        %4470 = vset.pattern.permute.xlu0 6
        %4471 = vperm.xlu0 %4470, %v3563
        %v4472 = vpop.permute.xlu0 %4471
        %v4474 = vmul.f32 %v4436, %v4414
        %v4475 = vmul.f32 %v4436, %v4415
        %v4476 = vmul.f32 %v4440, %v4416
        %v4477 = vmul.f32 %v4440, %v4417
        %v4478 = vmul.f32 %v4444, %v4418
        %v4479 = vmul.f32 %v4444, %v4419
        %v4480 = vmul.f32 %v4448, %v4420
        %v4481 = vmul.f32 %v4448, %v4421
        %v4482 = vmul.f32 %v4452, %v4422
        %v4483 = vmul.f32 %v4452, %v4423
        %v4484 = vmul.f32 %v4456, %v4424
        %v4485 = vmul.f32 %v4456, %v4425
        %v4486 = vmul.f32 %v4460, %v4426
        %v4487 = vmul.f32 %v4460, %v4427
        %v4488 = vmul.f32 %v4464, %v4428
        %v4489 = vmul.f32 %v4464, %v4429
        %v4490 = vmul.f32 %v4468, %v4430
        %v4491 = vmul.f32 %v4468, %v4431
        %v4492 = vmul.f32 %v4472, %v4432
        %v4493 = vmul.f32 %v4472, %v4433
        %v4494 = vadd.f32 %v4334, %v4474
        %v4495 = vadd.f32 %v4335, %v4475
        %v4496 = vadd.f32 %v4336, %v4476
        %v4497 = vadd.f32 %v4337, %v4477
        %v4498 = vadd.f32 %v4338, %v4478
        %v4499 = vadd.f32 %v4339, %v4479
        %v4500 = vadd.f32 %v4340, %v4480
        %v4501 = vadd.f32 %v4341, %v4481
        %v4502 = vadd.f32 %v4342, %v4482
        %v4503 = vadd.f32 %v4343, %v4483
        %v4504 = vadd.f32 %v4344, %v4484
        %v4505 = vadd.f32 %v4345, %v4485
        %v4506 = vadd.f32 %v4346, %v4486
        %v4507 = vadd.f32 %v4347, %v4487
        %v4508 = vadd.f32 %v4348, %v4488
        %v4509 = vadd.f32 %v4349, %v4489
        %v4510 = vadd.f32 %v4350, %v4490
        %v4511 = vadd.f32 %v4351, %v4491
        %v4512 = vadd.f32 %v4352, %v4492
        %v4513 = vadd.f32 %v4353, %v4493
        %4514 = vrot.lane.b32.xlu0 %v3416, 112
        %v4515 = vpop.permute.xlu0 %4514
        %4516 = vrot.lane.b32.xlu0 %v3422, 112
        %v4517 = vpop.permute.xlu0 %4516
        %4518 = vrot.lane.b32.xlu0 %v3428, 112
        %v4519 = vpop.permute.xlu0 %4518
        %4520 = vrot.lane.b32.xlu0 %v3434, 112
        %v4521 = vpop.permute.xlu0 %4520
        %4522 = vrot.lane.b32.xlu0 %v3440, 112
        %v4523 = vpop.permute.xlu0 %4522
        %4524 = vrot.lane.b32.xlu0 %v3446, 112
        %v4525 = vpop.permute.xlu0 %4524
        %4526 = vrot.lane.b32.xlu0 %v3452, 112
        %v4527 = vpop.permute.xlu0 %4526
        %4528 = vrot.lane.b32.xlu0 %v3458, 112
        %v4529 = vpop.permute.xlu0 %4528
        %4530 = vrot.lane.b32.xlu0 %v3464, 112
        %v4531 = vpop.permute.xlu0 %4530
        %4532 = vrot.lane.b32.xlu0 %v3470, 112
        %v4533 = vpop.permute.xlu0 %4532
        %4534 = vrot.lane.b32.xlu0 %v3418, 112
        %v4535 = vpop.permute.xlu0 %4534
        %4536 = vrot.lane.b32.xlu0 %v3424, 112
        %v4537 = vpop.permute.xlu0 %4536
        %4538 = vrot.lane.b32.xlu0 %v3430, 112
        %v4539 = vpop.permute.xlu0 %4538
        %4540 = vrot.lane.b32.xlu0 %v3436, 112
        %v4541 = vpop.permute.xlu0 %4540
        %4542 = vrot.lane.b32.xlu0 %v3442, 112
        %v4543 = vpop.permute.xlu0 %4542
        %4544 = vrot.lane.b32.xlu0 %v3448, 112
        %v4545 = vpop.permute.xlu0 %4544
        %4546 = vrot.lane.b32.xlu0 %v3454, 112
        %v4547 = vpop.permute.xlu0 %4546
        %4548 = vrot.lane.b32.xlu0 %v3460, 112
        %v4549 = vpop.permute.xlu0 %4548
        %4550 = vrot.lane.b32.xlu0 %v3466, 112
        %v4551 = vpop.permute.xlu0 %4550
        %4552 = vrot.lane.b32.xlu0 %v3472, 112
        %v4553 = vpop.permute.xlu0 %4552
        %v4554 = vsel %vm2280, %v4515, %v4535
        %v4555 = vsel %vm2280, %v4517, %v4537
        %v4556 = vsel %vm2280, %v4519, %v4539
        %v4557 = vsel %vm2280, %v4521, %v4541
        %v4558 = vsel %vm2280, %v4523, %v4543
        %v4559 = vsel %vm2280, %v4525, %v4545
        %v4560 = vsel %vm2280, %v4527, %v4547
        %v4561 = vsel %vm2280, %v4529, %v4549
        %v4562 = vsel %vm2280, %v4531, %v4551
        %v4563 = vsel %vm2280, %v4533, %v4553
        %v4564 = vsel %vm2280, %v4535, %v4515
        %v4565 = vsel %vm2280, %v4537, %v4517
        %v4566 = vsel %vm2280, %v4539, %v4519
        %v4567 = vsel %vm2280, %v4541, %v4521
        %v4568 = vsel %vm2280, %v4543, %v4523
        %v4569 = vsel %vm2280, %v4545, %v4525
        %v4570 = vsel %vm2280, %v4547, %v4527
        %v4571 = vsel %vm2280, %v4549, %v4529
        %v4572 = vsel %vm2280, %v4551, %v4531
        %v4573 = vsel %vm2280, %v4553, %v4533
        %v4574 = vmul.f32 %v4554, %v2311
        %v4575 = vmul.f32 %v4564, %v2315
        %v4576 = vmul.f32 %v4555, %v2311
        %v4577 = vmul.f32 %v4565, %v2315
        %v4578 = vmul.f32 %v4556, %v2311
        %v4579 = vmul.f32 %v4566, %v2315
        %v4580 = vmul.f32 %v4557, %v2311
        %v4581 = vmul.f32 %v4567, %v2315
        %v4582 = vmul.f32 %v4558, %v2311
        %v4583 = vmul.f32 %v4568, %v2315
        %v4584 = vmul.f32 %v4559, %v2311
        %v4585 = vmul.f32 %v4569, %v2315
        %v4586 = vmul.f32 %v4560, %v2311
        %v4587 = vmul.f32 %v4570, %v2315
        %v4588 = vmul.f32 %v4561, %v2311
        %v4589 = vmul.f32 %v4571, %v2315
        %v4590 = vmul.f32 %v4562, %v2311
        %v4591 = vmul.f32 %v4572, %v2315
        %v4592 = vmul.f32 %v4563, %v2311
        %v4593 = vmul.f32 %v4573, %v2315
        %4594 = vset.pattern.permute.xlu0 7
        %4595 = vperm.xlu0 %4594, %v3554
        %v4596 = vpop.permute.xlu0 %4595
        %4598 = vset.pattern.permute.xlu0 7
        %4599 = vperm.xlu0 %4598, %v3555
        %v4600 = vpop.permute.xlu0 %4599
        %4602 = vset.pattern.permute.xlu0 7
        %4603 = vperm.xlu0 %4602, %v3556
        %v4604 = vpop.permute.xlu0 %4603
        %4606 = vset.pattern.permute.xlu0 7
        %4607 = vperm.xlu0 %4606, %v3557
        %v4608 = vpop.permute.xlu0 %4607
        %4610 = vset.pattern.permute.xlu0 7
        %4611 = vperm.xlu0 %4610, %v3558
        %v4612 = vpop.permute.xlu0 %4611
        %4614 = vset.pattern.permute.xlu0 7
        %4615 = vperm.xlu0 %4614, %v3559
        %v4616 = vpop.permute.xlu0 %4615
        %4618 = vset.pattern.permute.xlu0 7
        %4619 = vperm.xlu0 %4618, %v3560
        %v4620 = vpop.permute.xlu0 %4619
        %4622 = vset.pattern.permute.xlu0 7
        %4623 = vperm.xlu0 %4622, %v3561
        %v4624 = vpop.permute.xlu0 %4623
        %4626 = vset.pattern.permute.xlu0 7
        %4627 = vperm.xlu0 %4626, %v3562
        %v4628 = vpop.permute.xlu0 %4627
        %4630 = vset.pattern.permute.xlu0 7
        %4631 = vperm.xlu0 %4630, %v3563
        %v4632 = vpop.permute.xlu0 %4631
        %v4634 = vmul.f32 %v4596, %v4574
        %v4635 = vmul.f32 %v4596, %v4575
        %v4636 = vmul.f32 %v4600, %v4576
        %v4637 = vmul.f32 %v4600, %v4577
        %v4638 = vmul.f32 %v4604, %v4578
        %v4639 = vmul.f32 %v4604, %v4579
        %v4640 = vmul.f32 %v4608, %v4580
        %v4641 = vmul.f32 %v4608, %v4581
        %v4642 = vmul.f32 %v4612, %v4582
        %v4643 = vmul.f32 %v4612, %v4583
        %v4644 = vmul.f32 %v4616, %v4584
        %v4645 = vmul.f32 %v4616, %v4585
        %v4646 = vmul.f32 %v4620, %v4586
        %v4647 = vmul.f32 %v4620, %v4587
        %v4648 = vmul.f32 %v4624, %v4588
        %v4649 = vmul.f32 %v4624, %v4589
        %v4650 = vmul.f32 %v4628, %v4590
        %v4651 = vmul.f32 %v4628, %v4591
        %v4652 = vmul.f32 %v4632, %v4592
        %v4653 = vmul.f32 %v4632, %v4593
        %v4654 = vadd.f32 %v4494, %v4634
        %v4655 = vadd.f32 %v4495, %v4635
        %v4656 = vadd.f32 %v4496, %v4636
        %v4657 = vadd.f32 %v4497, %v4637
        %v4658 = vadd.f32 %v4498, %v4638
        %v4659 = vadd.f32 %v4499, %v4639
        %v4660 = vadd.f32 %v4500, %v4640
        %v4661 = vadd.f32 %v4501, %v4641
        %v4662 = vadd.f32 %v4502, %v4642
        %v4663 = vadd.f32 %v4503, %v4643
        %v4664 = vadd.f32 %v4504, %v4644
        %v4665 = vadd.f32 %v4505, %v4645
        %v4666 = vadd.f32 %v4506, %v4646
        %v4667 = vadd.f32 %v4507, %v4647
        %v4668 = vadd.f32 %v4508, %v4648
        %v4669 = vadd.f32 %v4509, %v4649
        %v4670 = vadd.f32 %v4510, %v4650
        %v4671 = vadd.f32 %v4511, %v4651
        %v4672 = vadd.f32 %v4512, %v4652
        %v4673 = vadd.f32 %v4513, %v4653
        %4674 = vrot.lane.b32.xlu0 %v3416, 111
        %v4675 = vpop.permute.xlu0 %4674
        %4676 = vrot.lane.b32.xlu0 %v3422, 111
        %v4677 = vpop.permute.xlu0 %4676
        %4678 = vrot.lane.b32.xlu0 %v3428, 111
        %v4679 = vpop.permute.xlu0 %4678
        %4680 = vrot.lane.b32.xlu0 %v3434, 111
        %v4681 = vpop.permute.xlu0 %4680
        %4682 = vrot.lane.b32.xlu0 %v3440, 111
        %v4683 = vpop.permute.xlu0 %4682
        %4684 = vrot.lane.b32.xlu0 %v3446, 111
        %v4685 = vpop.permute.xlu0 %4684
        %4686 = vrot.lane.b32.xlu0 %v3452, 111
        %v4687 = vpop.permute.xlu0 %4686
        %4688 = vrot.lane.b32.xlu0 %v3458, 111
        %v4689 = vpop.permute.xlu0 %4688
        %4690 = vrot.lane.b32.xlu0 %v3464, 111
        %v4691 = vpop.permute.xlu0 %4690
        %4692 = vrot.lane.b32.xlu0 %v3470, 111
        %v4693 = vpop.permute.xlu0 %4692
        %4694 = vrot.lane.b32.xlu0 %v3418, 111
        %v4695 = vpop.permute.xlu0 %4694
        %4696 = vrot.lane.b32.xlu0 %v3424, 111
        %v4697 = vpop.permute.xlu0 %4696
        %4698 = vrot.lane.b32.xlu0 %v3430, 111
        %v4699 = vpop.permute.xlu0 %4698
        %4700 = vrot.lane.b32.xlu0 %v3436, 111
        %v4701 = vpop.permute.xlu0 %4700
        %4702 = vrot.lane.b32.xlu0 %v3442, 111
        %v4703 = vpop.permute.xlu0 %4702
        %4704 = vrot.lane.b32.xlu0 %v3448, 111
        %v4705 = vpop.permute.xlu0 %4704
        %4706 = vrot.lane.b32.xlu0 %v3454, 111
        %v4707 = vpop.permute.xlu0 %4706
        %4708 = vrot.lane.b32.xlu0 %v3460, 111
        %v4709 = vpop.permute.xlu0 %4708
        %4710 = vrot.lane.b32.xlu0 %v3466, 111
        %v4711 = vpop.permute.xlu0 %4710
        %4712 = vrot.lane.b32.xlu0 %v3472, 111
        %v4713 = vpop.permute.xlu0 %4712
        %v4714 = vsel %vm2486, %v4675, %v4695
        %v4715 = vsel %vm2486, %v4677, %v4697
        %v4716 = vsel %vm2486, %v4679, %v4699
        %v4717 = vsel %vm2486, %v4681, %v4701
        %v4718 = vsel %vm2486, %v4683, %v4703
        %v4719 = vsel %vm2486, %v4685, %v4705
        %v4720 = vsel %vm2486, %v4687, %v4707
        %v4721 = vsel %vm2486, %v4689, %v4709
        %v4722 = vsel %vm2486, %v4691, %v4711
        %v4723 = vsel %vm2486, %v4693, %v4713
        %v4724 = vsel %vm2486, %v4695, %v4675
        %v4725 = vsel %vm2486, %v4697, %v4677
        %v4726 = vsel %vm2486, %v4699, %v4679
        %v4727 = vsel %vm2486, %v4701, %v4681
        %v4728 = vsel %vm2486, %v4703, %v4683
        %v4729 = vsel %vm2486, %v4705, %v4685
        %v4730 = vsel %vm2486, %v4707, %v4687
        %v4731 = vsel %vm2486, %v4709, %v4689
        %v4732 = vsel %vm2486, %v4711, %v4691
        %v4733 = vsel %vm2486, %v4713, %v4693
        %v4734 = vmul.f32 %v4714, %v2517
        %v4735 = vmul.f32 %v4724, %v2521
        %v4736 = vmul.f32 %v4715, %v2517
        %v4737 = vmul.f32 %v4725, %v2521
        %v4738 = vmul.f32 %v4716, %v2517
        %v4739 = vmul.f32 %v4726, %v2521
        %v4740 = vmul.f32 %v4717, %v2517
        %v4741 = vmul.f32 %v4727, %v2521
        %v4742 = vmul.f32 %v4718, %v2517
        %v4743 = vmul.f32 %v4728, %v2521
        %v4744 = vmul.f32 %v4719, %v2517
        %v4745 = vmul.f32 %v4729, %v2521
        %v4746 = vmul.f32 %v4720, %v2517
        %v4747 = vmul.f32 %v4730, %v2521
        %v4748 = vmul.f32 %v4721, %v2517
        %v4749 = vmul.f32 %v4731, %v2521
        %v4750 = vmul.f32 %v4722, %v2517
        %v4751 = vmul.f32 %v4732, %v2521
        %v4752 = vmul.f32 %v4723, %v2517
        %v4753 = vmul.f32 %v4733, %v2521
        %4754 = vset.pattern.permute.xlu0 8
        %4755 = vperm.xlu0 %4754, %v3554
        %v4756 = vpop.permute.xlu0 %4755
        %4758 = vset.pattern.permute.xlu0 8
        %4759 = vperm.xlu0 %4758, %v3555
        %v4760 = vpop.permute.xlu0 %4759
        %4762 = vset.pattern.permute.xlu0 8
        %4763 = vperm.xlu0 %4762, %v3556
        %v4764 = vpop.permute.xlu0 %4763
        %4766 = vset.pattern.permute.xlu0 8
        %4767 = vperm.xlu0 %4766, %v3557
        %v4768 = vpop.permute.xlu0 %4767
        %4770 = vset.pattern.permute.xlu0 8
        %4771 = vperm.xlu0 %4770, %v3558
        %v4772 = vpop.permute.xlu0 %4771
        %4774 = vset.pattern.permute.xlu0 8
        %4775 = vperm.xlu0 %4774, %v3559
        %v4776 = vpop.permute.xlu0 %4775
        %4778 = vset.pattern.permute.xlu0 8
        %4779 = vperm.xlu0 %4778, %v3560
        %v4780 = vpop.permute.xlu0 %4779
        %4782 = vset.pattern.permute.xlu0 8
        %4783 = vperm.xlu0 %4782, %v3561
        %v4784 = vpop.permute.xlu0 %4783
        %4786 = vset.pattern.permute.xlu0 8
        %4787 = vperm.xlu0 %4786, %v3562
        %v4788 = vpop.permute.xlu0 %4787
        %4790 = vset.pattern.permute.xlu0 8
        %4791 = vperm.xlu0 %4790, %v3563
        %v4792 = vpop.permute.xlu0 %4791
        %v4794 = vmul.f32 %v4756, %v4734
        %v4795 = vmul.f32 %v4756, %v4735
        %v4796 = vmul.f32 %v4760, %v4736
        %v4797 = vmul.f32 %v4760, %v4737
        %v4798 = vmul.f32 %v4764, %v4738
        %v4799 = vmul.f32 %v4764, %v4739
        %v4800 = vmul.f32 %v4768, %v4740
        %v4801 = vmul.f32 %v4768, %v4741
        %v4802 = vmul.f32 %v4772, %v4742
        %v4803 = vmul.f32 %v4772, %v4743
        %v4804 = vmul.f32 %v4776, %v4744
        %v4805 = vmul.f32 %v4776, %v4745
        %v4806 = vmul.f32 %v4780, %v4746
        %v4807 = vmul.f32 %v4780, %v4747
        %v4808 = vmul.f32 %v4784, %v4748
        %v4809 = vmul.f32 %v4784, %v4749
        %v4810 = vmul.f32 %v4788, %v4750
        %v4811 = vmul.f32 %v4788, %v4751
        %v4812 = vmul.f32 %v4792, %v4752
        %v4813 = vmul.f32 %v4792, %v4753
        %v4814 = vadd.f32 %v4654, %v4794
        %v4815 = vadd.f32 %v4655, %v4795
        %v4816 = vadd.f32 %v4656, %v4796
        %v4817 = vadd.f32 %v4657, %v4797
        %v4818 = vadd.f32 %v4658, %v4798
        %v4819 = vadd.f32 %v4659, %v4799
        %v4820 = vadd.f32 %v4660, %v4800
        %v4821 = vadd.f32 %v4661, %v4801
        %v4822 = vadd.f32 %v4662, %v4802
        %v4823 = vadd.f32 %v4663, %v4803
        %v4824 = vadd.f32 %v4664, %v4804
        %v4825 = vadd.f32 %v4665, %v4805
        %v4826 = vadd.f32 %v4666, %v4806
        %v4827 = vadd.f32 %v4667, %v4807
        %v4828 = vadd.f32 %v4668, %v4808
        %v4829 = vadd.f32 %v4669, %v4809
        %v4830 = vadd.f32 %v4670, %v4810
        %v4831 = vadd.f32 %v4671, %v4811
        %v4832 = vadd.f32 %v4672, %v4812
        %v4833 = vadd.f32 %v4673, %v4813
        %v4834 = vmul.f32 %v4814, 0.70710677
        %v4835 = vmul.f32 %v4815, 0.70710677
        %v4836 = vmul.f32 %v4816, 0.70710677
        %v4837 = vmul.f32 %v4817, 0.70710677
        %v4838 = vmul.f32 %v4818, 0.70710677
        %v4839 = vmul.f32 %v4819, 0.70710677
        %v4840 = vmul.f32 %v4820, 0.70710677
        %v4841 = vmul.f32 %v4821, 0.70710677
        %v4842 = vmul.f32 %v4822, 0.70710677
        %v4843 = vmul.f32 %v4823, 0.70710677
        %v4844 = vand.u32 2147483647, %v4834
        %v4845 = vand.u32 2147483647, %v4835
        %v4846 = vand.u32 2147483647, %v4836
        %v4847 = vand.u32 2147483647, %v4837
        %v4848 = vand.u32 2147483647, %v4838
        %v4849 = vand.u32 2147483647, %v4839
        %v4850 = vand.u32 2147483647, %v4840
        %v4851 = vand.u32 2147483647, %v4841
        %v4852 = vand.u32 2147483647, %v4842
        %v4853 = vand.u32 2147483647, %v4843
        %v4854 = vmul.f32 %v4844, 0.3275911
        %v4855 = vmul.f32 %v4845, 0.3275911
        %v4856 = vmul.f32 %v4846, 0.3275911
        %v4857 = vmul.f32 %v4847, 0.3275911
        %v4858 = vmul.f32 %v4848, 0.3275911
        %v4859 = vmul.f32 %v4849, 0.3275911
        %v4860 = vmul.f32 %v4850, 0.3275911
        %v4861 = vmul.f32 %v4851, 0.3275911
        %v4862 = vmul.f32 %v4852, 0.3275911
        %v4863 = vmul.f32 %v4853, 0.3275911
        %v4864 = vadd.f32 %v4854, 1.0
        %v4865 = vadd.f32 %v4855, 1.0
        %v4866 = vadd.f32 %v4856, 1.0
        %v4867 = vadd.f32 %v4857, 1.0
        %v4868 = vadd.f32 %v4858, 1.0
        %v4869 = vadd.f32 %v4859, 1.0
        %v4870 = vadd.f32 %v4860, 1.0
        %v4871 = vadd.f32 %v4861, 1.0
        %v4872 = vadd.f32 %v4862, 1.0
        %v4873 = vadd.f32 %v4863, 1.0
        %v4874 = vrcp.pop %v4864
        %v4875 = vrcp.pop %v4865
        %v4876 = vrcp.pop %v4866
        %v4877 = vrcp.pop %v4867
        %v4878 = vrcp.pop %v4868
        %v4879 = vrcp.pop %v4869
        %v4880 = vrcp.pop %v4870
        %v4881 = vrcp.pop %v4871
        %v4882 = vrcp.pop %v4872
        %v4883 = vrcp.pop %v4873
        %v4884 = vmul.f32 %v4864, %v4874
        %v4885 = vmul.f32 %v4865, %v4875
        %v4886 = vmul.f32 %v4866, %v4876
        %v4887 = vmul.f32 %v4867, %v4877
        %v4888 = vmul.f32 %v4868, %v4878
        %v4889 = vmul.f32 %v4869, %v4879
        %v4890 = vmul.f32 %v4870, %v4880
        %v4891 = vmul.f32 %v4871, %v4881
        %v4892 = vmul.f32 %v4872, %v4882
        %v4893 = vmul.f32 %v4873, %v4883
        %v4894 = vsub.f32 2.0, %v4884
        %v4895 = vsub.f32 2.0, %v4885
        %v4896 = vsub.f32 2.0, %v4886
        %v4897 = vsub.f32 2.0, %v4887
        %v4898 = vsub.f32 2.0, %v4888
        %v4899 = vsub.f32 2.0, %v4889
        %v4900 = vsub.f32 2.0, %v4890
        %v4901 = vsub.f32 2.0, %v4891
        %v4902 = vsub.f32 2.0, %v4892
        %v4903 = vsub.f32 2.0, %v4893
        %v4904 = vmul.f32 %v4874, %v4894
        %v4905 = vmul.f32 %v4875, %v4895
        %v4906 = vmul.f32 %v4876, %v4896
        %v4907 = vmul.f32 %v4877, %v4897
        %v4908 = vmul.f32 %v4878, %v4898
        %v4909 = vmul.f32 %v4879, %v4899
        %v4910 = vmul.f32 %v4880, %v4900
        %v4911 = vmul.f32 %v4881, %v4901
        %v4912 = vmul.f32 %v4882, %v4902
        %v4913 = vmul.f32 %v4883, %v4903
        %v4914 = vmul.f32 %v4904, 1.0614054
        %v4915 = vmul.f32 %v4905, 1.0614054
        %v4916 = vmul.f32 %v4906, 1.0614054
        %v4917 = vmul.f32 %v4907, 1.0614054
        %v4918 = vmul.f32 %v4908, 1.0614054
        %v4919 = vmul.f32 %v4909, 1.0614054
        %v4920 = vmul.f32 %v4910, 1.0614054
        %v4921 = vmul.f32 %v4911, 1.0614054
        %v4922 = vmul.f32 %v4912, 1.0614054
        %v4923 = vmul.f32 %v4913, 1.0614054
        %v4924 = vadd.f32 %v4914, -1.4531521
        %v4925 = vadd.f32 %v4915, -1.4531521
        %v4926 = vadd.f32 %v4916, -1.4531521
        %v4927 = vadd.f32 %v4917, -1.4531521
        %v4928 = vadd.f32 %v4918, -1.4531521
        %v4929 = vadd.f32 %v4919, -1.4531521
        %v4930 = vadd.f32 %v4920, -1.4531521
        %v4931 = vadd.f32 %v4921, -1.4531521
        %v4932 = vadd.f32 %v4922, -1.4531521
        %v4933 = vadd.f32 %v4923, -1.4531521
        %v4934 = vmul.f32 %v4904, %v4924
        %v4935 = vmul.f32 %v4905, %v4925
        %v4936 = vmul.f32 %v4906, %v4926
        %v4937 = vmul.f32 %v4907, %v4927
        %v4938 = vmul.f32 %v4908, %v4928
        %v4939 = vmul.f32 %v4909, %v4929
        %v4940 = vmul.f32 %v4910, %v4930
        %v4941 = vmul.f32 %v4911, %v4931
        %v4942 = vmul.f32 %v4912, %v4932
        %v4943 = vmul.f32 %v4913, %v4933
        %v4944 = vadd.f32 %v4934, 1.4214138
        %v4945 = vadd.f32 %v4935, 1.4214138
        %v4946 = vadd.f32 %v4936, 1.4214138
        %v4947 = vadd.f32 %v4937, 1.4214138
        %v4948 = vadd.f32 %v4938, 1.4214138
        %v4949 = vadd.f32 %v4939, 1.4214138
        %v4950 = vadd.f32 %v4940, 1.4214138
        %v4951 = vadd.f32 %v4941, 1.4214138
        %v4952 = vadd.f32 %v4942, 1.4214138
        %v4953 = vadd.f32 %v4943, 1.4214138
        %v4954 = vmul.f32 %v4904, %v4944
        %v4955 = vmul.f32 %v4905, %v4945
        %v4956 = vmul.f32 %v4906, %v4946
        %v4957 = vmul.f32 %v4907, %v4947
        %v4958 = vmul.f32 %v4908, %v4948
        %v4959 = vmul.f32 %v4909, %v4949
        %v4960 = vmul.f32 %v4910, %v4950
        %v4961 = vmul.f32 %v4911, %v4951
        %v4962 = vmul.f32 %v4912, %v4952
        %v4963 = vmul.f32 %v4913, %v4953
        %v4964 = vadd.f32 %v4954, -0.28449672
        %v4965 = vadd.f32 %v4955, -0.28449672
        %v4966 = vadd.f32 %v4956, -0.28449672
        %v4967 = vadd.f32 %v4957, -0.28449672
        %v4968 = vadd.f32 %v4958, -0.28449672
        %v4969 = vadd.f32 %v4959, -0.28449672
        %v4970 = vadd.f32 %v4960, -0.28449672
        %v4971 = vadd.f32 %v4961, -0.28449672
        %v4972 = vadd.f32 %v4962, -0.28449672
        %v4973 = vadd.f32 %v4963, -0.28449672
        %v4974 = vmul.f32 %v4904, %v4964
        %v4975 = vmul.f32 %v4905, %v4965
        %v4976 = vmul.f32 %v4906, %v4966
        %v4977 = vmul.f32 %v4907, %v4967
        %v4978 = vmul.f32 %v4908, %v4968
        %v4979 = vmul.f32 %v4909, %v4969
        %v4980 = vmul.f32 %v4910, %v4970
        %v4981 = vmul.f32 %v4911, %v4971
        %v4982 = vmul.f32 %v4912, %v4972
        %v4983 = vmul.f32 %v4913, %v4973
        %v4984 = vadd.f32 %v4974, 0.2548296
        %v4985 = vadd.f32 %v4975, 0.2548296
        %v4986 = vadd.f32 %v4976, 0.2548296
        %v4987 = vadd.f32 %v4977, 0.2548296
        %v4988 = vadd.f32 %v4978, 0.2548296
        %v4989 = vadd.f32 %v4979, 0.2548296
        %v4990 = vadd.f32 %v4980, 0.2548296
        %v4991 = vadd.f32 %v4981, 0.2548296
        %v4992 = vadd.f32 %v4982, 0.2548296
        %v4993 = vadd.f32 %v4983, 0.2548296
        %v4994 = vmul.f32 %v4904, %v4984
        %v4995 = vmul.f32 %v4905, %v4985
        %v4996 = vmul.f32 %v4906, %v4986
        %v4997 = vmul.f32 %v4907, %v4987
        %v4998 = vmul.f32 %v4908, %v4988
        %v4999 = vmul.f32 %v4909, %v4989
        %v5000 = vmul.f32 %v4910, %v4990
        %v5001 = vmul.f32 %v4911, %v4991
        %v5002 = vmul.f32 %v4912, %v4992
        %v5003 = vmul.f32 %v4913, %v4993
        %v5004 = vsub.f32 0.0, %v4844
        %v5005 = vsub.f32 0.0, %v4845
        %v5006 = vsub.f32 0.0, %v4846
        %v5007 = vsub.f32 0.0, %v4847
        %v5008 = vsub.f32 0.0, %v4848
        %v5009 = vsub.f32 0.0, %v4849
        %v5010 = vsub.f32 0.0, %v4850
        %v5011 = vsub.f32 0.0, %v4851
        %v5012 = vsub.f32 0.0, %v4852
        %v5013 = vsub.f32 0.0, %v4853
        %v5014 = vmul.f32 %v5004, %v4844
        %v5015 = vmul.f32 %v5005, %v4845
        %v5016 = vmul.f32 %v5006, %v4846
        %v5017 = vmul.f32 %v5007, %v4847
        %v5018 = vmul.f32 %v5008, %v4848
        %v5019 = vmul.f32 %v5009, %v4849
        %v5020 = vmul.f32 %v5010, %v4850
        %v5021 = vmul.f32 %v5011, %v4851
        %v5022 = vmul.f32 %v5012, %v4852
        %v5023 = vmul.f32 %v5013, %v4853
        %v5024 = vmul.f32 %v5014, 1.442695
        %v5025 = vpow.pop %v5024
        %v5026 = vmul.f32 %v5015, 1.442695
        %v5027 = vpow.pop %v5026
        %v5028 = vmul.f32 %v5016, 1.442695
        %v5029 = vpow.pop %v5028
        %v5030 = vmul.f32 %v5017, 1.442695
        %v5031 = vpow.pop %v5030
        %v5032 = vmul.f32 %v5018, 1.442695
        %v5033 = vpow.pop %v5032
        %v5034 = vmul.f32 %v5019, 1.442695
        %v5035 = vpow.pop %v5034
        %v5036 = vmul.f32 %v5020, 1.442695
        %v5037 = vpow.pop %v5036
        %v5038 = vmul.f32 %v5021, 1.442695
        %v5039 = vpow.pop %v5038
        %v5040 = vmul.f32 %v5022, 1.442695
        %v5041 = vpow.pop %v5040
        %v5042 = vmul.f32 %v5023, 1.442695
        %v5043 = vpow.pop %v5042
        %v5044 = vmul.f32 %v4994, %v5025
        %v5045 = vmul.f32 %v4995, %v5027
        %v5046 = vmul.f32 %v4996, %v5029
        %v5047 = vmul.f32 %v4997, %v5031
        %v5048 = vmul.f32 %v4998, %v5033
        %v5049 = vmul.f32 %v4999, %v5035
        %v5050 = vmul.f32 %v5000, %v5037
        %v5051 = vmul.f32 %v5001, %v5039
        %v5052 = vmul.f32 %v5002, %v5041
        %v5053 = vmul.f32 %v5003, %v5043
        %v5054 = vsub.f32 1.0, %v5044
        %v5055 = vsub.f32 1.0, %v5045
        %v5056 = vsub.f32 1.0, %v5046
        %v5057 = vsub.f32 1.0, %v5047
        %v5058 = vsub.f32 1.0, %v5048
        %v5059 = vsub.f32 1.0, %v5049
        %v5060 = vsub.f32 1.0, %v5050
        %v5061 = vsub.f32 1.0, %v5051
        %v5062 = vsub.f32 1.0, %v5052
        %v5063 = vsub.f32 1.0, %v5053
        %vm5064 = vcmp.ge.f32.partialorder %v4834, 0.0
        %vm5065 = vcmp.ge.f32.partialorder %v4835, 0.0
        %vm5066 = vcmp.ge.f32.partialorder %v4836, 0.0
        %vm5067 = vcmp.ge.f32.partialorder %v4837, 0.0
        %vm5068 = vcmp.ge.f32.partialorder %v4838, 0.0
        %vm5069 = vcmp.ge.f32.partialorder %v4839, 0.0
        %vm5070 = vcmp.ge.f32.partialorder %v4840, 0.0
        %vm5071 = vcmp.ge.f32.partialorder %v4841, 0.0
        %vm5072 = vcmp.ge.f32.partialorder %v4842, 0.0
        %vm5073 = vcmp.ge.f32.partialorder %v4843, 0.0
        %v5074 = vsub.f32 0.0, %v5054
        %v5075 = vsub.f32 0.0, %v5055
        %v5076 = vsub.f32 0.0, %v5056
        %v5077 = vsub.f32 0.0, %v5057
        %v5078 = vsub.f32 0.0, %v5058
        %v5079 = vsub.f32 0.0, %v5059
        %v5080 = vsub.f32 0.0, %v5060
        %v5081 = vsub.f32 0.0, %v5061
        %v5082 = vsub.f32 0.0, %v5062
        %v5083 = vsub.f32 0.0, %v5063
        %v5084 = vsel %vm5064, %v5054, %v5074
        %v5085 = vsel %vm5065, %v5055, %v5075
        %v5086 = vsel %vm5066, %v5056, %v5076
        %v5087 = vsel %vm5067, %v5057, %v5077
        %v5088 = vsel %vm5068, %v5058, %v5078
        %v5089 = vsel %vm5069, %v5059, %v5079
        %v5090 = vsel %vm5070, %v5060, %v5080
        %v5091 = vsel %vm5071, %v5061, %v5081
        %v5092 = vsel %vm5072, %v5062, %v5082
        %v5093 = vsel %vm5073, %v5063, %v5083
        %v5094 = vmul.f32 %v4814, 0.5
        %v5095 = vmul.f32 %v4815, 0.5
        %v5096 = vmul.f32 %v4816, 0.5
        %v5097 = vmul.f32 %v4817, 0.5
        %v5098 = vmul.f32 %v4818, 0.5
        %v5099 = vmul.f32 %v4819, 0.5
        %v5100 = vmul.f32 %v4820, 0.5
        %v5101 = vmul.f32 %v4821, 0.5
        %v5102 = vmul.f32 %v4822, 0.5
        %v5103 = vmul.f32 %v4823, 0.5
        %v5104 = vadd.f32 %v5084, 1.0
        %v5105 = vadd.f32 %v5085, 1.0
        %v5106 = vadd.f32 %v5086, 1.0
        %v5107 = vadd.f32 %v5087, 1.0
        %v5108 = vadd.f32 %v5088, 1.0
        %v5109 = vadd.f32 %v5089, 1.0
        %v5110 = vadd.f32 %v5090, 1.0
        %v5111 = vadd.f32 %v5091, 1.0
        %v5112 = vadd.f32 %v5092, 1.0
        %v5113 = vadd.f32 %v5093, 1.0
        %v5114 = vmul.f32 %v5094, %v5104
        %v5115 = vmul.f32 %v5095, %v5105
        %v5116 = vmul.f32 %v5096, %v5106
        %v5117 = vmul.f32 %v5097, %v5107
        %v5118 = vmul.f32 %v5098, %v5108
        %v5119 = vmul.f32 %v5099, %v5109
        %v5120 = vmul.f32 %v5100, %v5110
        %v5121 = vmul.f32 %v5101, %v5111
        %v5122 = vmul.f32 %v5102, %v5112
        %v5123 = vmul.f32 %v5103, %v5113
        %v5124 = vmul.f32 %v5114, %v4824
        %v5125 = vmul.f32 %v5115, %v4825
        %v5126 = vmul.f32 %v5116, %v4826
        %v5127 = vmul.f32 %v5117, %v4827
        %v5128 = vmul.f32 %v5118, %v4828
        %v5129 = vmul.f32 %v5119, %v4829
        %v5130 = vmul.f32 %v5120, %v4830
        %v5131 = vmul.f32 %v5121, %v4831
        %v5132 = vmul.f32 %v5122, %v4832
        %v5133 = vmul.f32 %v5123, %v4833
        %v5134 = vld [vmem:[%s7] sm:$0xff]
        %v5135 = vld [vmem:[%s7 + $0x8] sm:$0xff]
        %v5136 = vld [vmem:[%s7 + $0x10] sm:$0xff]
        %v5137 = vld [vmem:[%s7 + $0x18] sm:$0xff]
        %vm5138 = vcmask 326656
        %v5140 = vsel %vm5138, %v5134, 0
        %v5143 = vsel %vm5138, %v5135, 0
        %v5146 = vsel %vm5138, %v5136, 0
        %v5149 = vsel %vm5138, %v5137, 0
        %5151 = vmatprep.subr.mxu0 %v5125
        %5152 = vmatpush1.msra.mxu0 %v5124
        %5153 = vmatprep.subr.mxu0 %v5127
        %5154 = vmatpush1.msra.mxu0 %v5126
        %5155 = vmatprep.subr.mxu0 %v5129
        %5156 = vmatpush1.msra.mxu0 %v5128
        %5157 = vmatprep.subr.mxu0 %v5131
        %5158 = vmatpush1.msra.mxu0 %v5130
        %5159 = vmatprep.subr.mxu0 %v5133
        %5160 = vmatpush1.msra.mxu0 %v5132
        %5161 = vmatprep.subr.mxu0 0.0
        %5162 = vmatpush1.msra.mxu0 0.0
        %5163 = vmatprep.subr.mxu0 0.0
        %5164 = vmatpush1.msra.mxu0 0.0
        %5165 = vmatprep.subr.mxu0 0.0
        %5166 = vmatpush1.msra.mxu0 0.0
        %5167 = vmatprep.subr.mxu0 0.0
        %5168 = vmatpush1.msra.mxu0 0.0
        %5169 = vmatprep.subr.mxu0 0.0
        %5170 = vmatpush1.msra.mxu0 0.0
        %5171 = vmatprep.subr.mxu0 0.0
        %5172 = vmatpush1.msra.mxu0 0.0
        %5173 = vmatprep.subr.mxu0 0.0
        %5174 = vmatpush1.msra.mxu0 0.0
        %5175 = vmatprep.subr.mxu0 0.0
        %5176 = vmatpush1.msra.mxu0 0.0
        %5177 = vmatprep.subr.mxu0 0.0
        %5178 = vmatpush1.msra.mxu0 0.0
        %5179 = vmatprep.subr.mxu0 0.0
        %5180 = vmatpush1.msra.mxu0 0.0
        %5181 = vmatprep.subr.mxu0 0.0
        %5182 = vmatpush1.msra.mxu0 0.0
        %5183 = vmatprep.subr.mxu0 0.0
        %5184 = vmatpush1.msra.mxu0 0.0
        %5185 = vmatprep.subr.mxu0 0.0
        %5186 = vmatpush1.msra.mxu0 0.0
        %5187 = vmatprep.subr.mxu0 0.0
        %5188 = vmatpush1.msra.mxu0 0.0
        %5189 = vmatprep.subr.mxu0 0.0
        %5190 = vmatpush1.msra.mxu0 0.0
        %5191 = vmatprep.subr.mxu0 0.0
        %5192 = vmatpush1.msra.mxu0 0.0
        %5193 = vmatprep.subr.mxu0 0.0
        %5194 = vmatpush1.msra.mxu0 0.0
        %5195 = vmatprep.subr.mxu0 0.0
        %5196 = vmatpush1.msra.mxu0 0.0
        %5197 = vmatprep.subr.mxu0 0.0
        %5198 = vmatpush1.msra.mxu0 0.0
        %5199 = vmatprep.subr.mxu0 0.0
        %5200 = vmatpush1.msra.mxu0 0.0
        %5201 = vmatprep.subr.mxu0 0.0
        %5202 = vmatpush1.msra.mxu0 0.0
        %5203 = vmatprep.subr.mxu0 0.0
        %5204 = vmatpush1.msra.mxu0 0.0
        %5205 = vmatprep.subr.mxu0 0.0
        %5206 = vmatpush1.msra.mxu0 0.0
        %5207 = vmatprep.subr.mxu0 0.0
        %5208 = vmatpush1.msra.mxu0 0.0
        %5209 = vmatprep.subr.mxu0 0.0
        %5210 = vmatpush1.msra.mxu0 0.0
        %5211 = vmatprep.subr.mxu0 0.0
        %5212 = vmatpush1.msra.mxu0 0.0
        %5213 = vmatprep.subr.mxu0 0.0
        %5214 = vmatpush1.msra.mxu0 0.0
        %5215 = vmatprep.mubr.f32.mxu0 0.0
        %5216 = vmatmul.mubr.f32.gmra.mrb[0].mxu0 %v5140
        %v5217 = vpop.f32.mrb[0].mxu0
        %v5218 = vadd.f32 0.0, %v5217
        %v5219 = vpop.f32.mrb[0].mxu0
        %v5220 = vadd.f32 0.0, %v5219
        %5221 = vmatprep.mubr.f32.mxu0 0.0
        %5222 = vmatmul.mubr.f32.gmra.mrb[0].mxu0 %v5143
        %v5223 = vpop.f32.mrb[0].mxu0
        %v5224 = vadd.f32 0.0, %v5223
        %v5225 = vpop.f32.mrb[0].mxu0
        %v5226 = vadd.f32 0.0, %v5225
        %5227 = vmatprep.mubr.f32.mxu0 0.0
        %5228 = vmatmul.mubr.f32.gmra.mrb[0].mxu0 %v5146
        %v5229 = vpop.f32.mrb[0].mxu0
        %v5230 = vadd.f32 0.0, %v5229
        %v5231 = vpop.f32.mrb[0].mxu0
        %v5232 = vadd.f32 0.0, %v5231
        %5233 = vmatprep.mubr.f32.mxu0 0.0
        %5234 = vmatmul.mubr.f32.gmra.mrb[0].mxu0 %v5149
        %v5235 = vpop.f32.mrb[0].mxu0
        %v5236 = vadd.f32 0.0, %v5235
        %v5237 = vpop.f32.mrb[0].mxu0
        %v5238 = vadd.f32 0.0, %v5237
        %5239 = vdwg.mxu0
        %v5240 = vadd.f32 %v3075, %v5218
        %v5241 = vadd.f32 %v3076, %v5220
        %v5242 = vadd.f32 %v3077, %v5224
        %v5243 = vadd.f32 %v3078, %v5226
        %v5244 = vadd.f32 %v3079, %v5230
        %v5245 = vadd.f32 %v3080, %v5232
        %v5246 = vadd.f32 %v3081, %v5236
        %v5247 = vadd.f32 %v3082, %v5238
        %5248 = vrot.lane.b32.xlu0 %v5240, 8
        %v5249 = vpop.permute.xlu0 %5248
        %5250 = vrot.lane.b32.xlu0 %v5242, 8
        %v5251 = vpop.permute.xlu0 %5250
        %5252 = vrot.lane.b32.xlu0 %v5244, 8
        %v5253 = vpop.permute.xlu0 %5252
        %5254 = vrot.lane.b32.xlu0 %v5246, 8
        %v5255 = vpop.permute.xlu0 %5254
        %5256 = vrot.lane.b32.xlu0 %v5241, 8
        %v5257 = vpop.permute.xlu0 %5256
        %5258 = vrot.lane.b32.xlu0 %v5243, 8
        %v5259 = vpop.permute.xlu0 %5258
        %5260 = vrot.lane.b32.xlu0 %v5245, 8
        %v5261 = vpop.permute.xlu0 %5260
        %5262 = vrot.lane.b32.xlu0 %v5247, 8
        %v5263 = vpop.permute.xlu0 %5262
        %vm5264 = vcmp.lt.s32.totalorder %v948, 8
        %v5265 = vsel %vm5264, %v5249, %v5257
        %v5266 = vsel %vm5264, %v5251, %v5259
        %v5267 = vsel %vm5264, %v5253, %v5261
        %v5268 = vsel %vm5264, %v5255, %v5263
        %v5269 = vsel %vm5264, %v5257, %v5249
        %v5270 = vsel %vm5264, %v5259, %v5251
        %v5271 = vsel %vm5264, %v5261, %v5253
        %v5272 = vsel %vm5264, %v5263, %v5255
        %v5273 = vld [vmem:[%s12] ss:$8 sm:$0x3]
        %v5275 = vlaneseq
        %v5276 = vshrl.u32 %v5275, 7
        %v5277 = vsub.s32 0, %v5276
        %v5278 = vrot.slane %v5273, %v5277
        %v5279 = vlaneseq
        %v5280 = vshrl.u32 %v5279, 7
        %v5281 = vsub.s32 1, %v5280
        %v5282 = vrot.slane %v5273, %v5281
        %v5285 = vmul.f32 %v5265, %v5278
        %v5286 = vmul.f32 %v5269, %v5282
        %v5287 = vmul.f32 %v5266, %v5278
        %v5288 = vmul.f32 %v5270, %v5282
        %v5289 = vmul.f32 %v5267, %v5278
        %v5290 = vmul.f32 %v5271, %v5282
        %v5291 = vmul.f32 %v5268, %v5278
        %v5292 = vmul.f32 %v5272, %v5282
        %v5293 = vld [vmem:[%s8] sm:$0xff]
        %v5294 = vld [vmem:[%s8 + $0x8] sm:$0xff]
        %v5295 = vld [vmem:[%s8 + $0x10] sm:$0xff]
        %v5296 = vld [vmem:[%s8 + $0x18] sm:$0xff]
        %5298 = vset.pattern.permute.xlu0 0
        %5299 = vperm.xlu0 %5298, %v5293
        %v5300 = vpop.permute.xlu0 %5299
        %5303 = vset.pattern.permute.xlu0 0
        %5304 = vperm.xlu0 %5303, %v5294
        %v5305 = vpop.permute.xlu0 %5304
        %5308 = vset.pattern.permute.xlu0 0
        %5309 = vperm.xlu0 %5308, %v5295
        %v5310 = vpop.permute.xlu0 %5309
        %5313 = vset.pattern.permute.xlu0 0
        %5314 = vperm.xlu0 %5313, %v5296
        %v5315 = vpop.permute.xlu0 %5314
        %v5317 = vmul.f32 %v5300, %v5285
        %v5318 = vmul.f32 %v5300, %v5286
        %v5319 = vmul.f32 %v5305, %v5287
        %v5320 = vmul.f32 %v5305, %v5288
        %v5321 = vmul.f32 %v5310, %v5289
        %v5322 = vmul.f32 %v5310, %v5290
        %v5323 = vmul.f32 %v5315, %v5291
        %v5324 = vmul.f32 %v5315, %v5292
        %5325 = vrot.lane.b32.xlu0 %v5240, 4
        %v5326 = vpop.permute.xlu0 %5325
        %5327 = vrot.lane.b32.xlu0 %v5242, 4
        %v5328 = vpop.permute.xlu0 %5327
        %5329 = vrot.lane.b32.xlu0 %v5244, 4
        %v5330 = vpop.permute.xlu0 %5329
        %5331 = vrot.lane.b32.xlu0 %v5246, 4
        %v5332 = vpop.permute.xlu0 %5331
        %5333 = vrot.lane.b32.xlu0 %v5241, 4
        %v5334 = vpop.permute.xlu0 %5333
        %5335 = vrot.lane.b32.xlu0 %v5243, 4
        %v5336 = vpop.permute.xlu0 %5335
        %5337 = vrot.lane.b32.xlu0 %v5245, 4
        %v5338 = vpop.permute.xlu0 %5337
        %5339 = vrot.lane.b32.xlu0 %v5247, 4
        %v5340 = vpop.permute.xlu0 %5339
        %vm5341 = vcmp.lt.s32.totalorder %v948, 4
        %v5342 = vsel %vm5341, %v5326, %v5334
        %v5343 = vsel %vm5341, %v5328, %v5336
        %v5344 = vsel %vm5341, %v5330, %v5338
        %v5345 = vsel %vm5341, %v5332, %v5340
        %v5346 = vsel %vm5341, %v5334, %v5326
        %v5347 = vsel %vm5341, %v5336, %v5328
        %v5348 = vsel %vm5341, %v5338, %v5330
        %v5349 = vsel %vm5341, %v5340, %v5332
        %s5350 = scalar_lea.vmem %s12, 1
        %v5351 = vld [vmem:[%s5350] ss:$8 sm:$0x3]
        %v5353 = vlaneseq
        %v5354 = vshrl.u32 %v5353, 7
        %v5355 = vsub.s32 0, %v5354
        %v5356 = vrot.slane %v5351, %v5355
        %v5357 = vlaneseq
        %v5358 = vshrl.u32 %v5357, 7
        %v5359 = vsub.s32 1, %v5358
        %v5360 = vrot.slane %v5351, %v5359
        %v5363 = vmul.f32 %v5342, %v5356
        %v5364 = vmul.f32 %v5346, %v5360
        %v5365 = vmul.f32 %v5343, %v5356
        %v5366 = vmul.f32 %v5347, %v5360
        %v5367 = vmul.f32 %v5344, %v5356
        %v5368 = vmul.f32 %v5348, %v5360
        %v5369 = vmul.f32 %v5345, %v5356
        %v5370 = vmul.f32 %v5349, %v5360
        %5371 = vset.pattern.permute.xlu0 1
        %5372 = vperm.xlu0 %5371, %v5293
        %v5373 = vpop.permute.xlu0 %5372
        %5375 = vset.pattern.permute.xlu0 1
        %5376 = vperm.xlu0 %5375, %v5294
        %v5377 = vpop.permute.xlu0 %5376
        %5379 = vset.pattern.permute.xlu0 1
        %5380 = vperm.xlu0 %5379, %v5295
        %v5381 = vpop.permute.xlu0 %5380
        %5383 = vset.pattern.permute.xlu0 1
        %5384 = vperm.xlu0 %5383, %v5296
        %v5385 = vpop.permute.xlu0 %5384
        %v5387 = vmul.f32 %v5373, %v5363
        %v5388 = vmul.f32 %v5373, %v5364
        %v5389 = vmul.f32 %v5377, %v5365
        %v5390 = vmul.f32 %v5377, %v5366
        %v5391 = vmul.f32 %v5381, %v5367
        %v5392 = vmul.f32 %v5381, %v5368
        %v5393 = vmul.f32 %v5385, %v5369
        %v5394 = vmul.f32 %v5385, %v5370
        %v5395 = vadd.f32 %v5317, %v5387
        %v5396 = vadd.f32 %v5318, %v5388
        %v5397 = vadd.f32 %v5319, %v5389
        %v5398 = vadd.f32 %v5320, %v5390
        %v5399 = vadd.f32 %v5321, %v5391
        %v5400 = vadd.f32 %v5322, %v5392
        %v5401 = vadd.f32 %v5323, %v5393
        %v5402 = vadd.f32 %v5324, %v5394
        %s5403 = scalar_lea.vmem %s12, 2
        %v5404 = vld [vmem:[%s5403] ss:$8 sm:$0x3]
        %v5406 = vlaneseq
        %v5407 = vshrl.u32 %v5406, 7
        %v5408 = vsub.s32 0, %v5407
        %v5409 = vrot.slane %v5404, %v5408
        %v5410 = vlaneseq
        %v5411 = vshrl.u32 %v5410, 7
        %v5412 = vsub.s32 1, %v5411
        %v5413 = vrot.slane %v5404, %v5412
        %v5416 = vmul.f32 %v5241, %v5409
        %v5417 = vmul.f32 %v5240, %v5413
        %v5418 = vmul.f32 %v5243, %v5409
        %v5419 = vmul.f32 %v5242, %v5413
        %v5420 = vmul.f32 %v5245, %v5409
        %v5421 = vmul.f32 %v5244, %v5413
        %v5422 = vmul.f32 %v5247, %v5409
        %v5423 = vmul.f32 %v5246, %v5413
        %5424 = vset.pattern.permute.xlu0 2
        %5425 = vperm.xlu0 %5424, %v5293
        %v5426 = vpop.permute.xlu0 %5425
        %5428 = vset.pattern.permute.xlu0 2
        %5429 = vperm.xlu0 %5428, %v5294
        %v5430 = vpop.permute.xlu0 %5429
        %5432 = vset.pattern.permute.xlu0 2
        %5433 = vperm.xlu0 %5432, %v5295
        %v5434 = vpop.permute.xlu0 %5433
        %5436 = vset.pattern.permute.xlu0 2
        %5437 = vperm.xlu0 %5436, %v5296
        %v5438 = vpop.permute.xlu0 %5437
        %v5440 = vmul.f32 %v5426, %v5416
        %v5441 = vmul.f32 %v5426, %v5417
        %v5442 = vmul.f32 %v5430, %v5418
        %v5443 = vmul.f32 %v5430, %v5419
        %v5444 = vmul.f32 %v5434, %v5420
        %v5445 = vmul.f32 %v5434, %v5421
        %v5446 = vmul.f32 %v5438, %v5422
        %v5447 = vmul.f32 %v5438, %v5423
        %v5448 = vadd.f32 %v5395, %v5440
        %v5449 = vadd.f32 %v5396, %v5441
        %v5450 = vadd.f32 %v5397, %v5442
        %v5451 = vadd.f32 %v5398, %v5443
        %v5452 = vadd.f32 %v5399, %v5444
        %v5453 = vadd.f32 %v5400, %v5445
        %v5454 = vadd.f32 %v5401, %v5446
        %v5455 = vadd.f32 %v5402, %v5447
        %5456 = vrot.lane.b32.xlu0 %v5240, 124
        %v5457 = vpop.permute.xlu0 %5456
        %5458 = vrot.lane.b32.xlu0 %v5242, 124
        %v5459 = vpop.permute.xlu0 %5458
        %5460 = vrot.lane.b32.xlu0 %v5244, 124
        %v5461 = vpop.permute.xlu0 %5460
        %5462 = vrot.lane.b32.xlu0 %v5246, 124
        %v5463 = vpop.permute.xlu0 %5462
        %5464 = vrot.lane.b32.xlu0 %v5241, 124
        %v5465 = vpop.permute.xlu0 %5464
        %5466 = vrot.lane.b32.xlu0 %v5243, 124
        %v5467 = vpop.permute.xlu0 %5466
        %5468 = vrot.lane.b32.xlu0 %v5245, 124
        %v5469 = vpop.permute.xlu0 %5468
        %5470 = vrot.lane.b32.xlu0 %v5247, 124
        %v5471 = vpop.permute.xlu0 %5470
        %vm5472 = vcmp.lt.s32.totalorder %v948, 124
        %v5473 = vsel %vm5472, %v5457, %v5465
        %v5474 = vsel %vm5472, %v5459, %v5467
        %v5475 = vsel %vm5472, %v5461, %v5469
        %v5476 = vsel %vm5472, %v5463, %v5471
        %v5477 = vsel %vm5472, %v5465, %v5457
        %v5478 = vsel %vm5472, %v5467, %v5459
        %v5479 = vsel %vm5472, %v5469, %v5461
        %v5480 = vsel %vm5472, %v5471, %v5463
        %s5481 = scalar_lea.vmem %s12, 3
        %v5482 = vld [vmem:[%s5481] ss:$8 sm:$0x3]
        %v5484 = vlaneseq
        %v5485 = vshrl.u32 %v5484, 7
        %v5486 = vsub.s32 0, %v5485
        %v5487 = vrot.slane %v5482, %v5486
        %v5488 = vlaneseq
        %v5489 = vshrl.u32 %v5488, 7
        %v5490 = vsub.s32 1, %v5489
        %v5491 = vrot.slane %v5482, %v5490
        %v5494 = vmul.f32 %v5477, %v5487
        %v5495 = vmul.f32 %v5473, %v5491
        %v5496 = vmul.f32 %v5478, %v5487
        %v5497 = vmul.f32 %v5474, %v5491
        %v5498 = vmul.f32 %v5479, %v5487
        %v5499 = vmul.f32 %v5475, %v5491
        %v5500 = vmul.f32 %v5480, %v5487
        %v5501 = vmul.f32 %v5476, %v5491
        %5502 = vset.pattern.permute.xlu0 3
        %5503 = vperm.xlu0 %5502, %v5293
        %v5504 = vpop.permute.xlu0 %5503
        %5506 = vset.pattern.permute.xlu0 3
        %5507 = vperm.xlu0 %5506, %v5294
        %v5508 = vpop.permute.xlu0 %5507
        %5510 = vset.pattern.permute.xlu0 3
        %5511 = vperm.xlu0 %5510, %v5295
        %v5512 = vpop.permute.xlu0 %5511
        %5514 = vset.pattern.permute.xlu0 3
        %5515 = vperm.xlu0 %5514, %v5296
        %v5516 = vpop.permute.xlu0 %5515
        %v5518 = vmul.f32 %v5504, %v5494
        %v5519 = vmul.f32 %v5504, %v5495
        %v5520 = vmul.f32 %v5508, %v5496
        %v5521 = vmul.f32 %v5508, %v5497
        %v5522 = vmul.f32 %v5512, %v5498
        %v5523 = vmul.f32 %v5512, %v5499
        %v5524 = vmul.f32 %v5516, %v5500
        %v5525 = vmul.f32 %v5516, %v5501
        %v5526 = vadd.f32 %v5448, %v5518
        %v5527 = vadd.f32 %v5449, %v5519
        %v5528 = vadd.f32 %v5450, %v5520
        %v5529 = vadd.f32 %v5451, %v5521
        %v5530 = vadd.f32 %v5452, %v5522
        %v5531 = vadd.f32 %v5453, %v5523
        %v5532 = vadd.f32 %v5454, %v5524
        %v5533 = vadd.f32 %v5455, %v5525
        %5534 = vrot.lane.b32.xlu0 %v5240, 120
        %v5535 = vpop.permute.xlu0 %5534
        %5536 = vrot.lane.b32.xlu0 %v5242, 120
        %v5537 = vpop.permute.xlu0 %5536
        %5538 = vrot.lane.b32.xlu0 %v5244, 120
        %v5539 = vpop.permute.xlu0 %5538
        %5540 = vrot.lane.b32.xlu0 %v5246, 120
        %v5541 = vpop.permute.xlu0 %5540
        %5542 = vrot.lane.b32.xlu0 %v5241, 120
        %v5543 = vpop.permute.xlu0 %5542
        %5544 = vrot.lane.b32.xlu0 %v5243, 120
        %v5545 = vpop.permute.xlu0 %5544
        %5546 = vrot.lane.b32.xlu0 %v5245, 120
        %v5547 = vpop.permute.xlu0 %5546
        %5548 = vrot.lane.b32.xlu0 %v5247, 120
        %v5549 = vpop.permute.xlu0 %5548
        %vm5550 = vcmp.lt.s32.totalorder %v948, 120
        %v5551 = vsel %vm5550, %v5535, %v5543
        %v5552 = vsel %vm5550, %v5537, %v5545
        %v5553 = vsel %vm5550, %v5539, %v5547
        %v5554 = vsel %vm5550, %v5541, %v5549
        %v5555 = vsel %vm5550, %v5543, %v5535
        %v5556 = vsel %vm5550, %v5545, %v5537
        %v5557 = vsel %vm5550, %v5547, %v5539
        %v5558 = vsel %vm5550, %v5549, %v5541
        %s5559 = scalar_lea.vmem %s12, 4
        %v5560 = vld [vmem:[%s5559] ss:$8 sm:$0x3]
        %v5562 = vlaneseq
        %v5563 = vshrl.u32 %v5562, 7
        %v5564 = vsub.s32 0, %v5563
        %v5565 = vrot.slane %v5560, %v5564
        %v5566 = vlaneseq
        %v5567 = vshrl.u32 %v5566, 7
        %v5568 = vsub.s32 1, %v5567
        %v5569 = vrot.slane %v5560, %v5568
        %v5572 = vmul.f32 %v5555, %v5565
        %v5573 = vmul.f32 %v5551, %v5569
        %v5574 = vmul.f32 %v5556, %v5565
        %v5575 = vmul.f32 %v5552, %v5569
        %v5576 = vmul.f32 %v5557, %v5565
        %v5577 = vmul.f32 %v5553, %v5569
        %v5578 = vmul.f32 %v5558, %v5565
        %v5579 = vmul.f32 %v5554, %v5569
        %5580 = vset.pattern.permute.xlu0 4
        %5581 = vperm.xlu0 %5580, %v5293
        %v5582 = vpop.permute.xlu0 %5581
        %5584 = vset.pattern.permute.xlu0 4
        %5585 = vperm.xlu0 %5584, %v5294
        %v5586 = vpop.permute.xlu0 %5585
        %5588 = vset.pattern.permute.xlu0 4
        %5589 = vperm.xlu0 %5588, %v5295
        %v5590 = vpop.permute.xlu0 %5589
        %5592 = vset.pattern.permute.xlu0 4
        %5593 = vperm.xlu0 %5592, %v5296
        %v5594 = vpop.permute.xlu0 %5593
        %v5596 = vmul.f32 %v5582, %v5572
        %v5597 = vmul.f32 %v5582, %v5573
        %v5598 = vmul.f32 %v5586, %v5574
        %v5599 = vmul.f32 %v5586, %v5575
        %v5600 = vmul.f32 %v5590, %v5576
        %v5601 = vmul.f32 %v5590, %v5577
        %v5602 = vmul.f32 %v5594, %v5578
        %v5603 = vmul.f32 %v5594, %v5579
        %v5604 = vadd.f32 %v5526, %v5596
        %v5605 = vadd.f32 %v5527, %v5597
        %v5606 = vadd.f32 %v5528, %v5598
        %v5607 = vadd.f32 %v5529, %v5599
        %v5608 = vadd.f32 %v5530, %v5600
        %v5609 = vadd.f32 %v5531, %v5601
        %v5610 = vadd.f32 %v5532, %v5602
        %v5611 = vadd.f32 %v5533, %v5603
        %5612 = vrot.lane.b32.xlu0 %v5240, 72
        %v5613 = vpop.permute.xlu0 %5612
        %5614 = vrot.lane.b32.xlu0 %v5242, 72
        %v5615 = vpop.permute.xlu0 %5614
        %5616 = vrot.lane.b32.xlu0 %v5244, 72
        %v5617 = vpop.permute.xlu0 %5616
        %5618 = vrot.lane.b32.xlu0 %v5246, 72
        %v5619 = vpop.permute.xlu0 %5618
        %5620 = vrot.lane.b32.xlu0 %v5241, 72
        %v5621 = vpop.permute.xlu0 %5620
        %5622 = vrot.lane.b32.xlu0 %v5243, 72
        %v5623 = vpop.permute.xlu0 %5622
        %5624 = vrot.lane.b32.xlu0 %v5245, 72
        %v5625 = vpop.permute.xlu0 %5624
        %5626 = vrot.lane.b32.xlu0 %v5247, 72
        %v5627 = vpop.permute.xlu0 %5626
        %vm5628 = vcmp.lt.s32.totalorder %v948, 72
        %v5629 = vsel %vm5628, %v5613, %v5621
        %v5630 = vsel %vm5628, %v5615, %v5623
        %v5631 = vsel %vm5628, %v5617, %v5625
        %v5632 = vsel %vm5628, %v5619, %v5627
        %v5633 = vsel %vm5628, %v5621, %v5613
        %v5634 = vsel %vm5628, %v5623, %v5615
        %v5635 = vsel %vm5628, %v5625, %v5617
        %v5636 = vsel %vm5628, %v5627, %v5619
        %s5637 = scalar_lea.vmem %s12, 5
        %v5638 = vld [vmem:[%s5637] ss:$8 sm:$0x3]
        %v5640 = vlaneseq
        %v5641 = vshrl.u32 %v5640, 7
        %v5642 = vsub.s32 0, %v5641
        %v5643 = vrot.slane %v5638, %v5642
        %v5644 = vlaneseq
        %v5645 = vshrl.u32 %v5644, 7
        %v5646 = vsub.s32 1, %v5645
        %v5647 = vrot.slane %v5638, %v5646
        %v5650 = vmul.f32 %v5633, %v5643
        %v5651 = vmul.f32 %v5629, %v5647
        %v5652 = vmul.f32 %v5634, %v5643
        %v5653 = vmul.f32 %v5630, %v5647
        %v5654 = vmul.f32 %v5635, %v5643
        %v5655 = vmul.f32 %v5631, %v5647
        %v5656 = vmul.f32 %v5636, %v5643
        %v5657 = vmul.f32 %v5632, %v5647
        %5658 = vset.pattern.permute.xlu0 5
        %5659 = vperm.xlu0 %5658, %v5293
        %v5660 = vpop.permute.xlu0 %5659
        %5662 = vset.pattern.permute.xlu0 5
        %5663 = vperm.xlu0 %5662, %v5294
        %v5664 = vpop.permute.xlu0 %5663
        %5666 = vset.pattern.permute.xlu0 5
        %5667 = vperm.xlu0 %5666, %v5295
        %v5668 = vpop.permute.xlu0 %5667
        %5670 = vset.pattern.permute.xlu0 5
        %5671 = vperm.xlu0 %5670, %v5296
        %v5672 = vpop.permute.xlu0 %5671
        %v5674 = vmul.f32 %v5660, %v5650
        %v5675 = vmul.f32 %v5660, %v5651
        %v5676 = vmul.f32 %v5664, %v5652
        %v5677 = vmul.f32 %v5664, %v5653
        %v5678 = vmul.f32 %v5668, %v5654
        %v5679 = vmul.f32 %v5668, %v5655
        %v5680 = vmul.f32 %v5672, %v5656
        %v5681 = vmul.f32 %v5672, %v5657
        %v5682 = vadd.f32 %v5604, %v5674
        %v5683 = vadd.f32 %v5605, %v5675
        %v5684 = vadd.f32 %v5606, %v5676
        %v5685 = vadd.f32 %v5607, %v5677
        %v5686 = vadd.f32 %v5608, %v5678
        %v5687 = vadd.f32 %v5609, %v5679
        %v5688 = vadd.f32 %v5610, %v5680
        %v5689 = vadd.f32 %v5611, %v5681
        %5690 = vrot.lane.b32.xlu0 %v5240, 68
        %v5691 = vpop.permute.xlu0 %5690
        %5692 = vrot.lane.b32.xlu0 %v5242, 68
        %v5693 = vpop.permute.xlu0 %5692
        %5694 = vrot.lane.b32.xlu0 %v5244, 68
        %v5695 = vpop.permute.xlu0 %5694
        %5696 = vrot.lane.b32.xlu0 %v5246, 68
        %v5697 = vpop.permute.xlu0 %5696
        %5698 = vrot.lane.b32.xlu0 %v5241, 68
        %v5699 = vpop.permute.xlu0 %5698
        %5700 = vrot.lane.b32.xlu0 %v5243, 68
        %v5701 = vpop.permute.xlu0 %5700
        %5702 = vrot.lane.b32.xlu0 %v5245, 68
        %v5703 = vpop.permute.xlu0 %5702
        %5704 = vrot.lane.b32.xlu0 %v5247, 68
        %v5705 = vpop.permute.xlu0 %5704
        %vm5706 = vcmp.lt.s32.totalorder %v948, 68
        %v5707 = vsel %vm5706, %v5691, %v5699
        %v5708 = vsel %vm5706, %v5693, %v5701
        %v5709 = vsel %vm5706, %v5695, %v5703
        %v5710 = vsel %vm5706, %v5697, %v5705
        %v5711 = vsel %vm5706, %v5699, %v5691
        %v5712 = vsel %vm5706, %v5701, %v5693
        %v5713 = vsel %vm5706, %v5703, %v5695
        %v5714 = vsel %vm5706, %v5705, %v5697
        %s5715 = scalar_lea.vmem %s12, 6
        %v5716 = vld [vmem:[%s5715] ss:$8 sm:$0x3]
        %v5718 = vlaneseq
        %v5719 = vshrl.u32 %v5718, 7
        %v5720 = vsub.s32 0, %v5719
        %v5721 = vrot.slane %v5716, %v5720
        %v5722 = vlaneseq
        %v5723 = vshrl.u32 %v5722, 7
        %v5724 = vsub.s32 1, %v5723
        %v5725 = vrot.slane %v5716, %v5724
        %v5728 = vmul.f32 %v5711, %v5721
        %v5729 = vmul.f32 %v5707, %v5725
        %v5730 = vmul.f32 %v5712, %v5721
        %v5731 = vmul.f32 %v5708, %v5725
        %v5732 = vmul.f32 %v5713, %v5721
        %v5733 = vmul.f32 %v5709, %v5725
        %v5734 = vmul.f32 %v5714, %v5721
        %v5735 = vmul.f32 %v5710, %v5725
        %5736 = vset.pattern.permute.xlu0 6
        %5737 = vperm.xlu0 %5736, %v5293
        %v5738 = vpop.permute.xlu0 %5737
        %5740 = vset.pattern.permute.xlu0 6
        %5741 = vperm.xlu0 %5740, %v5294
        %v5742 = vpop.permute.xlu0 %5741
        %5744 = vset.pattern.permute.xlu0 6
        %5745 = vperm.xlu0 %5744, %v5295
        %v5746 = vpop.permute.xlu0 %5745
        %5748 = vset.pattern.permute.xlu0 6
        %5749 = vperm.xlu0 %5748, %v5296
        %v5750 = vpop.permute.xlu0 %5749
        %v5752 = vmul.f32 %v5738, %v5728
        %v5753 = vmul.f32 %v5738, %v5729
        %v5754 = vmul.f32 %v5742, %v5730
        %v5755 = vmul.f32 %v5742, %v5731
        %v5756 = vmul.f32 %v5746, %v5732
        %v5757 = vmul.f32 %v5746, %v5733
        %v5758 = vmul.f32 %v5750, %v5734
        %v5759 = vmul.f32 %v5750, %v5735
        %v5760 = vadd.f32 %v5682, %v5752
        %v5761 = vadd.f32 %v5683, %v5753
        %v5762 = vadd.f32 %v5684, %v5754
        %v5763 = vadd.f32 %v5685, %v5755
        %v5764 = vadd.f32 %v5686, %v5756
        %v5765 = vadd.f32 %v5687, %v5757
        %v5766 = vadd.f32 %v5688, %v5758
        %v5767 = vadd.f32 %v5689, %v5759
        %5768 = vrot.lane.b32.xlu0 %v5240, 64
        %v5769 = vpop.permute.xlu0 %5768
        %5770 = vrot.lane.b32.xlu0 %v5242, 64
        %v5771 = vpop.permute.xlu0 %5770
        %5772 = vrot.lane.b32.xlu0 %v5244, 64
        %v5773 = vpop.permute.xlu0 %5772
        %5774 = vrot.lane.b32.xlu0 %v5246, 64
        %v5775 = vpop.permute.xlu0 %5774
        %5776 = vrot.lane.b32.xlu0 %v5241, 64
        %v5777 = vpop.permute.xlu0 %5776
        %5778 = vrot.lane.b32.xlu0 %v5243, 64
        %v5779 = vpop.permute.xlu0 %5778
        %5780 = vrot.lane.b32.xlu0 %v5245, 64
        %v5781 = vpop.permute.xlu0 %5780
        %5782 = vrot.lane.b32.xlu0 %v5247, 64
        %v5783 = vpop.permute.xlu0 %5782
        %vm5784 = vcmp.lt.s32.totalorder %v948, 64
        %v5785 = vsel %vm5784, %v5769, %v5777
        %v5786 = vsel %vm5784, %v5771, %v5779
        %v5787 = vsel %vm5784, %v5773, %v5781
        %v5788 = vsel %vm5784, %v5775, %v5783
        %v5789 = vsel %vm5784, %v5777, %v5769
        %v5790 = vsel %vm5784, %v5779, %v5771
        %v5791 = vsel %vm5784, %v5781, %v5773
        %v5792 = vsel %vm5784, %v5783, %v5775
        %s5793 = scalar_lea.vmem %s12, 7
        %v5794 = vld [vmem:[%s5793] ss:$8 sm:$0x3]
        %v5796 = vlaneseq
        %v5797 = vshrl.u32 %v5796, 7
        %v5798 = vsub.s32 0, %v5797
        %v5799 = vrot.slane %v5794, %v5798
        %v5800 = vlaneseq
        %v5801 = vshrl.u32 %v5800, 7
        %v5802 = vsub.s32 1, %v5801
        %v5803 = vrot.slane %v5794, %v5802
        %v5806 = vmul.f32 %v5789, %v5799
        %v5807 = vmul.f32 %v5785, %v5803
        %v5808 = vmul.f32 %v5790, %v5799
        %v5809 = vmul.f32 %v5786, %v5803
        %v5810 = vmul.f32 %v5791, %v5799
        %v5811 = vmul.f32 %v5787, %v5803
        %v5812 = vmul.f32 %v5792, %v5799
        %v5813 = vmul.f32 %v5788, %v5803
        %5814 = vset.pattern.permute.xlu0 7
        %5815 = vperm.xlu0 %5814, %v5293
        %v5816 = vpop.permute.xlu0 %5815
        %5818 = vset.pattern.permute.xlu0 7
        %5819 = vperm.xlu0 %5818, %v5294
        %v5820 = vpop.permute.xlu0 %5819
        %5822 = vset.pattern.permute.xlu0 7
        %5823 = vperm.xlu0 %5822, %v5295
        %v5824 = vpop.permute.xlu0 %5823
        %5826 = vset.pattern.permute.xlu0 7
        %5827 = vperm.xlu0 %5826, %v5296
        %v5828 = vpop.permute.xlu0 %5827
        %v5830 = vmul.f32 %v5816, %v5806
        %v5831 = vmul.f32 %v5816, %v5807
        %v5832 = vmul.f32 %v5820, %v5808
        %v5833 = vmul.f32 %v5820, %v5809
        %v5834 = vmul.f32 %v5824, %v5810
        %v5835 = vmul.f32 %v5824, %v5811
        %v5836 = vmul.f32 %v5828, %v5812
        %v5837 = vmul.f32 %v5828, %v5813
        %v5838 = vadd.f32 %v5760, %v5830
        %v5839 = vadd.f32 %v5761, %v5831
        %v5840 = vadd.f32 %v5762, %v5832
        %v5841 = vadd.f32 %v5763, %v5833
        %v5842 = vadd.f32 %v5764, %v5834
        %v5843 = vadd.f32 %v5765, %v5835
        %v5844 = vadd.f32 %v5766, %v5836
        %v5845 = vadd.f32 %v5767, %v5837
        %5846 = vrot.lane.b32.xlu0 %v5240, 60
        %v5847 = vpop.permute.xlu0 %5846
        %5848 = vrot.lane.b32.xlu0 %v5242, 60
        %v5849 = vpop.permute.xlu0 %5848
        %5850 = vrot.lane.b32.xlu0 %v5244, 60
        %v5851 = vpop.permute.xlu0 %5850
        %5852 = vrot.lane.b32.xlu0 %v5246, 60
        %v5853 = vpop.permute.xlu0 %5852
        %5854 = vrot.lane.b32.xlu0 %v5241, 60
        %v5855 = vpop.permute.xlu0 %5854
        %5856 = vrot.lane.b32.xlu0 %v5243, 60
        %v5857 = vpop.permute.xlu0 %5856
        %5858 = vrot.lane.b32.xlu0 %v5245, 60
        %v5859 = vpop.permute.xlu0 %5858
        %5860 = vrot.lane.b32.xlu0 %v5247, 60
        %v5861 = vpop.permute.xlu0 %5860
        %vm5862 = vcmp.lt.s32.totalorder %v948, 60
        %v5863 = vsel %vm5862, %v5847, %v5855
        %v5864 = vsel %vm5862, %v5849, %v5857
        %v5865 = vsel %vm5862, %v5851, %v5859
        %v5866 = vsel %vm5862, %v5853, %v5861
        %v5867 = vsel %vm5862, %v5855, %v5847
        %v5868 = vsel %vm5862, %v5857, %v5849
        %v5869 = vsel %vm5862, %v5859, %v5851
        %v5870 = vsel %vm5862, %v5861, %v5853
        %s5871 = scalar_lea.vmem %s12, 16
        %v5872 = vld [vmem:[%s5871] ss:$8 sm:$0x3]
        %v5874 = vlaneseq
        %v5875 = vshrl.u32 %v5874, 7
        %v5876 = vsub.s32 0, %v5875
        %v5877 = vrot.slane %v5872, %v5876
        %v5878 = vlaneseq
        %v5879 = vshrl.u32 %v5878, 7
        %v5880 = vsub.s32 1, %v5879
        %v5881 = vrot.slane %v5872, %v5880
        %v5884 = vmul.f32 %v5867, %v5877
        %v5885 = vmul.f32 %v5863, %v5881
        %v5886 = vmul.f32 %v5868, %v5877
        %v5887 = vmul.f32 %v5864, %v5881
        %v5888 = vmul.f32 %v5869, %v5877
        %v5889 = vmul.f32 %v5865, %v5881
        %v5890 = vmul.f32 %v5870, %v5877
        %v5891 = vmul.f32 %v5866, %v5881
        %5892 = vset.pattern.permute.xlu0 8
        %5893 = vperm.xlu0 %5892, %v5293
        %v5894 = vpop.permute.xlu0 %5893
        %5896 = vset.pattern.permute.xlu0 8
        %5897 = vperm.xlu0 %5896, %v5294
        %v5898 = vpop.permute.xlu0 %5897
        %5900 = vset.pattern.permute.xlu0 8
        %5901 = vperm.xlu0 %5900, %v5295
        %v5902 = vpop.permute.xlu0 %5901
        %5904 = vset.pattern.permute.xlu0 8
        %5905 = vperm.xlu0 %5904, %v5296
        %v5906 = vpop.permute.xlu0 %5905
        %v5908 = vmul.f32 %v5894, %v5884
        %v5909 = vmul.f32 %v5894, %v5885
        %v5910 = vmul.f32 %v5898, %v5886
        %v5911 = vmul.f32 %v5898, %v5887
        %v5912 = vmul.f32 %v5902, %v5888
        %v5913 = vmul.f32 %v5902, %v5889
        %v5914 = vmul.f32 %v5906, %v5890
        %v5915 = vmul.f32 %v5906, %v5891
        %v5916 = vadd.f32 %v5838, %v5908
        %v5917 = vadd.f32 %v5839, %v5909
        %v5918 = vadd.f32 %v5840, %v5910
        %v5919 = vadd.f32 %v5841, %v5911
        %v5920 = vadd.f32 %v5842, %v5912
        %v5921 = vadd.f32 %v5843, %v5913
        %v5922 = vadd.f32 %v5844, %v5914
        %v5923 = vadd.f32 %v5845, %v5915
        %5924 = vrot.lane.b32.xlu0 %v5240, 56
        %v5925 = vpop.permute.xlu0 %5924
        %5926 = vrot.lane.b32.xlu0 %v5242, 56
        %v5927 = vpop.permute.xlu0 %5926
        %5928 = vrot.lane.b32.xlu0 %v5244, 56
        %v5929 = vpop.permute.xlu0 %5928
        %5930 = vrot.lane.b32.xlu0 %v5246, 56
        %v5931 = vpop.permute.xlu0 %5930
        %5932 = vrot.lane.b32.xlu0 %v5241, 56
        %v5933 = vpop.permute.xlu0 %5932
        %5934 = vrot.lane.b32.xlu0 %v5243, 56
        %v5935 = vpop.permute.xlu0 %5934
        %5936 = vrot.lane.b32.xlu0 %v5245, 56
        %v5937 = vpop.permute.xlu0 %5936
        %5938 = vrot.lane.b32.xlu0 %v5247, 56
        %v5939 = vpop.permute.xlu0 %5938
        %vm5940 = vcmp.lt.s32.totalorder %v948, 56
        %v5941 = vsel %vm5940, %v5925, %v5933
        %v5942 = vsel %vm5940, %v5927, %v5935
        %v5943 = vsel %vm5940, %v5929, %v5937
        %v5944 = vsel %vm5940, %v5931, %v5939
        %v5945 = vsel %vm5940, %v5933, %v5925
        %v5946 = vsel %vm5940, %v5935, %v5927
        %v5947 = vsel %vm5940, %v5937, %v5929
        %v5948 = vsel %vm5940, %v5939, %v5931
        %s5949 = scalar_lea.vmem %s12, 17
        %v5950 = vld [vmem:[%s5949] ss:$8 sm:$0x3]
        %v5952 = vlaneseq
        %v5953 = vshrl.u32 %v5952, 7
        %v5954 = vsub.s32 0, %v5953
        %v5955 = vrot.slane %v5950, %v5954
        %v5956 = vlaneseq
        %v5957 = vshrl.u32 %v5956, 7
        %v5958 = vsub.s32 1, %v5957
        %v5959 = vrot.slane %v5950, %v5958
        %v5962 = vmul.f32 %v5945, %v5955
        %v5963 = vmul.f32 %v5941, %v5959
        %v5964 = vmul.f32 %v5946, %v5955
        %v5965 = vmul.f32 %v5942, %v5959
        %v5966 = vmul.f32 %v5947, %v5955
        %v5967 = vmul.f32 %v5943, %v5959
        %v5968 = vmul.f32 %v5948, %v5955
        %v5969 = vmul.f32 %v5944, %v5959
        %5970 = vset.pattern.permute.xlu0 9
        %5971 = vperm.xlu0 %5970, %v5293
        %v5972 = vpop.permute.xlu0 %5971
        %5974 = vset.pattern.permute.xlu0 9
        %5975 = vperm.xlu0 %5974, %v5294
        %v5976 = vpop.permute.xlu0 %5975
        %5978 = vset.pattern.permute.xlu0 9
        %5979 = vperm.xlu0 %5978, %v5295
        %v5980 = vpop.permute.xlu0 %5979
        %5982 = vset.pattern.permute.xlu0 9
        %5983 = vperm.xlu0 %5982, %v5296
        %v5984 = vpop.permute.xlu0 %5983
        %v5986 = vmul.f32 %v5972, %v5962
        %v5987 = vmul.f32 %v5972, %v5963
        %v5988 = vmul.f32 %v5976, %v5964
        %v5989 = vmul.f32 %v5976, %v5965
        %v5990 = vmul.f32 %v5980, %v5966
        %v5991 = vmul.f32 %v5980, %v5967
        %v5992 = vmul.f32 %v5984, %v5968
        %v5993 = vmul.f32 %v5984, %v5969
        %v5994 = vadd.f32 %v5916, %v5986
        %v5995 = vadd.f32 %v5917, %v5987
        %v5996 = vadd.f32 %v5918, %v5988
        %v5997 = vadd.f32 %v5919, %v5989
        %v5998 = vadd.f32 %v5920, %v5990
        %v5999 = vadd.f32 %v5921, %v5991
        %v6000 = vadd.f32 %v5922, %v5992
        %v6001 = vadd.f32 %v5923, %v5993
        %s6002 = scalar_lea.vmem %s12, 18
        %v6003 = vld [vmem:[%s6002] ss:$8 sm:$0x3]
        %v6005 = vlaneseq
        %v6006 = vshrl.u32 %v6005, 7
        %v6007 = vsub.s32 0, %v6006
        %v6008 = vrot.slane %v6003, %v6007
        %v6009 = vlaneseq
        %v6010 = vshrl.u32 %v6009, 7
        %v6011 = vsub.s32 1, %v6010
        %v6012 = vrot.slane %v6003, %v6011
        %v6015 = vmul.f32 %v5269, %v6008
        %v6016 = vmul.f32 %v5265, %v6012
        %v6017 = vmul.f32 %v5270, %v6008
        %v6018 = vmul.f32 %v5266, %v6012
        %v6019 = vmul.f32 %v5271, %v6008
        %v6020 = vmul.f32 %v5267, %v6012
        %v6021 = vmul.f32 %v5272, %v6008
        %v6022 = vmul.f32 %v5268, %v6012
        %6023 = vset.pattern.permute.xlu0 10
        %6024 = vperm.xlu0 %6023, %v5293
        %v6025 = vpop.permute.xlu0 %6024
        %6027 = vset.pattern.permute.xlu0 10
        %6028 = vperm.xlu0 %6027, %v5294
        %v6029 = vpop.permute.xlu0 %6028
        %6031 = vset.pattern.permute.xlu0 10
        %6032 = vperm.xlu0 %6031, %v5295
        %v6033 = vpop.permute.xlu0 %6032
        %6035 = vset.pattern.permute.xlu0 10
        %6036 = vperm.xlu0 %6035, %v5296
        %v6037 = vpop.permute.xlu0 %6036
        %v6039 = vmul.f32 %v6025, %v6015
        %v6040 = vmul.f32 %v6025, %v6016
        %v6041 = vmul.f32 %v6029, %v6017
        %v6042 = vmul.f32 %v6029, %v6018
        %v6043 = vmul.f32 %v6033, %v6019
        %v6044 = vmul.f32 %v6033, %v6020
        %v6045 = vmul.f32 %v6037, %v6021
        %v6046 = vmul.f32 %v6037, %v6022
        %v6047 = vadd.f32 %v5994, %v6039
        %v6048 = vadd.f32 %v5995, %v6040
        %v6049 = vadd.f32 %v5996, %v6041
        %v6050 = vadd.f32 %v5997, %v6042
        %v6051 = vadd.f32 %v5998, %v6043
        %v6052 = vadd.f32 %v5999, %v6044
        %v6053 = vadd.f32 %v6000, %v6045
        %v6054 = vadd.f32 %v6001, %v6046
        %s6055 = scalar_lea.vmem %s12, 19
        %v6056 = vld [vmem:[%s6055] ss:$8 sm:$0x3]
        %v6058 = vlaneseq
        %v6059 = vshrl.u32 %v6058, 7
        %v6060 = vsub.s32 0, %v6059
        %v6061 = vrot.slane %v6056, %v6060
        %v6062 = vlaneseq
        %v6063 = vshrl.u32 %v6062, 7
        %v6064 = vsub.s32 1, %v6063
        %v6065 = vrot.slane %v6056, %v6064
        %v6068 = vmul.f32 %v5346, %v6061
        %v6069 = vmul.f32 %v5342, %v6065
        %v6070 = vmul.f32 %v5347, %v6061
        %v6071 = vmul.f32 %v5343, %v6065
        %v6072 = vmul.f32 %v5348, %v6061
        %v6073 = vmul.f32 %v5344, %v6065
        %v6074 = vmul.f32 %v5349, %v6061
        %v6075 = vmul.f32 %v5345, %v6065
        %6076 = vset.pattern.permute.xlu0 11
        %6077 = vperm.xlu0 %6076, %v5293
        %v6078 = vpop.permute.xlu0 %6077
        %6080 = vset.pattern.permute.xlu0 11
        %6081 = vperm.xlu0 %6080, %v5294
        %v6082 = vpop.permute.xlu0 %6081
        %6084 = vset.pattern.permute.xlu0 11
        %6085 = vperm.xlu0 %6084, %v5295
        %v6086 = vpop.permute.xlu0 %6085
        %6088 = vset.pattern.permute.xlu0 11
        %6089 = vperm.xlu0 %6088, %v5296
        %v6090 = vpop.permute.xlu0 %6089
        %v6092 = vmul.f32 %v6078, %v6068
        %v6093 = vmul.f32 %v6078, %v6069
        %v6094 = vmul.f32 %v6082, %v6070
        %v6095 = vmul.f32 %v6082, %v6071
        %v6096 = vmul.f32 %v6086, %v6072
        %v6097 = vmul.f32 %v6086, %v6073
        %v6098 = vmul.f32 %v6090, %v6074
        %v6099 = vmul.f32 %v6090, %v6075
        %v6100 = vadd.f32 %v6047, %v6092
        %v6101 = vadd.f32 %v6048, %v6093
        %v6102 = vadd.f32 %v6049, %v6094
        %v6103 = vadd.f32 %v6050, %v6095
        %v6104 = vadd.f32 %v6051, %v6096
        %v6105 = vadd.f32 %v6052, %v6097
        %v6106 = vadd.f32 %v6053, %v6098
        %v6107 = vadd.f32 %v6054, %v6099
        %6108 = vset.pattern.permute.xlu0 12
        %6109 = vperm.xlu0 %6108, %v5293
        %v6110 = vpop.permute.xlu0 %6109
        %6112 = vset.pattern.permute.xlu0 12
        %6113 = vperm.xlu0 %6112, %v5294
        %v6114 = vpop.permute.xlu0 %6113
        %6116 = vset.pattern.permute.xlu0 12
        %6117 = vperm.xlu0 %6116, %v5295
        %v6118 = vpop.permute.xlu0 %6117
        %6120 = vset.pattern.permute.xlu0 12
        %6121 = vperm.xlu0 %6120, %v5296
        %v6122 = vpop.permute.xlu0 %6121
        %v6124 = vmul.f32 %v6110, %v5240
        %v6125 = vmul.f32 %v6110, %v5241
        %v6126 = vmul.f32 %v6114, %v5242
        %v6127 = vmul.f32 %v6114, %v5243
        %v6128 = vmul.f32 %v6118, %v5244
        %v6129 = vmul.f32 %v6118, %v5245
        %v6130 = vmul.f32 %v6122, %v5246
        %v6131 = vmul.f32 %v6122, %v5247
        %v6132 = vadd.f32 %v6100, %v6124
        %v6133 = vadd.f32 %v6101, %v6125
        %v6134 = vadd.f32 %v6102, %v6126
        %v6135 = vadd.f32 %v6103, %v6127
        %v6136 = vadd.f32 %v6104, %v6128
        %v6137 = vadd.f32 %v6105, %v6129
        %v6138 = vadd.f32 %v6106, %v6130
        %v6139 = vadd.f32 %v6107, %v6131
        %s6140 = scalar_lea.vmem %s12, 21
        %v6141 = vld [vmem:[%s6140] ss:$8 sm:$0x3]
        %v6143 = vlaneseq
        %v6144 = vshrl.u32 %v6143, 7
        %v6145 = vsub.s32 0, %v6144
        %v6146 = vrot.slane %v6141, %v6145
        %v6147 = vlaneseq
        %v6148 = vshrl.u32 %v6147, 7
        %v6149 = vsub.s32 1, %v6148
        %v6150 = vrot.slane %v6141, %v6149
        %v6153 = vmul.f32 %v5473, %v6146
        %v6154 = vmul.f32 %v5477, %v6150
        %v6155 = vmul.f32 %v5474, %v6146
        %v6156 = vmul.f32 %v5478, %v6150
        %v6157 = vmul.f32 %v5475, %v6146
        %v6158 = vmul.f32 %v5479, %v6150
        %v6159 = vmul.f32 %v5476, %v6146
        %v6160 = vmul.f32 %v5480, %v6150
        %6161 = vset.pattern.permute.xlu0 13
        %6162 = vperm.xlu0 %6161, %v5293
        %v6163 = vpop.permute.xlu0 %6162
        %6165 = vset.pattern.permute.xlu0 13
        %6166 = vperm.xlu0 %6165, %v5294
        %v6167 = vpop.permute.xlu0 %6166
        %6169 = vset.pattern.permute.xlu0 13
        %6170 = vperm.xlu0 %6169, %v5295
        %v6171 = vpop.permute.xlu0 %6170
        %6173 = vset.pattern.permute.xlu0 13
        %6174 = vperm.xlu0 %6173, %v5296
        %v6175 = vpop.permute.xlu0 %6174
        %v6177 = vmul.f32 %v6163, %v6153
        %v6178 = vmul.f32 %v6163, %v6154
        %v6179 = vmul.f32 %v6167, %v6155
        %v6180 = vmul.f32 %v6167, %v6156
        %v6181 = vmul.f32 %v6171, %v6157
        %v6182 = vmul.f32 %v6171, %v6158
        %v6183 = vmul.f32 %v6175, %v6159
        %v6184 = vmul.f32 %v6175, %v6160
        %v6185 = vadd.f32 %v6132, %v6177
        %v6186 = vadd.f32 %v6133, %v6178
        %v6187 = vadd.f32 %v6134, %v6179
        %v6188 = vadd.f32 %v6135, %v6180
        %v6189 = vadd.f32 %v6136, %v6181
        %v6190 = vadd.f32 %v6137, %v6182
        %v6191 = vadd.f32 %v6138, %v6183
        %v6192 = vadd.f32 %v6139, %v6184
        %s6193 = scalar_lea.vmem %s12, 22
        %v6194 = vld [vmem:[%s6193] ss:$8 sm:$0x3]
        %v6196 = vlaneseq
        %v6197 = vshrl.u32 %v6196, 7
        %v6198 = vsub.s32 0, %v6197
        %v6199 = vrot.slane %v6194, %v6198
        %v6200 = vlaneseq
        %v6201 = vshrl.u32 %v6200, 7
        %v6202 = vsub.s32 1, %v6201
        %v6203 = vrot.slane %v6194, %v6202
        %v6206 = vmul.f32 %v5551, %v6199
        %v6207 = vmul.f32 %v5555, %v6203
        %v6208 = vmul.f32 %v5552, %v6199
        %v6209 = vmul.f32 %v5556, %v6203
        %v6210 = vmul.f32 %v5553, %v6199
        %v6211 = vmul.f32 %v5557, %v6203
        %v6212 = vmul.f32 %v5554, %v6199
        %v6213 = vmul.f32 %v5558, %v6203
        %6214 = vset.pattern.permute.xlu0 14
        %6215 = vperm.xlu0 %6214, %v5293
        %v6216 = vpop.permute.xlu0 %6215
        %6218 = vset.pattern.permute.xlu0 14
        %6219 = vperm.xlu0 %6218, %v5294
        %v6220 = vpop.permute.xlu0 %6219
        %6222 = vset.pattern.permute.xlu0 14
        %6223 = vperm.xlu0 %6222, %v5295
        %v6224 = vpop.permute.xlu0 %6223
        %6226 = vset.pattern.permute.xlu0 14
        %6227 = vperm.xlu0 %6226, %v5296
        %v6228 = vpop.permute.xlu0 %6227
        %v6230 = vmul.f32 %v6216, %v6206
        %v6231 = vmul.f32 %v6216, %v6207
        %v6232 = vmul.f32 %v6220, %v6208
        %v6233 = vmul.f32 %v6220, %v6209
        %v6234 = vmul.f32 %v6224, %v6210
        %v6235 = vmul.f32 %v6224, %v6211
        %v6236 = vmul.f32 %v6228, %v6212
        %v6237 = vmul.f32 %v6228, %v6213
        %v6238 = vadd.f32 %v6185, %v6230
        %v6239 = vadd.f32 %v6186, %v6231
        %v6240 = vadd.f32 %v6187, %v6232
        %v6241 = vadd.f32 %v6188, %v6233
        %v6242 = vadd.f32 %v6189, %v6234
        %v6243 = vadd.f32 %v6190, %v6235
        %v6244 = vadd.f32 %v6191, %v6236
        %v6245 = vadd.f32 %v6192, %v6237
        %s6246 = scalar_lea.vmem %s12, 23
        %v6247 = vld [vmem:[%s6246] ss:$8 sm:$0x3]
        %v6249 = vlaneseq
        %v6250 = vshrl.u32 %v6249, 7
        %v6251 = vsub.s32 0, %v6250
        %v6252 = vrot.slane %v6247, %v6251
        %v6253 = vlaneseq
        %v6254 = vshrl.u32 %v6253, 7
        %v6255 = vsub.s32 1, %v6254
        %v6256 = vrot.slane %v6247, %v6255
        %v6259 = vmul.f32 %v5629, %v6252
        %v6260 = vmul.f32 %v5633, %v6256
        %v6261 = vmul.f32 %v5630, %v6252
        %v6262 = vmul.f32 %v5634, %v6256
        %v6263 = vmul.f32 %v5631, %v6252
        %v6264 = vmul.f32 %v5635, %v6256
        %v6265 = vmul.f32 %v5632, %v6252
        %v6266 = vmul.f32 %v5636, %v6256
        %6267 = vset.pattern.permute.xlu0 15
        %6268 = vperm.xlu0 %6267, %v5293
        %v6269 = vpop.permute.xlu0 %6268
        %6271 = vset.pattern.permute.xlu0 15
        %6272 = vperm.xlu0 %6271, %v5294
        %v6273 = vpop.permute.xlu0 %6272
        %6275 = vset.pattern.permute.xlu0 15
        %6276 = vperm.xlu0 %6275, %v5295
        %v6277 = vpop.permute.xlu0 %6276
        %6279 = vset.pattern.permute.xlu0 15
        %6280 = vperm.xlu0 %6279, %v5296
        %v6281 = vpop.permute.xlu0 %6280
        %v6283 = vmul.f32 %v6269, %v6259
        %v6284 = vmul.f32 %v6269, %v6260
        %v6285 = vmul.f32 %v6273, %v6261
        %v6286 = vmul.f32 %v6273, %v6262
        %v6287 = vmul.f32 %v6277, %v6263
        %v6288 = vmul.f32 %v6277, %v6264
        %v6289 = vmul.f32 %v6281, %v6265
        %v6290 = vmul.f32 %v6281, %v6266
        %v6291 = vadd.f32 %v6238, %v6283
        %v6292 = vadd.f32 %v6239, %v6284
        %v6293 = vadd.f32 %v6240, %v6285
        %v6294 = vadd.f32 %v6241, %v6286
        %v6295 = vadd.f32 %v6242, %v6287
        %v6296 = vadd.f32 %v6243, %v6288
        %v6297 = vadd.f32 %v6244, %v6289
        %v6298 = vadd.f32 %v6245, %v6290
        %s6299 = scalar_lea.vmem %s12, 32
        %v6300 = vld [vmem:[%s6299] ss:$8 sm:$0x3]
        %v6302 = vlaneseq
        %v6303 = vshrl.u32 %v6302, 7
        %v6304 = vsub.s32 0, %v6303
        %v6305 = vrot.slane %v6300, %v6304
        %v6306 = vlaneseq
        %v6307 = vshrl.u32 %v6306, 7
        %v6308 = vsub.s32 1, %v6307
        %v6309 = vrot.slane %v6300, %v6308
        %v6312 = vmul.f32 %v5707, %v6305
        %v6313 = vmul.f32 %v5711, %v6309
        %v6314 = vmul.f32 %v5708, %v6305
        %v6315 = vmul.f32 %v5712, %v6309
        %v6316 = vmul.f32 %v5709, %v6305
        %v6317 = vmul.f32 %v5713, %v6309
        %v6318 = vmul.f32 %v5710, %v6305
        %v6319 = vmul.f32 %v5714, %v6309
        %6320 = vset.pattern.permute.xlu0 16
        %6321 = vperm.xlu0 %6320, %v5293
        %v6322 = vpop.permute.xlu0 %6321
        %6324 = vset.pattern.permute.xlu0 16
        %6325 = vperm.xlu0 %6324, %v5294
        %v6326 = vpop.permute.xlu0 %6325
        %6328 = vset.pattern.permute.xlu0 16
        %6329 = vperm.xlu0 %6328, %v5295
        %v6330 = vpop.permute.xlu0 %6329
        %6332 = vset.pattern.permute.xlu0 16
        %6333 = vperm.xlu0 %6332, %v5296
        %v6334 = vpop.permute.xlu0 %6333
        %v6336 = vmul.f32 %v6322, %v6312
        %v6337 = vmul.f32 %v6322, %v6313
        %v6338 = vmul.f32 %v6326, %v6314
        %v6339 = vmul.f32 %v6326, %v6315
        %v6340 = vmul.f32 %v6330, %v6316
        %v6341 = vmul.f32 %v6330, %v6317
        %v6342 = vmul.f32 %v6334, %v6318
        %v6343 = vmul.f32 %v6334, %v6319
        %v6344 = vadd.f32 %v6291, %v6336
        %v6345 = vadd.f32 %v6292, %v6337
        %v6346 = vadd.f32 %v6293, %v6338
        %v6347 = vadd.f32 %v6294, %v6339
        %v6348 = vadd.f32 %v6295, %v6340
        %v6349 = vadd.f32 %v6296, %v6341
        %v6350 = vadd.f32 %v6297, %v6342
        %v6351 = vadd.f32 %v6298, %v6343
        %s6352 = scalar_lea.vmem %s12, 33
        %v6353 = vld [vmem:[%s6352] ss:$8 sm:$0x3]
        %v6355 = vlaneseq
        %v6356 = vshrl.u32 %v6355, 7
        %v6357 = vsub.s32 0, %v6356
        %v6358 = vrot.slane %v6353, %v6357
        %v6359 = vlaneseq
        %v6360 = vshrl.u32 %v6359, 7
        %v6361 = vsub.s32 1, %v6360
        %v6362 = vrot.slane %v6353, %v6361
        %v6365 = vmul.f32 %v5785, %v6358
        %v6366 = vmul.f32 %v5789, %v6362
        %v6367 = vmul.f32 %v5786, %v6358
        %v6368 = vmul.f32 %v5790, %v6362
        %v6369 = vmul.f32 %v5787, %v6358
        %v6370 = vmul.f32 %v5791, %v6362
        %v6371 = vmul.f32 %v5788, %v6358
        %v6372 = vmul.f32 %v5792, %v6362
        %6373 = vset.pattern.permute.xlu0 17
        %6374 = vperm.xlu0 %6373, %v5293
        %v6375 = vpop.permute.xlu0 %6374
        %6377 = vset.pattern.permute.xlu0 17
        %6378 = vperm.xlu0 %6377, %v5294
        %v6379 = vpop.permute.xlu0 %6378
        %6381 = vset.pattern.permute.xlu0 17
        %6382 = vperm.xlu0 %6381, %v5295
        %v6383 = vpop.permute.xlu0 %6382
        %6385 = vset.pattern.permute.xlu0 17
        %6386 = vperm.xlu0 %6385, %v5296
        %v6387 = vpop.permute.xlu0 %6386
        %v6389 = vmul.f32 %v6375, %v6365
        %v6390 = vmul.f32 %v6375, %v6366
        %v6391 = vmul.f32 %v6379, %v6367
        %v6392 = vmul.f32 %v6379, %v6368
        %v6393 = vmul.f32 %v6383, %v6369
        %v6394 = vmul.f32 %v6383, %v6370
        %v6395 = vmul.f32 %v6387, %v6371
        %v6396 = vmul.f32 %v6387, %v6372
        %v6397 = vadd.f32 %v6344, %v6389
        %v6398 = vadd.f32 %v6345, %v6390
        %v6399 = vadd.f32 %v6346, %v6391
        %v6400 = vadd.f32 %v6347, %v6392
        %v6401 = vadd.f32 %v6348, %v6393
        %v6402 = vadd.f32 %v6349, %v6394
        %v6403 = vadd.f32 %v6350, %v6395
        %v6404 = vadd.f32 %v6351, %v6396
        %s6405 = scalar_lea.vmem %s12, 34
        %v6406 = vld [vmem:[%s6405] ss:$8 sm:$0x3]
        %v6408 = vlaneseq
        %v6409 = vshrl.u32 %v6408, 7
        %v6410 = vsub.s32 0, %v6409
        %v6411 = vrot.slane %v6406, %v6410
        %v6412 = vlaneseq
        %v6413 = vshrl.u32 %v6412, 7
        %v6414 = vsub.s32 1, %v6413
        %v6415 = vrot.slane %v6406, %v6414
        %v6418 = vmul.f32 %v5863, %v6411
        %v6419 = vmul.f32 %v5867, %v6415
        %v6420 = vmul.f32 %v5864, %v6411
        %v6421 = vmul.f32 %v5868, %v6415
        %v6422 = vmul.f32 %v5865, %v6411
        %v6423 = vmul.f32 %v5869, %v6415
        %v6424 = vmul.f32 %v5866, %v6411
        %v6425 = vmul.f32 %v5870, %v6415
        %6426 = vset.pattern.permute.xlu0 18
        %6427 = vperm.xlu0 %6426, %v5293
        %v6428 = vpop.permute.xlu0 %6427
        %6430 = vset.pattern.permute.xlu0 18
        %6431 = vperm.xlu0 %6430, %v5294
        %v6432 = vpop.permute.xlu0 %6431
        %6434 = vset.pattern.permute.xlu0 18
        %6435 = vperm.xlu0 %6434, %v5295
        %v6436 = vpop.permute.xlu0 %6435
        %6438 = vset.pattern.permute.xlu0 18
        %6439 = vperm.xlu0 %6438, %v5296
        %v6440 = vpop.permute.xlu0 %6439
        %v6442 = vmul.f32 %v6428, %v6418
        %v6443 = vmul.f32 %v6428, %v6419
        %v6444 = vmul.f32 %v6432, %v6420
        %v6445 = vmul.f32 %v6432, %v6421
        %v6446 = vmul.f32 %v6436, %v6422
        %v6447 = vmul.f32 %v6436, %v6423
        %v6448 = vmul.f32 %v6440, %v6424
        %v6449 = vmul.f32 %v6440, %v6425
        %v6450 = vadd.f32 %v6397, %v6442
        %v6451 = vadd.f32 %v6398, %v6443
        %v6452 = vadd.f32 %v6399, %v6444
        %v6453 = vadd.f32 %v6400, %v6445
        %v6454 = vadd.f32 %v6401, %v6446
        %v6455 = vadd.f32 %v6402, %v6447
        %v6456 = vadd.f32 %v6403, %v6448
        %v6457 = vadd.f32 %v6404, %v6449
        %s6458 = scalar_lea.vmem %s12, 35
        %v6459 = vld [vmem:[%s6458] ss:$8 sm:$0x3]
        %v6461 = vlaneseq
        %v6462 = vshrl.u32 %v6461, 7
        %v6463 = vsub.s32 0, %v6462
        %v6464 = vrot.slane %v6459, %v6463
        %v6465 = vlaneseq
        %v6466 = vshrl.u32 %v6465, 7
        %v6467 = vsub.s32 1, %v6466
        %v6468 = vrot.slane %v6459, %v6467
        %v6471 = vmul.f32 %v5941, %v6464
        %v6472 = vmul.f32 %v5945, %v6468
        %v6473 = vmul.f32 %v5942, %v6464
        %v6474 = vmul.f32 %v5946, %v6468
        %v6475 = vmul.f32 %v5943, %v6464
        %v6476 = vmul.f32 %v5947, %v6468
        %v6477 = vmul.f32 %v5944, %v6464
        %v6478 = vmul.f32 %v5948, %v6468
        %6479 = vset.pattern.permute.xlu0 19
        %6480 = vperm.xlu0 %6479, %v5293
        %v6481 = vpop.permute.xlu0 %6480
        %6483 = vset.pattern.permute.xlu0 19
        %6484 = vperm.xlu0 %6483, %v5294
        %v6485 = vpop.permute.xlu0 %6484
        %6487 = vset.pattern.permute.xlu0 19
        %6488 = vperm.xlu0 %6487, %v5295
        %v6489 = vpop.permute.xlu0 %6488
        %6491 = vset.pattern.permute.xlu0 19
        %6492 = vperm.xlu0 %6491, %v5296
        %v6493 = vpop.permute.xlu0 %6492
        %v6495 = vmul.f32 %v6481, %v6471
        %v6496 = vmul.f32 %v6481, %v6472
        %v6497 = vmul.f32 %v6485, %v6473
        %v6498 = vmul.f32 %v6485, %v6474
        %v6499 = vmul.f32 %v6489, %v6475
        %v6500 = vmul.f32 %v6489, %v6476
        %v6501 = vmul.f32 %v6493, %v6477
        %v6502 = vmul.f32 %v6493, %v6478
        %v6503 = vadd.f32 %v6450, %v6495
        %v6504 = vadd.f32 %v6451, %v6496
        %v6505 = vadd.f32 %v6452, %v6497
        %v6506 = vadd.f32 %v6453, %v6498
        %v6507 = vadd.f32 %v6454, %v6499
        %v6508 = vadd.f32 %v6455, %v6500
        %v6509 = vadd.f32 %v6456, %v6501
        %v6510 = vadd.f32 %v6457, %v6502
        %s6511 = scalar_lea.vmem %s12, 36
        %v6512 = vld [vmem:[%s6511] ss:$8 sm:$0x3]
        %v6514 = vlaneseq
        %v6515 = vshrl.u32 %v6514, 7
        %v6516 = vsub.s32 0, %v6515
        %v6517 = vrot.slane %v6512, %v6516
        %v6518 = vlaneseq
        %v6519 = vshrl.u32 %v6518, 7
        %v6520 = vsub.s32 1, %v6519
        %v6521 = vrot.slane %v6512, %v6520
        %v6524 = vmul.f32 %v5265, %v6517
        %v6525 = vmul.f32 %v5269, %v6521
        %v6526 = vmul.f32 %v5266, %v6517
        %v6527 = vmul.f32 %v5270, %v6521
        %v6528 = vmul.f32 %v5267, %v6517
        %v6529 = vmul.f32 %v5271, %v6521
        %v6530 = vmul.f32 %v5268, %v6517
        %v6531 = vmul.f32 %v5272, %v6521
        %6532 = vset.pattern.permute.xlu0 20
        %6533 = vperm.xlu0 %6532, %v5293
        %v6534 = vpop.permute.xlu0 %6533
        %6536 = vset.pattern.permute.xlu0 20
        %6537 = vperm.xlu0 %6536, %v5294
        %v6538 = vpop.permute.xlu0 %6537
        %6540 = vset.pattern.permute.xlu0 20
        %6541 = vperm.xlu0 %6540, %v5295
        %v6542 = vpop.permute.xlu0 %6541
        %6544 = vset.pattern.permute.xlu0 20
        %6545 = vperm.xlu0 %6544, %v5296
        %v6546 = vpop.permute.xlu0 %6545
        %v6548 = vmul.f32 %v6534, %v6524
        %v6549 = vmul.f32 %v6534, %v6525
        %v6550 = vmul.f32 %v6538, %v6526
        %v6551 = vmul.f32 %v6538, %v6527
        %v6552 = vmul.f32 %v6542, %v6528
        %v6553 = vmul.f32 %v6542, %v6529
        %v6554 = vmul.f32 %v6546, %v6530
        %v6555 = vmul.f32 %v6546, %v6531
        %v6556 = vadd.f32 %v6503, %v6548
        %v6557 = vadd.f32 %v6504, %v6549
        %v6558 = vadd.f32 %v6505, %v6550
        %v6559 = vadd.f32 %v6506, %v6551
        %v6560 = vadd.f32 %v6507, %v6552
        %v6561 = vadd.f32 %v6508, %v6553
        %v6562 = vadd.f32 %v6509, %v6554
        %v6563 = vadd.f32 %v6510, %v6555
        %s6564 = scalar_lea.vmem %s12, 37
        %v6565 = vld [vmem:[%s6564] ss:$8 sm:$0x3]
        %v6567 = vlaneseq
        %v6568 = vshrl.u32 %v6567, 7
        %v6569 = vsub.s32 0, %v6568
        %v6570 = vrot.slane %v6565, %v6569
        %v6571 = vlaneseq
        %v6572 = vshrl.u32 %v6571, 7
        %v6573 = vsub.s32 1, %v6572
        %v6574 = vrot.slane %v6565, %v6573
        %v6577 = vmul.f32 %v5342, %v6570
        %v6578 = vmul.f32 %v5346, %v6574
        %v6579 = vmul.f32 %v5343, %v6570
        %v6580 = vmul.f32 %v5347, %v6574
        %v6581 = vmul.f32 %v5344, %v6570
        %v6582 = vmul.f32 %v5348, %v6574
        %v6583 = vmul.f32 %v5345, %v6570
        %v6584 = vmul.f32 %v5349, %v6574
        %6585 = vset.pattern.permute.xlu0 21
        %6586 = vperm.xlu0 %6585, %v5293
        %v6587 = vpop.permute.xlu0 %6586
        %6589 = vset.pattern.permute.xlu0 21
        %6590 = vperm.xlu0 %6589, %v5294
        %v6591 = vpop.permute.xlu0 %6590
        %6593 = vset.pattern.permute.xlu0 21
        %6594 = vperm.xlu0 %6593, %v5295
        %v6595 = vpop.permute.xlu0 %6594
        %6597 = vset.pattern.permute.xlu0 21
        %6598 = vperm.xlu0 %6597, %v5296
        %v6599 = vpop.permute.xlu0 %6598
        %v6601 = vmul.f32 %v6587, %v6577
        %v6602 = vmul.f32 %v6587, %v6578
        %v6603 = vmul.f32 %v6591, %v6579
        %v6604 = vmul.f32 %v6591, %v6580
        %v6605 = vmul.f32 %v6595, %v6581
        %v6606 = vmul.f32 %v6595, %v6582
        %v6607 = vmul.f32 %v6599, %v6583
        %v6608 = vmul.f32 %v6599, %v6584
        %v6609 = vadd.f32 %v6556, %v6601
        %v6610 = vadd.f32 %v6557, %v6602
        %v6611 = vadd.f32 %v6558, %v6603
        %v6612 = vadd.f32 %v6559, %v6604
        %v6613 = vadd.f32 %v6560, %v6605
        %v6614 = vadd.f32 %v6561, %v6606
        %v6615 = vadd.f32 %v6562, %v6607
        %v6616 = vadd.f32 %v6563, %v6608
        %s6617 = scalar_lea.vmem %s12, 38
        %v6618 = vld [vmem:[%s6617] ss:$8 sm:$0x3]
        %v6620 = vlaneseq
        %v6621 = vshrl.u32 %v6620, 7
        %v6622 = vsub.s32 0, %v6621
        %v6623 = vrot.slane %v6618, %v6622
        %v6624 = vlaneseq
        %v6625 = vshrl.u32 %v6624, 7
        %v6626 = vsub.s32 1, %v6625
        %v6627 = vrot.slane %v6618, %v6626
        %v6630 = vmul.f32 %v5241, %v6623
        %v6631 = vmul.f32 %v5240, %v6627
        %v6632 = vmul.f32 %v5243, %v6623
        %v6633 = vmul.f32 %v5242, %v6627
        %v6634 = vmul.f32 %v5245, %v6623
        %v6635 = vmul.f32 %v5244, %v6627
        %v6636 = vmul.f32 %v5247, %v6623
        %v6637 = vmul.f32 %v5246, %v6627
        %6638 = vset.pattern.permute.xlu0 22
        %6639 = vperm.xlu0 %6638, %v5293
        %v6640 = vpop.permute.xlu0 %6639
        %6642 = vset.pattern.permute.xlu0 22
        %6643 = vperm.xlu0 %6642, %v5294
        %v6644 = vpop.permute.xlu0 %6643
        %6646 = vset.pattern.permute.xlu0 22
        %6647 = vperm.xlu0 %6646, %v5295
        %v6648 = vpop.permute.xlu0 %6647
        %6650 = vset.pattern.permute.xlu0 22
        %6651 = vperm.xlu0 %6650, %v5296
        %v6652 = vpop.permute.xlu0 %6651
        %v6654 = vmul.f32 %v6640, %v6630
        %v6655 = vmul.f32 %v6640, %v6631
        %v6656 = vmul.f32 %v6644, %v6632
        %v6657 = vmul.f32 %v6644, %v6633
        %v6658 = vmul.f32 %v6648, %v6634
        %v6659 = vmul.f32 %v6648, %v6635
        %v6660 = vmul.f32 %v6652, %v6636
        %v6661 = vmul.f32 %v6652, %v6637
        %v6662 = vadd.f32 %v6609, %v6654
        %v6663 = vadd.f32 %v6610, %v6655
        %v6664 = vadd.f32 %v6611, %v6656
        %v6665 = vadd.f32 %v6612, %v6657
        %v6666 = vadd.f32 %v6613, %v6658
        %v6667 = vadd.f32 %v6614, %v6659
        %v6668 = vadd.f32 %v6615, %v6660
        %v6669 = vadd.f32 %v6616, %v6661
        %s6670 = scalar_lea.vmem %s12, 39
        %v6671 = vld [vmem:[%s6670] ss:$8 sm:$0x3]
        %v6673 = vlaneseq
        %v6674 = vshrl.u32 %v6673, 7
        %v6675 = vsub.s32 0, %v6674
        %v6676 = vrot.slane %v6671, %v6675
        %v6677 = vlaneseq
        %v6678 = vshrl.u32 %v6677, 7
        %v6679 = vsub.s32 1, %v6678
        %v6680 = vrot.slane %v6671, %v6679
        %v6683 = vmul.f32 %v5477, %v6676
        %v6684 = vmul.f32 %v5473, %v6680
        %v6685 = vmul.f32 %v5478, %v6676
        %v6686 = vmul.f32 %v5474, %v6680
        %v6687 = vmul.f32 %v5479, %v6676
        %v6688 = vmul.f32 %v5475, %v6680
        %v6689 = vmul.f32 %v5480, %v6676
        %v6690 = vmul.f32 %v5476, %v6680
        %6691 = vset.pattern.permute.xlu0 23
        %6692 = vperm.xlu0 %6691, %v5293
        %v6693 = vpop.permute.xlu0 %6692
        %6695 = vset.pattern.permute.xlu0 23
        %6696 = vperm.xlu0 %6695, %v5294
        %v6697 = vpop.permute.xlu0 %6696
        %6699 = vset.pattern.permute.xlu0 23
        %6700 = vperm.xlu0 %6699, %v5295
        %v6701 = vpop.permute.xlu0 %6700
        %6703 = vset.pattern.permute.xlu0 23
        %6704 = vperm.xlu0 %6703, %v5296
        %v6705 = vpop.permute.xlu0 %6704
        %v6707 = vmul.f32 %v6693, %v6683
        %v6708 = vmul.f32 %v6693, %v6684
        %v6709 = vmul.f32 %v6697, %v6685
        %v6710 = vmul.f32 %v6697, %v6686
        %v6711 = vmul.f32 %v6701, %v6687
        %v6712 = vmul.f32 %v6701, %v6688
        %v6713 = vmul.f32 %v6705, %v6689
        %v6714 = vmul.f32 %v6705, %v6690
        %v6715 = vadd.f32 %v6662, %v6707
        %v6716 = vadd.f32 %v6663, %v6708
        %v6717 = vadd.f32 %v6664, %v6709
        %v6718 = vadd.f32 %v6665, %v6710
        %v6719 = vadd.f32 %v6666, %v6711
        %v6720 = vadd.f32 %v6667, %v6712
        %v6721 = vadd.f32 %v6668, %v6713
        %v6722 = vadd.f32 %v6669, %v6714
        %s6723 = scalar_lea.vmem %s12, 48
        %v6724 = vld [vmem:[%s6723] ss:$8 sm:$0x3]
        %v6726 = vlaneseq
        %v6727 = vshrl.u32 %v6726, 7
        %v6728 = vsub.s32 0, %v6727
        %v6729 = vrot.slane %v6724, %v6728
        %v6730 = vlaneseq
        %v6731 = vshrl.u32 %v6730, 7
        %v6732 = vsub.s32 1, %v6731
        %v6733 = vrot.slane %v6724, %v6732
        %v6736 = vmul.f32 %v5555, %v6729
        %v6737 = vmul.f32 %v5551, %v6733
        %v6738 = vmul.f32 %v5556, %v6729
        %v6739 = vmul.f32 %v5552, %v6733
        %v6740 = vmul.f32 %v5557, %v6729
        %v6741 = vmul.f32 %v5553, %v6733
        %v6742 = vmul.f32 %v5558, %v6729
        %v6743 = vmul.f32 %v5554, %v6733
        %6744 = vset.pattern.permute.xlu0 24
        %6745 = vperm.xlu0 %6744, %v5293
        %v6746 = vpop.permute.xlu0 %6745
        %6748 = vset.pattern.permute.xlu0 24
        %6749 = vperm.xlu0 %6748, %v5294
        %v6750 = vpop.permute.xlu0 %6749
        %6752 = vset.pattern.permute.xlu0 24
        %6753 = vperm.xlu0 %6752, %v5295
        %v6754 = vpop.permute.xlu0 %6753
        %6756 = vset.pattern.permute.xlu0 24
        %6757 = vperm.xlu0 %6756, %v5296
        %v6758 = vpop.permute.xlu0 %6757
        %v6760 = vmul.f32 %v6746, %v6736
        %v6761 = vmul.f32 %v6746, %v6737
        %v6762 = vmul.f32 %v6750, %v6738
        %v6763 = vmul.f32 %v6750, %v6739
        %v6764 = vmul.f32 %v6754, %v6740
        %v6765 = vmul.f32 %v6754, %v6741
        %v6766 = vmul.f32 %v6758, %v6742
        %v6767 = vmul.f32 %v6758, %v6743
        %v6768 = vadd.f32 %v6715, %v6760
        %v6769 = vadd.f32 %v6716, %v6761
        %v6770 = vadd.f32 %v6717, %v6762
        %v6771 = vadd.f32 %v6718, %v6763
        %v6772 = vadd.f32 %v6719, %v6764
        %v6773 = vadd.f32 %v6720, %v6765
        %v6774 = vadd.f32 %v6721, %v6766
        %v6775 = vadd.f32 %v6722, %v6767
        %6776 = vset.pattern.permute.xlu0 2
        %6777 = vperm.xlu0 %6776, %v439
        %v6778 = vpop.permute.xlu0 %6777
        %6780 = vset.pattern.permute.xlu0 2
        %6781 = vperm.xlu0 %6780, %v440
        %v6782 = vpop.permute.xlu0 %6781
        %6784 = vset.pattern.permute.xlu0 2
        %6785 = vperm.xlu0 %6784, %v441
        %v6786 = vpop.permute.xlu0 %6785
        %6788 = vset.pattern.permute.xlu0 2
        %6789 = vperm.xlu0 %6788, %v442
        %v6790 = vpop.permute.xlu0 %6789
        %v6792 = vadd.f32 %v6768, %v6778
        %v6793 = vadd.f32 %v6769, %v6778
        %v6794 = vadd.f32 %v6770, %v6782
        %v6795 = vadd.f32 %v6771, %v6782
        %v6796 = vadd.f32 %v6772, %v6786
        %v6797 = vadd.f32 %v6773, %v6786
        %v6798 = vadd.f32 %v6774, %v6790
        %v6799 = vadd.f32 %v6775, %v6790
        %6800 = vst [vmem:[%s433] sm:$0xff] %v6792
        %6801 = vst [vmem:[%s433 + $0x8] sm:$0xff] %v6793
        %6802 = vst [vmem:[%s433 + $0x10] sm:$0xff] %v6794
        %6803 = vst [vmem:[%s433 + $0x18] sm:$0xff] %v6795
        %6804 = vst [vmem:[%s433 + $0x20] sm:$0xff] %v6796
        %6805 = vst [vmem:[%s433 + $0x28] sm:$0xff] %v6797
        %6806 = vst [vmem:[%s433 + $0x30] sm:$0xff] %v6798
        %6807 = vst [vmem:[%s433 + $0x38] sm:$0xff] %v6799
        %s6808 = sand.u32 %s313, 1
        %s6809 = scalar_lea.sflag [#allocation3], %s6808
        %s6810 = sand.u32 %s313, 1
        %s6811 = smul.addr %s6810, 64
        %s6812 = scalar_lea.vmem [#allocation2], %s6811
        // Predicated region
        $region73: #{tpu_custom_call.1} parent=71 // pred_check
          %p6813 = pneg %p323
        $region74: #{tpu_custom_call.1} parent=71 // pred_check_branch
          %6815 = sbr.rel (%p6813) target = $region76
        $region75: #{tpu_custom_call.1} parent=71 // pred_region
          %s6817 = ssub.s32 1024, 1024
          %6818 = vsyncadd %s6809, %s6817
          %s6819 = smul.addr %s27, 8
          %s6820 = smul.addr %s6819, 128
          %s6821 = scalar_lea.hbm %s13, %s6820
          %s6822 = sshll.u32 %s6812, 4
          %s6823 = int_to_ptr.vmem [resolvable:$true] %s6822
          %6828 = dma.vmem_to_hbm [thread:$0]  %s6823, 1024, %s6821, %s6809, 256, 256, 16
        $region76: #{tpu_custom_call.1} parent=71 // pred_fallthru
          _
      $region72: #{tpu_custom_call.1} parent=5 // pred_fallthru
        _
      %p6829 = scmp.le.s32.totalorder 2, %s22
      // Predicated region
      $region77: #{tpu_custom_call.1} parent=5 // pred_check
        %p6830 = pneg %p6829
      $region78: #{tpu_custom_call.1} parent=5 // pred_check_branch
        %6832 = sbr.rel (%p6830) target = $region80
      $region79: #{tpu_custom_call.1} parent=5 // pred_region
        %s6833 = ssub.s32 %s22, 2
        // Predicated region
        $region81: #{tpu_custom_call.1} parent=79 // pred_check
          %p6834 = pneg %p329
        $region82: #{tpu_custom_call.1} parent=79 // pred_check_branch
          %6836 = sbr.rel (%p6834) target = $region84
        $region83: #{tpu_custom_call.1} parent=79 // pred_region
          %s6837 = sand.u32 %s314, 1
          %s6838 = scalar_lea.sflag [#allocation3], %s6837
          %s6839 = sand.u32 %s314, 1
          %s6840 = smul.addr %s6839, 64
          %s6841 = scalar_lea.vmem [#allocation2], %s6840
          %6842 = dma.done %s6838, 1024
        $region84: #{tpu_custom_call.1} parent=79 // pred_fallthru
          _
      $region80: #{tpu_custom_call.1} parent=5 // pred_fallthru
        _
    $region6: #{tpu_custom_call.1} parent=1 // loop_footer
      %s26 = sadd.s32 1, %s22
    $region7: #{tpu_custom_call.1} parent=1 // loop_footer_branch
      %21 = sbr.rel target = $region3
    $region8: #{tpu_custom_call.1} parent=1 // loop_exit
      _
    %6843 = vsyncpa [#allocation3], 1
    %s6844 = scalar_lea.sflag [#allocation3], 1
    %6845 = vsyncpa %s6844, 1

</llo_original>
